<compile_context>
chip_gen: v6e
topology: v6e:2x2x1
jax: 0.10.0
libtpu: 0.0.40
codegen_flags: <defaults>
</compile_context>

<pallas_src>
import numpy as np

import jax
import jax.numpy as jnp
from jax import lax
from jax.experimental import pallas as pl
from jax.experimental.pallas import tpu as pltpu

# ----------------------------- configuration -----------------------------
B_BATCH = 2
D_MODEL = 32                      # == C
HEADDIM = 8
NHEADS = D_MODEL // HEADDIM       # 4
D_STATE = 1
H_IMG = 8
W_IMG = 8
L_SEQ = H_IMG * W_IMG             # 64
L_LOW = L_SEQ // 4                # 16
D_IN_PROJ = (2 * D_MODEL + 2 * D_STATE + NHEADS) * 4       # 280 (original in_proj width)
D_EXPANDED = 4 * 2 * D_MODEL + 3 * 4 * D_MODEL              # 640 = 256 (xz) + 384 (B/C/dt bcast)
DT_MIN, DT_MAX, DT_INIT_FLOOR = 1e-3, 0.1, 1e-4
DIR_NAMES = ("HF", "HB", "VF", "VB")
FLIPPED = (False, True, False, True)


# ----------------------------- Pallas kernels -----------------------------
def _erf_approx(x):
    # Abramowitz & Stegun 7.1.26 (|err| <= 1.5e-7); only exp/abs/mul/div -> lowers in Mosaic.
    a1, a2, a3, a4, a5 = 0.254829592, -0.284496736, 1.421413741, -1.453152027, 1.061405429
    p = 0.3275911
    sgn = jnp.where(x >= 0.0, 1.0, -1.0)
    ax = jnp.abs(x)
    t = 1.0 / (1.0 + p * ax)
    poly = ((((a5 * t + a4) * t + a3) * t + a2) * t + a1) * t
    return sgn * (1.0 - poly * jnp.exp(-ax * ax))


def _inproj_kernel(x_ref, w_ref, o_ref):
    # (rows, 32) bf16 @ (32, 640) bf16 -> f32
    o_ref[...] = jnp.dot(x_ref[...], w_ref[...], preferred_element_type=jnp.float32)


def _conv2d_gelu_bn_kernel(p_ref, w_ref, g_ref, b_ref, o_ref):
    # per direction-pair: patches (M, 1152) bf16 @ block-diag weight (1152, 128) bf16
    y = jnp.dot(p_ref[...], w_ref[...], preferred_element_type=jnp.float32)
    y = 0.5 * y * (1.0 + _erf_approx(y * 0.7071067811865476))      # exact-erf GELU
    mean = jnp.mean(y, axis=0, keepdims=True)                       # training-mode BN stats
    var = jnp.mean((y - mean) ** 2, axis=0, keepdims=True)
    o_ref[...] = (y - mean) * lax.rsqrt(var + 1e-3) * g_ref[...] + b_ref[...]


def _fused_scan_kernel(zx_ref, conv_ref, pin_ref, pout_ref, swap_ref,
                       cos_ref, sin_ref, a_ref, bias_ref, dd_ref, o_ref):
    # per-batch block:
    #   zx_ref   (L, 640) f32  in_proj output (cols 256: direction-major [B|C|dt] bcast, 96 each)
    #   conv_ref (L, 256) f32  conv2d output, direction-major [x_d(32)|z_d(32)], pixel order
    #   pin/pout (4, L, L) f32 morton gather / output-reorder permutation matrices
    #   swap     (128,128) f32 even/odd-lane swap permutation (for RoPE)
    #   cos/sin  (L, 128) f32  per-channel RoPE tables (flips + pair sign folded in)
    #   a/bias/dd(1, 128) f32  per-channel A, dt_bias, D
    L, _ = conv_ref.shape
    dim = D_MODEL
    bcd_off = 4 * 2 * dim                                 # 256

    # ---- gather (morton order + HB/VB flips) via permutation matmuls on the idle MXU ----
    xs, zs, bs, cs, dts = [], [], [], [], []
    for d in range(4):
        P = pin_ref[d]                                                       # (L, L)
        xz_d = jnp.dot(P, conv_ref[:, d * 2 * dim:(d + 1) * 2 * dim],
                       preferred_element_type=jnp.float32)                   # (L, 64)
        bcd_d = jnp.dot(P, zx_ref[:, bcd_off + d * 3 * dim: bcd_off + (d + 1) * 3 * dim],
                        preferred_element_type=jnp.float32)                  # (L, 96)
        xs.append(xz_d[:, :dim]); zs.append(xz_d[:, dim:])
        bs.append(bcd_d[:, :dim]); cs.append(bcd_d[:, dim:2 * dim]); dts.append(bcd_d[:, 2 * dim:])
    x = jnp.concatenate(xs, axis=1)        # (L, 128) packed by direction
    z = jnp.concatenate(zs, axis=1)
    bb = jnp.concatenate(bs, axis=1)       # B_t broadcast over channels (d_state == 1)
    cc = jnp.concatenate(cs, axis=1)
    dtc = jnp.concatenate(dts, axis=1)     # per-channel dt (pre-softplus, head value replicated)

    # ---- RoPE: out = x*cos + swap(x)*sin_eff (swap = adjacent-lane permutation matmul) ----
    x_sw = jnp.dot(x, swap_ref[...], preferred_element_type=jnp.float32)
    x = x * cos_ref[...] + x_sw * sin_ref[...]

    # ---- state-independent SSD math, fully vectorized over (L, 128) ----
    v = dtc + bias_ref[...]
    dtp = jnp.where(v > 20.0, v, jnp.log(1.0 + jnp.exp(jnp.minimum(v, 20.0))))   # softplus
    da = jnp.exp(dtp * a_ref[...])                       # per-step decay exp(dt * A)
    u = bb * dtp * x                                     # B_t * dt_t * x_t

    # ---- associative scan of h_t = da_t*h_{t-1} + u_t:
    #      Hillis-Steele inside each (8,128) vreg (roll by 1,2,4) + 8-step cross-group carry.
    row8 = lax.broadcasted_iota(jnp.int32, (8, 4 * dim), 0)
    carry = jnp.zeros((1, 4 * dim), jnp.float32)
    h_groups = []
    for g in range(L // 8):
        Ag = da[g * 8:(g + 1) * 8, :]
        Bg = u[g * 8:(g + 1) * 8, :]
        for s in (1, 2, 4):
            a_prev = jnp.where(row8 >= s, pltpu.roll(Ag, shift=s, axis=0), 1.0)
            b_prev = jnp.where(row8 >= s, pltpu.roll(Bg, shift=s, axis=0), 0.0)
            Bg = Ag * b_prev + Bg
            Ag = Ag * a_prev
        hg = Ag * jnp.broadcast_to(carry, (8, 4 * dim)) + Bg     # h rows of this group
        h_groups.append(hg)
        carry = hg[7:8, :]
    h = jnp.concatenate(h_groups, axis=0)                        # (L, 128)

    # ---- epilogue: y = C_t*h + D*x, gated by silu(z) (reciprocal on the EUP slot) ----
    y = cc * h + dd_ref[...] * x
    sig = pl.reciprocal(1.0 + jnp.exp(-z), approx=True)
    out = y * (z * sig)

    # ---- per-direction row reorder (flip-back + inverse-morton-low folded in) so the tail
    #      kernel is one dense matmul ----
    outs = [jnp.dot(pout_ref[d], out[:, d * dim:(d + 1) * dim],
                    preferred_element_type=jnp.float32) for d in range(4)]
    o_ref[...] = jnp.concatenate(outs, axis=1)


def _tail_kernel(y_ref, w_ref, g_ref, b_ref, o_ref):
    # (16, 512) bf16 @ (512, 32) bf16 -> conv1d + out_proj (pre-composed), then LayerNorm.
    t = jnp.dot(y_ref[...], w_ref[...], preferred_element_type=jnp.float32)
    mean = jnp.mean(t, axis=-1, keepdims=True)
    var = jnp.mean((t - mean) ** 2, axis=-1, keepdims=True)
    o_ref[...] = (t - mean) * lax.rsqrt(var + 1e-6) * g_ref[...] + b_ref[...]


# ----------------------------- static (numpy) constants -----------------------------
def _spread_bits(v):
    v = v.astype(np.int64)
    v = (v | (v << 8)) & 0x00FF00FF
    v = (v | (v << 4)) & 0x0F0F0F0F
    v = (v | (v << 2)) & 0x33333333
    v = (v | (v << 1)) & 0x55555555
    return v


def morton_indices(h, w):
    rows, cols = np.meshgrid(np.arange(h), np.arange(w), indexing="ij")
    rows = rows.flatten(); cols = cols.flatten()
    sx = _spread_bits(cols); sy = _spread_bits(rows)
    m1 = (sx << 1) | sy                     # interleave_bits(col, row)
    m2 = (sy << 1) | sx                     # interleave_bits_x_last(col, row)
    s1 = np.argsort(m1); s2 = np.argsort(m2)
    return rows[s1] * w + cols[s1], rows[s2] * w + cols[s2]


def inverse_perm(p):
    inv = np.empty_like(p)
    inv[p] = np.arange(p.size)
    return inv


def build_gather_matrices(mH, mV):
    """P[d, t, pixel] = 1: scan position t <- pixel idx (HB/VB sequence flips folded in)."""
    L = mH.size
    P = np.zeros((4, L, L), np.float32)
    tabs = (mH, mH, mV, mV)
    for d in range(4):
        for t in range(L):
            src = int(tabs[d][L - 1 - t]) if FLIPPED[d] else int(tabs[d][t])
            P[d, t, src] = 1.0
    return P


def build_output_reorder_matrices(inv_H_low, inv_V_low):
    """Q[d, l, p] = 1 so that row 4r+k of the reordered scan output holds scan position
    4*g_d(r)+k, where g_d folds the HB/VB flip-back and the low-res inverse-morton gather."""
    nlow = inv_H_low.size
    L = 4 * nlow
    Q = np.zeros((4, L, L), np.float32)
    tabs = (inv_H_low, inv_H_low, inv_V_low, inv_V_low)
    for d in range(4):
        for l in range(L):
            r, k = divmod(l, 4)
            g = int(tabs[d][r])
            if FLIPPED[d]:
                g = nlow - 1 - g
            Q[d, l, 4 * g + k] = 1.0
    return Q


def build_swap_matrix(n):
    """Adjacent-lane (even/odd) swap permutation, used for the RoPE pair rotation."""
    S = np.zeros((n, n), np.float32)
    for k in range(n // 2):
        S[2 * k, 2 * k + 1] = 1.0
        S[2 * k + 1, 2 * k] = 1.0
    return S


def _build_inproj_expand_src():
    """Source column (in the original 280-wide in_proj output) for each of the 640 expanded
    columns: [x_d|z_d](256) then per-direction [B*32 | C*32 | dt per-channel*32](384)."""
    dim, ds, nh = D_MODEL, D_STATE, NHEADS
    group = 2 * dim + 2 * ds + nh            # 70; original layout per dir: z, x, B, C, dt
    src = []
    for d in range(4):
        base = d * group
        src.extend(range(base + dim, base + 2 * dim))        # x (from xBC)
        src.extend(range(base, base + dim))                   # z
    for d in range(4):
        base = d * group
        src.extend([base + 2 * dim] * dim)                    # B  -> 32 channels
        src.extend([base + 2 * dim + ds] * dim)               # C  -> 32 channels
        for hh in range(nh):
            src.extend([base + 2 * dim + 2 * ds + hh] * HEADDIM)   # dt head -> 8 channels
    return np.asarray(src, dtype=np.int64)


# ----------------------------- parameters -----------------------------
def init_params(key):
    params = {}
    keys = jax.random.split(key, 64)
    ki = iter(keys)

    def nrm(shape, scale):
        return scale * jax.random.normal(next(ki), shape, dtype=jnp.float32)

    params["in_proj_w"] = nrm((D_IN_PROJ, D_MODEL), 1.0 / np.sqrt(D_MODEL))
    for name in DIR_NAMES:
        u = jax.random.uniform(next(ki), (NHEADS,), dtype=jnp.float32)
        dt = jnp.exp(u * (np.log(DT_MAX) - np.log(DT_MIN)) + np.log(DT_MIN))
        dt = jnp.maximum(dt, DT_INIT_FLOOR)
        params[f"dt_bias_{name}"] = dt + jnp.log(-jnp.expm1(-dt))
        a = jax.random.uniform(next(ki), (NHEADS,), minval=1.0, maxval=16.0, dtype=jnp.float32)
        params[f"A_log_{name}"] = jnp.log(a)
        params[f"D_{name}"] = jnp.ones((NHEADS,), jnp.float32)
        params[f"conv2d_{name}_w"] = nrm((2 * D_MODEL, 2 * D_MODEL, 3, 3),
                                         np.sqrt(2.0 / (2 * D_MODEL * 9)))
        params[f"conv2d_{name}_gamma"] = jnp.ones((2 * D_MODEL,), jnp.float32)
        params[f"conv2d_{name}_beta"] = jnp.zeros((2 * D_MODEL,), jnp.float32)
        params[f"conv1d_{name}_w"] = nrm((D_MODEL, D_MODEL, 4), np.sqrt(2.0 / (D_MODEL * 4)))
    params["out_proj_w"] = nrm((D_MODEL, 4 * D_MODEL), 1.0 / np.sqrt(4 * D_MODEL))
    params["ln_gamma"] = jnp.ones((D_MODEL,), jnp.float32)
    params["ln_beta"] = jnp.zeros((D_MODEL,), jnp.float32)
    return params


def prepare_params(params):
    """One-time host-side re-packing of the module parameters into kernel-ready tensors."""
    kp = {}
    dim = D_MODEL

    # in_proj weight, column-permuted + expanded (scalar->channel broadcasts folded in).
    src = _build_inproj_expand_src()
    kp["w_in"] = params["in_proj_w"].T[:, src].astype(jnp.bfloat16)            # (32, 640)

    # conv2d weights as (per-pair) block-diagonal im2col matrices + BN affine.
    conv_w, conv_g, conv_b = [], [], []
    for p in range(2):
        mats, gs, bs = [], [], []
        for d in (2 * p, 2 * p + 1):
            name = DIR_NAMES[d]
            w = params[f"conv2d_{name}_w"]                                     # (64, 64, 3, 3)
            mats.append(jnp.transpose(w, (2, 3, 1, 0)).reshape(9 * 2 * dim, 2 * dim))
            gs.append(params[f"conv2d_{name}_gamma"].reshape(1, 2 * dim))
            bs.append(params[f"conv2d_{name}_beta"].reshape(1, 2 * dim))
        zpad = jnp.zeros((9 * 2 * dim, 2 * dim), jnp.float32)
        wp = jnp.concatenate([jnp.concatenate([mats[0], zpad], axis=1),
                              jnp.concatenate([zpad, mats[1]], axis=1)], axis=0)  # (1152, 128)
        conv_w.append(wp)
        conv_g.append(jnp.concatenate(gs, axis=1))
        conv_b.append(jnp.concatenate(bs, axis=1))
    kp["conv_w"] = jnp.stack(conv_w, 0).astype(jnp.bfloat16)                   # (2, 1152, 128)
    kp["conv_gamma"] = jnp.stack(conv_g, 0)                                    # (2, 1, 128)
    kp["conv_beta"] = jnp.stack(conv_b, 0)

    # per-channel SSD constants (head values replicated over HEADDIM channels).
    a_l, b_l, d_l = [], [], []
    for name in DIR_NAMES:
        a_l.append(jnp.repeat(-jnp.exp(params[f"A_log_{name}"].astype(jnp.float32)), HEADDIM))
        b_l.append(jnp.repeat(params[f"dt_bias_{name}"].astype(jnp.float32), HEADDIM))
        d_l.append(jnp.repeat(params[f"D_{name}"].astype(jnp.float32), HEADDIM))
    kp["a_ch"] = jnp.concatenate(a_l)[None, :]
    kp["bias_ch"] = jnp.concatenate(b_l)[None, :]
    kp["d_ch"] = jnp.concatenate(d_l)[None, :]

    # conv1d (stride 4) composed with out_proj (no nonlinearity between -> exact composition).
    per_dir = []
    for d, name in enumerate(DIR_NAMES):
        w1 = params[f"conv1d_{name}_w"]                                        # (32, 32, 4)
        if FLIPPED[d]:
            w1 = jnp.flip(w1, axis=2)        # sequence flip-back == reversed conv taps
        wout_d = params["out_proj_w"][:, d * dim:(d + 1) * dim]                # (32, 32)
        per_dir.append(jnp.einsum('mck,om->kco', w1, wout_d))                  # (4, 32, 32)
    pd = jnp.stack(per_dir, axis=0)                                            # (dir, k, c, o)
    kp["w_tail"] = jnp.transpose(pd, (1, 0, 2, 3)).reshape(4 * 4 * dim, dim).astype(jnp.bfloat16)
    kp["ln_gamma"] = params["ln_gamma"].reshape(1, -1)
    kp["ln_beta"] = params["ln_beta"].reshape(1, -1)
    return kp


# ----------------------------- forward -----------------------------
def _build_rope_tables(cos, sin):
    """Per-channel RoPE tables (L, 128): direction flips + pair-rotation signs folded in."""
    cs, ss = [], []
    for d in range(4):
        c = jnp.flip(cos, 0) if FLIPPED[d] else cos
        s = jnp.flip(sin, 0) if FLIPPED[d] else sin
        cs.append(jnp.repeat(c, 2, axis=1))                                   # [c0,c0,c1,c1,...]
        ss.append(jnp.stack([-s, s], axis=-1).reshape(s.shape[0], -1))        # [-s0,s0,-s1,s1,...]
    return jnp.concatenate(cs, axis=1), jnp.concatenate(ss, axis=1)


def rope_mamba_forward(x, cos, sin, kp, consts):
    Bb, C, Hh, Ww = x.shape
    L = Hh * Ww
    M = Bb * L
    C4 = 4 * C

    # ---- K1: in_proj ((M,32)@(32,640), bf16 operands, f32 accumulate) ----
    x_rows = x.reshape(Bb, C, L).transpose(0, 2, 1).reshape(M, C).astype(jnp.bfloat16)
    zx = pl.pallas_call(
        _inproj_kernel,
        grid=(2,),
        in_specs=[pl.BlockSpec((M // 2, C), lambda i: (i, 0)),
                  pl.BlockSpec((C, D_EXPANDED), lambda i: (0, 0))],
        out_specs=pl.BlockSpec((M // 2, D_EXPANDED), lambda i: (i, 0)),
        out_shape=jax.ShapeDtypeStruct((M, D_EXPANDED), jnp.float32),
        compiler_params=pltpu.CompilerParams(dimension_semantics=("parallel",)),
    )(x_rows, kp["w_in"])

    # ---- K2: conv2d(3x3) + GELU + BatchNorm, 2 directions per grid step (lane-dense out) ----
    xz = zx[:, :4 * 2 * C].astype(jnp.bfloat16).reshape(Bb, Hh, Ww, 4 * 2 * C)
    xp = jnp.pad(xz, ((0, 0), (1, 1), (1, 1), (0, 0)))
    cols = [xp[:, kh:kh + Hh, kw:kw + Ww, :] for kh in range(3) for kw in range(3)]
    pat = jnp.stack(cols, axis=3)                                             # (B,H,W,9,256)
    pat = pat.reshape(M, 9, 4, 2 * C).transpose(0, 2, 1, 3)                   # (M,4,9,64)
    pat = pat.reshape(M, 2, 2 * 9 * 2 * C).transpose(1, 0, 2)                 # (2,M,1152)
    KP = 2 * 9 * 2 * C
    conv_out = pl.pallas_call(
        _conv2d_gelu_bn_kernel,
        grid=(2,),
        in_specs=[pl.BlockSpec((None, M, KP), lambda p: (p, 0, 0)),
                  pl.BlockSpec((None, KP, 4 * C), lambda p: (p, 0, 0)),
                  pl.BlockSpec((None, 1, 4 * C), lambda p: (p, 0, 0)),
                  pl.BlockSpec((None, 1, 4 * C), lambda p: (p, 0, 0))],
        out_specs=pl.BlockSpec((M, 4 * C), lambda p: (0, p)),
        out_shape=jax.ShapeDtypeStruct((M, 4 * 2 * C), jnp.float32),
        compiler_params=pltpu.CompilerParams(dimension_semantics=("parallel",)),
    )(pat, kp["conv_w"], kp["conv_gamma"], kp["conv_beta"])

    # ---- K3: fused morton-gather + RoPE + SSD selective scan + output reorder ----
    cos_full, sin_full = _build_rope_tables(cos, sin)
    Y = pl.pallas_call(
        _fused_scan_kernel,
        grid=(Bb,),
        in_specs=[pl.BlockSpec((None, L, D_EXPANDED), lambda b: (b, 0, 0)),
                  pl.BlockSpec((None, L, 4 * 2 * C), lambda b: (b, 0, 0)),
                  pl.BlockSpec((4, L, L), lambda b: (0, 0, 0)),
                  pl.BlockSpec((4, L, L), lambda b: (0, 0, 0)),
                  pl.BlockSpec((C4, C4), lambda b: (0, 0)),
                  pl.BlockSpec((L, C4), lambda b: (0, 0)),
                  pl.BlockSpec((L, C4), lambda b: (0, 0)),
                  pl.BlockSpec((1, C4), lambda b: (0, 0)),
                  pl.BlockSpec((1, C4), lambda b: (0, 0)),
                  pl.BlockSpec((1, C4), lambda b: (0, 0))],
        out_specs=pl.BlockSpec((None, L, C4), lambda b: (b, 0, 0)),
        out_shape=jax.ShapeDtypeStruct((Bb, L, C4), jnp.float32),
        compiler_params=pltpu.CompilerParams(dimension_semantics=("parallel",)),
    )(zx.reshape(Bb, L, D_EXPANDED), conv_out.reshape(Bb, L, 4 * 2 * C),
      consts["perm_in"], consts["perm_out"], consts["swap"],
      cos_full, sin_full, kp["a_ch"], kp["bias_ch"], kp["d_ch"])

    # ---- K4: conv1d(stride4) + inverse-morton + out_proj (pre-composed) + LayerNorm ----
    Mt = Bb * (L // 4)
    yg = Y.reshape(Mt, 4 * C4).astype(jnp.bfloat16)                           # (32, 512)
    out = pl.pallas_call(
        _tail_kernel,
        grid=(2,),
        in_specs=[pl.BlockSpec((Mt // 2, 4 * C4), lambda i: (i, 0)),
                  pl.BlockSpec((4 * C4, C), lambda i: (0, 0)),
                  pl.BlockSpec((1, C), lambda i: (0, 0)),
                  pl.BlockSpec((1, C), lambda i: (0, 0))],
        out_specs=pl.BlockSpec((Mt // 2, C), lambda i: (i, 0)),
        out_shape=jax.ShapeDtypeStruct((Mt, C), jnp.float32),
        compiler_params=pltpu.CompilerParams(dimension_semantics=("parallel",)),
    )(yg, kp["w_tail"], kp["ln_gamma"], kp["ln_beta"])

    # raw contiguous reinterpretation, matching torch .view(B, C, H//2, W//2)
    return out.reshape(Bb, C, Hh // 2, Ww // 2)


# ----------------------------- main -----------------------------
if __name__ == "__main__":
    key = jax.random.PRNGKey(0)
    kx, kparam = jax.random.split(key)

    x = jax.random.normal(kx, (B_BATCH, D_MODEL, H_IMG, W_IMG), dtype=jnp.float32)
    params = init_params(kparam)
    kparams = prepare_params(params)      # one-time host-side weight packing

    # freqs_cis (complex, (L, C//2)) represented by cos/sin parts
    half = D_MODEL // 2
    inv_freq = 1.0 / (10000.0 ** (np.arange(half, dtype=np.float64) / half))
    angles = np.arange(L_SEQ, dtype=np.float64)[:, None] * inv_freq[None, :]
    cos = jnp.asarray(np.cos(angles), dtype=jnp.float32)
    sin = jnp.asarray(np.sin(angles), dtype=jnp.float32)

    # static morton / permutation tables
    mH, mV = morton_indices(H_IMG, W_IMG)
    mH_low, mV_low = morton_indices(H_IMG // 2, W_IMG // 2)
    consts = {
        "perm_in": jnp.asarray(build_gather_matrices(mH, mV)),
        "perm_out": jnp.asarray(build_output_reorder_matrices(inverse_perm(mH_low),
                                                              inverse_perm(mV_low))),
        "swap": jnp.asarray(build_swap_matrix(4 * D_MODEL)),
    }

    fwd = jax.jit(rope_mamba_forward)
    out = fwd(x, cos, sin, kparams, consts)
    out = jax.block_until_ready(out)
    assert out.shape == (B_BATCH, D_MODEL, H_IMG // 2, W_IMG // 2)
    assert bool(jnp.all(jnp.isfinite(out)))
    print("KERNEL_OK")
</pallas_src>

<mosaic_0001>
module attributes {stable_mosaic.version = 11 : i64} {
  func.func @_inproj_kernel(%arg0: i32, %arg1: memref<64x32xbf16, #tpu.memory_space<vmem>>, %arg2: memref<32x640xbf16, #tpu.memory_space<vmem>>, %arg3: memref<64x640xf32, #tpu.memory_space<vmem>>) attributes {dimension_semantics = [#tpu.dimension_semantics<parallel>], iteration_bounds = array<i64: 2>, scalar_prefetch = 0 : i64, scratch_operands = 0 : i64, tpu.core_type = #tpu.core_type<tc>, window_params = [{transform_indices = @transform_0, window_bounds = array<i64: 64, 32>}, {pipeline_mode = #tpu.pipeline_mode<synchronous>, transform_indices = @transform_1, window_bounds = array<i64: 32, 640>}, {transform_indices = @transform_2, window_bounds = array<i64: 64, 640>}]} {
    %c0 = arith.constant 0 : index
    %c0_0 = arith.constant 0 : index
    %0 = vector.load %arg1[%c0, %c0_0] : memref<64x32xbf16, #tpu.memory_space<vmem>>, vector<64x32xbf16>
    %c0_1 = arith.constant 0 : index
    %c0_2 = arith.constant 0 : index
    %1 = vector.load %arg2[%c0_1, %c0_2] : memref<32x640xbf16, #tpu.memory_space<vmem>>, vector<32x640xbf16>
    %cst = arith.constant dense<0.000000e+00> : vector<64x640xf32>
    %2 = tpu.matmul %0, %1, %cst {dimension_numbers = #tpu.dot_dimension_numbers<[1], [0], [0], [1], [0, 0, 1, 1], [], []>} : vector<64x32xbf16>, vector<32x640xbf16>, vector<64x640xf32> -> vector<64x640xf32>
    %c0_3 = arith.constant 0 : index
    %c0_4 = arith.constant 0 : index
    %3 = vector.load %arg3[%c0_3, %c0_4] : memref<64x640xf32, #tpu.memory_space<vmem>>, vector<64x640xf32>
    tpu.vector_store %arg3[%c0_3, %c0_4], %2 {strides = array<i32>} : memref<64x640xf32, #tpu.memory_space<vmem>>, vector<64x640xf32>,
    return
  }
  func.func @transform_0(%arg0: i32) -> (i32, i32) {
    %c0_i32 = arith.constant 0 : i32
    %c0_i32_0 = arith.constant 0 : i32
    return %arg0, %c0_i32 : i32, i32
  }
  func.func @transform_1(%arg0: i32) -> (i32, i32) {
    %c0_i32 = arith.constant 0 : i32
    %c0_i32_0 = arith.constant 0 : i32
    %c0_i32_1 = arith.constant 0 : i32
    return %c0_i32, %c0_i32_0 : i32, i32
  }
  func.func @transform_2(%arg0: i32) -> (i32, i32) {
    %c0_i32 = arith.constant 0 : i32
    %c0_i32_0 = arith.constant 0 : i32
    return %arg0, %c0_i32 : i32, i32
  }
}

module attributes {stable_mosaic.version = 11 : i64} {
  func.func @_conv2d_gelu_bn_kernel(%arg0: i32, %arg1: memref<1x128x1152xbf16, #tpu.memory_space<vmem>>, %arg2: memref<1x1152x128xbf16, #tpu.memory_space<vmem>>, %arg3: memref<1x1x128xf32, #tpu.memory_space<vmem>>, %arg4: memref<1x1x128xf32, #tpu.memory_space<vmem>>, %arg5: memref<128x128xf32, #tpu.memory_space<vmem>>) attributes {dimension_semantics = [#tpu.dimension_semantics<parallel>], iteration_bounds = array<i64: 2>, scalar_prefetch = 0 : i64, scratch_operands = 0 : i64, tpu.core_type = #tpu.core_type<tc>, window_params = [{transform_indices = @transform_0, window_bounds = array<i64: 1, 128, 1152>}, {transform_indices = @transform_1, window_bounds = array<i64: 1, 1152, 128>}, {transform_indices = @transform_2, window_bounds = array<i64: 1, 1, 128>}, {transform_indices = @transform_3, window_bounds = array<i64: 1, 1, 128>}, {transform_indices = @transform_4, window_bounds = array<i64: 128, 128>}]} {
    %c0 = arith.constant 0 : index
    %c0_0 = arith.constant 0 : index
    %c0_1 = arith.constant 0 : index
    %0 = vector.load %arg1[%c0, %c0_0, %c0_1] : memref<1x128x1152xbf16, #tpu.memory_space<vmem>>, vector<1x128x1152xbf16>
    %1 = vector.shape_cast %0 : vector<1x128x1152xbf16> to vector<128x1152xbf16>
    %c0_2 = arith.constant 0 : index
    %c0_3 = arith.constant 0 : index
    %c0_4 = arith.constant 0 : index
    %2 = vector.load %arg2[%c0_2, %c0_3, %c0_4] : memref<1x1152x128xbf16, #tpu.memory_space<vmem>>, vector<1x1152x128xbf16>
    %3 = vector.shape_cast %2 : vector<1x1152x128xbf16> to vector<1152x128xbf16>
    %cst = arith.constant dense<0.000000e+00> : vector<128x128xf32>
    %4 = tpu.matmul %1, %3, %cst {dimension_numbers = #tpu.dot_dimension_numbers<[1], [0], [0], [1], [0, 0, 1, 1], [], []>} : vector<128x1152xbf16>, vector<1152x128xbf16>, vector<128x128xf32> -> vector<128x128xf32>
    %cst_5 = arith.constant 5.000000e-01 : f32
    %5 = vector.broadcast %cst_5 : f32 to vector<128x128xf32>
    %6 = arith.mulf %5, %4 : vector<128x128xf32>
    %cst_6 = arith.constant 0.707106769 : f32
    %7 = vector.broadcast %cst_6 : f32 to vector<128x128xf32>
    %8 = arith.mulf %4, %7 : vector<128x128xf32>
    %cst_7 = arith.constant 0.000000e+00 : f32
    %9 = vector.broadcast %cst_7 : f32 to vector<128x128xf32>
    %10 = arith.cmpf oge, %8, %9 : vector<128x128xf32>
    %cst_8 = arith.constant 1.000000e+00 : f32
    %cst_9 = arith.constant -1.000000e+00 : f32
    %11 = vector.broadcast %cst_8 : f32 to vector<128x128xf32>
    %12 = vector.broadcast %cst_9 : f32 to vector<128x128xf32>
    %13 = arith.select %10, %11, %12 : vector<128x128xi1>, vector<128x128xf32>
    %14 = math.absf %8 : vector<128x128xf32>
    %cst_10 = arith.constant 0.327591091 : f32
    %15 = vector.broadcast %cst_10 : f32 to vector<128x128xf32>
    %16 = arith.mulf %15, %14 : vector<128x128xf32>
    %cst_11 = arith.constant 1.000000e+00 : f32
    %17 = vector.broadcast %cst_11 : f32 to vector<128x128xf32>
    %18 = arith.addf %17, %16 : vector<128x128xf32>
    %cst_12 = arith.constant 1.000000e+00 : f32
    %19 = vector.broadcast %cst_12 : f32 to vector<128x128xf32>
    %20 = arith.divf %19, %18 : vector<128x128xf32>
    %cst_13 = arith.constant 1.06140542 : f32
    %21 = vector.broadcast %cst_13 : f32 to vector<128x128xf32>
    %22 = arith.mulf %21, %20 : vector<128x128xf32>
    %cst_14 = arith.constant -1.45315206 : f32
    %23 = vector.broadcast %cst_14 : f32 to vector<128x128xf32>
    %24 = arith.addf %22, %23 : vector<128x128xf32>
    %25 = arith.mulf %24, %20 : vector<128x128xf32>
    %cst_15 = arith.constant 1.42141378 : f32
    %26 = vector.broadcast %cst_15 : f32 to vector<128x128xf32>
    %27 = arith.addf %25, %26 : vector<128x128xf32>
    %28 = arith.mulf %27, %20 : vector<128x128xf32>
    %cst_16 = arith.constant -0.284496725 : f32
    %29 = vector.broadcast %cst_16 : f32 to vector<128x128xf32>
    %30 = arith.addf %28, %29 : vector<128x128xf32>
    %31 = arith.mulf %30, %20 : vector<128x128xf32>
    %cst_17 = arith.constant 0.254829586 : f32
    %32 = vector.broadcast %cst_17 : f32 to vector<128x128xf32>
    %33 = arith.addf %31, %32 : vector<128x128xf32>
    %34 = arith.mulf %33, %20 : vector<128x128xf32>
    %cst_18 = arith.constant 0.000000e+00 : f32
    %35 = vector.broadcast %cst_18 : f32 to vector<128x128xf32>
    %36 = arith.subf %35, %14 : vector<128x128xf32>
    %37 = arith.mulf %36, %14 : vector<128x128xf32>
    %38 = math.exp %37 : vector<128x128xf32>
    %39 = arith.mulf %34, %38 : vector<128x128xf32>
    %cst_19 = arith.constant 1.000000e+00 : f32
    %40 = vector.broadcast %cst_19 : f32 to vector<128x128xf32>
    %41 = arith.subf %40, %39 : vector<128x128xf32>
    %42 = arith.mulf %13, %41 : vector<128x128xf32>
    %cst_20 = arith.constant 1.000000e+00 : f32
    %43 = vector.broadcast %cst_20 : f32 to vector<128x128xf32>
    %44 = arith.addf %43, %42 : vector<128x128xf32>
    %45 = arith.mulf %6, %44 : vector<128x128xf32>
    %cst_21 = arith.constant dense<0.000000e+00> : vector<128xf32>
    %46 = vector.multi_reduction <add>, %45, %cst_21 [0] : vector<128x128xf32> to vector<128xf32>
    %47 = vector.shape_cast %46 : vector<128xf32> to vector<1x128xf32>
    %cst_22 = arith.constant 1.280000e+02 : f32
    %48 = vector.broadcast %cst_22 : f32 to vector<1x128xf32>
    %49 = arith.divf %47, %48 : vector<1x128xf32>
    %50 = vector.broadcast %49 : vector<1x128xf32> to vector<128x128xf32>
    %51 = arith.subf %45, %50 : vector<128x128xf32>
    %52 = arith.mulf %51, %51 : vector<128x128xf32>
    %cst_23 = arith.constant dense<0.000000e+00> : vector<128xf32>
    %53 = vector.multi_reduction <add>, %52, %cst_23 [0] : vector<128x128xf32> to vector<128xf32>
    %54 = vector.shape_cast %53 : vector<128xf32> to vector<1x128xf32>
    %cst_24 = arith.constant 1.280000e+02 : f32
    %55 = vector.broadcast %cst_24 : f32 to vector<1x128xf32>
    %56 = arith.divf %54, %55 : vector<1x128xf32>
    %57 = vector.broadcast %49 : vector<1x128xf32> to vector<128x128xf32>
    %58 = arith.subf %45, %57 : vector<128x128xf32>
    %cst_25 = arith.constant 1.000000e-03 : f32
    %59 = vector.broadcast %cst_25 : f32 to vector<1x128xf32>
    %60 = arith.addf %56, %59 : vector<1x128xf32>
    %61 = math.rsqrt %60 : vector<1x128xf32>
    %62 = vector.broadcast %61 : vector<1x128xf32> to vector<128x128xf32>
    %63 = arith.mulf %58, %62 : vector<128x128xf32>
    %c0_26 = arith.constant 0 : index
    %c0_27 = arith.constant 0 : index
    %c0_28 = arith.constant 0 : index
    %64 = vector.load %arg3[%c0_26, %c0_27, %c0_28] : memref<1x1x128xf32, #tpu.memory_space<vmem>>, vector<1x1x128xf32>
    %65 = vector.shape_cast %64 : vector<1x1x128xf32> to vector<1x128xf32>
    %66 = vector.broadcast %65 : vector<1x128xf32> to vector<128x128xf32>
    %67 = arith.mulf %63, %66 : vector<128x128xf32>
    %c0_29 = arith.constant 0 : index
    %c0_30 = arith.constant 0 : index
    %c0_31 = arith.constant 0 : index
    %68 = vector.load %arg4[%c0_29, %c0_30, %c0_31] : memref<1x1x128xf32, #tpu.memory_space<vmem>>, vector<1x1x128xf32>
    %69 = vector.shape_cast %68 : vector<1x1x128xf32> to vector<1x128xf32>
    %70 = vector.broadcast %69 : vector<1x128xf32> to vector<128x128xf32>
    %71 = arith.addf %67, %70 : vector<128x128xf32>
    %c0_32 = arith.constant 0 : index
    %c0_33 = arith.constant 0 : index
    %72 = vector.load %arg5[%c0_32, %c0_33] : memref<128x128xf32, #tpu.memory_space<vmem>>, vector<128x128xf32>
    tpu.vector_store %arg5[%c0_32, %c0_33], %71 {strides = array<i32>} : memref<128x128xf32, #tpu.memory_space<vmem>>, vector<128x128xf32>,
    return
  }
  func.func @transform_0(%arg0: i32) -> (i32, i32, i32) {
    %c0_i32 = arith.constant 0 : i32
    %c0_i32_0 = arith.constant 0 : i32
    %c0_i32_1 = arith.constant 0 : i32
    return %arg0, %c0_i32, %c0_i32_0 : i32, i32, i32
  }
  func.func @transform_1(%arg0: i32) -> (i32, i32, i32) {
    %c0_i32 = arith.constant 0 : i32
    %c0_i32_0 = arith.constant 0 : i32
    %c0_i32_1 = arith.constant 0 : i32
    return %arg0, %c0_i32, %c0_i32_0 : i32, i32, i32
  }
  func.func @transform_2(%arg0: i32) -> (i32, i32, i32) {
    %c0_i32 = arith.constant 0 : i32
    %c0_i32_0 = arith.constant 0 : i32
    %c0_i32_1 = arith.constant 0 : i32
    return %arg0, %c0_i32, %c0_i32_0 : i32, i32, i32
  }
  func.func @transform_3(%arg0: i32) -> (i32, i32, i32) {
    %c0_i32 = arith.constant 0 : i32
    %c0_i32_0 = arith.constant 0 : i32
    %c0_i32_1 = arith.constant 0 : i32
    return %arg0, %c0_i32, %c0_i32_0 : i32, i32, i32
  }
  func.func @transform_4(%arg0: i32) -> (i32, i32) {
    %c0_i32 = arith.constant 0 : i32
    %c0_i32_0 = arith.constant 0 : i32
    return %c0_i32, %arg0 : i32, i32
  }
}

module attributes {stable_mosaic.version = 11 : i64} {
  func.func @_fused_scan_kernel(%arg0: i32, %arg1: memref<1x64x640xf32, #tpu.memory_space<vmem>>, %arg2: memref<1x64x256xf32, #tpu.memory_space<vmem>>, %arg3: memref<4x64x64xf32, #tpu.memory_space<vmem>>, %arg4: memref<4x64x64xf32, #tpu.memory_space<vmem>>, %arg5: memref<128x128xf32, #tpu.memory_space<vmem>>, %arg6: memref<64x128xf32, #tpu.memory_space<vmem>>, %arg7: memref<64x128xf32, #tpu.memory_space<vmem>>, %arg8: memref<1x128xf32, #tpu.memory_space<vmem>>, %arg9: memref<1x128xf32, #tpu.memory_space<vmem>>, %arg10: memref<1x128xf32, #tpu.memory_space<vmem>>, %arg11: memref<1x64x128xf32, #tpu.memory_space<vmem>>) attributes {dimension_semantics = [#tpu.dimension_semantics<parallel>], iteration_bounds = array<i64: 2>, scalar_prefetch = 0 : i64, scratch_operands = 0 : i64, tpu.core_type = #tpu.core_type<tc>, window_params = [{transform_indices = @transform_0, window_bounds = array<i64: 1, 64, 640>}, {transform_indices = @transform_1, window_bounds = array<i64: 1, 64, 256>}, {pipeline_mode = #tpu.pipeline_mode<synchronous>, transform_indices = @transform_2, window_bounds = array<i64: 4, 64, 64>}, {pipeline_mode = #tpu.pipeline_mode<synchronous>, transform_indices = @transform_3, window_bounds = array<i64: 4, 64, 64>}, {pipeline_mode = #tpu.pipeline_mode<synchronous>, transform_indices = @transform_4, window_bounds = array<i64: 128, 128>}, {pipeline_mode = #tpu.pipeline_mode<synchronous>, transform_indices = @transform_5, window_bounds = array<i64: 64, 128>}, {pipeline_mode = #tpu.pipeline_mode<synchronous>, transform_indices = @transform_6, window_bounds = array<i64: 64, 128>}, {pipeline_mode = #tpu.pipeline_mode<synchronous>, transform_indices = @transform_7, window_bounds = array<i64: 1, 128>}, {pipeline_mode = #tpu.pipeline_mode<synchronous>, transform_indices = @transform_8, window_bounds = array<i64: 1, 128>}, {pipeline_mode = #tpu.pipeline_mode<synchronous>, transform_indices = @transform_9, window_bounds = array<i64: 1, 128>}, {transform_indices = @transform_10, window_bounds = array<i64: 1, 64, 128>}]} {
    %c0 = arith.constant 0 : index
    %c0_0 = arith.constant 0 : index
    %c0_1 = arith.constant 0 : index
    %0 = vector.load %arg3[%c0, %c0_0, %c0_1] : memref<4x64x64xf32, #tpu.memory_space<vmem>>, vector<1x64x64xf32>
    %1 = vector.shape_cast %0 : vector<1x64x64xf32> to vector<64x64xf32>
    %c0_2 = arith.constant 0 : index
    %c0_3 = arith.constant 0 : index
    %c0_4 = arith.constant 0 : index
    %2 = vector.load %arg2[%c0_2, %c0_3, %c0_4] : memref<1x64x256xf32, #tpu.memory_space<vmem>>, vector<1x64x64xf32>
    %3 = vector.shape_cast %2 : vector<1x64x64xf32> to vector<64x64xf32>
    %cst = arith.constant dense<0.000000e+00> : vector<64x64xf32>
    %4 = tpu.matmul %1, %3, %cst {dimension_numbers = #tpu.dot_dimension_numbers<[1], [0], [0], [1], [0, 0, 1, 1], [], []>} : vector<64x64xf32>, vector<64x64xf32>, vector<64x64xf32> -> vector<64x64xf32>
    %c0_5 = arith.constant 0 : index
    %c0_6 = arith.constant 0 : index
    %c256 = arith.constant 256 : index
    %5 = vector.load %arg1[%c0_5, %c0_6, %c256] : memref<1x64x640xf32, #tpu.memory_space<vmem>>, vector<1x64x96xf32>
    %6 = vector.shape_cast %5 : vector<1x64x96xf32> to vector<64x96xf32>
    %cst_7 = arith.constant dense<0.000000e+00> : vector<64x96xf32>
    %7 = tpu.matmul %1, %6, %cst_7 {dimension_numbers = #tpu.dot_dimension_numbers<[1], [0], [0], [1], [0, 0, 1, 1], [], []>} : vector<64x64xf32>, vector<64x96xf32>, vector<64x96xf32> -> vector<64x96xf32>
    %8 = vector.extract_strided_slice %4 {offsets = [0, 0], sizes = [64, 32], strides = [1, 1]} : vector<64x64xf32> to vector<64x32xf32>
    %9 = vector.extract_strided_slice %4 {offsets = [0, 32], sizes = [64, 32], strides = [1, 1]} : vector<64x64xf32> to vector<64x32xf32>
    %10 = vector.extract_strided_slice %7 {offsets = [0, 0], sizes = [64, 32], strides = [1, 1]} : vector<64x96xf32> to vector<64x32xf32>
    %11 = vector.extract_strided_slice %7 {offsets = [0, 32], sizes = [64, 32], strides = [1, 1]} : vector<64x96xf32> to vector<64x32xf32>
    %12 = vector.extract_strided_slice %7 {offsets = [0, 64], sizes = [64, 32], strides = [1, 1]} : vector<64x96xf32> to vector<64x32xf32>
    %c1 = arith.constant 1 : index
    %c0_8 = arith.constant 0 : index
    %c0_9 = arith.constant 0 : index
    %13 = vector.load %arg3[%c1, %c0_8, %c0_9] : memref<4x64x64xf32, #tpu.memory_space<vmem>>, vector<1x64x64xf32>
    %14 = vector.shape_cast %13 : vector<1x64x64xf32> to vector<64x64xf32>
    %c0_10 = arith.constant 0 : index
    %c0_11 = arith.constant 0 : index
    %c64 = arith.constant 64 : index
    %15 = vector.load %arg2[%c0_10, %c0_11, %c64] : memref<1x64x256xf32, #tpu.memory_space<vmem>>, vector<1x64x64xf32>
    %16 = vector.shape_cast %15 : vector<1x64x64xf32> to vector<64x64xf32>
    %cst_12 = arith.constant dense<0.000000e+00> : vector<64x64xf32>
    %17 = tpu.matmul %14, %16, %cst_12 {dimension_numbers = #tpu.dot_dimension_numbers<[1], [0], [0], [1], [0, 0, 1, 1], [], []>} : vector<64x64xf32>, vector<64x64xf32>, vector<64x64xf32> -> vector<64x64xf32>
    %c0_13 = arith.constant 0 : index
    %c0_14 = arith.constant 0 : index
    %c352 = arith.constant 352 : index
    %18 = vector.load %arg1[%c0_13, %c0_14, %c352] : memref<1x64x640xf32, #tpu.memory_space<vmem>>, vector<1x64x96xf32>
    %19 = vector.shape_cast %18 : vector<1x64x96xf32> to vector<64x96xf32>
    %cst_15 = arith.constant dense<0.000000e+00> : vector<64x96xf32>
    %20 = tpu.matmul %14, %19, %cst_15 {dimension_numbers = #tpu.dot_dimension_numbers<[1], [0], [0], [1], [0, 0, 1, 1], [], []>} : vector<64x64xf32>, vector<64x96xf32>, vector<64x96xf32> -> vector<64x96xf32>
    %21 = vector.extract_strided_slice %17 {offsets = [0, 0], sizes = [64, 32], strides = [1, 1]} : vector<64x64xf32> to vector<64x32xf32>
    %22 = vector.extract_strided_slice %17 {offsets = [0, 32], sizes = [64, 32], strides = [1, 1]} : vector<64x64xf32> to vector<64x32xf32>
    %23 = vector.extract_strided_slice %20 {offsets = [0, 0], sizes = [64, 32], strides = [1, 1]} : vector<64x96xf32> to vector<64x32xf32>
    %24 = vector.extract_strided_slice %20 {offsets = [0, 32], sizes = [64, 32], strides = [1, 1]} : vector<64x96xf32> to vector<64x32xf32>
    %25 = vector.extract_strided_slice %20 {offsets = [0, 64], sizes = [64, 32], strides = [1, 1]} : vector<64x96xf32> to vector<64x32xf32>
    %c2 = arith.constant 2 : index
    %c0_16 = arith.constant 0 : index
    %c0_17 = arith.constant 0 : index
    %26 = vector.load %arg3[%c2, %c0_16, %c0_17] : memref<4x64x64xf32, #tpu.memory_space<vmem>>, vector<1x64x64xf32>
    %27 = vector.shape_cast %26 : vector<1x64x64xf32> to vector<64x64xf32>
    %c0_18 = arith.constant 0 : index
    %c0_19 = arith.constant 0 : index
    %c128 = arith.constant 128 : index
    %28 = vector.load %arg2[%c0_18, %c0_19, %c128] : memref<1x64x256xf32, #tpu.memory_space<vmem>>, vector<1x64x64xf32>
    %29 = vector.shape_cast %28 : vector<1x64x64xf32> to vector<64x64xf32>
    %cst_20 = arith.constant dense<0.000000e+00> : vector<64x64xf32>
    %30 = tpu.matmul %27, %29, %cst_20 {dimension_numbers = #tpu.dot_dimension_numbers<[1], [0], [0], [1], [0, 0, 1, 1], [], []>} : vector<64x64xf32>, vector<64x64xf32>, vector<64x64xf32> -> vector<64x64xf32>
    %c0_21 = arith.constant 0 : index
    %c0_22 = arith.constant 0 : index
    %c448 = arith.constant 448 : index
    %31 = vector.load %arg1[%c0_21, %c0_22, %c448] : memref<1x64x640xf32, #tpu.memory_space<vmem>>, vector<1x64x96xf32>
    %32 = vector.shape_cast %31 : vector<1x64x96xf32> to vector<64x96xf32>
    %cst_23 = arith.constant dense<0.000000e+00> : vector<64x96xf32>
    %33 = tpu.matmul %27, %32, %cst_23 {dimension_numbers = #tpu.dot_dimension_numbers<[1], [0], [0], [1], [0, 0, 1, 1], [], []>} : vector<64x64xf32>, vector<64x96xf32>, vector<64x96xf32> -> vector<64x96xf32>
    %34 = vector.extract_strided_slice %30 {offsets = [0, 0], sizes = [64, 32], strides = [1, 1]} : vector<64x64xf32> to vector<64x32xf32>
    %35 = vector.extract_strided_slice %30 {offsets = [0, 32], sizes = [64, 32], strides = [1, 1]} : vector<64x64xf32> to vector<64x32xf32>
    %36 = vector.extract_strided_slice %33 {offsets = [0, 0], sizes = [64, 32], strides = [1, 1]} : vector<64x96xf32> to vector<64x32xf32>
    %37 = vector.extract_strided_slice %33 {offsets = [0, 32], sizes = [64, 32], strides = [1, 1]} : vector<64x96xf32> to vector<64x32xf32>
    %38 = vector.extract_strided_slice %33 {offsets = [0, 64], sizes = [64, 32], strides = [1, 1]} : vector<64x96xf32> to vector<64x32xf32>
    %c3 = arith.constant 3 : index
    %c0_24 = arith.constant 0 : index
    %c0_25 = arith.constant 0 : index
    %39 = vector.load %arg3[%c3, %c0_24, %c0_25] : memref<4x64x64xf32, #tpu.memory_space<vmem>>, vector<1x64x64xf32>
    %40 = vector.shape_cast %39 : vector<1x64x64xf32> to vector<64x64xf32>
    %c0_26 = arith.constant 0 : index
    %c0_27 = arith.constant 0 : index
    %c192 = arith.constant 192 : index
    %41 = vector.load %arg2[%c0_26, %c0_27, %c192] : memref<1x64x256xf32, #tpu.memory_space<vmem>>, vector<1x64x64xf32>
    %42 = vector.shape_cast %41 : vector<1x64x64xf32> to vector<64x64xf32>
    %cst_28 = arith.constant dense<0.000000e+00> : vector<64x64xf32>
    %43 = tpu.matmul %40, %42, %cst_28 {dimension_numbers = #tpu.dot_dimension_numbers<[1], [0], [0], [1], [0, 0, 1, 1], [], []>} : vector<64x64xf32>, vector<64x64xf32>, vector<64x64xf32> -> vector<64x64xf32>
    %c0_29 = arith.constant 0 : index
    %c0_30 = arith.constant 0 : index
    %c544 = arith.constant 544 : index
    %44 = vector.load %arg1[%c0_29, %c0_30, %c544] : memref<1x64x640xf32, #tpu.memory_space<vmem>>, vector<1x64x96xf32>
    %45 = vector.shape_cast %44 : vector<1x64x96xf32> to vector<64x96xf32>
    %cst_31 = arith.constant dense<0.000000e+00> : vector<64x96xf32>
    %46 = tpu.matmul %40, %45, %cst_31 {dimension_numbers = #tpu.dot_dimension_numbers<[1], [0], [0], [1], [0, 0, 1, 1], [], []>} : vector<64x64xf32>, vector<64x96xf32>, vector<64x96xf32> -> vector<64x96xf32>
    %47 = vector.extract_strided_slice %43 {offsets = [0, 0], sizes = [64, 32], strides = [1, 1]} : vector<64x64xf32> to vector<64x32xf32>
    %48 = vector.extract_strided_slice %43 {offsets = [0, 32], sizes = [64, 32], strides = [1, 1]} : vector<64x64xf32> to vector<64x32xf32>
    %49 = vector.extract_strided_slice %46 {offsets = [0, 0], sizes = [64, 32], strides = [1, 1]} : vector<64x96xf32> to vector<64x32xf32>
    %50 = vector.extract_strided_slice %46 {offsets = [0, 32], sizes = [64, 32], strides = [1, 1]} : vector<64x96xf32> to vector<64x32xf32>
    %51 = vector.extract_strided_slice %46 {offsets = [0, 64], sizes = [64, 32], strides = [1, 1]} : vector<64x96xf32> to vector<64x32xf32>
    %52 = tpu.concatenate %8, %21, %34, %47 in 1 : vector<64x32xf32>, vector<64x32xf32>, vector<64x32xf32>, vector<64x32xf32> -> vector<64x128xf32>
    %53 = tpu.concatenate %9, %22, %35, %48 in 1 : vector<64x32xf32>, vector<64x32xf32>, vector<64x32xf32>, vector<64x32xf32> -> vector<64x128xf32>
    %54 = tpu.concatenate %10, %23, %36, %49 in 1 : vector<64x32xf32>, vector<64x32xf32>, vector<64x32xf32>, vector<64x32xf32> -> vector<64x128xf32>
    %55 = tpu.concatenate %11, %24, %37, %50 in 1 : vector<64x32xf32>, vector<64x32xf32>, vector<64x32xf32>, vector<64x32xf32> -> vector<64x128xf32>
    %56 = tpu.concatenate %12, %25, %38, %51 in 1 : vector<64x32xf32>, vector<64x32xf32>, vector<64x32xf32>, vector<64x32xf32> -> vector<64x128xf32>
    %c0_32 = arith.constant 0 : index
    %c0_33 = arith.constant 0 : index
    %57 = vector.load %arg5[%c0_32, %c0_33] : memref<128x128xf32, #tpu.memory_space<vmem>>, vector<128x128xf32>
    %cst_34 = arith.constant dense<0.000000e+00> : vector<64x128xf32>
    %58 = tpu.matmul %52, %57, %cst_34 {dimension_numbers = #tpu.dot_dimension_numbers<[1], [0], [0], [1], [0, 0, 1, 1], [], []>} : vector<64x128xf32>, vector<128x128xf32>, vector<64x128xf32> -> vector<64x128xf32>
    %c0_35 = arith.constant 0 : index
    %c0_36 = arith.constant 0 : index
    %59 = vector.load %arg6[%c0_35, %c0_36] : memref<64x128xf32, #tpu.memory_space<vmem>>, vector<64x128xf32>
    %60 = arith.mulf %52, %59 : vector<64x128xf32>
    %c0_37 = arith.constant 0 : index
    %c0_38 = arith.constant 0 : index
    %61 = vector.load %arg7[%c0_37, %c0_38] : memref<64x128xf32, #tpu.memory_space<vmem>>, vector<64x128xf32>
    %62 = arith.mulf %58, %61 : vector<64x128xf32>
    %63 = arith.addf %60, %62 : vector<64x128xf32>
    %c0_39 = arith.constant 0 : index
    %c0_40 = arith.constant 0 : index
    %64 = vector.load %arg9[%c0_39, %c0_40] : memref<1x128xf32, #tpu.memory_space<vmem>>, vector<1x128xf32>
    %65 = vector.broadcast %64 : vector<1x128xf32> to vector<64x128xf32>
    %66 = arith.addf %56, %65 : vector<64x128xf32>
    %cst_41 = arith.constant 2.000000e+01 : f32
    %67 = vector.broadcast %cst_41 : f32 to vector<64x128xf32>
    %68 = arith.cmpf ogt, %66, %67 : vector<64x128xf32>
    %cst_42 = arith.constant 2.000000e+01 : f32
    %69 = vector.broadcast %cst_42 : f32 to vector<64x128xf32>
    %70 = arith.minimumf %66, %69 : vector<64x128xf32>
    %71 = math.exp %70 : vector<64x128xf32>
    %cst_43 = arith.constant 1.000000e+00 : f32
    %72 = vector.broadcast %cst_43 : f32 to vector<64x128xf32>
    %73 = arith.addf %72, %71 : vector<64x128xf32>
    %74 = math.log %73 : vector<64x128xf32>
    %75 = arith.select %68, %66, %74 : vector<64x128xi1>, vector<64x128xf32>
    %c0_44 = arith.constant 0 : index
    %c0_45 = arith.constant 0 : index
    %76 = vector.load %arg8[%c0_44, %c0_45] : memref<1x128xf32, #tpu.memory_space<vmem>>, vector<1x128xf32>
    %77 = vector.broadcast %76 : vector<1x128xf32> to vector<64x128xf32>
    %78 = arith.mulf %75, %77 : vector<64x128xf32>
    %79 = math.exp %78 : vector<64x128xf32>
    %80 = arith.mulf %54, %75 : vector<64x128xf32>
    %81 = arith.mulf %80, %63 : vector<64x128xf32>
    %82 = tpu.iota {dimensions = array<i32: 0>} : vector<8x128xi32>
    %cst_46 = arith.constant 0.000000e+00 : f32
    %83 = vector.broadcast %cst_46 : f32 to vector<1x128xf32>
    %84 = vector.extract_strided_slice %79 {offsets = [0, 0], sizes = [8, 128], strides = [1, 1]} : vector<64x128xf32> to vector<8x128xf32>
    %85 = vector.extract_strided_slice %81 {offsets = [0, 0], sizes = [8, 128], strides = [1, 1]} : vector<64x128xf32> to vector<8x128xf32>
    %c1_i32 = arith.constant 1 : i32
    %86 = vector.broadcast %c1_i32 : i32 to vector<8x128xi32>
    %87 = arith.cmpi sge, %82, %86 : vector<8x128xi32>
    %c1_i32_47 = arith.constant 1 : i32
    %88 = tpu.dynamic_rotate %84 by %c1_i32_47 dim 0 : vector<8x128xf32>, i32 -> vector<8x128xf32>
    %cst_48 = arith.constant 1.000000e+00 : f32
    %89 = vector.broadcast %cst_48 : f32 to vector<8x128xf32>
    %90 = arith.select %87, %88, %89 : vector<8x128xi1>, vector<8x128xf32>
    %c1_i32_49 = arith.constant 1 : i32
    %91 = vector.broadcast %c1_i32_49 : i32 to vector<8x128xi32>
    %92 = arith.cmpi sge, %82, %91 : vector<8x128xi32>
    %c1_i32_50 = arith.constant 1 : i32
    %93 = tpu.dynamic_rotate %85 by %c1_i32_50 dim 0 : vector<8x128xf32>, i32 -> vector<8x128xf32>
    %cst_51 = arith.constant 0.000000e+00 : f32
    %94 = vector.broadcast %cst_51 : f32 to vector<8x128xf32>
    %95 = arith.select %92, %93, %94 : vector<8x128xi1>, vector<8x128xf32>
    %96 = arith.mulf %84, %95 : vector<8x128xf32>
    %97 = arith.addf %96, %85 : vector<8x128xf32>
    %98 = arith.mulf %84, %90 : vector<8x128xf32>
    %c2_i32 = arith.constant 2 : i32
    %99 = vector.broadcast %c2_i32 : i32 to vector<8x128xi32>
    %100 = arith.cmpi sge, %82, %99 : vector<8x128xi32>
    %c2_i32_52 = arith.constant 2 : i32
    %101 = tpu.dynamic_rotate %98 by %c2_i32_52 dim 0 : vector<8x128xf32>, i32 -> vector<8x128xf32>
    %cst_53 = arith.constant 1.000000e+00 : f32
    %102 = vector.broadcast %cst_53 : f32 to vector<8x128xf32>
    %103 = arith.select %100, %101, %102 : vector<8x128xi1>, vector<8x128xf32>
    %c2_i32_54 = arith.constant 2 : i32
    %104 = vector.broadcast %c2_i32_54 : i32 to vector<8x128xi32>
    %105 = arith.cmpi sge, %82, %104 : vector<8x128xi32>
    %c2_i32_55 = arith.constant 2 : i32
    %106 = tpu.dynamic_rotate %97 by %c2_i32_55 dim 0 : vector<8x128xf32>, i32 -> vector<8x128xf32>
    %cst_56 = arith.constant 0.000000e+00 : f32
    %107 = vector.broadcast %cst_56 : f32 to vector<8x128xf32>
    %108 = arith.select %105, %106, %107 : vector<8x128xi1>, vector<8x128xf32>
    %109 = arith.mulf %98, %108 : vector<8x128xf32>
    %110 = arith.addf %109, %97 : vector<8x128xf32>
    %111 = arith.mulf %98, %103 : vector<8x128xf32>
    %c4_i32 = arith.constant 4 : i32
    %112 = vector.broadcast %c4_i32 : i32 to vector<8x128xi32>
    %113 = arith.cmpi sge, %82, %112 : vector<8x128xi32>
    %c4_i32_57 = arith.constant 4 : i32
    %114 = tpu.dynamic_rotate %111 by %c4_i32_57 dim 0 : vector<8x128xf32>, i32 -> vector<8x128xf32>
    %cst_58 = arith.constant 1.000000e+00 : f32
    %115 = vector.broadcast %cst_58 : f32 to vector<8x128xf32>
    %116 = arith.select %113, %114, %115 : vector<8x128xi1>, vector<8x128xf32>
    %c4_i32_59 = arith.constant 4 : i32
    %117 = vector.broadcast %c4_i32_59 : i32 to vector<8x128xi32>
    %118 = arith.cmpi sge, %82, %117 : vector<8x128xi32>
    %c4_i32_60 = arith.constant 4 : i32
    %119 = tpu.dynamic_rotate %110 by %c4_i32_60 dim 0 : vector<8x128xf32>, i32 -> vector<8x128xf32>
    %cst_61 = arith.constant 0.000000e+00 : f32
    %120 = vector.broadcast %cst_61 : f32 to vector<8x128xf32>
    %121 = arith.select %118, %119, %120 : vector<8x128xi1>, vector<8x128xf32>
    %122 = arith.mulf %111, %121 : vector<8x128xf32>
    %123 = arith.addf %122, %110 : vector<8x128xf32>
    %124 = arith.mulf %111, %116 : vector<8x128xf32>
    %125 = vector.shape_cast %83 : vector<1x128xf32> to vector<1x128xf32>
    %126 = vector.broadcast %125 : vector<1x128xf32> to vector<8x128xf32>
    %127 = arith.mulf %124, %126 : vector<8x128xf32>
    %128 = arith.addf %127, %123 : vector<8x128xf32>
    %129 = vector.extract_strided_slice %128 {offsets = [7, 0], sizes = [1, 128], strides = [1, 1]} : vector<8x128xf32> to vector<1x128xf32>
    %130 = vector.extract_strided_slice %79 {offsets = [8, 0], sizes = [8, 128], strides = [1, 1]} : vector<64x128xf32> to vector<8x128xf32>
    %131 = vector.extract_strided_slice %81 {offsets = [8, 0], sizes = [8, 128], strides = [1, 1]} : vector<64x128xf32> to vector<8x128xf32>
    %c1_i32_62 = arith.constant 1 : i32
    %132 = vector.broadcast %c1_i32_62 : i32 to vector<8x128xi32>
    %133 = arith.cmpi sge, %82, %132 : vector<8x128xi32>
    %c1_i32_63 = arith.constant 1 : i32
    %134 = tpu.dynamic_rotate %130 by %c1_i32_63 dim 0 : vector<8x128xf32>, i32 -> vector<8x128xf32>
    %cst_64 = arith.constant 1.000000e+00 : f32
    %135 = vector.broadcast %cst_64 : f32 to vector<8x128xf32>
    %136 = arith.select %133, %134, %135 : vector<8x128xi1>, vector<8x128xf32>
    %c1_i32_65 = arith.constant 1 : i32
    %137 = vector.broadcast %c1_i32_65 : i32 to vector<8x128xi32>
    %138 = arith.cmpi sge, %82, %137 : vector<8x128xi32>
    %c1_i32_66 = arith.constant 1 : i32
    %139 = tpu.dynamic_rotate %131 by %c1_i32_66 dim 0 : vector<8x128xf32>, i32 -> vector<8x128xf32>
    %cst_67 = arith.constant 0.000000e+00 : f32
    %140 = vector.broadcast %cst_67 : f32 to vector<8x128xf32>
    %141 = arith.select %138, %139, %140 : vector<8x128xi1>, vector<8x128xf32>
    %142 = arith.mulf %130, %141 : vector<8x128xf32>
    %143 = arith.addf %142, %131 : vector<8x128xf32>
    %144 = arith.mulf %130, %136 : vector<8x128xf32>
    %c2_i32_68 = arith.constant 2 : i32
    %145 = vector.broadcast %c2_i32_68 : i32 to vector<8x128xi32>
    %146 = arith.cmpi sge, %82, %145 : vector<8x128xi32>
    %c2_i32_69 = arith.constant 2 : i32
    %147 = tpu.dynamic_rotate %144 by %c2_i32_69 dim 0 : vector<8x128xf32>, i32 -> vector<8x128xf32>
    %cst_70 = arith.constant 1.000000e+00 : f32
    %148 = vector.broadcast %cst_70 : f32 to vector<8x128xf32>
    %149 = arith.select %146, %147, %148 : vector<8x128xi1>, vector<8x128xf32>
    %c2_i32_71 = arith.constant 2 : i32
    %150 = vector.broadcast %c2_i32_71 : i32 to vector<8x128xi32>
    %151 = arith.cmpi sge, %82, %150 : vector<8x128xi32>
    %c2_i32_72 = arith.constant 2 : i32
    %152 = tpu.dynamic_rotate %143 by %c2_i32_72 dim 0 : vector<8x128xf32>, i32 -> vector<8x128xf32>
    %cst_73 = arith.constant 0.000000e+00 : f32
    %153 = vector.broadcast %cst_73 : f32 to vector<8x128xf32>
    %154 = arith.select %151, %152, %153 : vector<8x128xi1>, vector<8x128xf32>
    %155 = arith.mulf %144, %154 : vector<8x128xf32>
    %156 = arith.addf %155, %143 : vector<8x128xf32>
    %157 = arith.mulf %144, %149 : vector<8x128xf32>
    %c4_i32_74 = arith.constant 4 : i32
    %158 = vector.broadcast %c4_i32_74 : i32 to vector<8x128xi32>
    %159 = arith.cmpi sge, %82, %158 : vector<8x128xi32>
    %c4_i32_75 = arith.constant 4 : i32
    %160 = tpu.dynamic_rotate %157 by %c4_i32_75 dim 0 : vector<8x128xf32>, i32 -> vector<8x128xf32>
    %cst_76 = arith.constant 1.000000e+00 : f32
    %161 = vector.broadcast %cst_76 : f32 to vector<8x128xf32>
    %162 = arith.select %159, %160, %161 : vector<8x128xi1>, vector<8x128xf32>
    %c4_i32_77 = arith.constant 4 : i32
    %163 = vector.broadcast %c4_i32_77 : i32 to vector<8x128xi32>
    %164 = arith.cmpi sge, %82, %163 : vector<8x128xi32>
    %c4_i32_78 = arith.constant 4 : i32
    %165 = tpu.dynamic_rotate %156 by %c4_i32_78 dim 0 : vector<8x128xf32>, i32 -> vector<8x128xf32>
    %cst_79 = arith.constant 0.000000e+00 : f32
    %166 = vector.broadcast %cst_79 : f32 to vector<8x128xf32>
    %167 = arith.select %164, %165, %166 : vector<8x128xi1>, vector<8x128xf32>
    %168 = arith.mulf %157, %167 : vector<8x128xf32>
    %169 = arith.addf %168, %156 : vector<8x128xf32>
    %170 = arith.mulf %157, %162 : vector<8x128xf32>
    %171 = vector.shape_cast %129 : vector<1x128xf32> to vector<1x128xf32>
    %172 = vector.broadcast %171 : vector<1x128xf32> to vector<8x128xf32>
    %173 = arith.mulf %170, %172 : vector<8x128xf32>
    %174 = arith.addf %173, %169 : vector<8x128xf32>
    %175 = vector.extract_strided_slice %174 {offsets = [7, 0], sizes = [1, 128], strides = [1, 1]} : vector<8x128xf32> to vector<1x128xf32>
    %176 = vector.extract_strided_slice %79 {offsets = [16, 0], sizes = [8, 128], strides = [1, 1]} : vector<64x128xf32> to vector<8x128xf32>
    %177 = vector.extract_strided_slice %81 {offsets = [16, 0], sizes = [8, 128], strides = [1, 1]} : vector<64x128xf32> to vector<8x128xf32>
    %c1_i32_80 = arith.constant 1 : i32
    %178 = vector.broadcast %c1_i32_80 : i32 to vector<8x128xi32>
    %179 = arith.cmpi sge, %82, %178 : vector<8x128xi32>
    %c1_i32_81 = arith.constant 1 : i32
    %180 = tpu.dynamic_rotate %176 by %c1_i32_81 dim 0 : vector<8x128xf32>, i32 -> vector<8x128xf32>
    %cst_82 = arith.constant 1.000000e+00 : f32
    %181 = vector.broadcast %cst_82 : f32 to vector<8x128xf32>
    %182 = arith.select %179, %180, %181 : vector<8x128xi1>, vector<8x128xf32>
    %c1_i32_83 = arith.constant 1 : i32
    %183 = vector.broadcast %c1_i32_83 : i32 to vector<8x128xi32>
    %184 = arith.cmpi sge, %82, %183 : vector<8x128xi32>
    %c1_i32_84 = arith.constant 1 : i32
    %185 = tpu.dynamic_rotate %177 by %c1_i32_84 dim 0 : vector<8x128xf32>, i32 -> vector<8x128xf32>
    %cst_85 = arith.constant 0.000000e+00 : f32
    %186 = vector.broadcast %cst_85 : f32 to vector<8x128xf32>
    %187 = arith.select %184, %185, %186 : vector<8x128xi1>, vector<8x128xf32>
    %188 = arith.mulf %176, %187 : vector<8x128xf32>
    %189 = arith.addf %188, %177 : vector<8x128xf32>
    %190 = arith.mulf %176, %182 : vector<8x128xf32>
    %c2_i32_86 = arith.constant 2 : i32
    %191 = vector.broadcast %c2_i32_86 : i32 to vector<8x128xi32>
    %192 = arith.cmpi sge, %82, %191 : vector<8x128xi32>
    %c2_i32_87 = arith.constant 2 : i32
    %193 = tpu.dynamic_rotate %190 by %c2_i32_87 dim 0 : vector<8x128xf32>, i32 -> vector<8x128xf32>
    %cst_88 = arith.constant 1.000000e+00 : f32
    %194 = vector.broadcast %cst_88 : f32 to vector<8x128xf32>
    %195 = arith.select %192, %193, %194 : vector<8x128xi1>, vector<8x128xf32>
    %c2_i32_89 = arith.constant 2 : i32
    %196 = vector.broadcast %c2_i32_89 : i32 to vector<8x128xi32>
    %197 = arith.cmpi sge, %82, %196 : vector<8x128xi32>
    %c2_i32_90 = arith.constant 2 : i32
    %198 = tpu.dynamic_rotate %189 by %c2_i32_90 dim 0 : vector<8x128xf32>, i32 -> vector<8x128xf32>
    %cst_91 = arith.constant 0.000000e+00 : f32
    %199 = vector.broadcast %cst_91 : f32 to vector<8x128xf32>
    %200 = arith.select %197, %198, %199 : vector<8x128xi1>, vector<8x128xf32>
    %201 = arith.mulf %190, %200 : vector<8x128xf32>
    %202 = arith.addf %201, %189 : vector<8x128xf32>
    %203 = arith.mulf %190, %195 : vector<8x128xf32>
    %c4_i32_92 = arith.constant 4 : i32
    %204 = vector.broadcast %c4_i32_92 : i32 to vector<8x128xi32>
    %205 = arith.cmpi sge, %82, %204 : vector<8x128xi32>
    %c4_i32_93 = arith.constant 4 : i32
    %206 = tpu.dynamic_rotate %203 by %c4_i32_93 dim 0 : vector<8x128xf32>, i32 -> vector<8x128xf32>
    %cst_94 = arith.constant 1.000000e+00 : f32
    %207 = vector.broadcast %cst_94 : f32 to vector<8x128xf32>
    %208 = arith.select %205, %206, %207 : vector<8x128xi1>, vector<8x128xf32>
    %c4_i32_95 = arith.constant 4 : i32
    %209 = vector.broadcast %c4_i32_95 : i32 to vector<8x128xi32>
    %210 = arith.cmpi sge, %82, %209 : vector<8x128xi32>
    %c4_i32_96 = arith.constant 4 : i32
    %211 = tpu.dynamic_rotate %202 by %c4_i32_96 dim 0 : vector<8x128xf32>, i32 -> vector<8x128xf32>
    %cst_97 = arith.constant 0.000000e+00 : f32
    %212 = vector.broadcast %cst_97 : f32 to vector<8x128xf32>
    %213 = arith.select %210, %211, %212 : vector<8x128xi1>, vector<8x128xf32>
    %214 = arith.mulf %203, %213 : vector<8x128xf32>
    %215 = arith.addf %214, %202 : vector<8x128xf32>
    %216 = arith.mulf %203, %208 : vector<8x128xf32>
    %217 = vector.shape_cast %175 : vector<1x128xf32> to vector<1x128xf32>
    %218 = vector.broadcast %217 : vector<1x128xf32> to vector<8x128xf32>
    %219 = arith.mulf %216, %218 : vector<8x128xf32>
    %220 = arith.addf %219, %215 : vector<8x128xf32>
    %221 = vector.extract_strided_slice %220 {offsets = [7, 0], sizes = [1, 128], strides = [1, 1]} : vector<8x128xf32> to vector<1x128xf32>
    %222 = vector.extract_strided_slice %79 {offsets = [24, 0], sizes = [8, 128], strides = [1, 1]} : vector<64x128xf32> to vector<8x128xf32>
    %223 = vector.extract_strided_slice %81 {offsets = [24, 0], sizes = [8, 128], strides = [1, 1]} : vector<64x128xf32> to vector<8x128xf32>
    %c1_i32_98 = arith.constant 1 : i32
    %224 = vector.broadcast %c1_i32_98 : i32 to vector<8x128xi32>
    %225 = arith.cmpi sge, %82, %224 : vector<8x128xi32>
    %c1_i32_99 = arith.constant 1 : i32
    %226 = tpu.dynamic_rotate %222 by %c1_i32_99 dim 0 : vector<8x128xf32>, i32 -> vector<8x128xf32>
    %cst_100 = arith.constant 1.000000e+00 : f32
    %227 = vector.broadcast %cst_100 : f32 to vector<8x128xf32>
    %228 = arith.select %225, %226, %227 : vector<8x128xi1>, vector<8x128xf32>
    %c1_i32_101 = arith.constant 1 : i32
    %229 = vector.broadcast %c1_i32_101 : i32 to vector<8x128xi32>
    %230 = arith.cmpi sge, %82, %229 : vector<8x128xi32>
    %c1_i32_102 = arith.constant 1 : i32
    %231 = tpu.dynamic_rotate %223 by %c1_i32_102 dim 0 : vector<8x128xf32>, i32 -> vector<8x128xf32>
    %cst_103 = arith.constant 0.000000e+00 : f32
    %232 = vector.broadcast %cst_103 : f32 to vector<8x128xf32>
    %233 = arith.select %230, %231, %232 : vector<8x128xi1>, vector<8x128xf32>
    %234 = arith.mulf %222, %233 : vector<8x128xf32>
    %235 = arith.addf %234, %223 : vector<8x128xf32>
    %236 = arith.mulf %222, %228 : vector<8x128xf32>
    %c2_i32_104 = arith.constant 2 : i32
    %237 = vector.broadcast %c2_i32_104 : i32 to vector<8x128xi32>
    %238 = arith.cmpi sge, %82, %237 : vector<8x128xi32>
    %c2_i32_105 = arith.constant 2 : i32
    %239 = tpu.dynamic_rotate %236 by %c2_i32_105 dim 0 : vector<8x128xf32>, i32 -> vector<8x128xf32>
    %cst_106 = arith.constant 1.000000e+00 : f32
    %240 = vector.broadcast %cst_106 : f32 to vector<8x128xf32>
    %241 = arith.select %238, %239, %240 : vector<8x128xi1>, vector<8x128xf32>
    %c2_i32_107 = arith.constant 2 : i32
    %242 = vector.broadcast %c2_i32_107 : i32 to vector<8x128xi32>
    %243 = arith.cmpi sge, %82, %242 : vector<8x128xi32>
    %c2_i32_108 = arith.constant 2 : i32
    %244 = tpu.dynamic_rotate %235 by %c2_i32_108 dim 0 : vector<8x128xf32>, i32 -> vector<8x128xf32>
    %cst_109 = arith.constant 0.000000e+00 : f32
    %245 = vector.broadcast %cst_109 : f32 to vector<8x128xf32>
    %246 = arith.select %243, %244, %245 : vector<8x128xi1>, vector<8x128xf32>
    %247 = arith.mulf %236, %246 : vector<8x128xf32>
    %248 = arith.addf %247, %235 : vector<8x128xf32>
    %249 = arith.mulf %236, %241 : vector<8x128xf32>
    %c4_i32_110 = arith.constant 4 : i32
    %250 = vector.broadcast %c4_i32_110 : i32 to vector<8x128xi32>
    %251 = arith.cmpi sge, %82, %250 : vector<8x128xi32>
    %c4_i32_111 = arith.constant 4 : i32
    %252 = tpu.dynamic_rotate %249 by %c4_i32_111 dim 0 : vector<8x128xf32>, i32 -> vector<8x128xf32>
    %cst_112 = arith.constant 1.000000e+00 : f32
    %253 = vector.broadcast %cst_112 : f32 to vector<8x128xf32>
    %254 = arith.select %251, %252, %253 : vector<8x128xi1>, vector<8x128xf32>
    %c4_i32_113 = arith.constant 4 : i32
    %255 = vector.broadcast %c4_i32_113 : i32 to vector<8x128xi32>
    %256 = arith.cmpi sge, %82, %255 : vector<8x128xi32>
    %c4_i32_114 = arith.constant 4 : i32
    %257 = tpu.dynamic_rotate %248 by %c4_i32_114 dim 0 : vector<8x128xf32>, i32 -> vector<8x128xf32>
    %cst_115 = arith.constant 0.000000e+00 : f32
    %258 = vector.broadcast %cst_115 : f32 to vector<8x128xf32>
    %259 = arith.select %256, %257, %258 : vector<8x128xi1>, vector<8x128xf32>
    %260 = arith.mulf %249, %259 : vector<8x128xf32>
    %261 = arith.addf %260, %248 : vector<8x128xf32>
    %262 = arith.mulf %249, %254 : vector<8x128xf32>
    %263 = vector.shape_cast %221 : vector<1x128xf32> to vector<1x128xf32>
    %264 = vector.broadcast %263 : vector<1x128xf32> to vector<8x128xf32>
    %265 = arith.mulf %262, %264 : vector<8x128xf32>
    %266 = arith.addf %265, %261 : vector<8x128xf32>
    %267 = vector.extract_strided_slice %266 {offsets = [7, 0], sizes = [1, 128], strides = [1, 1]} : vector<8x128xf32> to vector<1x128xf32>
    %268 = vector.extract_strided_slice %79 {offsets = [32, 0], sizes = [8, 128], strides = [1, 1]} : vector<64x128xf32> to vector<8x128xf32>
    %269 = vector.extract_strided_slice %81 {offsets = [32, 0], sizes = [8, 128], strides = [1, 1]} : vector<64x128xf32> to vector<8x128xf32>
    %c1_i32_116 = arith.constant 1 : i32
    %270 = vector.broadcast %c1_i32_116 : i32 to vector<8x128xi32>
    %271 = arith.cmpi sge, %82, %270 : vector<8x128xi32>
    %c1_i32_117 = arith.constant 1 : i32
    %272 = tpu.dynamic_rotate %268 by %c1_i32_117 dim 0 : vector<8x128xf32>, i32 -> vector<8x128xf32>
    %cst_118 = arith.constant 1.000000e+00 : f32
    %273 = vector.broadcast %cst_118 : f32 to vector<8x128xf32>
    %274 = arith.select %271, %272, %273 : vector<8x128xi1>, vector<8x128xf32>
    %c1_i32_119 = arith.constant 1 : i32
    %275 = vector.broadcast %c1_i32_119 : i32 to vector<8x128xi32>
    %276 = arith.cmpi sge, %82, %275 : vector<8x128xi32>
    %c1_i32_120 = arith.constant 1 : i32
    %277 = tpu.dynamic_rotate %269 by %c1_i32_120 dim 0 : vector<8x128xf32>, i32 -> vector<8x128xf32>
    %cst_121 = arith.constant 0.000000e+00 : f32
    %278 = vector.broadcast %cst_121 : f32 to vector<8x128xf32>
    %279 = arith.select %276, %277, %278 : vector<8x128xi1>, vector<8x128xf32>
    %280 = arith.mulf %268, %279 : vector<8x128xf32>
    %281 = arith.addf %280, %269 : vector<8x128xf32>
    %282 = arith.mulf %268, %274 : vector<8x128xf32>
    %c2_i32_122 = arith.constant 2 : i32
    %283 = vector.broadcast %c2_i32_122 : i32 to vector<8x128xi32>
    %284 = arith.cmpi sge, %82, %283 : vector<8x128xi32>
    %c2_i32_123 = arith.constant 2 : i32
    %285 = tpu.dynamic_rotate %282 by %c2_i32_123 dim 0 : vector<8x128xf32>, i32 -> vector<8x128xf32>
    %cst_124 = arith.constant 1.000000e+00 : f32
    %286 = vector.broadcast %cst_124 : f32 to vector<8x128xf32>
    %287 = arith.select %284, %285, %286 : vector<8x128xi1>, vector<8x128xf32>
    %c2_i32_125 = arith.constant 2 : i32
    %288 = vector.broadcast %c2_i32_125 : i32 to vector<8x128xi32>
    %289 = arith.cmpi sge, %82, %288 : vector<8x128xi32>
    %c2_i32_126 = arith.constant 2 : i32
    %290 = tpu.dynamic_rotate %281 by %c2_i32_126 dim 0 : vector<8x128xf32>, i32 -> vector<8x128xf32>
    %cst_127 = arith.constant 0.000000e+00 : f32
    %291 = vector.broadcast %cst_127 : f32 to vector<8x128xf32>
    %292 = arith.select %289, %290, %291 : vector<8x128xi1>, vector<8x128xf32>
    %293 = arith.mulf %282, %292 : vector<8x128xf32>
    %294 = arith.addf %293, %281 : vector<8x128xf32>
    %295 = arith.mulf %282, %287 : vector<8x128xf32>
    %c4_i32_128 = arith.constant 4 : i32
    %296 = vector.broadcast %c4_i32_128 : i32 to vector<8x128xi32>
    %297 = arith.cmpi sge, %82, %296 : vector<8x128xi32>
    %c4_i32_129 = arith.constant 4 : i32
    %298 = tpu.dynamic_rotate %295 by %c4_i32_129 dim 0 : vector<8x128xf32>, i32 -> vector<8x128xf32>
    %cst_130 = arith.constant 1.000000e+00 : f32
    %299 = vector.broadcast %cst_130 : f32 to vector<8x128xf32>
    %300 = arith.select %297, %298, %299 : vector<8x128xi1>, vector<8x128xf32>
    %c4_i32_131 = arith.constant 4 : i32
    %301 = vector.broadcast %c4_i32_131 : i32 to vector<8x128xi32>
    %302 = arith.cmpi sge, %82, %301 : vector<8x128xi32>
    %c4_i32_132 = arith.constant 4 : i32
    %303 = tpu.dynamic_rotate %294 by %c4_i32_132 dim 0 : vector<8x128xf32>, i32 -> vector<8x128xf32>
    %cst_133 = arith.constant 0.000000e+00 : f32
    %304 = vector.broadcast %cst_133 : f32 to vector<8x128xf32>
    %305 = arith.select %302, %303, %304 : vector<8x128xi1>, vector<8x128xf32>
    %306 = arith.mulf %295, %305 : vector<8x128xf32>
    %307 = arith.addf %306, %294 : vector<8x128xf32>
    %308 = arith.mulf %295, %300 : vector<8x128xf32>
    %309 = vector.shape_cast %267 : vector<1x128xf32> to vector<1x128xf32>
    %310 = vector.broadcast %309 : vector<1x128xf32> to vector<8x128xf32>
    %311 = arith.mulf %308, %310 : vector<8x128xf32>
    %312 = arith.addf %311, %307 : vector<8x128xf32>
    %313 = vector.extract_strided_slice %312 {offsets = [7, 0], sizes = [1, 128], strides = [1, 1]} : vector<8x128xf32> to vector<1x128xf32>
    %314 = vector.extract_strided_slice %79 {offsets = [40, 0], sizes = [8, 128], strides = [1, 1]} : vector<64x128xf32> to vector<8x128xf32>
    %315 = vector.extract_strided_slice %81 {offsets = [40, 0], sizes = [8, 128], strides = [1, 1]} : vector<64x128xf32> to vector<8x128xf32>
    %c1_i32_134 = arith.constant 1 : i32
    %316 = vector.broadcast %c1_i32_134 : i32 to vector<8x128xi32>
    %317 = arith.cmpi sge, %82, %316 : vector<8x128xi32>
    %c1_i32_135 = arith.constant 1 : i32
    %318 = tpu.dynamic_rotate %314 by %c1_i32_135 dim 0 : vector<8x128xf32>, i32 -> vector<8x128xf32>
    %cst_136 = arith.constant 1.000000e+00 : f32
    %319 = vector.broadcast %cst_136 : f32 to vector<8x128xf32>
    %320 = arith.select %317, %318, %319 : vector<8x128xi1>, vector<8x128xf32>
    %c1_i32_137 = arith.constant 1 : i32
    %321 = vector.broadcast %c1_i32_137 : i32 to vector<8x128xi32>
    %322 = arith.cmpi sge, %82, %321 : vector<8x128xi32>
    %c1_i32_138 = arith.constant 1 : i32
    %323 = tpu.dynamic_rotate %315 by %c1_i32_138 dim 0 : vector<8x128xf32>, i32 -> vector<8x128xf32>
    %cst_139 = arith.constant 0.000000e+00 : f32
    %324 = vector.broadcast %cst_139 : f32 to vector<8x128xf32>
    %325 = arith.select %322, %323, %324 : vector<8x128xi1>, vector<8x128xf32>
    %326 = arith.mulf %314, %325 : vector<8x128xf32>
    %327 = arith.addf %326, %315 : vector<8x128xf32>
    %328 = arith.mulf %314, %320 : vector<8x128xf32>
    %c2_i32_140 = arith.constant 2 : i32
    %329 = vector.broadcast %c2_i32_140 : i32 to vector<8x128xi32>
    %330 = arith.cmpi sge, %82, %329 : vector<8x128xi32>
    %c2_i32_141 = arith.constant 2 : i32
    %331 = tpu.dynamic_rotate %328 by %c2_i32_141 dim 0 : vector<8x128xf32>, i32 -> vector<8x128xf32>
    %cst_142 = arith.constant 1.000000e+00 : f32
    %332 = vector.broadcast %cst_142 : f32 to vector<8x128xf32>
    %333 = arith.select %330, %331, %332 : vector<8x128xi1>, vector<8x128xf32>
    %c2_i32_143 = arith.constant 2 : i32
    %334 = vector.broadcast %c2_i32_143 : i32 to vector<8x128xi32>
    %335 = arith.cmpi sge, %82, %334 : vector<8x128xi32>
    %c2_i32_144 = arith.constant 2 : i32
    %336 = tpu.dynamic_rotate %327 by %c2_i32_144 dim 0 : vector<8x128xf32>, i32 -> vector<8x128xf32>
    %cst_145 = arith.constant 0.000000e+00 : f32
    %337 = vector.broadcast %cst_145 : f32 to vector<8x128xf32>
    %338 = arith.select %335, %336, %337 : vector<8x128xi1>, vector<8x128xf32>
    %339 = arith.mulf %328, %338 : vector<8x128xf32>
    %340 = arith.addf %339, %327 : vector<8x128xf32>
    %341 = arith.mulf %328, %333 : vector<8x128xf32>
    %c4_i32_146 = arith.constant 4 : i32
    %342 = vector.broadcast %c4_i32_146 : i32 to vector<8x128xi32>
    %343 = arith.cmpi sge, %82, %342 : vector<8x128xi32>
    %c4_i32_147 = arith.constant 4 : i32
    %344 = tpu.dynamic_rotate %341 by %c4_i32_147 dim 0 : vector<8x128xf32>, i32 -> vector<8x128xf32>
    %cst_148 = arith.constant 1.000000e+00 : f32
    %345 = vector.broadcast %cst_148 : f32 to vector<8x128xf32>
    %346 = arith.select %343, %344, %345 : vector<8x128xi1>, vector<8x128xf32>
    %c4_i32_149 = arith.constant 4 : i32
    %347 = vector.broadcast %c4_i32_149 : i32 to vector<8x128xi32>
    %348 = arith.cmpi sge, %82, %347 : vector<8x128xi32>
    %c4_i32_150 = arith.constant 4 : i32
    %349 = tpu.dynamic_rotate %340 by %c4_i32_150 dim 0 : vector<8x128xf32>, i32 -> vector<8x128xf32>
    %cst_151 = arith.constant 0.000000e+00 : f32
    %350 = vector.broadcast %cst_151 : f32 to vector<8x128xf32>
    %351 = arith.select %348, %349, %350 : vector<8x128xi1>, vector<8x128xf32>
    %352 = arith.mulf %341, %351 : vector<8x128xf32>
    %353 = arith.addf %352, %340 : vector<8x128xf32>
    %354 = arith.mulf %341, %346 : vector<8x128xf32>
    %355 = vector.shape_cast %313 : vector<1x128xf32> to vector<1x128xf32>
    %356 = vector.broadcast %355 : vector<1x128xf32> to vector<8x128xf32>
    %357 = arith.mulf %354, %356 : vector<8x128xf32>
    %358 = arith.addf %357, %353 : vector<8x128xf32>
    %359 = vector.extract_strided_slice %358 {offsets = [7, 0], sizes = [1, 128], strides = [1, 1]} : vector<8x128xf32> to vector<1x128xf32>
    %360 = vector.extract_strided_slice %79 {offsets = [48, 0], sizes = [8, 128], strides = [1, 1]} : vector<64x128xf32> to vector<8x128xf32>
    %361 = vector.extract_strided_slice %81 {offsets = [48, 0], sizes = [8, 128], strides = [1, 1]} : vector<64x128xf32> to vector<8x128xf32>
    %c1_i32_152 = arith.constant 1 : i32
    %362 = vector.broadcast %c1_i32_152 : i32 to vector<8x128xi32>
    %363 = arith.cmpi sge, %82, %362 : vector<8x128xi32>
    %c1_i32_153 = arith.constant 1 : i32
    %364 = tpu.dynamic_rotate %360 by %c1_i32_153 dim 0 : vector<8x128xf32>, i32 -> vector<8x128xf32>
    %cst_154 = arith.constant 1.000000e+00 : f32
    %365 = vector.broadcast %cst_154 : f32 to vector<8x128xf32>
    %366 = arith.select %363, %364, %365 : vector<8x128xi1>, vector<8x128xf32>
    %c1_i32_155 = arith.constant 1 : i32
    %367 = vector.broadcast %c1_i32_155 : i32 to vector<8x128xi32>
    %368 = arith.cmpi sge, %82, %367 : vector<8x128xi32>
    %c1_i32_156 = arith.constant 1 : i32
    %369 = tpu.dynamic_rotate %361 by %c1_i32_156 dim 0 : vector<8x128xf32>, i32 -> vector<8x128xf32>
    %cst_157 = arith.constant 0.000000e+00 : f32
    %370 = vector.broadcast %cst_157 : f32 to vector<8x128xf32>
    %371 = arith.select %368, %369, %370 : vector<8x128xi1>, vector<8x128xf32>
    %372 = arith.mulf %360, %371 : vector<8x128xf32>
    %373 = arith.addf %372, %361 : vector<8x128xf32>
    %374 = arith.mulf %360, %366 : vector<8x128xf32>
    %c2_i32_158 = arith.constant 2 : i32
    %375 = vector.broadcast %c2_i32_158 : i32 to vector<8x128xi32>
    %376 = arith.cmpi sge, %82, %375 : vector<8x128xi32>
    %c2_i32_159 = arith.constant 2 : i32
    %377 = tpu.dynamic_rotate %374 by %c2_i32_159 dim 0 : vector<8x128xf32>, i32 -> vector<8x128xf32>
    %cst_160 = arith.constant 1.000000e+00 : f32
    %378 = vector.broadcast %cst_160 : f32 to vector<8x128xf32>
    %379 = arith.select %376, %377, %378 : vector<8x128xi1>, vector<8x128xf32>
    %c2_i32_161 = arith.constant 2 : i32
    %380 = vector.broadcast %c2_i32_161 : i32 to vector<8x128xi32>
    %381 = arith.cmpi sge, %82, %380 : vector<8x128xi32>
    %c2_i32_162 = arith.constant 2 : i32
    %382 = tpu.dynamic_rotate %373 by %c2_i32_162 dim 0 : vector<8x128xf32>, i32 -> vector<8x128xf32>
    %cst_163 = arith.constant 0.000000e+00 : f32
    %383 = vector.broadcast %cst_163 : f32 to vector<8x128xf32>
    %384 = arith.select %381, %382, %383 : vector<8x128xi1>, vector<8x128xf32>
    %385 = arith.mulf %374, %384 : vector<8x128xf32>
    %386 = arith.addf %385, %373 : vector<8x128xf32>
    %387 = arith.mulf %374, %379 : vector<8x128xf32>
    %c4_i32_164 = arith.constant 4 : i32
    %388 = vector.broadcast %c4_i32_164 : i32 to vector<8x128xi32>
    %389 = arith.cmpi sge, %82, %388 : vector<8x128xi32>
    %c4_i32_165 = arith.constant 4 : i32
    %390 = tpu.dynamic_rotate %387 by %c4_i32_165 dim 0 : vector<8x128xf32>, i32 -> vector<8x128xf32>
    %cst_166 = arith.constant 1.000000e+00 : f32
    %391 = vector.broadcast %cst_166 : f32 to vector<8x128xf32>
    %392 = arith.select %389, %390, %391 : vector<8x128xi1>, vector<8x128xf32>
    %c4_i32_167 = arith.constant 4 : i32
    %393 = vector.broadcast %c4_i32_167 : i32 to vector<8x128xi32>
    %394 = arith.cmpi sge, %82, %393 : vector<8x128xi32>
    %c4_i32_168 = arith.constant 4 : i32
    %395 = tpu.dynamic_rotate %386 by %c4_i32_168 dim 0 : vector<8x128xf32>, i32 -> vector<8x128xf32>
    %cst_169 = arith.constant 0.000000e+00 : f32
    %396 = vector.broadcast %cst_169 : f32 to vector<8x128xf32>
    %397 = arith.select %394, %395, %396 : vector<8x128xi1>, vector<8x128xf32>
    %398 = arith.mulf %387, %397 : vector<8x128xf32>
    %399 = arith.addf %398, %386 : vector<8x128xf32>
    %400 = arith.mulf %387, %392 : vector<8x128xf32>
    %401 = vector.shape_cast %359 : vector<1x128xf32> to vector<1x128xf32>
    %402 = vector.broadcast %401 : vector<1x128xf32> to vector<8x128xf32>
    %403 = arith.mulf %400, %402 : vector<8x128xf32>
    %404 = arith.addf %403, %399 : vector<8x128xf32>
    %405 = vector.extract_strided_slice %404 {offsets = [7, 0], sizes = [1, 128], strides = [1, 1]} : vector<8x128xf32> to vector<1x128xf32>
    %406 = vector.extract_strided_slice %79 {offsets = [56, 0], sizes = [8, 128], strides = [1, 1]} : vector<64x128xf32> to vector<8x128xf32>
    %407 = vector.extract_strided_slice %81 {offsets = [56, 0], sizes = [8, 128], strides = [1, 1]} : vector<64x128xf32> to vector<8x128xf32>
    %c1_i32_170 = arith.constant 1 : i32
    %408 = vector.broadcast %c1_i32_170 : i32 to vector<8x128xi32>
    %409 = arith.cmpi sge, %82, %408 : vector<8x128xi32>
    %c1_i32_171 = arith.constant 1 : i32
    %410 = tpu.dynamic_rotate %406 by %c1_i32_171 dim 0 : vector<8x128xf32>, i32 -> vector<8x128xf32>
    %cst_172 = arith.constant 1.000000e+00 : f32
    %411 = vector.broadcast %cst_172 : f32 to vector<8x128xf32>
    %412 = arith.select %409, %410, %411 : vector<8x128xi1>, vector<8x128xf32>
    %c1_i32_173 = arith.constant 1 : i32
    %413 = vector.broadcast %c1_i32_173 : i32 to vector<8x128xi32>
    %414 = arith.cmpi sge, %82, %413 : vector<8x128xi32>
    %c1_i32_174 = arith.constant 1 : i32
    %415 = tpu.dynamic_rotate %407 by %c1_i32_174 dim 0 : vector<8x128xf32>, i32 -> vector<8x128xf32>
    %cst_175 = arith.constant 0.000000e+00 : f32
    %416 = vector.broadcast %cst_175 : f32 to vector<8x128xf32>
    %417 = arith.select %414, %415, %416 : vector<8x128xi1>, vector<8x128xf32>
    %418 = arith.mulf %406, %417 : vector<8x128xf32>
    %419 = arith.addf %418, %407 : vector<8x128xf32>
    %420 = arith.mulf %406, %412 : vector<8x128xf32>
    %c2_i32_176 = arith.constant 2 : i32
    %421 = vector.broadcast %c2_i32_176 : i32 to vector<8x128xi32>
    %422 = arith.cmpi sge, %82, %421 : vector<8x128xi32>
    %c2_i32_177 = arith.constant 2 : i32
    %423 = tpu.dynamic_rotate %420 by %c2_i32_177 dim 0 : vector<8x128xf32>, i32 -> vector<8x128xf32>
    %cst_178 = arith.constant 1.000000e+00 : f32
    %424 = vector.broadcast %cst_178 : f32 to vector<8x128xf32>
    %425 = arith.select %422, %423, %424 : vector<8x128xi1>, vector<8x128xf32>
    %c2_i32_179 = arith.constant 2 : i32
    %426 = vector.broadcast %c2_i32_179 : i32 to vector<8x128xi32>
    %427 = arith.cmpi sge, %82, %426 : vector<8x128xi32>
    %c2_i32_180 = arith.constant 2 : i32
    %428 = tpu.dynamic_rotate %419 by %c2_i32_180 dim 0 : vector<8x128xf32>, i32 -> vector<8x128xf32>
    %cst_181 = arith.constant 0.000000e+00 : f32
    %429 = vector.broadcast %cst_181 : f32 to vector<8x128xf32>
    %430 = arith.select %427, %428, %429 : vector<8x128xi1>, vector<8x128xf32>
    %431 = arith.mulf %420, %430 : vector<8x128xf32>
    %432 = arith.addf %431, %419 : vector<8x128xf32>
    %433 = arith.mulf %420, %425 : vector<8x128xf32>
    %c4_i32_182 = arith.constant 4 : i32
    %434 = vector.broadcast %c4_i32_182 : i32 to vector<8x128xi32>
    %435 = arith.cmpi sge, %82, %434 : vector<8x128xi32>
    %c4_i32_183 = arith.constant 4 : i32
    %436 = tpu.dynamic_rotate %433 by %c4_i32_183 dim 0 : vector<8x128xf32>, i32 -> vector<8x128xf32>
    %cst_184 = arith.constant 1.000000e+00 : f32
    %437 = vector.broadcast %cst_184 : f32 to vector<8x128xf32>
    %438 = arith.select %435, %436, %437 : vector<8x128xi1>, vector<8x128xf32>
    %c4_i32_185 = arith.constant 4 : i32
    %439 = vector.broadcast %c4_i32_185 : i32 to vector<8x128xi32>
    %440 = arith.cmpi sge, %82, %439 : vector<8x128xi32>
    %c4_i32_186 = arith.constant 4 : i32
    %441 = tpu.dynamic_rotate %432 by %c4_i32_186 dim 0 : vector<8x128xf32>, i32 -> vector<8x128xf32>
    %cst_187 = arith.constant 0.000000e+00 : f32
    %442 = vector.broadcast %cst_187 : f32 to vector<8x128xf32>
    %443 = arith.select %440, %441, %442 : vector<8x128xi1>, vector<8x128xf32>
    %444 = arith.mulf %433, %443 : vector<8x128xf32>
    %445 = arith.addf %444, %432 : vector<8x128xf32>
    %446 = arith.mulf %433, %438 : vector<8x128xf32>
    %447 = vector.shape_cast %405 : vector<1x128xf32> to vector<1x128xf32>
    %448 = vector.broadcast %447 : vector<1x128xf32> to vector<8x128xf32>
    %449 = arith.mulf %446, %448 : vector<8x128xf32>
    %450 = arith.addf %449, %445 : vector<8x128xf32>
    %451 = tpu.concatenate %128, %174, %220, %266, %312, %358, %404, %450 in 0 : vector<8x128xf32>, vector<8x128xf32>, vector<8x128xf32>, vector<8x128xf32>, vector<8x128xf32>, vector<8x128xf32>, vector<8x128xf32>, vector<8x128xf32> -> vector<64x128xf32>
    %452 = arith.mulf %55, %451 : vector<64x128xf32>
    %c0_188 = arith.constant 0 : index
    %c0_189 = arith.constant 0 : index
    %453 = vector.load %arg10[%c0_188, %c0_189] : memref<1x128xf32, #tpu.memory_space<vmem>>, vector<1x128xf32>
    %454 = vector.broadcast %453 : vector<1x128xf32> to vector<64x128xf32>
    %455 = arith.mulf %454, %63 : vector<64x128xf32>
    %456 = arith.addf %452, %455 : vector<64x128xf32>
    %cst_190 = arith.constant 0.000000e+00 : f32
    %457 = vector.broadcast %cst_190 : f32 to vector<64x128xf32>
    %458 = arith.subf %457, %53 : vector<64x128xf32>
    %459 = math.exp %458 : vector<64x128xf32>
    %cst_191 = arith.constant 1.000000e+00 : f32
    %460 = vector.broadcast %cst_191 : f32 to vector<64x128xf32>
    %461 = arith.addf %460, %459 : vector<64x128xf32>
    %462 = tpu.reciprocal %461 {approx = true} : vector<64x128xf32> -> vector<64x128xf32>
    %463 = arith.mulf %53, %462 : vector<64x128xf32>
    %464 = arith.mulf %456, %463 : vector<64x128xf32>
    %c0_192 = arith.constant 0 : index
    %c0_193 = arith.constant 0 : index
    %c0_194 = arith.constant 0 : index
    %465 = vector.load %arg4[%c0_192, %c0_193, %c0_194] : memref<4x64x64xf32, #tpu.memory_space<vmem>>, vector<1x64x64xf32>
    %466 = vector.shape_cast %465 : vector<1x64x64xf32> to vector<64x64xf32>
    %467 = vector.extract_strided_slice %464 {offsets = [0, 0], sizes = [64, 32], strides = [1, 1]} : vector<64x128xf32> to vector<64x32xf32>
    %cst_195 = arith.constant dense<0.000000e+00> : vector<64x32xf32>
    %468 = tpu.matmul %466, %467, %cst_195 {dimension_numbers = #tpu.dot_dimension_numbers<[1], [0], [0], [1], [0, 0, 1, 1], [], []>} : vector<64x64xf32>, vector<64x32xf32>, vector<64x32xf32> -> vector<64x32xf32>
    %c1_196 = arith.constant 1 : index
    %c0_197 = arith.constant 0 : index
    %c0_198 = arith.constant 0 : index
    %469 = vector.load %arg4[%c1_196, %c0_197, %c0_198] : memref<4x64x64xf32, #tpu.memory_space<vmem>>, vector<1x64x64xf32>
    %470 = vector.shape_cast %469 : vector<1x64x64xf32> to vector<64x64xf32>
    %471 = vector.extract_strided_slice %464 {offsets = [0, 32], sizes = [64, 32], strides = [1, 1]} : vector<64x128xf32> to vector<64x32xf32>
    %cst_199 = arith.constant dense<0.000000e+00> : vector<64x32xf32>
    %472 = tpu.matmul %470, %471, %cst_199 {dimension_numbers = #tpu.dot_dimension_numbers<[1], [0], [0], [1], [0, 0, 1, 1], [], []>} : vector<64x64xf32>, vector<64x32xf32>, vector<64x32xf32> -> vector<64x32xf32>
    %c2_200 = arith.constant 2 : index
    %c0_201 = arith.constant 0 : index
    %c0_202 = arith.constant 0 : index
    %473 = vector.load %arg4[%c2_200, %c0_201, %c0_202] : memref<4x64x64xf32, #tpu.memory_space<vmem>>, vector<1x64x64xf32>
    %474 = vector.shape_cast %473 : vector<1x64x64xf32> to vector<64x64xf32>
    %475 = vector.extract_strided_slice %464 {offsets = [0, 64], sizes = [64, 32], strides = [1, 1]} : vector<64x128xf32> to vector<64x32xf32>
    %cst_203 = arith.constant dense<0.000000e+00> : vector<64x32xf32>
    %476 = tpu.matmul %474, %475, %cst_203 {dimension_numbers = #tpu.dot_dimension_numbers<[1], [0], [0], [1], [0, 0, 1, 1], [], []>} : vector<64x64xf32>, vector<64x32xf32>, vector<64x32xf32> -> vector<64x32xf32>
    %c3_204 = arith.constant 3 : index
    %c0_205 = arith.constant 0 : index
    %c0_206 = arith.constant 0 : index
    %477 = vector.load %arg4[%c3_204, %c0_205, %c0_206] : memref<4x64x64xf32, #tpu.memory_space<vmem>>, vector<1x64x64xf32>
    %478 = vector.shape_cast %477 : vector<1x64x64xf32> to vector<64x64xf32>
    %479 = vector.extract_strided_slice %464 {offsets = [0, 96], sizes = [64, 32], strides = [1, 1]} : vector<64x128xf32> to vector<64x32xf32>
    %cst_207 = arith.constant dense<0.000000e+00> : vector<64x32xf32>
    %480 = tpu.matmul %478, %479, %cst_207 {dimension_numbers = #tpu.dot_dimension_numbers<[1], [0], [0], [1], [0, 0, 1, 1], [], []>} : vector<64x64xf32>, vector<64x32xf32>, vector<64x32xf32> -> vector<64x32xf32>
    %481 = tpu.concatenate %468, %472, %476, %480 in 1 : vector<64x32xf32>, vector<64x32xf32>, vector<64x32xf32>, vector<64x32xf32> -> vector<64x128xf32>
    %c0_208 = arith.constant 0 : index
    %c0_209 = arith.constant 0 : index
    %c0_210 = arith.constant 0 : index
    %482 = vector.load %arg11[%c0_208, %c0_209, %c0_210] : memref<1x64x128xf32, #tpu.memory_space<vmem>>, vector<1x64x128xf32>
    %483 = vector.shape_cast %482 : vector<1x64x128xf32> to vector<64x128xf32>
    %484 = vector.shape_cast %481 : vector<64x128xf32> to vector<1x64x128xf32>
    tpu.vector_store %arg11[%c0_208, %c0_209, %c0_210], %484 {strides = array<i32>} : memref<1x64x128xf32, #tpu.memory_space<vmem>>, vector<1x64x128xf32>,
    return
  }
  func.func @transform_0(%arg0: i32) -> (i32, i32, i32) {
    %c0_i32 = arith.constant 0 : i32
    %c0_i32_0 = arith.constant 0 : i32
    %c0_i32_1 = arith.constant 0 : i32
    return %arg0, %c0_i32, %c0_i32_0 : i32, i32, i32
  }
  func.func @transform_1(%arg0: i32) -> (i32, i32, i32) {
    %c0_i32 = arith.constant 0 : i32
    %c0_i32_0 = arith.constant 0 : i32
    %c0_i32_1 = arith.constant 0 : i32
    return %arg0, %c0_i32, %c0_i32_0 : i32, i32, i32
  }
  func.func @transform_2(%arg0: i32) -> (i32, i32, i32) {
    %c0_i32 = arith.constant 0 : i32
    %c0_i32_0 = arith.constant 0 : i32
    %c0_i32_1 = arith.constant 0 : i32
    %c0_i32_2 = arith.constant 0 : i32
    return %c0_i32, %c0_i32_0, %c0_i32_1 : i32, i32, i32
  }
  func.func @transform_3(%arg0: i32) -> (i32, i32, i32) {
    %c0_i32 = arith.constant 0 : i32
    %c0_i32_0 = arith.constant 0 : i32
    %c0_i32_1 = arith.constant 0 : i32
    %c0_i32_2 = arith.constant 0 : i32
    return %c0_i32, %c0_i32_0, %c0_i32_1 : i32, i32, i32
  }
  func.func @transform_4(%arg0: i32) -> (i32, i32) {
    %c0_i32 = arith.constant 0 : i32
    %c0_i32_0 = arith.constant 0 : i32
    %c0_i32_1 = arith.constant 0 : i32
    return %c0_i32, %c0_i32_0 : i32, i32
  }
  func.func @transform_5(%arg0: i32) -> (i32, i32) {
    %c0_i32 = arith.constant 0 : i32
    %c0_i32_0 = arith.constant 0 : i32
    %c0_i32_1 = arith.constant 0 : i32
    return %c0_i32, %c0_i32_0 : i32, i32
  }
  func.func @transform_6(%arg0: i32) -> (i32, i32) {
    %c0_i32 = arith.constant 0 : i32
    %c0_i32_0 = arith.constant 0 : i32
    %c0_i32_1 = arith.constant 0 : i32
    return %c0_i32, %c0_i32_0 : i32, i32
  }
  func.func @transform_7(%arg0: i32) -> (i32, i32) {
    %c0_i32 = arith.constant 0 : i32
    %c0_i32_0 = arith.constant 0 : i32
    %c0_i32_1 = arith.constant 0 : i32
    return %c0_i32, %c0_i32_0 : i32, i32
  }
  func.func @transform_8(%arg0: i32) -> (i32, i32) {
    %c0_i32 = arith.constant 0 : i32
    %c0_i32_0 = arith.constant 0 : i32
    %c0_i32_1 = arith.constant 0 : i32
    return %c0_i32, %c0_i32_0 : i32, i32
  }
  func.func @transform_9(%arg0: i32) -> (i32, i32) {
    %c0_i32 = arith.constant 0 : i32
    %c0_i32_0 = arith.constant 0 : i32
    %c0_i32_1 = arith.constant 0 : i32
    return %c0_i32, %c0_i32_0 : i32, i32
  }
  func.func @transform_10(%arg0: i32) -> (i32, i32, i32) {
    %c0_i32 = arith.constant 0 : i32
    %c0_i32_0 = arith.constant 0 : i32
    %c0_i32_1 = arith.constant 0 : i32
    return %arg0, %c0_i32, %c0_i32_0 : i32, i32, i32
  }
}

module attributes {stable_mosaic.version = 11 : i64} {
  func.func @_tail_kernel(%arg0: i32, %arg1: memref<16x512xbf16, #tpu.memory_space<vmem>>, %arg2: memref<512x32xbf16, #tpu.memory_space<vmem>>, %arg3: memref<1x32xf32, #tpu.memory_space<vmem>>, %arg4: memref<1x32xf32, #tpu.memory_space<vmem>>, %arg5: memref<16x32xf32, #tpu.memory_space<vmem>>) attributes {dimension_semantics = [#tpu.dimension_semantics<parallel>], iteration_bounds = array<i64: 2>, scalar_prefetch = 0 : i64, scratch_operands = 0 : i64, tpu.core_type = #tpu.core_type<tc>, window_params = [{transform_indices = @transform_0, window_bounds = array<i64: 16, 512>}, {pipeline_mode = #tpu.pipeline_mode<synchronous>, transform_indices = @transform_1, window_bounds = array<i64: 512, 32>}, {pipeline_mode = #tpu.pipeline_mode<synchronous>, transform_indices = @transform_2, window_bounds = array<i64: 1, 32>}, {pipeline_mode = #tpu.pipeline_mode<synchronous>, transform_indices = @transform_3, window_bounds = array<i64: 1, 32>}, {transform_indices = @transform_4, window_bounds = array<i64: 16, 32>}]} {
    %c0 = arith.constant 0 : index
    %c0_0 = arith.constant 0 : index
    %0 = vector.load %arg1[%c0, %c0_0] : memref<16x512xbf16, #tpu.memory_space<vmem>>, vector<16x512xbf16>
    %c0_1 = arith.constant 0 : index
    %c0_2 = arith.constant 0 : index
    %1 = vector.load %arg2[%c0_1, %c0_2] : memref<512x32xbf16, #tpu.memory_space<vmem>>, vector<512x32xbf16>
    %cst = arith.constant dense<0.000000e+00> : vector<16x32xf32>
    %2 = tpu.matmul %0, %1, %cst {dimension_numbers = #tpu.dot_dimension_numbers<[1], [0], [0], [1], [0, 0, 1, 1], [], []>} : vector<16x512xbf16>, vector<512x32xbf16>, vector<16x32xf32> -> vector<16x32xf32>
    %cst_3 = arith.constant dense<0.000000e+00> : vector<16xf32>
    %3 = vector.multi_reduction <add>, %2, %cst_3 [1] : vector<16x32xf32> to vector<16xf32>
    %4 = vector.shape_cast %3 : vector<16xf32> to vector<16x1xf32>
    %cst_4 = arith.constant 3.200000e+01 : f32
    %5 = vector.broadcast %cst_4 : f32 to vector<16x1xf32>
    %6 = arith.divf %4, %5 : vector<16x1xf32>
    %7 = vector.broadcast %6 : vector<16x1xf32> to vector<16x32xf32>
    %8 = arith.subf %2, %7 : vector<16x32xf32>
    %9 = arith.mulf %8, %8 : vector<16x32xf32>
    %cst_5 = arith.constant dense<0.000000e+00> : vector<16xf32>
    %10 = vector.multi_reduction <add>, %9, %cst_5 [1] : vector<16x32xf32> to vector<16xf32>
    %11 = vector.shape_cast %10 : vector<16xf32> to vector<16x1xf32>
    %cst_6 = arith.constant 3.200000e+01 : f32
    %12 = vector.broadcast %cst_6 : f32 to vector<16x1xf32>
    %13 = arith.divf %11, %12 : vector<16x1xf32>
    %14 = vector.broadcast %6 : vector<16x1xf32> to vector<16x32xf32>
    %15 = arith.subf %2, %14 : vector<16x32xf32>
    %cst_7 = arith.constant 9.99999997E-7 : f32
    %16 = vector.broadcast %cst_7 : f32 to vector<16x1xf32>
    %17 = arith.addf %13, %16 : vector<16x1xf32>
    %18 = math.rsqrt %17 : vector<16x1xf32>
    %19 = vector.broadcast %18 : vector<16x1xf32> to vector<16x32xf32>
    %20 = arith.mulf %15, %19 : vector<16x32xf32>
    %c0_8 = arith.constant 0 : index
    %c0_9 = arith.constant 0 : index
    %21 = vector.load %arg3[%c0_8, %c0_9] : memref<1x32xf32, #tpu.memory_space<vmem>>, vector<1x32xf32>
    %22 = vector.broadcast %21 : vector<1x32xf32> to vector<16x32xf32>
    %23 = arith.mulf %20, %22 : vector<16x32xf32>
    %c0_10 = arith.constant 0 : index
    %c0_11 = arith.constant 0 : index
    %24 = vector.load %arg4[%c0_10, %c0_11] : memref<1x32xf32, #tpu.memory_space<vmem>>, vector<1x32xf32>
    %25 = vector.broadcast %24 : vector<1x32xf32> to vector<16x32xf32>
    %26 = arith.addf %23, %25 : vector<16x32xf32>
    %c0_12 = arith.constant 0 : index
    %c0_13 = arith.constant 0 : index
    %27 = vector.load %arg5[%c0_12, %c0_13] : memref<16x32xf32, #tpu.memory_space<vmem>>, vector<16x32xf32>
    tpu.vector_store %arg5[%c0_12, %c0_13], %26 {strides = array<i32>} : memref<16x32xf32, #tpu.memory_space<vmem>>, vector<16x32xf32>,
    return
  }
  func.func @transform_0(%arg0: i32) -> (i32, i32) {
    %c0_i32 = arith.constant 0 : i32
    %c0_i32_0 = arith.constant 0 : i32
    return %arg0, %c0_i32 : i32, i32
  }
  func.func @transform_1(%arg0: i32) -> (i32, i32) {
    %c0_i32 = arith.constant 0 : i32
    %c0_i32_0 = arith.constant 0 : i32
    %c0_i32_1 = arith.constant 0 : i32
    return %c0_i32, %c0_i32_0 : i32, i32
  }
  func.func @transform_2(%arg0: i32) -> (i32, i32) {
    %c0_i32 = arith.constant 0 : i32
    %c0_i32_0 = arith.constant 0 : i32
    %c0_i32_1 = arith.constant 0 : i32
    return %c0_i32, %c0_i32_0 : i32, i32
  }
  func.func @transform_3(%arg0: i32) -> (i32, i32) {
    %c0_i32 = arith.constant 0 : i32
    %c0_i32_0 = arith.constant 0 : i32
    %c0_i32_1 = arith.constant 0 : i32
    return %c0_i32, %c0_i32_0 : i32, i32
  }
  func.func @transform_4(%arg0: i32) -> (i32, i32) {
    %c0_i32 = arith.constant 0 : i32
    %c0_i32_0 = arith.constant 0 : i32
    return %arg0, %c0_i32 : i32, i32
  }
}

</mosaic_0001>

<llo_original>
// kernel: rope_mamba_forward.4
$region0: #{rope_mamba_forward.4}
  #allocation0 [shape = 'u32[]', space=smem, size = 0x4, offset = 0x4, fixed_abs, tag = 'smem constant byte address 0x4 - core index']
  #allocation1 [shape = 'u32[144,128]{1,0:T(1,128)}', space=vmem, size = 0x12000, scoped, tag = 'internal scratch']
  %s0 = inlined_call_operand.vmem [shape: bf16[128,32], index: 0, kind: input, shape index: {}]
  %s1 = inlined_call_operand.hbm [shape: bf16[32,640], index: 1, kind: input, shape index: {}]
  %s2 = inlined_call_operand.vmem [shape: f32[128,640], index: 2, kind: output, shape index: {}]
  %s3 = sld [smem:[#allocation0]]
  $region45: #{rope_mamba_forward.4} parent=0
    _
  %s5 = ssub.s32 1, %s3
  %s6 = scalar_select 0, %s5, %s3
  $region1: #{rope_mamba_forward.4} parent=0
    #allocation2 [shape = 'u8[40960]{0}', space=vmem, size = 0xa000, scoped, tag = 'input window, operand 1, single buffered']
    #allocation3 [shape = 's32[2]{0}', space=sflag, size = 0x8, scoped, tag = 'scoped memory for rope_mamba_forward.4']
    %7 = vsyncpa [#allocation3], 0
    loop: start=0, step=1, limit=4
    $region2: #{rope_mamba_forward.4} parent=1 // loop_pre_header
      _
    $region3: #{rope_mamba_forward.4} parent=1 // loop_header
      %s9 = sphi 0, %s13
      %p10 = scmp.ge.s32.totalorder %s9, 4
      %s19 = sphi 0, %s21
      %s22 = sphi 0, %s19
      %s23 = sphi 0, %s22
      %s39 = sphi 0, %s23
      %s43 = sphi 0, %s43
      %s45 = sphi 0, %s43
      %s46 = sphi 0, %s45
      %s60 = sphi 0, %s46
      %s66 = sphi 0, %s68
      %s69 = sphi 0, %s66
      %s70 = sphi 0, %s69
      %s86 = sphi 0, %s70
    $region4: #{rope_mamba_forward.4} parent=1 // loop_header_branch
      %12 = sbr.rel (%p10) target = $region8
    $region5: #{rope_mamba_forward.4} parent=1 // loop_body
      %s14 = ssub.s32 %s9, 1
      %s15 = ssub.s32 %s9, 2
      %s16 = sadd.s32 %s9, 1
      %s17 = ssub.s32 %s9, %s16
      %p18 = scmp.eq.s32.totalorder %s17, 0
      %s20 = sadd.s32 %s19, 1
      %s21 = scalar_select %p18, %s19, %s20
      %p24 = pneg %p18
      %p25 = scmp.eq.s32.totalorder %s9, 1
      %p26 = por %p24, %p25
      %p27 = scmp.ne.s32.totalorder %s19, %s22
      %p28 = scmp.eq.s32.totalorder %s9, 0
      %p29 = por %p27, %p28
      %p30 = scmp.ne.s32.totalorder %s19, %s22
      %p31 = scmp.eq.s32.totalorder %s14, 1
      %p32 = por %p30, %p31
      %p33 = scmp.ne.s32.totalorder %s22, %s23
      %p34 = scmp.eq.s32.totalorder %s14, 0
      %p35 = por %p33, %p34
      %p36 = scmp.ne.s32.totalorder %s22, %s23
      %p37 = scmp.eq.s32.totalorder %s15, 1
      %p38 = por %p36, %p37
      %p40 = scmp.ne.s32.totalorder %s23, %s39
      %p41 = scmp.eq.s32.totalorder %s15, 0
      %p42 = por %p40, %p41
      %s44 = sadd.s32 %s43, 1
      %p47 = scmp.eq.s32.totalorder %s9, 1
      %p48 = scmp.ne.s32.totalorder %s43, %s45
      %p49 = scmp.eq.s32.totalorder %s9, 0
      %p50 = por %p48, %p49
      %p51 = scmp.ne.s32.totalorder %s43, %s45
      %p52 = scmp.eq.s32.totalorder %s14, 1
      %p53 = por %p51, %p52
      %p54 = scmp.ne.s32.totalorder %s45, %s46
      %p55 = scmp.eq.s32.totalorder %s14, 0
      %p56 = por %p54, %p55
      %p57 = scmp.ne.s32.totalorder %s45, %s46
      %p58 = scmp.eq.s32.totalorder %s15, 1
      %p59 = por %p57, %p58
      %p61 = scmp.ne.s32.totalorder %s46, %s60
      %p62 = scmp.eq.s32.totalorder %s15, 0
      %p63 = por %p61, %p62
      %s64 = ssub.s32 %s9, %s16
      %p65 = scmp.eq.s32.totalorder %s64, 0
      %s67 = sadd.s32 %s66, 1
      %s68 = scalar_select %p65, %s66, %s67
      %p71 = pneg %p65
      %p72 = scmp.eq.s32.totalorder %s9, 1
      %p73 = por %p71, %p72
      %p74 = scmp.ne.s32.totalorder %s66, %s69
      %p75 = scmp.eq.s32.totalorder %s9, 0
      %p76 = por %p74, %p75
      %p77 = scmp.ne.s32.totalorder %s66, %s69
      %p78 = scmp.eq.s32.totalorder %s14, 1
      %p79 = por %p77, %p78
      %p80 = scmp.ne.s32.totalorder %s69, %s70
      %p81 = scmp.eq.s32.totalorder %s14, 0
      %p82 = por %p80, %p81
      %p83 = scmp.ne.s32.totalorder %s69, %s70
      %p84 = scmp.eq.s32.totalorder %s15, 1
      %p85 = por %p83, %p84
      %p87 = scmp.ne.s32.totalorder %s70, %s86
      %p88 = scmp.eq.s32.totalorder %s15, 0
      %p89 = por %p87, %p88
      %p90 = scmp.le.s32.totalorder 1, %s9
      %p91 = scmp.lt.s32.totalorder %s9, 3
      %p92 = pnand %p90, %p91
      %p93 = pneg %p92
      // Predicated region
      $region9: #{rope_mamba_forward.4} parent=5 // pred_check
        _
      $region10: #{rope_mamba_forward.4} parent=5 // pred_check_branch
        %95 = sbr.rel (%p92) target = $region12
      $region11: #{rope_mamba_forward.4} parent=5 // pred_region
        %s96 = ssub.s32 %s9, 1
        // Predicated region
        $region13: #{rope_mamba_forward.4} parent=11 // pred_check
          %p97 = pneg %p56
        $region14: #{rope_mamba_forward.4} parent=11 // pred_check_branch
          %99 = sbr.rel (%p97) target = $region16
        $region15: #{rope_mamba_forward.4} parent=11 // pred_region
          %s101 = ssub.s32 1280, 1280
          %102 = vsyncadd [#allocation3], %s101
          %s103 = sshll.u32 [#allocation2], 4
          %s104 = int_to_ptr.vmem [resolvable:$true] %s103
          %109 = dma.hbm_to_vmem [thread:$0]  %s1, 1280, %s104, [#allocation3], 320, 320, 20
        $region16: #{rope_mamba_forward.4} parent=11 // pred_fallthru
          _
      $region12: #{rope_mamba_forward.4} parent=5 // pred_fallthru
        _
      %p110 = scmp.lt.s32.totalorder %s9, 2
      // Predicated region
      $region17: #{rope_mamba_forward.4} parent=5 // pred_check
        %p111 = pneg %p110
      $region18: #{rope_mamba_forward.4} parent=5 // pred_check_branch
        %113 = sbr.rel (%p111) target = $region20
      $region19: #{rope_mamba_forward.4} parent=5 // pred_region
        // Predicated region
        $region21: #{rope_mamba_forward.4} parent=19 // pred_check
          %p114 = pneg %p29
        $region22: #{rope_mamba_forward.4} parent=19 // pred_check_branch
          %116 = sbr.rel (%p114) target = $region24
        $region23: #{rope_mamba_forward.4} parent=19 // pred_region
          %s117 = smul.u32 8, %s9
          %p118 = scmp.lt.s32.totalorder %s117, 15
          %s119 = scalar_select %p118, %s117, 15
          %s120 = smul.addr %s119, 4
          %s121 = scalar_lea.vmem %s0, %s120
          %s122 = smul.u32 8, %s9
        $region24: #{rope_mamba_forward.4} parent=19 // pred_fallthru
          _
      $region20: #{rope_mamba_forward.4} parent=5 // pred_fallthru
        _
      %p123 = scmp.le.s32.totalorder 1, %s9
      %p124 = scmp.lt.s32.totalorder %s9, 3
      %p125 = pnand %p123, %p124
      %p126 = pneg %p125
      // Predicated region
      $region25: #{rope_mamba_forward.4} parent=5 // pred_check
        _
      $region26: #{rope_mamba_forward.4} parent=5 // pred_check_branch
        %128 = sbr.rel (%p125) target = $region28
      $region27: #{rope_mamba_forward.4} parent=5 // pred_region
        %s129 = ssub.s32 %s9, 1
        // Predicated region
        $region29: #{rope_mamba_forward.4} parent=27 // pred_check
          %p130 = pneg %p56
        $region30: #{rope_mamba_forward.4} parent=27 // pred_check_branch
          %132 = sbr.rel (%p130) target = $region32
        $region31: #{rope_mamba_forward.4} parent=27 // pred_region
          %133 = dma.done [#allocation3], 1280
        $region32: #{rope_mamba_forward.4} parent=27 // pred_fallthru
          _
        %s134 = smul.u32 8, %s14
        %p135 = scmp.lt.s32.totalorder %s134, 15
        %s136 = scalar_select %p135, %s134, 15
        %s137 = smul.addr %s136, 4
        %s138 = scalar_lea.vmem %s0, %s137
        %p139 = pneg %p35
        %p140 = pneg %p32
        %p141 = pneg %p56
        %p142 = pneg %p53
        %p143 = pneg %p82
        %p144 = pneg %p79
        %s145 = smul.u32 8, %s14
        %p146 = scmp.lt.s32.totalorder %s145, 15
        %s147 = scalar_select %p146, %s145, 15
        %s148 = smul.addr %s147, 5
        %s149 = smul.addr %s148, 8
        %s150 = scalar_lea.vmem %s2, %s149
        %s151 = smul.u32 8, %s14
        %p152 = scmp.lt.s32.totalorder %s151, 15
        %s153 = scalar_select %p152, %s151, 15
        %s154 = smul.addr %s153, 4
        %s155 = scalar_lea.vmem %s0, %s154
        %s156 = smul.u32 8, %s14
        %s157 = smul.u32 8, %s14
        %p158 = scmp.lt.s32.totalorder %s157, 15
        %s159 = scalar_select %p158, %s157, 15
        %s160 = smul.addr %s159, 5
        %s161 = smul.addr %s160, 8
        %s162 = scalar_lea.vmem %s2, %s161
        %s163 = smul.u32 8, %s14
        %v165 = vld [vmem:[%s155] sm:$0xf]
        %v166 = vld [vmem:[%s155 + $0x4] sm:$0xf]
        %v167 = vld [vmem:[%s155 + $0x8] sm:$0xf]
        %v168 = vld [vmem:[%s155 + $0xc] sm:$0xf]
        %v169 = vld [vmem:[%s155 + $0x10] sm:$0xf]
        %v170 = vld [vmem:[%s155 + $0x14] sm:$0xf]
        %v171 = vld [vmem:[%s155 + $0x18] sm:$0xf]
        %v172 = vld [vmem:[%s155 + $0x1c] sm:$0xf]
        %v173 = vld [vmem:[#allocation2] sm:$0xff]
        %v174 = vld [vmem:[#allocation2 + $0x8] sm:$0xff]
        %v175 = vld [vmem:[#allocation2 + $0x10] sm:$0xf]
        %v176 = vld [vmem:[#allocation2 + $0x14] sm:$0xff]
        %v177 = vld [vmem:[#allocation2 + $0x1c] sm:$0xff]
        %v178 = vld [vmem:[#allocation2 + $0x24] sm:$0xf]
        %v179 = vld [vmem:[#allocation2 + $0x28] sm:$0xff]
        %v180 = vld [vmem:[#allocation2 + $0x30] sm:$0xff]
        %v181 = vld [vmem:[#allocation2 + $0x38] sm:$0xf]
        %v182 = vld [vmem:[#allocation2 + $0x3c] sm:$0xff]
        %v183 = vld [vmem:[#allocation2 + $0x44] sm:$0xff]
        %v184 = vld [vmem:[#allocation2 + $0x4c] sm:$0xf]
        %v193 = vunpack.c.l.b16 %v165
        %v194 = vunpack.c.l.b16 %v166
        %v195 = vunpack.c.l.b16 %v167
        %v196 = vunpack.c.l.b16 %v168
        %v197 = vunpack.c.l.b16 %v169
        %v198 = vunpack.c.l.b16 %v170
        %v199 = vunpack.c.l.b16 %v171
        %v200 = vunpack.c.l.b16 %v172
        %v201 = vpack.c.b16 %v194, %v193
        %v202 = vpack.c.b16 %v196, %v195
        %v203 = vpack.c.b16 %v198, %v197
        %v204 = vpack.c.b16 %v200, %v199
        %v217 = vunpack.c.l.b16 %v173
        %v218 = vunpack.c.h.b16 %v173
        %v219 = vunpack.c.l.b16 %v174
        %v220 = vunpack.c.h.b16 %v174
        %v221 = vunpack.c.l.b16 %v175
        %v222 = vunpack.c.l.b16 %v176
        %v223 = vunpack.c.h.b16 %v176
        %v224 = vunpack.c.l.b16 %v177
        %v225 = vunpack.c.h.b16 %v177
        %v226 = vunpack.c.l.b16 %v178
        %v227 = vunpack.c.l.b16 %v179
        %v228 = vunpack.c.h.b16 %v179
        %v229 = vunpack.c.l.b16 %v180
        %v230 = vunpack.c.h.b16 %v180
        %v231 = vunpack.c.l.b16 %v181
        %v232 = vunpack.c.l.b16 %v182
        %v233 = vunpack.c.h.b16 %v182
        %v234 = vunpack.c.l.b16 %v183
        %v235 = vunpack.c.h.b16 %v183
        %v236 = vunpack.c.l.b16 %v184
        %v237 = vpack.c.b16 %v222, %v217
        %v238 = vpack.c.b16 %v223, %v218
        %v239 = vpack.c.b16 %v224, %v219
        %v240 = vpack.c.b16 %v225, %v220
        %v241 = vpack.c.b16 %v226, %v221
        %v242 = vpack.c.b16 %v232, %v227
        %v243 = vpack.c.b16 %v233, %v228
        %v244 = vpack.c.b16 %v234, %v229
        %v245 = vpack.c.b16 %v235, %v230
        %v246 = vpack.c.b16 %v236, %v231
        %vm257 = vcmask 261120
        %v259 = vsel %vm257, %v201, 0
        %v262 = vsel %vm257, %v202, 0
        %v265 = vsel %vm257, %v203, 0
        %v268 = vsel %vm257, %v204, 0
        %270 = vmatprep.subr.bf16.mxu0 0
        %271 = vmatpush1.bf16.msra.mxu0 0
        %272 = vmatprep.subr.bf16.mxu0 0
        %273 = vmatpush1.bf16.msra.mxu0 0
        %274 = vmatprep.subr.bf16.mxu0 0
        %275 = vmatpush1.bf16.msra.mxu0 0
        %276 = vmatprep.subr.bf16.mxu0 0
        %277 = vmatpush1.bf16.msra.mxu0 0
        %278 = vmatprep.subr.bf16.mxu0 0
        %279 = vmatpush1.bf16.msra.mxu0 0
        %280 = vmatprep.subr.bf16.mxu0 0
        %281 = vmatpush1.bf16.msra.mxu0 0
        %282 = vmatprep.subr.bf16.mxu0 %v243
        %283 = vmatpush1.bf16.msra.mxu0 %v242
        %284 = vmatprep.subr.bf16.mxu0 %v238
        %285 = vmatpush1.bf16.msra.mxu0 %v237
        %286 = vmatprep.subr.bf16.mxu0 0
        %287 = vmatpush2.bf16.msra.mxu0 0
        %288 = vmatprep.subr.bf16.mxu0 0
        %289 = vmatpush2.bf16.msra.mxu0 0
        %290 = vmatprep.subr.bf16.mxu0 0
        %291 = vmatpush2.bf16.msra.mxu0 0
        %292 = vmatprep.subr.bf16.mxu0 0
        %293 = vmatpush2.bf16.msra.mxu0 0
        %294 = vmatprep.subr.bf16.mxu0 0
        %295 = vmatpush2.bf16.msra.mxu0 0
        %296 = vmatprep.subr.bf16.mxu0 0
        %297 = vmatpush2.bf16.msra.mxu0 0
        %298 = vmatprep.subr.bf16.mxu0 0
        %299 = vmatpush2.bf16.msra.mxu0 0
        %300 = vmatprep.subr.bf16.mxu0 0
        %301 = vmatpush2.bf16.msra.mxu0 0
        %302 = vmatprep.mubr.bf16.mxu0 0
        %303 = vmatmul.mubr.bf16.gmra.mxu0 %v259
        %v304 = vpop.f32.mrf.mxu0
        %v305 = vadd.f32 0.0, %v304
        %v306 = vpop.f32.mrf.mxu0
        %v307 = vadd.f32 0.0, %v306
        %v308 = vpop.f32.mrf.mxu0
        %v309 = vadd.f32 0.0, %v308
        %v310 = vpop.f32.mrf.mxu0
        %v311 = vadd.f32 0.0, %v310
        %312 = vmatprep.mubr.bf16.mxu0 0
        %313 = vmatmul.mubr.bf16.gmra.mxu0 %v262
        %v314 = vpop.f32.mrf.mxu0
        %v315 = vadd.f32 0.0, %v314
        %v316 = vpop.f32.mrf.mxu0
        %v317 = vadd.f32 0.0, %v316
        %v318 = vpop.f32.mrf.mxu0
        %v319 = vadd.f32 0.0, %v318
        %v320 = vpop.f32.mrf.mxu0
        %v321 = vadd.f32 0.0, %v320
        %322 = vmatprep.mubr.bf16.mxu0 0
        %323 = vmatmul.mubr.bf16.gmra.mxu0 %v265
        %v324 = vpop.f32.mrf.mxu0
        %v325 = vadd.f32 0.0, %v324
        %v326 = vpop.f32.mrf.mxu0
        %v327 = vadd.f32 0.0, %v326
        %v328 = vpop.f32.mrf.mxu0
        %v329 = vadd.f32 0.0, %v328
        %v330 = vpop.f32.mrf.mxu0
        %v331 = vadd.f32 0.0, %v330
        %332 = vmatprep.mubr.bf16.mxu0 0
        %333 = vmatmul.mubr.bf16.gmra.mxu0 %v268
        %v334 = vpop.f32.mrf.mxu0
        %v335 = vadd.f32 0.0, %v334
        %v336 = vpop.f32.mrf.mxu0
        %v337 = vadd.f32 0.0, %v336
        %v338 = vpop.f32.mrf.mxu0
        %v339 = vadd.f32 0.0, %v338
        %v340 = vpop.f32.mrf.mxu0
        %v341 = vadd.f32 0.0, %v340
        %342 = vdwg.mxu0
        %343 = vmatprep.subr.bf16.mxu0 0
        %344 = vmatpush1.bf16.msra.mxu0 0
        %345 = vmatprep.subr.bf16.mxu0 0
        %346 = vmatpush1.bf16.msra.mxu0 0
        %347 = vmatprep.subr.bf16.mxu0 0
        %348 = vmatpush1.bf16.msra.mxu0 0
        %349 = vmatprep.subr.bf16.mxu0 0
        %350 = vmatpush1.bf16.msra.mxu0 0
        %351 = vmatprep.subr.bf16.mxu0 0
        %352 = vmatpush1.bf16.msra.mxu0 0
        %353 = vmatprep.subr.bf16.mxu0 0
        %354 = vmatpush1.bf16.msra.mxu0 0
        %355 = vmatprep.subr.bf16.mxu0 %v245
        %356 = vmatpush1.bf16.msra.mxu0 %v244
        %357 = vmatprep.subr.bf16.mxu0 %v240
        %358 = vmatpush1.bf16.msra.mxu0 %v239
        %359 = vmatprep.subr.bf16.mxu0 0
        %360 = vmatpush2.bf16.msra.mxu0 0
        %361 = vmatprep.subr.bf16.mxu0 0
        %362 = vmatpush2.bf16.msra.mxu0 0
        %363 = vmatprep.subr.bf16.mxu0 0
        %364 = vmatpush2.bf16.msra.mxu0 0
        %365 = vmatprep.subr.bf16.mxu0 0
        %366 = vmatpush2.bf16.msra.mxu0 0
        %367 = vmatprep.subr.bf16.mxu0 0
        %368 = vmatpush2.bf16.msra.mxu0 0
        %369 = vmatprep.subr.bf16.mxu0 0
        %370 = vmatpush2.bf16.msra.mxu0 0
        %371 = vmatprep.subr.bf16.mxu0 0
        %372 = vmatpush2.bf16.msra.mxu0 0
        %373 = vmatprep.subr.bf16.mxu0 0
        %374 = vmatpush2.bf16.msra.mxu0 0
        %375 = vmatprep.mubr.bf16.mxu0 0
        %376 = vmatmul.mubr.bf16.gmra.mxu0 %v259
        %v377 = vpop.f32.mrf.mxu0
        %v378 = vadd.f32 0.0, %v377
        %v379 = vpop.f32.mrf.mxu0
        %v380 = vadd.f32 0.0, %v379
        %v381 = vpop.f32.mrf.mxu0
        %v382 = vadd.f32 0.0, %v381
        %v383 = vpop.f32.mrf.mxu0
        %v384 = vadd.f32 0.0, %v383
        %385 = vmatprep.mubr.bf16.mxu0 0
        %386 = vmatmul.mubr.bf16.gmra.mxu0 %v262
        %v387 = vpop.f32.mrf.mxu0
        %v388 = vadd.f32 0.0, %v387
        %v389 = vpop.f32.mrf.mxu0
        %v390 = vadd.f32 0.0, %v389
        %v391 = vpop.f32.mrf.mxu0
        %v392 = vadd.f32 0.0, %v391
        %v393 = vpop.f32.mrf.mxu0
        %v394 = vadd.f32 0.0, %v393
        %395 = vmatprep.mubr.bf16.mxu0 0
        %396 = vmatmul.mubr.bf16.gmra.mxu0 %v265
        %v397 = vpop.f32.mrf.mxu0
        %v398 = vadd.f32 0.0, %v397
        %v399 = vpop.f32.mrf.mxu0
        %v400 = vadd.f32 0.0, %v399
        %v401 = vpop.f32.mrf.mxu0
        %v402 = vadd.f32 0.0, %v401
        %v403 = vpop.f32.mrf.mxu0
        %v404 = vadd.f32 0.0, %v403
        %405 = vmatprep.mubr.bf16.mxu0 0
        %406 = vmatmul.mubr.bf16.gmra.mxu0 %v268
        %v407 = vpop.f32.mrf.mxu0
        %v408 = vadd.f32 0.0, %v407
        %v409 = vpop.f32.mrf.mxu0
        %v410 = vadd.f32 0.0, %v409
        %v411 = vpop.f32.mrf.mxu0
        %v412 = vadd.f32 0.0, %v411
        %v413 = vpop.f32.mrf.mxu0
        %v414 = vadd.f32 0.0, %v413
        %415 = vdwg.mxu0
        %416 = vmatprep.subr.bf16.mxu0 0
        %417 = vmatpush1.bf16.msra.mxu0 0
        %418 = vmatprep.subr.bf16.mxu0 0
        %419 = vmatpush1.bf16.msra.mxu0 0
        %420 = vmatprep.subr.bf16.mxu0 0
        %421 = vmatpush1.bf16.msra.mxu0 0
        %422 = vmatprep.subr.bf16.mxu0 0
        %423 = vmatpush1.bf16.msra.mxu0 0
        %424 = vmatprep.subr.bf16.mxu0 0
        %425 = vmatpush1.bf16.msra.mxu0 0
        %426 = vmatprep.subr.bf16.mxu0 0
        %427 = vmatpush1.bf16.msra.mxu0 0
        %428 = vmatprep.subr.bf16.mxu0 0
        %429 = vmatpush1.bf16.msra.mxu0 %v246
        %430 = vmatprep.subr.bf16.mxu0 0
        %431 = vmatpush1.bf16.msra.mxu0 %v241
        %432 = vmatprep.subr.bf16.mxu0 0
        %433 = vmatpush2.bf16.msra.mxu0 0
        %434 = vmatprep.subr.bf16.mxu0 0
        %435 = vmatpush2.bf16.msra.mxu0 0
        %436 = vmatprep.subr.bf16.mxu0 0
        %437 = vmatpush2.bf16.msra.mxu0 0
        %438 = vmatprep.subr.bf16.mxu0 0
        %439 = vmatpush2.bf16.msra.mxu0 0
        %440 = vmatprep.subr.bf16.mxu0 0
        %441 = vmatpush2.bf16.msra.mxu0 0
        %442 = vmatprep.subr.bf16.mxu0 0
        %443 = vmatpush2.bf16.msra.mxu0 0
        %444 = vmatprep.subr.bf16.mxu0 0
        %445 = vmatpush2.bf16.msra.mxu0 0
        %446 = vmatprep.subr.bf16.mxu0 0
        %447 = vmatpush2.bf16.msra.mxu0 0
        %448 = vmatprep.mubr.bf16.mxu0 0
        %449 = vmatmul.mubr.bf16.gmra.mxu0 %v259
        %v450 = vpop.f32.mrf.mxu0
        %v451 = vadd.f32 0.0, %v450
        %v452 = vpop.f32.mrf.mxu0
        %v453 = vpop.f32.mrf.mxu0
        %v454 = vadd.f32 0.0, %v453
        %v455 = vpop.f32.mrf.mxu0
        %456 = vmatprep.mubr.bf16.mxu0 0
        %457 = vmatmul.mubr.bf16.gmra.mxu0 %v262
        %v458 = vpop.f32.mrf.mxu0
        %v459 = vadd.f32 0.0, %v458
        %v460 = vpop.f32.mrf.mxu0
        %v461 = vpop.f32.mrf.mxu0
        %v462 = vadd.f32 0.0, %v461
        %v463 = vpop.f32.mrf.mxu0
        %464 = vmatprep.mubr.bf16.mxu0 0
        %465 = vmatmul.mubr.bf16.gmra.mxu0 %v265
        %v466 = vpop.f32.mrf.mxu0
        %v467 = vadd.f32 0.0, %v466
        %v468 = vpop.f32.mrf.mxu0
        %v469 = vpop.f32.mrf.mxu0
        %v470 = vadd.f32 0.0, %v469
        %v471 = vpop.f32.mrf.mxu0
        %472 = vmatprep.mubr.bf16.mxu0 0
        %473 = vmatmul.mubr.bf16.gmra.mxu0 %v268
        %v474 = vpop.f32.mrf.mxu0
        %v475 = vadd.f32 0.0, %v474
        %v476 = vpop.f32.mrf.mxu0
        %v477 = vpop.f32.mrf.mxu0
        %v478 = vadd.f32 0.0, %v477
        %v479 = vpop.f32.mrf.mxu0
        %480 = vdwg.mxu0
        %481 = vst [vmem:[%s162] sm:$0xff] %v305
        %482 = vst [vmem:[%s162 + $0x8] sm:$0xff] %v307
        %483 = vst [vmem:[%s162 + $0x10] sm:$0xff] %v378
        %484 = vst [vmem:[%s162 + $0x18] sm:$0xff] %v380
        %485 = vst [vmem:[%s162 + $0x20] sm:$0xff] %v451
        %486 = vst [vmem:[%s162 + $0x28] sm:$0xff] %v309
        %487 = vst [vmem:[%s162 + $0x30] sm:$0xff] %v311
        %488 = vst [vmem:[%s162 + $0x38] sm:$0xff] %v382
        %489 = vst [vmem:[%s162 + $0x40] sm:$0xff] %v384
        %490 = vst [vmem:[%s162 + $0x48] sm:$0xff] %v454
        %491 = vst [vmem:[%s162 + $0x50] sm:$0xff] %v315
        %492 = vst [vmem:[%s162 + $0x58] sm:$0xff] %v317
        %493 = vst [vmem:[%s162 + $0x60] sm:$0xff] %v388
        %494 = vst [vmem:[%s162 + $0x68] sm:$0xff] %v390
        %495 = vst [vmem:[%s162 + $0x70] sm:$0xff] %v459
        %496 = vst [vmem:[%s162 + $0x78] sm:$0xff] %v319
        %497 = vst [vmem:[%s162 + $0x80] sm:$0xff] %v321
        %498 = vst [vmem:[%s162 + $0x88] sm:$0xff] %v392
        %499 = vst [vmem:[%s162 + $0x90] sm:$0xff] %v394
        %500 = vst [vmem:[%s162 + $0x98] sm:$0xff] %v462
        %501 = vst [vmem:[%s162 + $0xa0] sm:$0xff] %v325
        %502 = vst [vmem:[%s162 + $0xa8] sm:$0xff] %v327
        %503 = vst [vmem:[%s162 + $0xb0] sm:$0xff] %v398
        %504 = vst [vmem:[%s162 + $0xb8] sm:$0xff] %v400
        %505 = vst [vmem:[%s162 + $0xc0] sm:$0xff] %v467
        %506 = vst [vmem:[%s162 + $0xc8] sm:$0xff] %v329
        %507 = vst [vmem:[%s162 + $0xd0] sm:$0xff] %v331
        %508 = vst [vmem:[%s162 + $0xd8] sm:$0xff] %v402
        %509 = vst [vmem:[%s162 + $0xe0] sm:$0xff] %v404
        %510 = vst [vmem:[%s162 + $0xe8] sm:$0xff] %v470
        %511 = vst [vmem:[%s162 + $0xf0] sm:$0xff] %v335
        %512 = vst [vmem:[%s162 + $0xf8] sm:$0xff] %v337
        %513 = vst [vmem:[%s162 + $0x100] sm:$0xff] %v408
        %514 = vst [vmem:[%s162 + $0x108] sm:$0xff] %v410
        %515 = vst [vmem:[%s162 + $0x110] sm:$0xff] %v475
        %516 = vst [vmem:[%s162 + $0x118] sm:$0xff] %v339
        %517 = vst [vmem:[%s162 + $0x120] sm:$0xff] %v341
        %518 = vst [vmem:[%s162 + $0x128] sm:$0xff] %v412
        %519 = vst [vmem:[%s162 + $0x130] sm:$0xff] %v414
        %520 = vst [vmem:[%s162 + $0x138] sm:$0xff] %v478
        %s521 = smul.u32 8, %s14
        %p522 = scmp.lt.s32.totalorder %s521, 15
        %s523 = scalar_select %p522, %s521, 15
        %s524 = smul.addr %s523, 5
        %s525 = smul.addr %s524, 8
        %s526 = scalar_lea.vmem %s2, %s525
        // Predicated region
        $region33: #{rope_mamba_forward.4} parent=27 // pred_check
          %p527 = pneg %p79
        $region34: #{rope_mamba_forward.4} parent=27 // pred_check_branch
          %529 = sbr.rel (%p527) target = $region36
        $region35: #{rope_mamba_forward.4} parent=27 // pred_region
          %s530 = smul.u32 8, %s14
        $region36: #{rope_mamba_forward.4} parent=27 // pred_fallthru
          _
      $region28: #{rope_mamba_forward.4} parent=5 // pred_fallthru
        _
      %p531 = scmp.le.s32.totalorder 2, %s9
      // Predicated region
      $region37: #{rope_mamba_forward.4} parent=5 // pred_check
        %p532 = pneg %p531
      $region38: #{rope_mamba_forward.4} parent=5 // pred_check_branch
        %534 = sbr.rel (%p532) target = $region40
      $region39: #{rope_mamba_forward.4} parent=5 // pred_region
        %s535 = ssub.s32 %s9, 2
        // Predicated region
        $region41: #{rope_mamba_forward.4} parent=39 // pred_check
          %p536 = pneg %p85
        $region42: #{rope_mamba_forward.4} parent=39 // pred_check_branch
          %538 = sbr.rel (%p536) target = $region44
        $region43: #{rope_mamba_forward.4} parent=39 // pred_region
          %s539 = smul.u32 8, %s15
          %p540 = scmp.lt.s32.totalorder %s539, 15
          %s541 = scalar_select %p540, %s539, 15
          %s542 = smul.addr %s541, 5
          %s543 = smul.addr %s542, 8
          %s544 = scalar_lea.vmem %s2, %s543
        $region44: #{rope_mamba_forward.4} parent=39 // pred_fallthru
          _
      $region40: #{rope_mamba_forward.4} parent=5 // pred_fallthru
        _
    $region6: #{rope_mamba_forward.4} parent=1 // loop_footer
      %s13 = sadd.s32 1, %s9
    $region7: #{rope_mamba_forward.4} parent=1 // loop_footer_branch
      %8 = sbr.rel target = $region3
    $region8: #{rope_mamba_forward.4} parent=1 // loop_exit
      _
    %545 = vsyncpa [#allocation3], 1
    %s546 = scalar_lea.sflag [#allocation3], 1
    %547 = vsyncpa %s546, 1

// kernel: rope_mamba_forward.5
$region0: #{rope_mamba_forward.5}
  #allocation0 [shape = 'u32[]', space=smem, size = 0x4, offset = 0x4, fixed_abs, tag = 'smem constant byte address 0x4 - core index']
  #allocation1 [shape = 'u32[144,128]{1,0:T(1,128)}', space=vmem, size = 0x12000, scoped, tag = 'internal scratch']
  %s0 = inlined_call_operand.vmem [shape: bf16[2,128,1152], index: 0, kind: input, shape index: {}]
  %s1 = inlined_call_operand.vmem [shape: bf16[2,1152,128], index: 1, kind: input, shape index: {}]
  %s2 = inlined_call_operand.vmem [shape: f32[2,1,128], index: 2, kind: input, shape index: {}]
  %s3 = inlined_call_operand.vmem [shape: f32[2,1,128], index: 3, kind: input, shape index: {}]
  %s4 = inlined_call_operand.vmem [shape: f32[128,256], index: 4, kind: output, shape index: {}]
  %s5 = sld [smem:[#allocation0]]
  $region83: #{rope_mamba_forward.5} parent=0
    _
  %s7 = ssub.s32 1, %s5
  %s8 = scalar_select 0, %s7, %s5
  $region1: #{rope_mamba_forward.5} parent=0
    #allocation2 [shape = 'u8[131072]{0}', space=vmem, size = 0x20000, scoped, tag = 'output window, operand 0']
    loop: start=0, step=1, limit=4
    $region2: #{rope_mamba_forward.5} parent=1 // loop_pre_header
      _
    $region3: #{rope_mamba_forward.5} parent=1 // loop_header
      %s10 = sphi 0, %s14
      %p11 = scmp.ge.s32.totalorder %s10, 4
      %s20 = sphi 0, %s22
      %s23 = sphi 0, %s20
      %s24 = sphi 0, %s23
      %s40 = sphi 0, %s24
      %s46 = sphi 0, %s48
      %s49 = sphi 0, %s46
      %s50 = sphi 0, %s49
      %s66 = sphi 0, %s50
      %s72 = sphi 0, %s74
      %s75 = sphi 0, %s72
      %s76 = sphi 0, %s75
      %s92 = sphi 0, %s76
      %s98 = sphi 0, %s100
      %s101 = sphi 0, %s98
      %s102 = sphi 0, %s101
      %s118 = sphi 0, %s102
      %s124 = sphi 0, %s126
      %s127 = sphi 0, %s124
      %s128 = sphi 0, %s127
      %s144 = sphi 0, %s128
    $region4: #{rope_mamba_forward.5} parent=1 // loop_header_branch
      %13 = sbr.rel (%p11) target = $region8
    $region5: #{rope_mamba_forward.5} parent=1 // loop_body
      %s15 = ssub.s32 %s10, 1
      %s16 = ssub.s32 %s10, 2
      %s17 = sadd.s32 %s10, 1
      %s18 = ssub.s32 %s10, %s17
      %p19 = scmp.eq.s32.totalorder %s18, 0
      %s21 = sadd.s32 %s20, 1
      %s22 = scalar_select %p19, %s20, %s21
      %p25 = pneg %p19
      %p26 = scmp.eq.s32.totalorder %s10, 1
      %p27 = por %p25, %p26
      %p28 = scmp.ne.s32.totalorder %s20, %s23
      %p29 = scmp.eq.s32.totalorder %s10, 0
      %p30 = por %p28, %p29
      %p31 = scmp.ne.s32.totalorder %s20, %s23
      %p32 = scmp.eq.s32.totalorder %s15, 1
      %p33 = por %p31, %p32
      %p34 = scmp.ne.s32.totalorder %s23, %s24
      %p35 = scmp.eq.s32.totalorder %s15, 0
      %p36 = por %p34, %p35
      %p37 = scmp.ne.s32.totalorder %s23, %s24
      %p38 = scmp.eq.s32.totalorder %s16, 1
      %p39 = por %p37, %p38
      %p41 = scmp.ne.s32.totalorder %s24, %s40
      %p42 = scmp.eq.s32.totalorder %s16, 0
      %p43 = por %p41, %p42
      %s44 = ssub.s32 %s10, %s17
      %p45 = scmp.eq.s32.totalorder %s44, 0
      %s47 = sadd.s32 %s46, 1
      %s48 = scalar_select %p45, %s46, %s47
      %p51 = pneg %p45
      %p52 = scmp.eq.s32.totalorder %s10, 1
      %p53 = por %p51, %p52
      %p54 = scmp.ne.s32.totalorder %s46, %s49
      %p55 = scmp.eq.s32.totalorder %s10, 0
      %p56 = por %p54, %p55
      %p57 = scmp.ne.s32.totalorder %s46, %s49
      %p58 = scmp.eq.s32.totalorder %s15, 1
      %p59 = por %p57, %p58
      %p60 = scmp.ne.s32.totalorder %s49, %s50
      %p61 = scmp.eq.s32.totalorder %s15, 0
      %p62 = por %p60, %p61
      %p63 = scmp.ne.s32.totalorder %s49, %s50
      %p64 = scmp.eq.s32.totalorder %s16, 1
      %p65 = por %p63, %p64
      %p67 = scmp.ne.s32.totalorder %s50, %s66
      %p68 = scmp.eq.s32.totalorder %s16, 0
      %p69 = por %p67, %p68
      %s70 = ssub.s32 %s10, %s17
      %p71 = scmp.eq.s32.totalorder %s70, 0
      %s73 = sadd.s32 %s72, 1
      %s74 = scalar_select %p71, %s72, %s73
      %p77 = pneg %p71
      %p78 = scmp.eq.s32.totalorder %s10, 1
      %p79 = por %p77, %p78
      %p80 = scmp.ne.s32.totalorder %s72, %s75
      %p81 = scmp.eq.s32.totalorder %s10, 0
      %p82 = por %p80, %p81
      %p83 = scmp.ne.s32.totalorder %s72, %s75
      %p84 = scmp.eq.s32.totalorder %s15, 1
      %p85 = por %p83, %p84
      %p86 = scmp.ne.s32.totalorder %s75, %s76
      %p87 = scmp.eq.s32.totalorder %s15, 0
      %p88 = por %p86, %p87
      %p89 = scmp.ne.s32.totalorder %s75, %s76
      %p90 = scmp.eq.s32.totalorder %s16, 1
      %p91 = por %p89, %p90
      %p93 = scmp.ne.s32.totalorder %s76, %s92
      %p94 = scmp.eq.s32.totalorder %s16, 0
      %p95 = por %p93, %p94
      %s96 = ssub.s32 %s10, %s17
      %p97 = scmp.eq.s32.totalorder %s96, 0
      %s99 = sadd.s32 %s98, 1
      %s100 = scalar_select %p97, %s98, %s99
      %p103 = pneg %p97
      %p104 = scmp.eq.s32.totalorder %s10, 1
      %p105 = por %p103, %p104
      %p106 = scmp.ne.s32.totalorder %s98, %s101
      %p107 = scmp.eq.s32.totalorder %s10, 0
      %p108 = por %p106, %p107
      %p109 = scmp.ne.s32.totalorder %s98, %s101
      %p110 = scmp.eq.s32.totalorder %s15, 1
      %p111 = por %p109, %p110
      %p112 = scmp.ne.s32.totalorder %s101, %s102
      %p113 = scmp.eq.s32.totalorder %s15, 0
      %p114 = por %p112, %p113
      %p115 = scmp.ne.s32.totalorder %s101, %s102
      %p116 = scmp.eq.s32.totalorder %s16, 1
      %p117 = por %p115, %p116
      %p119 = scmp.ne.s32.totalorder %s102, %s118
      %p120 = scmp.eq.s32.totalorder %s16, 0
      %p121 = por %p119, %p120
      %s122 = ssub.s32 %s10, %s17
      %p123 = scmp.eq.s32.totalorder %s122, 0
      %s125 = sadd.s32 %s124, 1
      %s126 = scalar_select %p123, %s124, %s125
      %p129 = pneg %p123
      %p130 = scmp.eq.s32.totalorder %s10, 1
      %p131 = por %p129, %p130
      %p132 = scmp.ne.s32.totalorder %s124, %s127
      %p133 = scmp.eq.s32.totalorder %s10, 0
      %p134 = por %p132, %p133
      %p135 = scmp.ne.s32.totalorder %s124, %s127
      %p136 = scmp.eq.s32.totalorder %s15, 1
      %p137 = por %p135, %p136
      %p138 = scmp.ne.s32.totalorder %s127, %s128
      %p139 = scmp.eq.s32.totalorder %s15, 0
      %p140 = por %p138, %p139
      %p141 = scmp.ne.s32.totalorder %s127, %s128
      %p142 = scmp.eq.s32.totalorder %s16, 1
      %p143 = por %p141, %p142
      %p145 = scmp.ne.s32.totalorder %s128, %s144
      %p146 = scmp.eq.s32.totalorder %s16, 0
      %p147 = por %p145, %p146
      %p148 = scmp.le.s32.totalorder 1, %s10
      %p149 = scmp.lt.s32.totalorder %s10, 3
      %p150 = pnand %p148, %p149
      %p151 = pneg %p150
      // Predicated region
      $region9: #{rope_mamba_forward.5} parent=5 // pred_check
        _
      $region10: #{rope_mamba_forward.5} parent=5 // pred_check_branch
        %153 = sbr.rel (%p150) target = $region12
      $region11: #{rope_mamba_forward.5} parent=5 // pred_region
        %s154 = ssub.s32 %s10, 1
      $region12: #{rope_mamba_forward.5} parent=5 // pred_fallthru
        _
      %p155 = scmp.lt.s32.totalorder %s10, 2
      // Predicated region
      $region13: #{rope_mamba_forward.5} parent=5 // pred_check
        %p156 = pneg %p155
      $region14: #{rope_mamba_forward.5} parent=5 // pred_check_branch
        %158 = sbr.rel (%p156) target = $region16
      $region15: #{rope_mamba_forward.5} parent=5 // pred_region
        // Predicated region
        $region17: #{rope_mamba_forward.5} parent=15 // pred_check
          %p159 = pneg %p30
        $region18: #{rope_mamba_forward.5} parent=15 // pred_check_branch
          %161 = sbr.rel (%p159) target = $region20
        $region19: #{rope_mamba_forward.5} parent=15 // pred_region
          %p162 = scmp.lt.s32.totalorder %s10, 1
          %s163 = scalar_select %p162, %s10, 1
          %s164 = smul.addr %s163, 144
          %s165 = smul.addr %s164, 4
          %s166 = scalar_lea.vmem %s0, %s165
        $region20: #{rope_mamba_forward.5} parent=15 // pred_fallthru
          _
        // Predicated region
        $region21: #{rope_mamba_forward.5} parent=15 // pred_check
          %p167 = pneg %p56
        $region22: #{rope_mamba_forward.5} parent=15 // pred_check_branch
          %169 = sbr.rel (%p167) target = $region24
        $region23: #{rope_mamba_forward.5} parent=15 // pred_region
          %p170 = scmp.lt.s32.totalorder %s10, 1
          %s171 = scalar_select %p170, %s10, 1
          %s172 = smul.addr %s171, 144
          %s173 = smul.addr %s172, 4
          %s174 = scalar_lea.vmem %s1, %s173
        $region24: #{rope_mamba_forward.5} parent=15 // pred_fallthru
          _
        // Predicated region
        $region25: #{rope_mamba_forward.5} parent=15 // pred_check
          %p175 = pneg %p82
        $region26: #{rope_mamba_forward.5} parent=15 // pred_check_branch
          %177 = sbr.rel (%p175) target = $region28
        $region27: #{rope_mamba_forward.5} parent=15 // pred_region
          %p178 = scmp.lt.s32.totalorder %s10, 1
          %s179 = scalar_select %p178, %s10, 1
          %s180 = scalar_lea.vmem %s2, %s179
        $region28: #{rope_mamba_forward.5} parent=15 // pred_fallthru
          _
        // Predicated region
        $region29: #{rope_mamba_forward.5} parent=15 // pred_check
          %p181 = pneg %p108
        $region30: #{rope_mamba_forward.5} parent=15 // pred_check_branch
          %183 = sbr.rel (%p181) target = $region32
        $region31: #{rope_mamba_forward.5} parent=15 // pred_region
          %p184 = scmp.lt.s32.totalorder %s10, 1
          %s185 = scalar_select %p184, %s10, 1
          %s186 = scalar_lea.vmem %s3, %s185
        $region32: #{rope_mamba_forward.5} parent=15 // pred_fallthru
          _
      $region16: #{rope_mamba_forward.5} parent=5 // pred_fallthru
        _
      %p187 = scmp.le.s32.totalorder 1, %s10
      %p188 = scmp.lt.s32.totalorder %s10, 3
      %p189 = pnand %p187, %p188
      %p190 = pneg %p189
      // Predicated region
      $region33: #{rope_mamba_forward.5} parent=5 // pred_check
        _
      $region34: #{rope_mamba_forward.5} parent=5 // pred_check_branch
        %192 = sbr.rel (%p189) target = $region36
      $region35: #{rope_mamba_forward.5} parent=5 // pred_region
        %s193 = ssub.s32 %s10, 1
        %p194 = scmp.lt.s32.totalorder %s15, 1
        %s195 = scalar_select %p194, %s15, 1
        %s196 = smul.addr %s195, 144
        %s197 = smul.addr %s196, 4
        %s198 = scalar_lea.vmem %s0, %s197
        %p199 = pneg %p36
        %p200 = pneg %p33
        %p201 = scmp.lt.s32.totalorder %s15, 1
        %s202 = scalar_select %p201, %s15, 1
        %s203 = smul.addr %s202, 144
        %s204 = smul.addr %s203, 4
        %s205 = scalar_lea.vmem %s1, %s204
        %p206 = pneg %p62
        %p207 = pneg %p59
        %p208 = scmp.lt.s32.totalorder %s15, 1
        %s209 = scalar_select %p208, %s15, 1
        %s210 = scalar_lea.vmem %s2, %s209
        %p211 = pneg %p88
        %p212 = pneg %p85
        %p213 = scmp.lt.s32.totalorder %s15, 1
        %s214 = scalar_select %p213, %s15, 1
        %s215 = scalar_lea.vmem %s3, %s214
        %p216 = pneg %p114
        %p217 = pneg %p111
        %p218 = pneg %p140
        %p219 = pneg %p137
        %s220 = sand.u32 %s127, 1
        %s221 = sand.u32 %s127, 1
        %s222 = smul.addr %s221, 128
        %s223 = scalar_lea.vmem [#allocation2], %s222
        %p224 = scmp.lt.s32.totalorder %s15, 1
        %s225 = scalar_select %p224, %s15, 1
        %s226 = smul.addr %s225, 144
        %s227 = smul.addr %s226, 4
        %s228 = scalar_lea.vmem %s0, %s227
        %p229 = scmp.lt.s32.totalorder %s15, 1
        %s230 = scalar_select %p229, %s15, 1
        %s231 = smul.addr %s230, 144
        %s232 = smul.addr %s231, 4
        %s233 = scalar_lea.vmem %s1, %s232
        %p234 = scmp.lt.s32.totalorder %s15, 1
        %s235 = scalar_select %p234, %s15, 1
        %s236 = scalar_lea.vmem %s2, %s235
        %p237 = scmp.lt.s32.totalorder %s15, 1
        %s238 = scalar_select %p237, %s15, 1
        %s239 = scalar_lea.vmem %s3, %s238
        %v241 = vld [vmem:[%s228] sm:$0xff]
        %v242 = vld [vmem:[%s228 + $0x8] sm:$0xff]
        %v243 = vld [vmem:[%s228 + $0x10] sm:$0xff]
        %v244 = vld [vmem:[%s228 + $0x18] sm:$0xff]
        %v245 = vld [vmem:[%s228 + $0x20] sm:$0xf]
        %v246 = vld [vmem:[%s228 + $0x24] sm:$0xff]
        %v247 = vld [vmem:[%s228 + $0x2c] sm:$0xff]
        %v248 = vld [vmem:[%s228 + $0x34] sm:$0xff]
        %v249 = vld [vmem:[%s228 + $0x3c] sm:$0xff]
        %v250 = vld [vmem:[%s228 + $0x44] sm:$0xf]
        %v251 = vld [vmem:[%s228 + $0x48] sm:$0xff]
        %v252 = vld [vmem:[%s228 + $0x50] sm:$0xff]
        %v253 = vld [vmem:[%s228 + $0x58] sm:$0xff]
        %v254 = vld [vmem:[%s228 + $0x60] sm:$0xff]
        %v255 = vld [vmem:[%s228 + $0x68] sm:$0xf]
        %v256 = vld [vmem:[%s228 + $0x6c] sm:$0xff]
        %v257 = vld [vmem:[%s228 + $0x74] sm:$0xff]
        %v258 = vld [vmem:[%s228 + $0x7c] sm:$0xff]
        %v259 = vld [vmem:[%s228 + $0x84] sm:$0xff]
        %v260 = vld [vmem:[%s228 + $0x8c] sm:$0xf]
        %v261 = vld [vmem:[%s228 + $0x90] sm:$0xff]
        %v262 = vld [vmem:[%s228 + $0x98] sm:$0xff]
        %v263 = vld [vmem:[%s228 + $0xa0] sm:$0xff]
        %v264 = vld [vmem:[%s228 + $0xa8] sm:$0xff]
        %v265 = vld [vmem:[%s228 + $0xb0] sm:$0xf]
        %v266 = vld [vmem:[%s228 + $0xb4] sm:$0xff]
        %v267 = vld [vmem:[%s228 + $0xbc] sm:$0xff]
        %v268 = vld [vmem:[%s228 + $0xc4] sm:$0xff]
        %v269 = vld [vmem:[%s228 + $0xcc] sm:$0xff]
        %v270 = vld [vmem:[%s228 + $0xd4] sm:$0xf]
        %v271 = vld [vmem:[%s228 + $0xd8] sm:$0xff]
        %v272 = vld [vmem:[%s228 + $0xe0] sm:$0xff]
        %v273 = vld [vmem:[%s228 + $0xe8] sm:$0xff]
        %v274 = vld [vmem:[%s228 + $0xf0] sm:$0xff]
        %v275 = vld [vmem:[%s228 + $0xf8] sm:$0xf]
        %v276 = vld [vmem:[%s228 + $0xfc] sm:$0xff]
        %v277 = vld [vmem:[%s228 + $0x104] sm:$0xff]
        %v278 = vld [vmem:[%s228 + $0x10c] sm:$0xff]
        %v279 = vld [vmem:[%s228 + $0x114] sm:$0xff]
        %v280 = vld [vmem:[%s228 + $0x11c] sm:$0xf]
        %v281 = vld [vmem:[%s228 + $0x120] sm:$0xff]
        %v282 = vld [vmem:[%s228 + $0x128] sm:$0xff]
        %v283 = vld [vmem:[%s228 + $0x130] sm:$0xff]
        %v284 = vld [vmem:[%s228 + $0x138] sm:$0xff]
        %v285 = vld [vmem:[%s228 + $0x140] sm:$0xf]
        %v286 = vld [vmem:[%s228 + $0x144] sm:$0xff]
        %v287 = vld [vmem:[%s228 + $0x14c] sm:$0xff]
        %v288 = vld [vmem:[%s228 + $0x154] sm:$0xff]
        %v289 = vld [vmem:[%s228 + $0x15c] sm:$0xff]
        %v290 = vld [vmem:[%s228 + $0x164] sm:$0xf]
        %v291 = vld [vmem:[%s228 + $0x168] sm:$0xff]
        %v292 = vld [vmem:[%s228 + $0x170] sm:$0xff]
        %v293 = vld [vmem:[%s228 + $0x178] sm:$0xff]
        %v294 = vld [vmem:[%s228 + $0x180] sm:$0xff]
        %v295 = vld [vmem:[%s228 + $0x188] sm:$0xf]
        %v296 = vld [vmem:[%s228 + $0x18c] sm:$0xff]
        %v297 = vld [vmem:[%s228 + $0x194] sm:$0xff]
        %v298 = vld [vmem:[%s228 + $0x19c] sm:$0xff]
        %v299 = vld [vmem:[%s228 + $0x1a4] sm:$0xff]
        %v300 = vld [vmem:[%s228 + $0x1ac] sm:$0xf]
        %v301 = vld [vmem:[%s228 + $0x1b0] sm:$0xff]
        %v302 = vld [vmem:[%s228 + $0x1b8] sm:$0xff]
        %v303 = vld [vmem:[%s228 + $0x1c0] sm:$0xff]
        %v304 = vld [vmem:[%s228 + $0x1c8] sm:$0xff]
        %v305 = vld [vmem:[%s228 + $0x1d0] sm:$0xf]
        %v306 = vld [vmem:[%s228 + $0x1d4] sm:$0xff]
        %v307 = vld [vmem:[%s228 + $0x1dc] sm:$0xff]
        %v308 = vld [vmem:[%s228 + $0x1e4] sm:$0xff]
        %v309 = vld [vmem:[%s228 + $0x1ec] sm:$0xff]
        %v310 = vld [vmem:[%s228 + $0x1f4] sm:$0xf]
        %v311 = vld [vmem:[%s228 + $0x1f8] sm:$0xff]
        %v312 = vld [vmem:[%s228 + $0x200] sm:$0xff]
        %v313 = vld [vmem:[%s228 + $0x208] sm:$0xff]
        %v314 = vld [vmem:[%s228 + $0x210] sm:$0xff]
        %v315 = vld [vmem:[%s228 + $0x218] sm:$0xf]
        %v316 = vld [vmem:[%s228 + $0x21c] sm:$0xff]
        %v317 = vld [vmem:[%s228 + $0x224] sm:$0xff]
        %v318 = vld [vmem:[%s228 + $0x22c] sm:$0xff]
        %v319 = vld [vmem:[%s228 + $0x234] sm:$0xff]
        %v320 = vld [vmem:[%s228 + $0x23c] sm:$0xf]
        %v321 = vld [vmem:[%s233] sm:$0xf]
        %v322 = vld [vmem:[%s233 + $0x4] sm:$0xf]
        %v323 = vld [vmem:[%s233 + $0x8] sm:$0xf]
        %v324 = vld [vmem:[%s233 + $0xc] sm:$0xf]
        %v325 = vld [vmem:[%s233 + $0x10] sm:$0xf]
        %v326 = vld [vmem:[%s233 + $0x14] sm:$0xf]
        %v327 = vld [vmem:[%s233 + $0x18] sm:$0xf]
        %v328 = vld [vmem:[%s233 + $0x1c] sm:$0xf]
        %v329 = vld [vmem:[%s233 + $0x20] sm:$0xf]
        %v330 = vld [vmem:[%s233 + $0x24] sm:$0xf]
        %v331 = vld [vmem:[%s233 + $0x28] sm:$0xf]
        %v332 = vld [vmem:[%s233 + $0x2c] sm:$0xf]
        %v333 = vld [vmem:[%s233 + $0x30] sm:$0xf]
        %v334 = vld [vmem:[%s233 + $0x34] sm:$0xf]
        %v335 = vld [vmem:[%s233 + $0x38] sm:$0xf]
        %v336 = vld [vmem:[%s233 + $0x3c] sm:$0xf]
        %v337 = vld [vmem:[%s233 + $0x40] sm:$0xf]
        %v338 = vld [vmem:[%s233 + $0x44] sm:$0xf]
        %v339 = vld [vmem:[%s233 + $0x48] sm:$0xf]
        %v340 = vld [vmem:[%s233 + $0x4c] sm:$0xf]
        %v341 = vld [vmem:[%s233 + $0x50] sm:$0xf]
        %v342 = vld [vmem:[%s233 + $0x54] sm:$0xf]
        %v343 = vld [vmem:[%s233 + $0x58] sm:$0xf]
        %v344 = vld [vmem:[%s233 + $0x5c] sm:$0xf]
        %v345 = vld [vmem:[%s233 + $0x60] sm:$0xf]
        %v346 = vld [vmem:[%s233 + $0x64] sm:$0xf]
        %v347 = vld [vmem:[%s233 + $0x68] sm:$0xf]
        %v348 = vld [vmem:[%s233 + $0x6c] sm:$0xf]
        %v349 = vld [vmem:[%s233 + $0x70] sm:$0xf]
        %v350 = vld [vmem:[%s233 + $0x74] sm:$0xf]
        %v351 = vld [vmem:[%s233 + $0x78] sm:$0xf]
        %v352 = vld [vmem:[%s233 + $0x7c] sm:$0xf]
        %v353 = vld [vmem:[%s233 + $0x80] sm:$0xf]
        %v354 = vld [vmem:[%s233 + $0x84] sm:$0xf]
        %v355 = vld [vmem:[%s233 + $0x88] sm:$0xf]
        %v356 = vld [vmem:[%s233 + $0x8c] sm:$0xf]
        %v357 = vld [vmem:[%s233 + $0x90] sm:$0xf]
        %v358 = vld [vmem:[%s233 + $0x94] sm:$0xf]
        %v359 = vld [vmem:[%s233 + $0x98] sm:$0xf]
        %v360 = vld [vmem:[%s233 + $0x9c] sm:$0xf]
        %v361 = vld [vmem:[%s233 + $0xa0] sm:$0xf]
        %v362 = vld [vmem:[%s233 + $0xa4] sm:$0xf]
        %v363 = vld [vmem:[%s233 + $0xa8] sm:$0xf]
        %v364 = vld [vmem:[%s233 + $0xac] sm:$0xf]
        %v365 = vld [vmem:[%s233 + $0xb0] sm:$0xf]
        %v366 = vld [vmem:[%s233 + $0xb4] sm:$0xf]
        %v367 = vld [vmem:[%s233 + $0xb8] sm:$0xf]
        %v368 = vld [vmem:[%s233 + $0xbc] sm:$0xf]
        %v369 = vld [vmem:[%s233 + $0xc0] sm:$0xf]
        %v370 = vld [vmem:[%s233 + $0xc4] sm:$0xf]
        %v371 = vld [vmem:[%s233 + $0xc8] sm:$0xf]
        %v372 = vld [vmem:[%s233 + $0xcc] sm:$0xf]
        %v373 = vld [vmem:[%s233 + $0xd0] sm:$0xf]
        %v374 = vld [vmem:[%s233 + $0xd4] sm:$0xf]
        %v375 = vld [vmem:[%s233 + $0xd8] sm:$0xf]
        %v376 = vld [vmem:[%s233 + $0xdc] sm:$0xf]
        %v377 = vld [vmem:[%s233 + $0xe0] sm:$0xf]
        %v378 = vld [vmem:[%s233 + $0xe4] sm:$0xf]
        %v379 = vld [vmem:[%s233 + $0xe8] sm:$0xf]
        %v380 = vld [vmem:[%s233 + $0xec] sm:$0xf]
        %v381 = vld [vmem:[%s233 + $0xf0] sm:$0xf]
        %v382 = vld [vmem:[%s233 + $0xf4] sm:$0xf]
        %v383 = vld [vmem:[%s233 + $0xf8] sm:$0xf]
        %v384 = vld [vmem:[%s233 + $0xfc] sm:$0xf]
        %v385 = vld [vmem:[%s233 + $0x100] sm:$0xf]
        %v386 = vld [vmem:[%s233 + $0x104] sm:$0xf]
        %v387 = vld [vmem:[%s233 + $0x108] sm:$0xf]
        %v388 = vld [vmem:[%s233 + $0x10c] sm:$0xf]
        %v389 = vld [vmem:[%s233 + $0x110] sm:$0xf]
        %v390 = vld [vmem:[%s233 + $0x114] sm:$0xf]
        %v391 = vld [vmem:[%s233 + $0x118] sm:$0xf]
        %v392 = vld [vmem:[%s233 + $0x11c] sm:$0xf]
        %v393 = vld [vmem:[%s233 + $0x120] sm:$0xf]
        %v394 = vld [vmem:[%s233 + $0x124] sm:$0xf]
        %v395 = vld [vmem:[%s233 + $0x128] sm:$0xf]
        %v396 = vld [vmem:[%s233 + $0x12c] sm:$0xf]
        %v397 = vld [vmem:[%s233 + $0x130] sm:$0xf]
        %v398 = vld [vmem:[%s233 + $0x134] sm:$0xf]
        %v399 = vld [vmem:[%s233 + $0x138] sm:$0xf]
        %v400 = vld [vmem:[%s233 + $0x13c] sm:$0xf]
        %v401 = vld [vmem:[%s233 + $0x140] sm:$0xf]
        %v402 = vld [vmem:[%s233 + $0x144] sm:$0xf]
        %v403 = vld [vmem:[%s233 + $0x148] sm:$0xf]
        %v404 = vld [vmem:[%s233 + $0x14c] sm:$0xf]
        %v405 = vld [vmem:[%s233 + $0x150] sm:$0xf]
        %v406 = vld [vmem:[%s233 + $0x154] sm:$0xf]
        %v407 = vld [vmem:[%s233 + $0x158] sm:$0xf]
        %v408 = vld [vmem:[%s233 + $0x15c] sm:$0xf]
        %v409 = vld [vmem:[%s233 + $0x160] sm:$0xf]
        %v410 = vld [vmem:[%s233 + $0x164] sm:$0xf]
        %v411 = vld [vmem:[%s233 + $0x168] sm:$0xf]
        %v412 = vld [vmem:[%s233 + $0x16c] sm:$0xf]
        %v413 = vld [vmem:[%s233 + $0x170] sm:$0xf]
        %v414 = vld [vmem:[%s233 + $0x174] sm:$0xf]
        %v415 = vld [vmem:[%s233 + $0x178] sm:$0xf]
        %v416 = vld [vmem:[%s233 + $0x17c] sm:$0xf]
        %v417 = vld [vmem:[%s233 + $0x180] sm:$0xf]
        %v418 = vld [vmem:[%s233 + $0x184] sm:$0xf]
        %v419 = vld [vmem:[%s233 + $0x188] sm:$0xf]
        %v420 = vld [vmem:[%s233 + $0x18c] sm:$0xf]
        %v421 = vld [vmem:[%s233 + $0x190] sm:$0xf]
        %v422 = vld [vmem:[%s233 + $0x194] sm:$0xf]
        %v423 = vld [vmem:[%s233 + $0x198] sm:$0xf]
        %v424 = vld [vmem:[%s233 + $0x19c] sm:$0xf]
        %v425 = vld [vmem:[%s233 + $0x1a0] sm:$0xf]
        %v426 = vld [vmem:[%s233 + $0x1a4] sm:$0xf]
        %v427 = vld [vmem:[%s233 + $0x1a8] sm:$0xf]
        %v428 = vld [vmem:[%s233 + $0x1ac] sm:$0xf]
        %v429 = vld [vmem:[%s233 + $0x1b0] sm:$0xf]
        %v430 = vld [vmem:[%s233 + $0x1b4] sm:$0xf]
        %v431 = vld [vmem:[%s233 + $0x1b8] sm:$0xf]
        %v432 = vld [vmem:[%s233 + $0x1bc] sm:$0xf]
        %v433 = vld [vmem:[%s233 + $0x1c0] sm:$0xf]
        %v434 = vld [vmem:[%s233 + $0x1c4] sm:$0xf]
        %v435 = vld [vmem:[%s233 + $0x1c8] sm:$0xf]
        %v436 = vld [vmem:[%s233 + $0x1cc] sm:$0xf]
        %v437 = vld [vmem:[%s233 + $0x1d0] sm:$0xf]
        %v438 = vld [vmem:[%s233 + $0x1d4] sm:$0xf]
        %v439 = vld [vmem:[%s233 + $0x1d8] sm:$0xf]
        %v440 = vld [vmem:[%s233 + $0x1dc] sm:$0xf]
        %v441 = vld [vmem:[%s233 + $0x1e0] sm:$0xf]
        %v442 = vld [vmem:[%s233 + $0x1e4] sm:$0xf]
        %v443 = vld [vmem:[%s233 + $0x1e8] sm:$0xf]
        %v444 = vld [vmem:[%s233 + $0x1ec] sm:$0xf]
        %v445 = vld [vmem:[%s233 + $0x1f0] sm:$0xf]
        %v446 = vld [vmem:[%s233 + $0x1f4] sm:$0xf]
        %v447 = vld [vmem:[%s233 + $0x1f8] sm:$0xf]
        %v448 = vld [vmem:[%s233 + $0x1fc] sm:$0xf]
        %v449 = vld [vmem:[%s233 + $0x200] sm:$0xf]
        %v450 = vld [vmem:[%s233 + $0x204] sm:$0xf]
        %v451 = vld [vmem:[%s233 + $0x208] sm:$0xf]
        %v452 = vld [vmem:[%s233 + $0x20c] sm:$0xf]
        %v453 = vld [vmem:[%s233 + $0x210] sm:$0xf]
        %v454 = vld [vmem:[%s233 + $0x214] sm:$0xf]
        %v455 = vld [vmem:[%s233 + $0x218] sm:$0xf]
        %v456 = vld [vmem:[%s233 + $0x21c] sm:$0xf]
        %v457 = vld [vmem:[%s233 + $0x220] sm:$0xf]
        %v458 = vld [vmem:[%s233 + $0x224] sm:$0xf]
        %v459 = vld [vmem:[%s233 + $0x228] sm:$0xf]
        %v460 = vld [vmem:[%s233 + $0x22c] sm:$0xf]
        %v461 = vld [vmem:[%s233 + $0x230] sm:$0xf]
        %v462 = vld [vmem:[%s233 + $0x234] sm:$0xf]
        %v463 = vld [vmem:[%s233 + $0x238] sm:$0xf]
        %v464 = vld [vmem:[%s233 + $0x23c] sm:$0xf]
        %v545 = vunpack.c.l.b16 %v241
        %v546 = vunpack.c.h.b16 %v241
        %v547 = vunpack.c.l.b16 %v242
        %v548 = vunpack.c.h.b16 %v242
        %v549 = vunpack.c.l.b16 %v243
        %v550 = vunpack.c.h.b16 %v243
        %v551 = vunpack.c.l.b16 %v244
        %v552 = vunpack.c.h.b16 %v244
        %v553 = vunpack.c.l.b16 %v245
        %v554 = vunpack.c.l.b16 %v246
        %v555 = vunpack.c.h.b16 %v246
        %v556 = vunpack.c.l.b16 %v247
        %v557 = vunpack.c.h.b16 %v247
        %v558 = vunpack.c.l.b16 %v248
        %v559 = vunpack.c.h.b16 %v248
        %v560 = vunpack.c.l.b16 %v249
        %v561 = vunpack.c.h.b16 %v249
        %v562 = vunpack.c.l.b16 %v250
        %v563 = vunpack.c.l.b16 %v251
        %v564 = vunpack.c.h.b16 %v251
        %v565 = vunpack.c.l.b16 %v252
        %v566 = vunpack.c.h.b16 %v252
        %v567 = vunpack.c.l.b16 %v253
        %v568 = vunpack.c.h.b16 %v253
        %v569 = vunpack.c.l.b16 %v254
        %v570 = vunpack.c.h.b16 %v254
        %v571 = vunpack.c.l.b16 %v255
        %v572 = vunpack.c.l.b16 %v256
        %v573 = vunpack.c.h.b16 %v256
        %v574 = vunpack.c.l.b16 %v257
        %v575 = vunpack.c.h.b16 %v257
        %v576 = vunpack.c.l.b16 %v258
        %v577 = vunpack.c.h.b16 %v258
        %v578 = vunpack.c.l.b16 %v259
        %v579 = vunpack.c.h.b16 %v259
        %v580 = vunpack.c.l.b16 %v260
        %v581 = vunpack.c.l.b16 %v261
        %v582 = vunpack.c.h.b16 %v261
        %v583 = vunpack.c.l.b16 %v262
        %v584 = vunpack.c.h.b16 %v262
        %v585 = vunpack.c.l.b16 %v263
        %v586 = vunpack.c.h.b16 %v263
        %v587 = vunpack.c.l.b16 %v264
        %v588 = vunpack.c.h.b16 %v264
        %v589 = vunpack.c.l.b16 %v265
        %v590 = vunpack.c.l.b16 %v266
        %v591 = vunpack.c.h.b16 %v266
        %v592 = vunpack.c.l.b16 %v267
        %v593 = vunpack.c.h.b16 %v267
        %v594 = vunpack.c.l.b16 %v268
        %v595 = vunpack.c.h.b16 %v268
        %v596 = vunpack.c.l.b16 %v269
        %v597 = vunpack.c.h.b16 %v269
        %v598 = vunpack.c.l.b16 %v270
        %v599 = vunpack.c.l.b16 %v271
        %v600 = vunpack.c.h.b16 %v271
        %v601 = vunpack.c.l.b16 %v272
        %v602 = vunpack.c.h.b16 %v272
        %v603 = vunpack.c.l.b16 %v273
        %v604 = vunpack.c.h.b16 %v273
        %v605 = vunpack.c.l.b16 %v274
        %v606 = vunpack.c.h.b16 %v274
        %v607 = vunpack.c.l.b16 %v275
        %v608 = vunpack.c.l.b16 %v276
        %v609 = vunpack.c.h.b16 %v276
        %v610 = vunpack.c.l.b16 %v277
        %v611 = vunpack.c.h.b16 %v277
        %v612 = vunpack.c.l.b16 %v278
        %v613 = vunpack.c.h.b16 %v278
        %v614 = vunpack.c.l.b16 %v279
        %v615 = vunpack.c.h.b16 %v279
        %v616 = vunpack.c.l.b16 %v280
        %v617 = vunpack.c.l.b16 %v281
        %v618 = vunpack.c.h.b16 %v281
        %v619 = vunpack.c.l.b16 %v282
        %v620 = vunpack.c.h.b16 %v282
        %v621 = vunpack.c.l.b16 %v283
        %v622 = vunpack.c.h.b16 %v283
        %v623 = vunpack.c.l.b16 %v284
        %v624 = vunpack.c.h.b16 %v284
        %v625 = vunpack.c.l.b16 %v285
        %v626 = vunpack.c.l.b16 %v286
        %v627 = vunpack.c.h.b16 %v286
        %v628 = vunpack.c.l.b16 %v287
        %v629 = vunpack.c.h.b16 %v287
        %v630 = vunpack.c.l.b16 %v288
        %v631 = vunpack.c.h.b16 %v288
        %v632 = vunpack.c.l.b16 %v289
        %v633 = vunpack.c.h.b16 %v289
        %v634 = vunpack.c.l.b16 %v290
        %v635 = vunpack.c.l.b16 %v291
        %v636 = vunpack.c.h.b16 %v291
        %v637 = vunpack.c.l.b16 %v292
        %v638 = vunpack.c.h.b16 %v292
        %v639 = vunpack.c.l.b16 %v293
        %v640 = vunpack.c.h.b16 %v293
        %v641 = vunpack.c.l.b16 %v294
        %v642 = vunpack.c.h.b16 %v294
        %v643 = vunpack.c.l.b16 %v295
        %v644 = vunpack.c.l.b16 %v296
        %v645 = vunpack.c.h.b16 %v296
        %v646 = vunpack.c.l.b16 %v297
        %v647 = vunpack.c.h.b16 %v297
        %v648 = vunpack.c.l.b16 %v298
        %v649 = vunpack.c.h.b16 %v298
        %v650 = vunpack.c.l.b16 %v299
        %v651 = vunpack.c.h.b16 %v299
        %v652 = vunpack.c.l.b16 %v300
        %v653 = vunpack.c.l.b16 %v301
        %v654 = vunpack.c.h.b16 %v301
        %v655 = vunpack.c.l.b16 %v302
        %v656 = vunpack.c.h.b16 %v302
        %v657 = vunpack.c.l.b16 %v303
        %v658 = vunpack.c.h.b16 %v303
        %v659 = vunpack.c.l.b16 %v304
        %v660 = vunpack.c.h.b16 %v304
        %v661 = vunpack.c.l.b16 %v305
        %v662 = vunpack.c.l.b16 %v306
        %v663 = vunpack.c.h.b16 %v306
        %v664 = vunpack.c.l.b16 %v307
        %v665 = vunpack.c.h.b16 %v307
        %v666 = vunpack.c.l.b16 %v308
        %v667 = vunpack.c.h.b16 %v308
        %v668 = vunpack.c.l.b16 %v309
        %v669 = vunpack.c.h.b16 %v309
        %v670 = vunpack.c.l.b16 %v310
        %v671 = vunpack.c.l.b16 %v311
        %v672 = vunpack.c.h.b16 %v311
        %v673 = vunpack.c.l.b16 %v312
        %v674 = vunpack.c.h.b16 %v312
        %v675 = vunpack.c.l.b16 %v313
        %v676 = vunpack.c.h.b16 %v313
        %v677 = vunpack.c.l.b16 %v314
        %v678 = vunpack.c.h.b16 %v314
        %v679 = vunpack.c.l.b16 %v315
        %v680 = vunpack.c.l.b16 %v316
        %v681 = vunpack.c.h.b16 %v316
        %v682 = vunpack.c.l.b16 %v317
        %v683 = vunpack.c.h.b16 %v317
        %v684 = vunpack.c.l.b16 %v318
        %v685 = vunpack.c.h.b16 %v318
        %v686 = vunpack.c.l.b16 %v319
        %v687 = vunpack.c.h.b16 %v319
        %v688 = vunpack.c.l.b16 %v320
        %v689 = vpack.c.b16 %v554, %v545
        %v690 = vpack.c.b16 %v555, %v546
        %v691 = vpack.c.b16 %v556, %v547
        %v692 = vpack.c.b16 %v557, %v548
        %v693 = vpack.c.b16 %v558, %v549
        %v694 = vpack.c.b16 %v559, %v550
        %v695 = vpack.c.b16 %v560, %v551
        %v696 = vpack.c.b16 %v561, %v552
        %v697 = vpack.c.b16 %v562, %v553
        %v698 = vpack.c.b16 %v572, %v563
        %v699 = vpack.c.b16 %v573, %v564
        %v700 = vpack.c.b16 %v574, %v565
        %v701 = vpack.c.b16 %v575, %v566
        %v702 = vpack.c.b16 %v576, %v567
        %v703 = vpack.c.b16 %v577, %v568
        %v704 = vpack.c.b16 %v578, %v569
        %v705 = vpack.c.b16 %v579, %v570
        %v706 = vpack.c.b16 %v580, %v571
        %v707 = vpack.c.b16 %v590, %v581
        %v708 = vpack.c.b16 %v591, %v582
        %v709 = vpack.c.b16 %v592, %v583
        %v710 = vpack.c.b16 %v593, %v584
        %v711 = vpack.c.b16 %v594, %v585
        %v712 = vpack.c.b16 %v595, %v586
        %v713 = vpack.c.b16 %v596, %v587
        %v714 = vpack.c.b16 %v597, %v588
        %v715 = vpack.c.b16 %v598, %v589
        %v716 = vpack.c.b16 %v608, %v599
        %v717 = vpack.c.b16 %v609, %v600
        %v718 = vpack.c.b16 %v610, %v601
        %v719 = vpack.c.b16 %v611, %v602
        %v720 = vpack.c.b16 %v612, %v603
        %v721 = vpack.c.b16 %v613, %v604
        %v722 = vpack.c.b16 %v614, %v605
        %v723 = vpack.c.b16 %v615, %v606
        %v724 = vpack.c.b16 %v616, %v607
        %v725 = vpack.c.b16 %v626, %v617
        %v726 = vpack.c.b16 %v627, %v618
        %v727 = vpack.c.b16 %v628, %v619
        %v728 = vpack.c.b16 %v629, %v620
        %v729 = vpack.c.b16 %v630, %v621
        %v730 = vpack.c.b16 %v631, %v622
        %v731 = vpack.c.b16 %v632, %v623
        %v732 = vpack.c.b16 %v633, %v624
        %v733 = vpack.c.b16 %v634, %v625
        %v734 = vpack.c.b16 %v644, %v635
        %v735 = vpack.c.b16 %v645, %v636
        %v736 = vpack.c.b16 %v646, %v637
        %v737 = vpack.c.b16 %v647, %v638
        %v738 = vpack.c.b16 %v648, %v639
        %v739 = vpack.c.b16 %v649, %v640
        %v740 = vpack.c.b16 %v650, %v641
        %v741 = vpack.c.b16 %v651, %v642
        %v742 = vpack.c.b16 %v652, %v643
        %v743 = vpack.c.b16 %v662, %v653
        %v744 = vpack.c.b16 %v663, %v654
        %v745 = vpack.c.b16 %v664, %v655
        %v746 = vpack.c.b16 %v665, %v656
        %v747 = vpack.c.b16 %v666, %v657
        %v748 = vpack.c.b16 %v667, %v658
        %v749 = vpack.c.b16 %v668, %v659
        %v750 = vpack.c.b16 %v669, %v660
        %v751 = vpack.c.b16 %v670, %v661
        %v752 = vpack.c.b16 %v680, %v671
        %v753 = vpack.c.b16 %v681, %v672
        %v754 = vpack.c.b16 %v682, %v673
        %v755 = vpack.c.b16 %v683, %v674
        %v756 = vpack.c.b16 %v684, %v675
        %v757 = vpack.c.b16 %v685, %v676
        %v758 = vpack.c.b16 %v686, %v677
        %v759 = vpack.c.b16 %v687, %v678
        %v760 = vpack.c.b16 %v688, %v679
        %v977 = vunpack.c.l.b16 %v321
        %v978 = vunpack.c.l.b16 %v322
        %v979 = vunpack.c.l.b16 %v323
        %v980 = vunpack.c.l.b16 %v324
        %v981 = vunpack.c.l.b16 %v325
        %v982 = vunpack.c.l.b16 %v326
        %v983 = vunpack.c.l.b16 %v327
        %v984 = vunpack.c.l.b16 %v328
        %v985 = vunpack.c.l.b16 %v329
        %v986 = vunpack.c.l.b16 %v330
        %v987 = vunpack.c.l.b16 %v331
        %v988 = vunpack.c.l.b16 %v332
        %v989 = vunpack.c.l.b16 %v333
        %v990 = vunpack.c.l.b16 %v334
        %v991 = vunpack.c.l.b16 %v335
        %v992 = vunpack.c.l.b16 %v336
        %v993 = vunpack.c.l.b16 %v337
        %v994 = vunpack.c.l.b16 %v338
        %v995 = vunpack.c.l.b16 %v339
        %v996 = vunpack.c.l.b16 %v340
        %v997 = vunpack.c.l.b16 %v341
        %v998 = vunpack.c.l.b16 %v342
        %v999 = vunpack.c.l.b16 %v343
        %v1000 = vunpack.c.l.b16 %v344
        %v1001 = vunpack.c.l.b16 %v345
        %v1002 = vunpack.c.l.b16 %v346
        %v1003 = vunpack.c.l.b16 %v347
        %v1004 = vunpack.c.l.b16 %v348
        %v1005 = vunpack.c.l.b16 %v349
        %v1006 = vunpack.c.l.b16 %v350
        %v1007 = vunpack.c.l.b16 %v351
        %v1008 = vunpack.c.l.b16 %v352
        %v1009 = vunpack.c.l.b16 %v353
        %v1010 = vunpack.c.l.b16 %v354
        %v1011 = vunpack.c.l.b16 %v355
        %v1012 = vunpack.c.l.b16 %v356
        %v1013 = vunpack.c.l.b16 %v357
        %v1014 = vunpack.c.l.b16 %v358
        %v1015 = vunpack.c.l.b16 %v359
        %v1016 = vunpack.c.l.b16 %v360
        %v1017 = vunpack.c.l.b16 %v361
        %v1018 = vunpack.c.l.b16 %v362
        %v1019 = vunpack.c.l.b16 %v363
        %v1020 = vunpack.c.l.b16 %v364
        %v1021 = vunpack.c.l.b16 %v365
        %v1022 = vunpack.c.l.b16 %v366
        %v1023 = vunpack.c.l.b16 %v367
        %v1024 = vunpack.c.l.b16 %v368
        %v1025 = vunpack.c.l.b16 %v369
        %v1026 = vunpack.c.l.b16 %v370
        %v1027 = vunpack.c.l.b16 %v371
        %v1028 = vunpack.c.l.b16 %v372
        %v1029 = vunpack.c.l.b16 %v373
        %v1030 = vunpack.c.l.b16 %v374
        %v1031 = vunpack.c.l.b16 %v375
        %v1032 = vunpack.c.l.b16 %v376
        %v1033 = vunpack.c.l.b16 %v377
        %v1034 = vunpack.c.l.b16 %v378
        %v1035 = vunpack.c.l.b16 %v379
        %v1036 = vunpack.c.l.b16 %v380
        %v1037 = vunpack.c.l.b16 %v381
        %v1038 = vunpack.c.l.b16 %v382
        %v1039 = vunpack.c.l.b16 %v383
        %v1040 = vunpack.c.l.b16 %v384
        %v1041 = vunpack.c.l.b16 %v385
        %v1042 = vunpack.c.l.b16 %v386
        %v1043 = vunpack.c.l.b16 %v387
        %v1044 = vunpack.c.l.b16 %v388
        %v1045 = vunpack.c.l.b16 %v389
        %v1046 = vunpack.c.l.b16 %v390
        %v1047 = vunpack.c.l.b16 %v391
        %v1048 = vunpack.c.l.b16 %v392
        %v1049 = vunpack.c.l.b16 %v393
        %v1050 = vunpack.c.l.b16 %v394
        %v1051 = vunpack.c.l.b16 %v395
        %v1052 = vunpack.c.l.b16 %v396
        %v1053 = vunpack.c.l.b16 %v397
        %v1054 = vunpack.c.l.b16 %v398
        %v1055 = vunpack.c.l.b16 %v399
        %v1056 = vunpack.c.l.b16 %v400
        %v1057 = vunpack.c.l.b16 %v401
        %v1058 = vunpack.c.l.b16 %v402
        %v1059 = vunpack.c.l.b16 %v403
        %v1060 = vunpack.c.l.b16 %v404
        %v1061 = vunpack.c.l.b16 %v405
        %v1062 = vunpack.c.l.b16 %v406
        %v1063 = vunpack.c.l.b16 %v407
        %v1064 = vunpack.c.l.b16 %v408
        %v1065 = vunpack.c.l.b16 %v409
        %v1066 = vunpack.c.l.b16 %v410
        %v1067 = vunpack.c.l.b16 %v411
        %v1068 = vunpack.c.l.b16 %v412
        %v1069 = vunpack.c.l.b16 %v413
        %v1070 = vunpack.c.l.b16 %v414
        %v1071 = vunpack.c.l.b16 %v415
        %v1072 = vunpack.c.l.b16 %v416
        %v1073 = vunpack.c.l.b16 %v417
        %v1074 = vunpack.c.l.b16 %v418
        %v1075 = vunpack.c.l.b16 %v419
        %v1076 = vunpack.c.l.b16 %v420
        %v1077 = vunpack.c.l.b16 %v421
        %v1078 = vunpack.c.l.b16 %v422
        %v1079 = vunpack.c.l.b16 %v423
        %v1080 = vunpack.c.l.b16 %v424
        %v1081 = vunpack.c.l.b16 %v425
        %v1082 = vunpack.c.l.b16 %v426
        %v1083 = vunpack.c.l.b16 %v427
        %v1084 = vunpack.c.l.b16 %v428
        %v1085 = vunpack.c.l.b16 %v429
        %v1086 = vunpack.c.l.b16 %v430
        %v1087 = vunpack.c.l.b16 %v431
        %v1088 = vunpack.c.l.b16 %v432
        %v1089 = vunpack.c.l.b16 %v433
        %v1090 = vunpack.c.l.b16 %v434
        %v1091 = vunpack.c.l.b16 %v435
        %v1092 = vunpack.c.l.b16 %v436
        %v1093 = vunpack.c.l.b16 %v437
        %v1094 = vunpack.c.l.b16 %v438
        %v1095 = vunpack.c.l.b16 %v439
        %v1096 = vunpack.c.l.b16 %v440
        %v1097 = vunpack.c.l.b16 %v441
        %v1098 = vunpack.c.l.b16 %v442
        %v1099 = vunpack.c.l.b16 %v443
        %v1100 = vunpack.c.l.b16 %v444
        %v1101 = vunpack.c.l.b16 %v445
        %v1102 = vunpack.c.l.b16 %v446
        %v1103 = vunpack.c.l.b16 %v447
        %v1104 = vunpack.c.l.b16 %v448
        %v1105 = vunpack.c.l.b16 %v449
        %v1106 = vunpack.c.l.b16 %v450
        %v1107 = vunpack.c.l.b16 %v451
        %v1108 = vunpack.c.l.b16 %v452
        %v1109 = vunpack.c.l.b16 %v453
        %v1110 = vunpack.c.l.b16 %v454
        %v1111 = vunpack.c.l.b16 %v455
        %v1112 = vunpack.c.l.b16 %v456
        %v1113 = vunpack.c.l.b16 %v457
        %v1114 = vunpack.c.l.b16 %v458
        %v1115 = vunpack.c.l.b16 %v459
        %v1116 = vunpack.c.l.b16 %v460
        %v1117 = vunpack.c.l.b16 %v461
        %v1118 = vunpack.c.l.b16 %v462
        %v1119 = vunpack.c.l.b16 %v463
        %v1120 = vunpack.c.l.b16 %v464
        %v1121 = vpack.c.b16 %v978, %v977
        %v1122 = vpack.c.b16 %v980, %v979
        %v1123 = vpack.c.b16 %v982, %v981
        %v1124 = vpack.c.b16 %v984, %v983
        %v1125 = vpack.c.b16 %v986, %v985
        %v1126 = vpack.c.b16 %v988, %v987
        %v1127 = vpack.c.b16 %v990, %v989
        %v1128 = vpack.c.b16 %v992, %v991
        %v1129 = vpack.c.b16 %v994, %v993
        %v1130 = vpack.c.b16 %v996, %v995
        %v1131 = vpack.c.b16 %v998, %v997
        %v1132 = vpack.c.b16 %v1000, %v999
        %v1133 = vpack.c.b16 %v1002, %v1001
        %v1134 = vpack.c.b16 %v1004, %v1003
        %v1135 = vpack.c.b16 %v1006, %v1005
        %v1136 = vpack.c.b16 %v1008, %v1007
        %v1137 = vpack.c.b16 %v1010, %v1009
        %v1138 = vpack.c.b16 %v1012, %v1011
        %v1139 = vpack.c.b16 %v1014, %v1013
        %v1140 = vpack.c.b16 %v1016, %v1015
        %v1141 = vpack.c.b16 %v1018, %v1017
        %v1142 = vpack.c.b16 %v1020, %v1019
        %v1143 = vpack.c.b16 %v1022, %v1021
        %v1144 = vpack.c.b16 %v1024, %v1023
        %v1145 = vpack.c.b16 %v1026, %v1025
        %v1146 = vpack.c.b16 %v1028, %v1027
        %v1147 = vpack.c.b16 %v1030, %v1029
        %v1148 = vpack.c.b16 %v1032, %v1031
        %v1149 = vpack.c.b16 %v1034, %v1033
        %v1150 = vpack.c.b16 %v1036, %v1035
        %v1151 = vpack.c.b16 %v1038, %v1037
        %v1152 = vpack.c.b16 %v1040, %v1039
        %v1153 = vpack.c.b16 %v1042, %v1041
        %v1154 = vpack.c.b16 %v1044, %v1043
        %v1155 = vpack.c.b16 %v1046, %v1045
        %v1156 = vpack.c.b16 %v1048, %v1047
        %v1157 = vpack.c.b16 %v1050, %v1049
        %v1158 = vpack.c.b16 %v1052, %v1051
        %v1159 = vpack.c.b16 %v1054, %v1053
        %v1160 = vpack.c.b16 %v1056, %v1055
        %v1161 = vpack.c.b16 %v1058, %v1057
        %v1162 = vpack.c.b16 %v1060, %v1059
        %v1163 = vpack.c.b16 %v1062, %v1061
        %v1164 = vpack.c.b16 %v1064, %v1063
        %v1165 = vpack.c.b16 %v1066, %v1065
        %v1166 = vpack.c.b16 %v1068, %v1067
        %v1167 = vpack.c.b16 %v1070, %v1069
        %v1168 = vpack.c.b16 %v1072, %v1071
        %v1169 = vpack.c.b16 %v1074, %v1073
        %v1170 = vpack.c.b16 %v1076, %v1075
        %v1171 = vpack.c.b16 %v1078, %v1077
        %v1172 = vpack.c.b16 %v1080, %v1079
        %v1173 = vpack.c.b16 %v1082, %v1081
        %v1174 = vpack.c.b16 %v1084, %v1083
        %v1175 = vpack.c.b16 %v1086, %v1085
        %v1176 = vpack.c.b16 %v1088, %v1087
        %v1177 = vpack.c.b16 %v1090, %v1089
        %v1178 = vpack.c.b16 %v1092, %v1091
        %v1179 = vpack.c.b16 %v1094, %v1093
        %v1180 = vpack.c.b16 %v1096, %v1095
        %v1181 = vpack.c.b16 %v1098, %v1097
        %v1182 = vpack.c.b16 %v1100, %v1099
        %v1183 = vpack.c.b16 %v1102, %v1101
        %v1184 = vpack.c.b16 %v1104, %v1103
        %v1185 = vpack.c.b16 %v1106, %v1105
        %v1186 = vpack.c.b16 %v1108, %v1107
        %v1187 = vpack.c.b16 %v1110, %v1109
        %v1188 = vpack.c.b16 %v1112, %v1111
        %v1189 = vpack.c.b16 %v1114, %v1113
        %v1190 = vpack.c.b16 %v1116, %v1115
        %v1191 = vpack.c.b16 %v1118, %v1117
        %v1192 = vpack.c.b16 %v1120, %v1119
        %1265 = vmatprep.subr.bf16.mxu0 0
        %1266 = vmatpush1.bf16.msra.mxu0 %v1128
        %1267 = vmatprep.subr.bf16.mxu0 0
        %1268 = vmatpush1.bf16.msra.mxu0 %v1127
        %1269 = vmatprep.subr.bf16.mxu0 0
        %1270 = vmatpush1.bf16.msra.mxu0 %v1126
        %1271 = vmatprep.subr.bf16.mxu0 0
        %1272 = vmatpush1.bf16.msra.mxu0 %v1125
        %1273 = vmatprep.subr.bf16.mxu0 0
        %1274 = vmatpush1.bf16.msra.mxu0 %v1124
        %1275 = vmatprep.subr.bf16.mxu0 0
        %1276 = vmatpush1.bf16.msra.mxu0 %v1123
        %1277 = vmatprep.subr.bf16.mxu0 0
        %1278 = vmatpush1.bf16.msra.mxu0 %v1122
        %1279 = vmatprep.subr.bf16.mxu0 0
        %1280 = vmatpush1.bf16.msra.mxu0 %v1121
        %1281 = vmatprep.subr.bf16.mxu0 0
        %1282 = vmatpush2.bf16.msra.mxu0 %v1136
        %1283 = vmatprep.subr.bf16.mxu0 0
        %1284 = vmatpush2.bf16.msra.mxu0 %v1135
        %1285 = vmatprep.subr.bf16.mxu0 0
        %1286 = vmatpush2.bf16.msra.mxu0 %v1134
        %1287 = vmatprep.subr.bf16.mxu0 0
        %1288 = vmatpush2.bf16.msra.mxu0 %v1133
        %1289 = vmatprep.subr.bf16.mxu0 0
        %1290 = vmatpush2.bf16.msra.mxu0 %v1132
        %1291 = vmatprep.subr.bf16.mxu0 0
        %1292 = vmatpush2.bf16.msra.mxu0 %v1131
        %1293 = vmatprep.subr.bf16.mxu0 0
        %1294 = vmatpush2.bf16.msra.mxu0 %v1130
        %1295 = vmatprep.subr.bf16.mxu0 0
        %1296 = vmatpush2.bf16.msra.mxu0 %v1129
        %1297 = vmatprep.mubr.bf16.mxu0 %v690
        %1298 = vmatmul.mubr.bf16.gmra.mxu0 %v689
        %v1299 = vpop.f32.mrf.mxu0
        %v1300 = vadd.f32 0.0, %v1299
        %v1301 = vpop.f32.mrf.mxu0
        %v1302 = vpop.f32.mrf.mxu0
        %v1303 = vadd.f32 0.0, %v1302
        %v1304 = vpop.f32.mrf.mxu0
        %1305 = vmatprep.mubr.bf16.mxu0 %v699
        %1306 = vmatmul.mubr.bf16.gmra.mxu0 %v698
        %v1307 = vpop.f32.mrf.mxu0
        %v1308 = vadd.f32 0.0, %v1307
        %v1309 = vpop.f32.mrf.mxu0
        %v1310 = vpop.f32.mrf.mxu0
        %v1311 = vadd.f32 0.0, %v1310
        %v1312 = vpop.f32.mrf.mxu0
        %1313 = vmatprep.mubr.bf16.mxu0 %v708
        %1314 = vmatmul.mubr.bf16.gmra.mxu0 %v707
        %v1315 = vpop.f32.mrf.mxu0
        %v1316 = vadd.f32 0.0, %v1315
        %v1317 = vpop.f32.mrf.mxu0
        %v1318 = vpop.f32.mrf.mxu0
        %v1319 = vadd.f32 0.0, %v1318
        %v1320 = vpop.f32.mrf.mxu0
        %1321 = vmatprep.mubr.bf16.mxu0 %v717
        %1322 = vmatmul.mubr.bf16.gmra.mxu0 %v716
        %v1323 = vpop.f32.mrf.mxu0
        %v1324 = vadd.f32 0.0, %v1323
        %v1325 = vpop.f32.mrf.mxu0
        %v1326 = vpop.f32.mrf.mxu0
        %v1327 = vadd.f32 0.0, %v1326
        %v1328 = vpop.f32.mrf.mxu0
        %1329 = vmatprep.mubr.bf16.mxu0 %v726
        %1330 = vmatmul.mubr.bf16.gmra.mxu0 %v725
        %v1331 = vpop.f32.mrf.mxu0
        %v1332 = vadd.f32 0.0, %v1331
        %v1333 = vpop.f32.mrf.mxu0
        %v1334 = vpop.f32.mrf.mxu0
        %v1335 = vadd.f32 0.0, %v1334
        %v1336 = vpop.f32.mrf.mxu0
        %1337 = vmatprep.mubr.bf16.mxu0 %v735
        %1338 = vmatmul.mubr.bf16.gmra.mxu0 %v734
        %v1339 = vpop.f32.mrf.mxu0
        %v1340 = vadd.f32 0.0, %v1339
        %v1341 = vpop.f32.mrf.mxu0
        %v1342 = vpop.f32.mrf.mxu0
        %v1343 = vadd.f32 0.0, %v1342
        %v1344 = vpop.f32.mrf.mxu0
        %1345 = vmatprep.mubr.bf16.mxu0 %v744
        %1346 = vmatmul.mubr.bf16.gmra.mxu0 %v743
        %v1347 = vpop.f32.mrf.mxu0
        %v1348 = vadd.f32 0.0, %v1347
        %v1349 = vpop.f32.mrf.mxu0
        %v1350 = vpop.f32.mrf.mxu0
        %v1351 = vadd.f32 0.0, %v1350
        %v1352 = vpop.f32.mrf.mxu0
        %1353 = vmatprep.mubr.bf16.mxu0 %v753
        %1354 = vmatmul.mubr.bf16.gmra.mxu0 %v752
        %v1355 = vpop.f32.mrf.mxu0
        %v1356 = vadd.f32 0.0, %v1355
        %v1357 = vpop.f32.mrf.mxu0
        %v1358 = vpop.f32.mrf.mxu0
        %v1359 = vadd.f32 0.0, %v1358
        %v1360 = vpop.f32.mrf.mxu0
        %1361 = vdwg.mxu0
        %1362 = vmatprep.subr.bf16.mxu0 0
        %1363 = vmatpush1.bf16.msra.mxu0 %v1144
        %1364 = vmatprep.subr.bf16.mxu0 0
        %1365 = vmatpush1.bf16.msra.mxu0 %v1143
        %1366 = vmatprep.subr.bf16.mxu0 0
        %1367 = vmatpush1.bf16.msra.mxu0 %v1142
        %1368 = vmatprep.subr.bf16.mxu0 0
        %1369 = vmatpush1.bf16.msra.mxu0 %v1141
        %1370 = vmatprep.subr.bf16.mxu0 0
        %1371 = vmatpush1.bf16.msra.mxu0 %v1140
        %1372 = vmatprep.subr.bf16.mxu0 0
        %1373 = vmatpush1.bf16.msra.mxu0 %v1139
        %1374 = vmatprep.subr.bf16.mxu0 0
        %1375 = vmatpush1.bf16.msra.mxu0 %v1138
        %1376 = vmatprep.subr.bf16.mxu0 0
        %1377 = vmatpush1.bf16.msra.mxu0 %v1137
        %1378 = vmatprep.subr.bf16.mxu0 0
        %1379 = vmatpush2.bf16.msra.mxu0 %v1152
        %1380 = vmatprep.subr.bf16.mxu0 0
        %1381 = vmatpush2.bf16.msra.mxu0 %v1151
        %1382 = vmatprep.subr.bf16.mxu0 0
        %1383 = vmatpush2.bf16.msra.mxu0 %v1150
        %1384 = vmatprep.subr.bf16.mxu0 0
        %1385 = vmatpush2.bf16.msra.mxu0 %v1149
        %1386 = vmatprep.subr.bf16.mxu0 0
        %1387 = vmatpush2.bf16.msra.mxu0 %v1148
        %1388 = vmatprep.subr.bf16.mxu0 0
        %1389 = vmatpush2.bf16.msra.mxu0 %v1147
        %1390 = vmatprep.subr.bf16.mxu0 0
        %1391 = vmatpush2.bf16.msra.mxu0 %v1146
        %1392 = vmatprep.subr.bf16.mxu0 0
        %1393 = vmatpush2.bf16.msra.mxu0 %v1145
        %1394 = vmatprep.mubr.bf16.mxu0 %v692
        %1395 = vmatmul.mubr.bf16.gmra.mxu0 %v691
        %v1396 = vpop.f32.mrf.mxu0
        %v1397 = vadd.f32 %v1300, %v1396
        %v1398 = vpop.f32.mrf.mxu0
        %v1399 = vpop.f32.mrf.mxu0
        %v1400 = vadd.f32 %v1303, %v1399
        %v1401 = vpop.f32.mrf.mxu0
        %1402 = vmatprep.mubr.bf16.mxu0 %v701
        %1403 = vmatmul.mubr.bf16.gmra.mxu0 %v700
        %v1404 = vpop.f32.mrf.mxu0
        %v1405 = vadd.f32 %v1308, %v1404
        %v1406 = vpop.f32.mrf.mxu0
        %v1407 = vpop.f32.mrf.mxu0
        %v1408 = vadd.f32 %v1311, %v1407
        %v1409 = vpop.f32.mrf.mxu0
        %1410 = vmatprep.mubr.bf16.mxu0 %v710
        %1411 = vmatmul.mubr.bf16.gmra.mxu0 %v709
        %v1412 = vpop.f32.mrf.mxu0
        %v1413 = vadd.f32 %v1316, %v1412
        %v1414 = vpop.f32.mrf.mxu0
        %v1415 = vpop.f32.mrf.mxu0
        %v1416 = vadd.f32 %v1319, %v1415
        %v1417 = vpop.f32.mrf.mxu0
        %1418 = vmatprep.mubr.bf16.mxu0 %v719
        %1419 = vmatmul.mubr.bf16.gmra.mxu0 %v718
        %v1420 = vpop.f32.mrf.mxu0
        %v1421 = vadd.f32 %v1324, %v1420
        %v1422 = vpop.f32.mrf.mxu0
        %v1423 = vpop.f32.mrf.mxu0
        %v1424 = vadd.f32 %v1327, %v1423
        %v1425 = vpop.f32.mrf.mxu0
        %1426 = vmatprep.mubr.bf16.mxu0 %v728
        %1427 = vmatmul.mubr.bf16.gmra.mxu0 %v727
        %v1428 = vpop.f32.mrf.mxu0
        %v1429 = vadd.f32 %v1332, %v1428
        %v1430 = vpop.f32.mrf.mxu0
        %v1431 = vpop.f32.mrf.mxu0
        %v1432 = vadd.f32 %v1335, %v1431
        %v1433 = vpop.f32.mrf.mxu0
        %1434 = vmatprep.mubr.bf16.mxu0 %v737
        %1435 = vmatmul.mubr.bf16.gmra.mxu0 %v736
        %v1436 = vpop.f32.mrf.mxu0
        %v1437 = vadd.f32 %v1340, %v1436
        %v1438 = vpop.f32.mrf.mxu0
        %v1439 = vpop.f32.mrf.mxu0
        %v1440 = vadd.f32 %v1343, %v1439
        %v1441 = vpop.f32.mrf.mxu0
        %1442 = vmatprep.mubr.bf16.mxu0 %v746
        %1443 = vmatmul.mubr.bf16.gmra.mxu0 %v745
        %v1444 = vpop.f32.mrf.mxu0
        %v1445 = vadd.f32 %v1348, %v1444
        %v1446 = vpop.f32.mrf.mxu0
        %v1447 = vpop.f32.mrf.mxu0
        %v1448 = vadd.f32 %v1351, %v1447
        %v1449 = vpop.f32.mrf.mxu0
        %1450 = vmatprep.mubr.bf16.mxu0 %v755
        %1451 = vmatmul.mubr.bf16.gmra.mxu0 %v754
        %v1452 = vpop.f32.mrf.mxu0
        %v1453 = vadd.f32 %v1356, %v1452
        %v1454 = vpop.f32.mrf.mxu0
        %v1455 = vpop.f32.mrf.mxu0
        %v1456 = vadd.f32 %v1359, %v1455
        %v1457 = vpop.f32.mrf.mxu0
        %1458 = vdwg.mxu0
        %1459 = vmatprep.subr.bf16.mxu0 0
        %1460 = vmatpush1.bf16.msra.mxu0 %v1160
        %1461 = vmatprep.subr.bf16.mxu0 0
        %1462 = vmatpush1.bf16.msra.mxu0 %v1159
        %1463 = vmatprep.subr.bf16.mxu0 0
        %1464 = vmatpush1.bf16.msra.mxu0 %v1158
        %1465 = vmatprep.subr.bf16.mxu0 0
        %1466 = vmatpush1.bf16.msra.mxu0 %v1157
        %1467 = vmatprep.subr.bf16.mxu0 0
        %1468 = vmatpush1.bf16.msra.mxu0 %v1156
        %1469 = vmatprep.subr.bf16.mxu0 0
        %1470 = vmatpush1.bf16.msra.mxu0 %v1155
        %1471 = vmatprep.subr.bf16.mxu0 0
        %1472 = vmatpush1.bf16.msra.mxu0 %v1154
        %1473 = vmatprep.subr.bf16.mxu0 0
        %1474 = vmatpush1.bf16.msra.mxu0 %v1153
        %1475 = vmatprep.subr.bf16.mxu0 0
        %1476 = vmatpush2.bf16.msra.mxu0 %v1168
        %1477 = vmatprep.subr.bf16.mxu0 0
        %1478 = vmatpush2.bf16.msra.mxu0 %v1167
        %1479 = vmatprep.subr.bf16.mxu0 0
        %1480 = vmatpush2.bf16.msra.mxu0 %v1166
        %1481 = vmatprep.subr.bf16.mxu0 0
        %1482 = vmatpush2.bf16.msra.mxu0 %v1165
        %1483 = vmatprep.subr.bf16.mxu0 0
        %1484 = vmatpush2.bf16.msra.mxu0 %v1164
        %1485 = vmatprep.subr.bf16.mxu0 0
        %1486 = vmatpush2.bf16.msra.mxu0 %v1163
        %1487 = vmatprep.subr.bf16.mxu0 0
        %1488 = vmatpush2.bf16.msra.mxu0 %v1162
        %1489 = vmatprep.subr.bf16.mxu0 0
        %1490 = vmatpush2.bf16.msra.mxu0 %v1161
        %1491 = vmatprep.mubr.bf16.mxu0 %v694
        %1492 = vmatmul.mubr.bf16.gmra.mxu0 %v693
        %v1493 = vpop.f32.mrf.mxu0
        %v1494 = vadd.f32 %v1397, %v1493
        %v1495 = vpop.f32.mrf.mxu0
        %v1496 = vpop.f32.mrf.mxu0
        %v1497 = vadd.f32 %v1400, %v1496
        %v1498 = vpop.f32.mrf.mxu0
        %1499 = vmatprep.mubr.bf16.mxu0 %v703
        %1500 = vmatmul.mubr.bf16.gmra.mxu0 %v702
        %v1501 = vpop.f32.mrf.mxu0
        %v1502 = vadd.f32 %v1405, %v1501
        %v1503 = vpop.f32.mrf.mxu0
        %v1504 = vpop.f32.mrf.mxu0
        %v1505 = vadd.f32 %v1408, %v1504
        %v1506 = vpop.f32.mrf.mxu0
        %1507 = vmatprep.mubr.bf16.mxu0 %v712
        %1508 = vmatmul.mubr.bf16.gmra.mxu0 %v711
        %v1509 = vpop.f32.mrf.mxu0
        %v1510 = vadd.f32 %v1413, %v1509
        %v1511 = vpop.f32.mrf.mxu0
        %v1512 = vpop.f32.mrf.mxu0
        %v1513 = vadd.f32 %v1416, %v1512
        %v1514 = vpop.f32.mrf.mxu0
        %1515 = vmatprep.mubr.bf16.mxu0 %v721
        %1516 = vmatmul.mubr.bf16.gmra.mxu0 %v720
        %v1517 = vpop.f32.mrf.mxu0
        %v1518 = vadd.f32 %v1421, %v1517
        %v1519 = vpop.f32.mrf.mxu0
        %v1520 = vpop.f32.mrf.mxu0
        %v1521 = vadd.f32 %v1424, %v1520
        %v1522 = vpop.f32.mrf.mxu0
        %1523 = vmatprep.mubr.bf16.mxu0 %v730
        %1524 = vmatmul.mubr.bf16.gmra.mxu0 %v729
        %v1525 = vpop.f32.mrf.mxu0
        %v1526 = vadd.f32 %v1429, %v1525
        %v1527 = vpop.f32.mrf.mxu0
        %v1528 = vpop.f32.mrf.mxu0
        %v1529 = vadd.f32 %v1432, %v1528
        %v1530 = vpop.f32.mrf.mxu0
        %1531 = vmatprep.mubr.bf16.mxu0 %v739
        %1532 = vmatmul.mubr.bf16.gmra.mxu0 %v738
        %v1533 = vpop.f32.mrf.mxu0
        %v1534 = vadd.f32 %v1437, %v1533
        %v1535 = vpop.f32.mrf.mxu0
        %v1536 = vpop.f32.mrf.mxu0
        %v1537 = vadd.f32 %v1440, %v1536
        %v1538 = vpop.f32.mrf.mxu0
        %1539 = vmatprep.mubr.bf16.mxu0 %v748
        %1540 = vmatmul.mubr.bf16.gmra.mxu0 %v747
        %v1541 = vpop.f32.mrf.mxu0
        %v1542 = vadd.f32 %v1445, %v1541
        %v1543 = vpop.f32.mrf.mxu0
        %v1544 = vpop.f32.mrf.mxu0
        %v1545 = vadd.f32 %v1448, %v1544
        %v1546 = vpop.f32.mrf.mxu0
        %1547 = vmatprep.mubr.bf16.mxu0 %v757
        %1548 = vmatmul.mubr.bf16.gmra.mxu0 %v756
        %v1549 = vpop.f32.mrf.mxu0
        %v1550 = vadd.f32 %v1453, %v1549
        %v1551 = vpop.f32.mrf.mxu0
        %v1552 = vpop.f32.mrf.mxu0
        %v1553 = vadd.f32 %v1456, %v1552
        %v1554 = vpop.f32.mrf.mxu0
        %1555 = vdwg.mxu0
        %1556 = vmatprep.subr.bf16.mxu0 0
        %1557 = vmatpush1.bf16.msra.mxu0 %v1176
        %1558 = vmatprep.subr.bf16.mxu0 0
        %1559 = vmatpush1.bf16.msra.mxu0 %v1175
        %1560 = vmatprep.subr.bf16.mxu0 0
        %1561 = vmatpush1.bf16.msra.mxu0 %v1174
        %1562 = vmatprep.subr.bf16.mxu0 0
        %1563 = vmatpush1.bf16.msra.mxu0 %v1173
        %1564 = vmatprep.subr.bf16.mxu0 0
        %1565 = vmatpush1.bf16.msra.mxu0 %v1172
        %1566 = vmatprep.subr.bf16.mxu0 0
        %1567 = vmatpush1.bf16.msra.mxu0 %v1171
        %1568 = vmatprep.subr.bf16.mxu0 0
        %1569 = vmatpush1.bf16.msra.mxu0 %v1170
        %1570 = vmatprep.subr.bf16.mxu0 0
        %1571 = vmatpush1.bf16.msra.mxu0 %v1169
        %1572 = vmatprep.subr.bf16.mxu0 0
        %1573 = vmatpush2.bf16.msra.mxu0 %v1184
        %1574 = vmatprep.subr.bf16.mxu0 0
        %1575 = vmatpush2.bf16.msra.mxu0 %v1183
        %1576 = vmatprep.subr.bf16.mxu0 0
        %1577 = vmatpush2.bf16.msra.mxu0 %v1182
        %1578 = vmatprep.subr.bf16.mxu0 0
        %1579 = vmatpush2.bf16.msra.mxu0 %v1181
        %1580 = vmatprep.subr.bf16.mxu0 0
        %1581 = vmatpush2.bf16.msra.mxu0 %v1180
        %1582 = vmatprep.subr.bf16.mxu0 0
        %1583 = vmatpush2.bf16.msra.mxu0 %v1179
        %1584 = vmatprep.subr.bf16.mxu0 0
        %1585 = vmatpush2.bf16.msra.mxu0 %v1178
        %1586 = vmatprep.subr.bf16.mxu0 0
        %1587 = vmatpush2.bf16.msra.mxu0 %v1177
        %1588 = vmatprep.mubr.bf16.mxu0 %v696
        %1589 = vmatmul.mubr.bf16.gmra.mxu0 %v695
        %v1590 = vpop.f32.mrf.mxu0
        %v1591 = vadd.f32 %v1494, %v1590
        %v1592 = vpop.f32.mrf.mxu0
        %v1593 = vpop.f32.mrf.mxu0
        %v1594 = vadd.f32 %v1497, %v1593
        %v1595 = vpop.f32.mrf.mxu0
        %1596 = vmatprep.mubr.bf16.mxu0 %v705
        %1597 = vmatmul.mubr.bf16.gmra.mxu0 %v704
        %v1598 = vpop.f32.mrf.mxu0
        %v1599 = vadd.f32 %v1502, %v1598
        %v1600 = vpop.f32.mrf.mxu0
        %v1601 = vpop.f32.mrf.mxu0
        %v1602 = vadd.f32 %v1505, %v1601
        %v1603 = vpop.f32.mrf.mxu0
        %1604 = vmatprep.mubr.bf16.mxu0 %v714
        %1605 = vmatmul.mubr.bf16.gmra.mxu0 %v713
        %v1606 = vpop.f32.mrf.mxu0
        %v1607 = vadd.f32 %v1510, %v1606
        %v1608 = vpop.f32.mrf.mxu0
        %v1609 = vpop.f32.mrf.mxu0
        %v1610 = vadd.f32 %v1513, %v1609
        %v1611 = vpop.f32.mrf.mxu0
        %1612 = vmatprep.mubr.bf16.mxu0 %v723
        %1613 = vmatmul.mubr.bf16.gmra.mxu0 %v722
        %v1614 = vpop.f32.mrf.mxu0
        %v1615 = vadd.f32 %v1518, %v1614
        %v1616 = vpop.f32.mrf.mxu0
        %v1617 = vpop.f32.mrf.mxu0
        %v1618 = vadd.f32 %v1521, %v1617
        %v1619 = vpop.f32.mrf.mxu0
        %1620 = vmatprep.mubr.bf16.mxu0 %v732
        %1621 = vmatmul.mubr.bf16.gmra.mxu0 %v731
        %v1622 = vpop.f32.mrf.mxu0
        %v1623 = vadd.f32 %v1526, %v1622
        %v1624 = vpop.f32.mrf.mxu0
        %v1625 = vpop.f32.mrf.mxu0
        %v1626 = vadd.f32 %v1529, %v1625
        %v1627 = vpop.f32.mrf.mxu0
        %1628 = vmatprep.mubr.bf16.mxu0 %v741
        %1629 = vmatmul.mubr.bf16.gmra.mxu0 %v740
        %v1630 = vpop.f32.mrf.mxu0
        %v1631 = vadd.f32 %v1534, %v1630
        %v1632 = vpop.f32.mrf.mxu0
        %v1633 = vpop.f32.mrf.mxu0
        %v1634 = vadd.f32 %v1537, %v1633
        %v1635 = vpop.f32.mrf.mxu0
        %1636 = vmatprep.mubr.bf16.mxu0 %v750
        %1637 = vmatmul.mubr.bf16.gmra.mxu0 %v749
        %v1638 = vpop.f32.mrf.mxu0
        %v1639 = vadd.f32 %v1542, %v1638
        %v1640 = vpop.f32.mrf.mxu0
        %v1641 = vpop.f32.mrf.mxu0
        %v1642 = vadd.f32 %v1545, %v1641
        %v1643 = vpop.f32.mrf.mxu0
        %1644 = vmatprep.mubr.bf16.mxu0 %v759
        %1645 = vmatmul.mubr.bf16.gmra.mxu0 %v758
        %v1646 = vpop.f32.mrf.mxu0
        %v1647 = vadd.f32 %v1550, %v1646
        %v1648 = vpop.f32.mrf.mxu0
        %v1649 = vpop.f32.mrf.mxu0
        %v1650 = vadd.f32 %v1553, %v1649
        %v1651 = vpop.f32.mrf.mxu0
        %1652 = vdwg.mxu0
        %1653 = vmatprep.subr.bf16.mxu0 0
        %1654 = vmatpush1.bf16.msra.mxu0 %v1192
        %1655 = vmatprep.subr.bf16.mxu0 0
        %1656 = vmatpush1.bf16.msra.mxu0 %v1191
        %1657 = vmatprep.subr.bf16.mxu0 0
        %1658 = vmatpush1.bf16.msra.mxu0 %v1190
        %1659 = vmatprep.subr.bf16.mxu0 0
        %1660 = vmatpush1.bf16.msra.mxu0 %v1189
        %1661 = vmatprep.subr.bf16.mxu0 0
        %1662 = vmatpush1.bf16.msra.mxu0 %v1188
        %1663 = vmatprep.subr.bf16.mxu0 0
        %1664 = vmatpush1.bf16.msra.mxu0 %v1187
        %1665 = vmatprep.subr.bf16.mxu0 0
        %1666 = vmatpush1.bf16.msra.mxu0 %v1186
        %1667 = vmatprep.subr.bf16.mxu0 0
        %1668 = vmatpush1.bf16.msra.mxu0 %v1185
        %1669 = vmatprep.subr.bf16.mxu0 0
        %1670 = vmatpush2.bf16.msra.mxu0 0
        %1671 = vmatprep.subr.bf16.mxu0 0
        %1672 = vmatpush2.bf16.msra.mxu0 0
        %1673 = vmatprep.subr.bf16.mxu0 0
        %1674 = vmatpush2.bf16.msra.mxu0 0
        %1675 = vmatprep.subr.bf16.mxu0 0
        %1676 = vmatpush2.bf16.msra.mxu0 0
        %1677 = vmatprep.subr.bf16.mxu0 0
        %1678 = vmatpush2.bf16.msra.mxu0 0
        %1679 = vmatprep.subr.bf16.mxu0 0
        %1680 = vmatpush2.bf16.msra.mxu0 0
        %1681 = vmatprep.subr.bf16.mxu0 0
        %1682 = vmatpush2.bf16.msra.mxu0 0
        %1683 = vmatprep.subr.bf16.mxu0 0
        %1684 = vmatpush2.bf16.msra.mxu0 0
        %1685 = vmatprep.mubr.bf16.mxu0 0
        %1686 = vmatmul.mubr.bf16.gmra.mxu0 %v697
        %v1687 = vpop.f32.mrf.mxu0
        %v1688 = vadd.f32 %v1591, %v1687
        %v1689 = vpop.f32.mrf.mxu0
        %v1690 = vpop.f32.mrf.mxu0
        %v1691 = vadd.f32 %v1594, %v1690
        %v1692 = vpop.f32.mrf.mxu0
        %1693 = vmatprep.mubr.bf16.mxu0 0
        %1694 = vmatmul.mubr.bf16.gmra.mxu0 %v706
        %v1695 = vpop.f32.mrf.mxu0
        %v1696 = vadd.f32 %v1599, %v1695
        %v1697 = vpop.f32.mrf.mxu0
        %v1698 = vpop.f32.mrf.mxu0
        %v1699 = vadd.f32 %v1602, %v1698
        %v1700 = vpop.f32.mrf.mxu0
        %1701 = vmatprep.mubr.bf16.mxu0 0
        %1702 = vmatmul.mubr.bf16.gmra.mxu0 %v715
        %v1703 = vpop.f32.mrf.mxu0
        %v1704 = vadd.f32 %v1607, %v1703
        %v1705 = vpop.f32.mrf.mxu0
        %v1706 = vpop.f32.mrf.mxu0
        %v1707 = vadd.f32 %v1610, %v1706
        %v1708 = vpop.f32.mrf.mxu0
        %1709 = vmatprep.mubr.bf16.mxu0 0
        %1710 = vmatmul.mubr.bf16.gmra.mxu0 %v724
        %v1711 = vpop.f32.mrf.mxu0
        %v1712 = vadd.f32 %v1615, %v1711
        %v1713 = vpop.f32.mrf.mxu0
        %v1714 = vpop.f32.mrf.mxu0
        %v1715 = vadd.f32 %v1618, %v1714
        %v1716 = vpop.f32.mrf.mxu0
        %1717 = vmatprep.mubr.bf16.mxu0 0
        %1718 = vmatmul.mubr.bf16.gmra.mxu0 %v733
        %v1719 = vpop.f32.mrf.mxu0
        %v1720 = vadd.f32 %v1623, %v1719
        %v1721 = vpop.f32.mrf.mxu0
        %v1722 = vpop.f32.mrf.mxu0
        %v1723 = vadd.f32 %v1626, %v1722
        %v1724 = vpop.f32.mrf.mxu0
        %1725 = vmatprep.mubr.bf16.mxu0 0
        %1726 = vmatmul.mubr.bf16.gmra.mxu0 %v742
        %v1727 = vpop.f32.mrf.mxu0
        %v1728 = vadd.f32 %v1631, %v1727
        %v1729 = vpop.f32.mrf.mxu0
        %v1730 = vpop.f32.mrf.mxu0
        %v1731 = vadd.f32 %v1634, %v1730
        %v1732 = vpop.f32.mrf.mxu0
        %1733 = vmatprep.mubr.bf16.mxu0 0
        %1734 = vmatmul.mubr.bf16.gmra.mxu0 %v751
        %v1735 = vpop.f32.mrf.mxu0
        %v1736 = vadd.f32 %v1639, %v1735
        %v1737 = vpop.f32.mrf.mxu0
        %v1738 = vpop.f32.mrf.mxu0
        %v1739 = vadd.f32 %v1642, %v1738
        %v1740 = vpop.f32.mrf.mxu0
        %1741 = vmatprep.mubr.bf16.mxu0 0
        %1742 = vmatmul.mubr.bf16.gmra.mxu0 %v760
        %v1743 = vpop.f32.mrf.mxu0
        %v1744 = vadd.f32 %v1647, %v1743
        %v1745 = vpop.f32.mrf.mxu0
        %v1746 = vpop.f32.mrf.mxu0
        %v1747 = vadd.f32 %v1650, %v1746
        %v1748 = vpop.f32.mrf.mxu0
        %1749 = vdwg.mxu0
        %v1750 = vmul.f32 %v1688, 0.5
        %v1751 = vmul.f32 %v1691, 0.5
        %v1752 = vmul.f32 %v1696, 0.5
        %v1753 = vmul.f32 %v1699, 0.5
        %v1754 = vmul.f32 %v1704, 0.5
        %v1755 = vmul.f32 %v1707, 0.5
        %v1756 = vmul.f32 %v1712, 0.5
        %v1757 = vmul.f32 %v1715, 0.5
        %v1758 = vmul.f32 %v1720, 0.5
        %v1759 = vmul.f32 %v1723, 0.5
        %v1760 = vmul.f32 %v1728, 0.5
        %v1761 = vmul.f32 %v1731, 0.5
        %v1762 = vmul.f32 %v1736, 0.5
        %v1763 = vmul.f32 %v1739, 0.5
        %v1764 = vmul.f32 %v1744, 0.5
        %v1765 = vmul.f32 %v1747, 0.5
        %v1766 = vmul.f32 %v1688, 0.70710677
        %v1767 = vmul.f32 %v1691, 0.70710677
        %v1768 = vmul.f32 %v1696, 0.70710677
        %v1769 = vmul.f32 %v1699, 0.70710677
        %v1770 = vmul.f32 %v1704, 0.70710677
        %v1771 = vmul.f32 %v1707, 0.70710677
        %v1772 = vmul.f32 %v1712, 0.70710677
        %v1773 = vmul.f32 %v1715, 0.70710677
        %v1774 = vmul.f32 %v1720, 0.70710677
        %v1775 = vmul.f32 %v1723, 0.70710677
        %v1776 = vmul.f32 %v1728, 0.70710677
        %v1777 = vmul.f32 %v1731, 0.70710677
        %v1778 = vmul.f32 %v1736, 0.70710677
        %v1779 = vmul.f32 %v1739, 0.70710677
        %v1780 = vmul.f32 %v1744, 0.70710677
        %v1781 = vmul.f32 %v1747, 0.70710677
        %vm1782 = vcmp.ge.f32.partialorder %v1766, 0.0
        %vm1783 = vcmp.ge.f32.partialorder %v1767, 0.0
        %vm1784 = vcmp.ge.f32.partialorder %v1768, 0.0
        %vm1785 = vcmp.ge.f32.partialorder %v1769, 0.0
        %vm1786 = vcmp.ge.f32.partialorder %v1770, 0.0
        %vm1787 = vcmp.ge.f32.partialorder %v1771, 0.0
        %vm1788 = vcmp.ge.f32.partialorder %v1772, 0.0
        %vm1789 = vcmp.ge.f32.partialorder %v1773, 0.0
        %vm1790 = vcmp.ge.f32.partialorder %v1774, 0.0
        %vm1791 = vcmp.ge.f32.partialorder %v1775, 0.0
        %vm1792 = vcmp.ge.f32.partialorder %v1776, 0.0
        %vm1793 = vcmp.ge.f32.partialorder %v1777, 0.0
        %vm1794 = vcmp.ge.f32.partialorder %v1778, 0.0
        %vm1795 = vcmp.ge.f32.partialorder %v1779, 0.0
        %vm1796 = vcmp.ge.f32.partialorder %v1780, 0.0
        %vm1797 = vcmp.ge.f32.partialorder %v1781, 0.0
        %v1798 = vsel %vm1782, 1.0, -1.0
        %v1799 = vsel %vm1783, 1.0, -1.0
        %v1800 = vsel %vm1784, 1.0, -1.0
        %v1801 = vsel %vm1785, 1.0, -1.0
        %v1802 = vsel %vm1786, 1.0, -1.0
        %v1803 = vsel %vm1787, 1.0, -1.0
        %v1804 = vsel %vm1788, 1.0, -1.0
        %v1805 = vsel %vm1789, 1.0, -1.0
        %v1806 = vsel %vm1790, 1.0, -1.0
        %v1807 = vsel %vm1791, 1.0, -1.0
        %v1808 = vsel %vm1792, 1.0, -1.0
        %v1809 = vsel %vm1793, 1.0, -1.0
        %v1810 = vsel %vm1794, 1.0, -1.0
        %v1811 = vsel %vm1795, 1.0, -1.0
        %v1812 = vsel %vm1796, 1.0, -1.0
        %v1813 = vsel %vm1797, 1.0, -1.0
        %v1814 = vand.u32 2147483647, %v1766
        %v1815 = vand.u32 2147483647, %v1767
        %v1816 = vand.u32 2147483647, %v1768
        %v1817 = vand.u32 2147483647, %v1769
        %v1818 = vand.u32 2147483647, %v1770
        %v1819 = vand.u32 2147483647, %v1771
        %v1820 = vand.u32 2147483647, %v1772
        %v1821 = vand.u32 2147483647, %v1773
        %v1822 = vand.u32 2147483647, %v1774
        %v1823 = vand.u32 2147483647, %v1775
        %v1824 = vand.u32 2147483647, %v1776
        %v1825 = vand.u32 2147483647, %v1777
        %v1826 = vand.u32 2147483647, %v1778
        %v1827 = vand.u32 2147483647, %v1779
        %v1828 = vand.u32 2147483647, %v1780
        %v1829 = vand.u32 2147483647, %v1781
        %v1830 = vmul.f32 %v1814, 0.3275911
        %v1831 = vmul.f32 %v1815, 0.3275911
        %v1832 = vmul.f32 %v1816, 0.3275911
        %v1833 = vmul.f32 %v1817, 0.3275911
        %v1834 = vmul.f32 %v1818, 0.3275911
        %v1835 = vmul.f32 %v1819, 0.3275911
        %v1836 = vmul.f32 %v1820, 0.3275911
        %v1837 = vmul.f32 %v1821, 0.3275911
        %v1838 = vmul.f32 %v1822, 0.3275911
        %v1839 = vmul.f32 %v1823, 0.3275911
        %v1840 = vmul.f32 %v1824, 0.3275911
        %v1841 = vmul.f32 %v1825, 0.3275911
        %v1842 = vmul.f32 %v1826, 0.3275911
        %v1843 = vmul.f32 %v1827, 0.3275911
        %v1844 = vmul.f32 %v1828, 0.3275911
        %v1845 = vmul.f32 %v1829, 0.3275911
        %v1846 = vadd.f32 %v1830, 1.0
        %v1847 = vadd.f32 %v1831, 1.0
        %v1848 = vadd.f32 %v1832, 1.0
        %v1849 = vadd.f32 %v1833, 1.0
        %v1850 = vadd.f32 %v1834, 1.0
        %v1851 = vadd.f32 %v1835, 1.0
        %v1852 = vadd.f32 %v1836, 1.0
        %v1853 = vadd.f32 %v1837, 1.0
        %v1854 = vadd.f32 %v1838, 1.0
        %v1855 = vadd.f32 %v1839, 1.0
        %v1856 = vadd.f32 %v1840, 1.0
        %v1857 = vadd.f32 %v1841, 1.0
        %v1858 = vadd.f32 %v1842, 1.0
        %v1859 = vadd.f32 %v1843, 1.0
        %v1860 = vadd.f32 %v1844, 1.0
        %v1861 = vadd.f32 %v1845, 1.0
        %v1862 = vrcp.pop %v1846
        %v1863 = vmul.f32 1.0, %v1862
        %v1864 = vrcp.pop %v1847
        %v1865 = vmul.f32 1.0, %v1864
        %v1866 = vrcp.pop %v1848
        %v1867 = vmul.f32 1.0, %v1866
        %v1868 = vrcp.pop %v1849
        %v1869 = vmul.f32 1.0, %v1868
        %v1870 = vrcp.pop %v1850
        %v1871 = vmul.f32 1.0, %v1870
        %v1872 = vrcp.pop %v1851
        %v1873 = vmul.f32 1.0, %v1872
        %v1874 = vrcp.pop %v1852
        %v1875 = vmul.f32 1.0, %v1874
        %v1876 = vrcp.pop %v1853
        %v1877 = vmul.f32 1.0, %v1876
        %v1878 = vrcp.pop %v1854
        %v1879 = vmul.f32 1.0, %v1878
        %v1880 = vrcp.pop %v1855
        %v1881 = vmul.f32 1.0, %v1880
        %v1882 = vrcp.pop %v1856
        %v1883 = vmul.f32 1.0, %v1882
        %v1884 = vrcp.pop %v1857
        %v1885 = vmul.f32 1.0, %v1884
        %v1886 = vrcp.pop %v1858
        %v1887 = vmul.f32 1.0, %v1886
        %v1888 = vrcp.pop %v1859
        %v1889 = vmul.f32 1.0, %v1888
        %v1890 = vrcp.pop %v1860
        %v1891 = vmul.f32 1.0, %v1890
        %v1892 = vrcp.pop %v1861
        %v1893 = vmul.f32 1.0, %v1892
        %v1894 = vmul.f32 %v1863, 1.0614054
        %v1895 = vmul.f32 %v1865, 1.0614054
        %v1896 = vmul.f32 %v1867, 1.0614054
        %v1897 = vmul.f32 %v1869, 1.0614054
        %v1898 = vmul.f32 %v1871, 1.0614054
        %v1899 = vmul.f32 %v1873, 1.0614054
        %v1900 = vmul.f32 %v1875, 1.0614054
        %v1901 = vmul.f32 %v1877, 1.0614054
        %v1902 = vmul.f32 %v1879, 1.0614054
        %v1903 = vmul.f32 %v1881, 1.0614054
        %v1904 = vmul.f32 %v1883, 1.0614054
        %v1905 = vmul.f32 %v1885, 1.0614054
        %v1906 = vmul.f32 %v1887, 1.0614054
        %v1907 = vmul.f32 %v1889, 1.0614054
        %v1908 = vmul.f32 %v1891, 1.0614054
        %v1909 = vmul.f32 %v1893, 1.0614054
        %v1910 = vadd.f32 %v1894, -1.4531521
        %v1911 = vadd.f32 %v1895, -1.4531521
        %v1912 = vadd.f32 %v1896, -1.4531521
        %v1913 = vadd.f32 %v1897, -1.4531521
        %v1914 = vadd.f32 %v1898, -1.4531521
        %v1915 = vadd.f32 %v1899, -1.4531521
        %v1916 = vadd.f32 %v1900, -1.4531521
        %v1917 = vadd.f32 %v1901, -1.4531521
        %v1918 = vadd.f32 %v1902, -1.4531521
        %v1919 = vadd.f32 %v1903, -1.4531521
        %v1920 = vadd.f32 %v1904, -1.4531521
        %v1921 = vadd.f32 %v1905, -1.4531521
        %v1922 = vadd.f32 %v1906, -1.4531521
        %v1923 = vadd.f32 %v1907, -1.4531521
        %v1924 = vadd.f32 %v1908, -1.4531521
        %v1925 = vadd.f32 %v1909, -1.4531521
        %v1926 = vmul.f32 %v1910, %v1863
        %v1927 = vmul.f32 %v1911, %v1865
        %v1928 = vmul.f32 %v1912, %v1867
        %v1929 = vmul.f32 %v1913, %v1869
        %v1930 = vmul.f32 %v1914, %v1871
        %v1931 = vmul.f32 %v1915, %v1873
        %v1932 = vmul.f32 %v1916, %v1875
        %v1933 = vmul.f32 %v1917, %v1877
        %v1934 = vmul.f32 %v1918, %v1879
        %v1935 = vmul.f32 %v1919, %v1881
        %v1936 = vmul.f32 %v1920, %v1883
        %v1937 = vmul.f32 %v1921, %v1885
        %v1938 = vmul.f32 %v1922, %v1887
        %v1939 = vmul.f32 %v1923, %v1889
        %v1940 = vmul.f32 %v1924, %v1891
        %v1941 = vmul.f32 %v1925, %v1893
        %v1942 = vadd.f32 %v1926, 1.4214138
        %v1943 = vadd.f32 %v1927, 1.4214138
        %v1944 = vadd.f32 %v1928, 1.4214138
        %v1945 = vadd.f32 %v1929, 1.4214138
        %v1946 = vadd.f32 %v1930, 1.4214138
        %v1947 = vadd.f32 %v1931, 1.4214138
        %v1948 = vadd.f32 %v1932, 1.4214138
        %v1949 = vadd.f32 %v1933, 1.4214138
        %v1950 = vadd.f32 %v1934, 1.4214138
        %v1951 = vadd.f32 %v1935, 1.4214138
        %v1952 = vadd.f32 %v1936, 1.4214138
        %v1953 = vadd.f32 %v1937, 1.4214138
        %v1954 = vadd.f32 %v1938, 1.4214138
        %v1955 = vadd.f32 %v1939, 1.4214138
        %v1956 = vadd.f32 %v1940, 1.4214138
        %v1957 = vadd.f32 %v1941, 1.4214138
        %v1958 = vmul.f32 %v1942, %v1863
        %v1959 = vmul.f32 %v1943, %v1865
        %v1960 = vmul.f32 %v1944, %v1867
        %v1961 = vmul.f32 %v1945, %v1869
        %v1962 = vmul.f32 %v1946, %v1871
        %v1963 = vmul.f32 %v1947, %v1873
        %v1964 = vmul.f32 %v1948, %v1875
        %v1965 = vmul.f32 %v1949, %v1877
        %v1966 = vmul.f32 %v1950, %v1879
        %v1967 = vmul.f32 %v1951, %v1881
        %v1968 = vmul.f32 %v1952, %v1883
        %v1969 = vmul.f32 %v1953, %v1885
        %v1970 = vmul.f32 %v1954, %v1887
        %v1971 = vmul.f32 %v1955, %v1889
        %v1972 = vmul.f32 %v1956, %v1891
        %v1973 = vmul.f32 %v1957, %v1893
        %v1974 = vadd.f32 %v1958, -0.28449672
        %v1975 = vadd.f32 %v1959, -0.28449672
        %v1976 = vadd.f32 %v1960, -0.28449672
        %v1977 = vadd.f32 %v1961, -0.28449672
        %v1978 = vadd.f32 %v1962, -0.28449672
        %v1979 = vadd.f32 %v1963, -0.28449672
        %v1980 = vadd.f32 %v1964, -0.28449672
        %v1981 = vadd.f32 %v1965, -0.28449672
        %v1982 = vadd.f32 %v1966, -0.28449672
        %v1983 = vadd.f32 %v1967, -0.28449672
        %v1984 = vadd.f32 %v1968, -0.28449672
        %v1985 = vadd.f32 %v1969, -0.28449672
        %v1986 = vadd.f32 %v1970, -0.28449672
        %v1987 = vadd.f32 %v1971, -0.28449672
        %v1988 = vadd.f32 %v1972, -0.28449672
        %v1989 = vadd.f32 %v1973, -0.28449672
        %v1990 = vmul.f32 %v1974, %v1863
        %v1991 = vmul.f32 %v1975, %v1865
        %v1992 = vmul.f32 %v1976, %v1867
        %v1993 = vmul.f32 %v1977, %v1869
        %v1994 = vmul.f32 %v1978, %v1871
        %v1995 = vmul.f32 %v1979, %v1873
        %v1996 = vmul.f32 %v1980, %v1875
        %v1997 = vmul.f32 %v1981, %v1877
        %v1998 = vmul.f32 %v1982, %v1879
        %v1999 = vmul.f32 %v1983, %v1881
        %v2000 = vmul.f32 %v1984, %v1883
        %v2001 = vmul.f32 %v1985, %v1885
        %v2002 = vmul.f32 %v1986, %v1887
        %v2003 = vmul.f32 %v1987, %v1889
        %v2004 = vmul.f32 %v1988, %v1891
        %v2005 = vmul.f32 %v1989, %v1893
        %v2006 = vadd.f32 %v1990, 0.2548296
        %v2007 = vadd.f32 %v1991, 0.2548296
        %v2008 = vadd.f32 %v1992, 0.2548296
        %v2009 = vadd.f32 %v1993, 0.2548296
        %v2010 = vadd.f32 %v1994, 0.2548296
        %v2011 = vadd.f32 %v1995, 0.2548296
        %v2012 = vadd.f32 %v1996, 0.2548296
        %v2013 = vadd.f32 %v1997, 0.2548296
        %v2014 = vadd.f32 %v1998, 0.2548296
        %v2015 = vadd.f32 %v1999, 0.2548296
        %v2016 = vadd.f32 %v2000, 0.2548296
        %v2017 = vadd.f32 %v2001, 0.2548296
        %v2018 = vadd.f32 %v2002, 0.2548296
        %v2019 = vadd.f32 %v2003, 0.2548296
        %v2020 = vadd.f32 %v2004, 0.2548296
        %v2021 = vadd.f32 %v2005, 0.2548296
        %v2022 = vmul.f32 %v2006, %v1863
        %v2023 = vmul.f32 %v2007, %v1865
        %v2024 = vmul.f32 %v2008, %v1867
        %v2025 = vmul.f32 %v2009, %v1869
        %v2026 = vmul.f32 %v2010, %v1871
        %v2027 = vmul.f32 %v2011, %v1873
        %v2028 = vmul.f32 %v2012, %v1875
        %v2029 = vmul.f32 %v2013, %v1877
        %v2030 = vmul.f32 %v2014, %v1879
        %v2031 = vmul.f32 %v2015, %v1881
        %v2032 = vmul.f32 %v2016, %v1883
        %v2033 = vmul.f32 %v2017, %v1885
        %v2034 = vmul.f32 %v2018, %v1887
        %v2035 = vmul.f32 %v2019, %v1889
        %v2036 = vmul.f32 %v2020, %v1891
        %v2037 = vmul.f32 %v2021, %v1893
        %v2038 = vsub.f32 0.0, %v1814
        %v2039 = vsub.f32 0.0, %v1815
        %v2040 = vsub.f32 0.0, %v1816
        %v2041 = vsub.f32 0.0, %v1817
        %v2042 = vsub.f32 0.0, %v1818
        %v2043 = vsub.f32 0.0, %v1819
        %v2044 = vsub.f32 0.0, %v1820
        %v2045 = vsub.f32 0.0, %v1821
        %v2046 = vsub.f32 0.0, %v1822
        %v2047 = vsub.f32 0.0, %v1823
        %v2048 = vsub.f32 0.0, %v1824
        %v2049 = vsub.f32 0.0, %v1825
        %v2050 = vsub.f32 0.0, %v1826
        %v2051 = vsub.f32 0.0, %v1827
        %v2052 = vsub.f32 0.0, %v1828
        %v2053 = vsub.f32 0.0, %v1829
        %v2054 = vmul.f32 %v2038, %v1814
        %v2055 = vmul.f32 %v2039, %v1815
        %v2056 = vmul.f32 %v2040, %v1816
        %v2057 = vmul.f32 %v2041, %v1817
        %v2058 = vmul.f32 %v2042, %v1818
        %v2059 = vmul.f32 %v2043, %v1819
        %v2060 = vmul.f32 %v2044, %v1820
        %v2061 = vmul.f32 %v2045, %v1821
        %v2062 = vmul.f32 %v2046, %v1822
        %v2063 = vmul.f32 %v2047, %v1823
        %v2064 = vmul.f32 %v2048, %v1824
        %v2065 = vmul.f32 %v2049, %v1825
        %v2066 = vmul.f32 %v2050, %v1826
        %v2067 = vmul.f32 %v2051, %v1827
        %v2068 = vmul.f32 %v2052, %v1828
        %v2069 = vmul.f32 %v2053, %v1829
        %v2070 = vmul.f32 %v2054, 1.442695
        %v2071 = vpow.pop %v2070
        %v2072 = vmul.f32 %v2055, 1.442695
        %v2073 = vpow.pop %v2072
        %v2074 = vmul.f32 %v2056, 1.442695
        %v2075 = vpow.pop %v2074
        %v2076 = vmul.f32 %v2057, 1.442695
        %v2077 = vpow.pop %v2076
        %v2078 = vmul.f32 %v2058, 1.442695
        %v2079 = vpow.pop %v2078
        %v2080 = vmul.f32 %v2059, 1.442695
        %v2081 = vpow.pop %v2080
        %v2082 = vmul.f32 %v2060, 1.442695
        %v2083 = vpow.pop %v2082
        %v2084 = vmul.f32 %v2061, 1.442695
        %v2085 = vpow.pop %v2084
        %v2086 = vmul.f32 %v2062, 1.442695
        %v2087 = vpow.pop %v2086
        %v2088 = vmul.f32 %v2063, 1.442695
        %v2089 = vpow.pop %v2088
        %v2090 = vmul.f32 %v2064, 1.442695
        %v2091 = vpow.pop %v2090
        %v2092 = vmul.f32 %v2065, 1.442695
        %v2093 = vpow.pop %v2092
        %v2094 = vmul.f32 %v2066, 1.442695
        %v2095 = vpow.pop %v2094
        %v2096 = vmul.f32 %v2067, 1.442695
        %v2097 = vpow.pop %v2096
        %v2098 = vmul.f32 %v2068, 1.442695
        %v2099 = vpow.pop %v2098
        %v2100 = vmul.f32 %v2069, 1.442695
        %v2101 = vpow.pop %v2100
        %v2102 = vmul.f32 %v2022, %v2071
        %v2103 = vmul.f32 %v2023, %v2073
        %v2104 = vmul.f32 %v2024, %v2075
        %v2105 = vmul.f32 %v2025, %v2077
        %v2106 = vmul.f32 %v2026, %v2079
        %v2107 = vmul.f32 %v2027, %v2081
        %v2108 = vmul.f32 %v2028, %v2083
        %v2109 = vmul.f32 %v2029, %v2085
        %v2110 = vmul.f32 %v2030, %v2087
        %v2111 = vmul.f32 %v2031, %v2089
        %v2112 = vmul.f32 %v2032, %v2091
        %v2113 = vmul.f32 %v2033, %v2093
        %v2114 = vmul.f32 %v2034, %v2095
        %v2115 = vmul.f32 %v2035, %v2097
        %v2116 = vmul.f32 %v2036, %v2099
        %v2117 = vmul.f32 %v2037, %v2101
        %v2118 = vsub.f32 1.0, %v2102
        %v2119 = vsub.f32 1.0, %v2103
        %v2120 = vsub.f32 1.0, %v2104
        %v2121 = vsub.f32 1.0, %v2105
        %v2122 = vsub.f32 1.0, %v2106
        %v2123 = vsub.f32 1.0, %v2107
        %v2124 = vsub.f32 1.0, %v2108
        %v2125 = vsub.f32 1.0, %v2109
        %v2126 = vsub.f32 1.0, %v2110
        %v2127 = vsub.f32 1.0, %v2111
        %v2128 = vsub.f32 1.0, %v2112
        %v2129 = vsub.f32 1.0, %v2113
        %v2130 = vsub.f32 1.0, %v2114
        %v2131 = vsub.f32 1.0, %v2115
        %v2132 = vsub.f32 1.0, %v2116
        %v2133 = vsub.f32 1.0, %v2117
        %v2134 = vmul.f32 %v1798, %v2118
        %v2135 = vmul.f32 %v1799, %v2119
        %v2136 = vmul.f32 %v1800, %v2120
        %v2137 = vmul.f32 %v1801, %v2121
        %v2138 = vmul.f32 %v1802, %v2122
        %v2139 = vmul.f32 %v1803, %v2123
        %v2140 = vmul.f32 %v1804, %v2124
        %v2141 = vmul.f32 %v1805, %v2125
        %v2142 = vmul.f32 %v1806, %v2126
        %v2143 = vmul.f32 %v1807, %v2127
        %v2144 = vmul.f32 %v1808, %v2128
        %v2145 = vmul.f32 %v1809, %v2129
        %v2146 = vmul.f32 %v1810, %v2130
        %v2147 = vmul.f32 %v1811, %v2131
        %v2148 = vmul.f32 %v1812, %v2132
        %v2149 = vmul.f32 %v1813, %v2133
        %v2150 = vadd.f32 %v2134, 1.0
        %v2151 = vadd.f32 %v2135, 1.0
        %v2152 = vadd.f32 %v2136, 1.0
        %v2153 = vadd.f32 %v2137, 1.0
        %v2154 = vadd.f32 %v2138, 1.0
        %v2155 = vadd.f32 %v2139, 1.0
        %v2156 = vadd.f32 %v2140, 1.0
        %v2157 = vadd.f32 %v2141, 1.0
        %v2158 = vadd.f32 %v2142, 1.0
        %v2159 = vadd.f32 %v2143, 1.0
        %v2160 = vadd.f32 %v2144, 1.0
        %v2161 = vadd.f32 %v2145, 1.0
        %v2162 = vadd.f32 %v2146, 1.0
        %v2163 = vadd.f32 %v2147, 1.0
        %v2164 = vadd.f32 %v2148, 1.0
        %v2165 = vadd.f32 %v2149, 1.0
        %v2166 = vmul.f32 %v1750, %v2150
        %v2167 = vmul.f32 %v1751, %v2151
        %v2168 = vmul.f32 %v1752, %v2152
        %v2169 = vmul.f32 %v1753, %v2153
        %v2170 = vmul.f32 %v1754, %v2154
        %v2171 = vmul.f32 %v1755, %v2155
        %v2172 = vmul.f32 %v1756, %v2156
        %v2173 = vmul.f32 %v1757, %v2157
        %v2174 = vmul.f32 %v1758, %v2158
        %v2175 = vmul.f32 %v1759, %v2159
        %v2176 = vmul.f32 %v1760, %v2160
        %v2177 = vmul.f32 %v1761, %v2161
        %v2178 = vmul.f32 %v1762, %v2162
        %v2179 = vmul.f32 %v1763, %v2163
        %v2180 = vmul.f32 %v1764, %v2164
        %v2181 = vmul.f32 %v1765, %v2165
        %v2182 = vadd.f32 %v2166, %v2167
        %v2183 = vadd.f32 %v2182, %v2168
        %v2184 = vadd.f32 %v2183, %v2169
        %v2185 = vadd.f32 %v2184, %v2170
        %v2186 = vadd.f32 %v2185, %v2171
        %v2187 = vadd.f32 %v2186, %v2172
        %v2188 = vadd.f32 %v2187, %v2173
        %v2189 = vadd.f32 %v2188, %v2174
        %v2190 = vadd.f32 %v2189, %v2175
        %v2191 = vadd.f32 %v2190, %v2176
        %v2192 = vadd.f32 %v2191, %v2177
        %v2193 = vadd.f32 %v2192, %v2178
        %v2194 = vadd.f32 %v2193, %v2179
        %v2195 = vadd.f32 %v2194, %v2180
        %v2196 = vadd.f32 %v2195, %v2181
        %v2197 = vrot.slane %v2196, 4
        %v2198 = vadd.f32 %v2196, %v2197
        %v2199 = vrot.slane %v2198, 2
        %v2200 = vadd.f32 %v2198, %v2199
        %v2201 = vrot.slane %v2200, 1
        %v2202 = vadd.f32 %v2200, %v2201
        %v2203 = vrcp.pop 128.0
        %v2204 = vmul.f32 %v2202, %v2203
        %v2205 = vsub.f32 %v2166, %v2204
        %v2206 = vsub.f32 %v2167, %v2204
        %v2207 = vsub.f32 %v2168, %v2204
        %v2208 = vsub.f32 %v2169, %v2204
        %v2209 = vsub.f32 %v2170, %v2204
        %v2210 = vsub.f32 %v2171, %v2204
        %v2211 = vsub.f32 %v2172, %v2204
        %v2212 = vsub.f32 %v2173, %v2204
        %v2213 = vsub.f32 %v2174, %v2204
        %v2214 = vsub.f32 %v2175, %v2204
        %v2215 = vsub.f32 %v2176, %v2204
        %v2216 = vsub.f32 %v2177, %v2204
        %v2217 = vsub.f32 %v2178, %v2204
        %v2218 = vsub.f32 %v2179, %v2204
        %v2219 = vsub.f32 %v2180, %v2204
        %v2220 = vsub.f32 %v2181, %v2204
        %v2221 = vmul.f32 %v2205, %v2205
        %v2222 = vmul.f32 %v2206, %v2206
        %v2223 = vmul.f32 %v2207, %v2207
        %v2224 = vmul.f32 %v2208, %v2208
        %v2225 = vmul.f32 %v2209, %v2209
        %v2226 = vmul.f32 %v2210, %v2210
        %v2227 = vmul.f32 %v2211, %v2211
        %v2228 = vmul.f32 %v2212, %v2212
        %v2229 = vmul.f32 %v2213, %v2213
        %v2230 = vmul.f32 %v2214, %v2214
        %v2231 = vmul.f32 %v2215, %v2215
        %v2232 = vmul.f32 %v2216, %v2216
        %v2233 = vmul.f32 %v2217, %v2217
        %v2234 = vmul.f32 %v2218, %v2218
        %v2235 = vmul.f32 %v2219, %v2219
        %v2236 = vmul.f32 %v2220, %v2220
        %v2237 = vadd.f32 %v2221, %v2222
        %v2238 = vadd.f32 %v2237, %v2223
        %v2239 = vadd.f32 %v2238, %v2224
        %v2240 = vadd.f32 %v2239, %v2225
        %v2241 = vadd.f32 %v2240, %v2226
        %v2242 = vadd.f32 %v2241, %v2227
        %v2243 = vadd.f32 %v2242, %v2228
        %v2244 = vadd.f32 %v2243, %v2229
        %v2245 = vadd.f32 %v2244, %v2230
        %v2246 = vadd.f32 %v2245, %v2231
        %v2247 = vadd.f32 %v2246, %v2232
        %v2248 = vadd.f32 %v2247, %v2233
        %v2249 = vadd.f32 %v2248, %v2234
        %v2250 = vadd.f32 %v2249, %v2235
        %v2251 = vadd.f32 %v2250, %v2236
        %v2252 = vrot.slane %v2251, 4
        %v2253 = vadd.f32 %v2251, %v2252
        %v2254 = vrot.slane %v2253, 2
        %v2255 = vadd.f32 %v2253, %v2254
        %v2256 = vrot.slane %v2255, 1
        %v2257 = vadd.f32 %v2255, %v2256
        %v2258 = vmul.f32 %v2257, %v2203
        %v2259 = vadd.f32 %v2258, 0.001
        %v2260 = vrsqrt.pop %v2259
        %v2261 = vmul.f32 %v2205, %v2260
        %v2262 = vmul.f32 %v2206, %v2260
        %v2263 = vmul.f32 %v2207, %v2260
        %v2264 = vmul.f32 %v2208, %v2260
        %v2265 = vmul.f32 %v2209, %v2260
        %v2266 = vmul.f32 %v2210, %v2260
        %v2267 = vmul.f32 %v2211, %v2260
        %v2268 = vmul.f32 %v2212, %v2260
        %v2269 = vmul.f32 %v2213, %v2260
        %v2270 = vmul.f32 %v2214, %v2260
        %v2271 = vmul.f32 %v2215, %v2260
        %v2272 = vmul.f32 %v2216, %v2260
        %v2273 = vmul.f32 %v2217, %v2260
        %v2274 = vmul.f32 %v2218, %v2260
        %v2275 = vmul.f32 %v2219, %v2260
        %v2276 = vmul.f32 %v2220, %v2260
        %v2277 = vld [vmem:[%s236] sm:$0x1]
        %v2279 = vlaneseq
        %v2280 = vshrl.u32 %v2279, 7
        %v2281 = vsub.s32 0, %v2280
        %v2282 = vrot.slane %v2277, %v2281
        %v2284 = vmul.f32 %v2261, %v2282
        %v2285 = vmul.f32 %v2262, %v2282
        %v2286 = vmul.f32 %v2263, %v2282
        %v2287 = vmul.f32 %v2264, %v2282
        %v2288 = vmul.f32 %v2265, %v2282
        %v2289 = vmul.f32 %v2266, %v2282
        %v2290 = vmul.f32 %v2267, %v2282
        %v2291 = vmul.f32 %v2268, %v2282
        %v2292 = vmul.f32 %v2269, %v2282
        %v2293 = vmul.f32 %v2270, %v2282
        %v2294 = vmul.f32 %v2271, %v2282
        %v2295 = vmul.f32 %v2272, %v2282
        %v2296 = vmul.f32 %v2273, %v2282
        %v2297 = vmul.f32 %v2274, %v2282
        %v2298 = vmul.f32 %v2275, %v2282
        %v2299 = vmul.f32 %v2276, %v2282
        %v2300 = vld [vmem:[%s239] sm:$0x1]
        %v2302 = vlaneseq
        %v2303 = vshrl.u32 %v2302, 7
        %v2304 = vsub.s32 0, %v2303
        %v2305 = vrot.slane %v2300, %v2304
        %v2307 = vadd.f32 %v2284, %v2305
        %v2308 = vadd.f32 %v2285, %v2305
        %v2309 = vadd.f32 %v2286, %v2305
        %v2310 = vadd.f32 %v2287, %v2305
        %v2311 = vadd.f32 %v2288, %v2305
        %v2312 = vadd.f32 %v2289, %v2305
        %v2313 = vadd.f32 %v2290, %v2305
        %v2314 = vadd.f32 %v2291, %v2305
        %v2315 = vadd.f32 %v2292, %v2305
        %v2316 = vadd.f32 %v2293, %v2305
        %v2317 = vadd.f32 %v2294, %v2305
        %v2318 = vadd.f32 %v2295, %v2305
        %v2319 = vadd.f32 %v2296, %v2305
        %v2320 = vadd.f32 %v2297, %v2305
        %v2321 = vadd.f32 %v2298, %v2305
        %v2322 = vadd.f32 %v2299, %v2305
        %2323 = vst [vmem:[%s223] sm:$0xff] %v2307
        %2324 = vst [vmem:[%s223 + $0x8] sm:$0xff] %v2308
        %2325 = vst [vmem:[%s223 + $0x10] sm:$0xff] %v2309
        %2326 = vst [vmem:[%s223 + $0x18] sm:$0xff] %v2310
        %2327 = vst [vmem:[%s223 + $0x20] sm:$0xff] %v2311
        %2328 = vst [vmem:[%s223 + $0x28] sm:$0xff] %v2312
        %2329 = vst [vmem:[%s223 + $0x30] sm:$0xff] %v2313
        %2330 = vst [vmem:[%s223 + $0x38] sm:$0xff] %v2314
        %2331 = vst [vmem:[%s223 + $0x40] sm:$0xff] %v2315
        %2332 = vst [vmem:[%s223 + $0x48] sm:$0xff] %v2316
        %2333 = vst [vmem:[%s223 + $0x50] sm:$0xff] %v2317
        %2334 = vst [vmem:[%s223 + $0x58] sm:$0xff] %v2318
        %2335 = vst [vmem:[%s223 + $0x60] sm:$0xff] %v2319
        %2336 = vst [vmem:[%s223 + $0x68] sm:$0xff] %v2320
        %2337 = vst [vmem:[%s223 + $0x70] sm:$0xff] %v2321
        %2338 = vst [vmem:[%s223 + $0x78] sm:$0xff] %v2322
        %s2339 = sand.u32 %s127, 1
        %s2340 = sand.u32 %s127, 1
        %s2341 = smul.addr %s2340, 128
        %s2342 = scalar_lea.vmem [#allocation2], %s2341
        // Predicated region
        $region37: #{rope_mamba_forward.5} parent=35 // pred_check
          %p2343 = pneg %p137
        $region38: #{rope_mamba_forward.5} parent=35 // pred_check_branch
          %2345 = sbr.rel (%p2343) target = $region40
        $region39: #{rope_mamba_forward.5} parent=35 // pred_region
          %s2346 = smul.addr %s15, 8
          %s2347 = scalar_lea.vmem %s4, %s2346
          // Predicated region
          $region41: #{rope_mamba_forward.5} parent=39 // pred_check
            _
          $region42: #{rope_mamba_forward.5} parent=39 // pred_check_branch
            %2349 = sbr.rel (0) target = $region44
          $region43: #{rope_mamba_forward.5} parent=39 // pred_region
            // Predicated region
            $region45: #{rope_mamba_forward.5} parent=43 // pred_check
              _
            $region46: #{rope_mamba_forward.5} parent=43 // pred_check_branch
              %2351 = sbr.rel (0) target = $region48
            $region47: #{rope_mamba_forward.5} parent=43 // pred_region
              // Predicated region
              $region60: #{rope_mamba_forward.5} parent=47 // pred_check
                _
              $region61: #{rope_mamba_forward.5} parent=47 // pred_check_branch
                %2397 = sbr.rel (0) target = $region63
              $region62: #{rope_mamba_forward.5} parent=47 // pred_region
                loop: start=0, step=1, limit=1
                $region64: #{rope_mamba_forward.5} parent=62 // loop_pre_header
                  _
                $region65: #{rope_mamba_forward.5} parent=62 // loop_header
                  %s2399 = sphi 0, %s2403
                  %p2400 = scmp.ge.s32.totalorder %s2399, 1
                  %s2404 = sphi %s2342, %s2342
                  %s2405 = sphi %s2347, %s2347
                $region66: #{rope_mamba_forward.5} parent=62 // loop_header_branch
                  %2402 = sbr.rel (%p2400) target = $region70
                $region67: #{rope_mamba_forward.5} parent=62 // loop_body
                  %v2406 = vld [vmem:[%s2404] sm:$0xff]
                  %2407 = vst [vmem:[%s2405] sm:$0xff] %v2406
                  %v2408 = vld [vmem:[%s2404 + $0x8] sm:$0xff]
                  %2409 = vst [vmem:[%s2405 + $0x10] sm:$0xff] %v2408
                  %v2410 = vld [vmem:[%s2404 + $0x10] sm:$0xff]
                  %2411 = vst [vmem:[%s2405 + $0x20] sm:$0xff] %v2410
                  %v2412 = vld [vmem:[%s2404 + $0x18] sm:$0xff]
                  %2413 = vst [vmem:[%s2405 + $0x30] sm:$0xff] %v2412
                  %v2414 = vld [vmem:[%s2404 + $0x20] sm:$0xff]
                  %2415 = vst [vmem:[%s2405 + $0x40] sm:$0xff] %v2414
                  %v2416 = vld [vmem:[%s2404 + $0x28] sm:$0xff]
                  %2417 = vst [vmem:[%s2405 + $0x50] sm:$0xff] %v2416
                  %v2418 = vld [vmem:[%s2404 + $0x30] sm:$0xff]
                  %2419 = vst [vmem:[%s2405 + $0x60] sm:$0xff] %v2418
                  %v2420 = vld [vmem:[%s2404 + $0x38] sm:$0xff]
                  %2421 = vst [vmem:[%s2405 + $0x70] sm:$0xff] %v2420
                  %v2422 = vld [vmem:[%s2404 + $0x40] sm:$0xff]
                  %2423 = vst [vmem:[%s2405 + $0x80] sm:$0xff] %v2422
                  %v2424 = vld [vmem:[%s2404 + $0x48] sm:$0xff]
                  %2425 = vst [vmem:[%s2405 + $0x90] sm:$0xff] %v2424
                  %v2426 = vld [vmem:[%s2404 + $0x50] sm:$0xff]
                  %2427 = vst [vmem:[%s2405 + $0xa0] sm:$0xff] %v2426
                  %v2428 = vld [vmem:[%s2404 + $0x58] sm:$0xff]
                  %2429 = vst [vmem:[%s2405 + $0xb0] sm:$0xff] %v2428
                  %v2430 = vld [vmem:[%s2404 + $0x60] sm:$0xff]
                  %2431 = vst [vmem:[%s2405 + $0xc0] sm:$0xff] %v2430
                  %v2432 = vld [vmem:[%s2404 + $0x68] sm:$0xff]
                  %2433 = vst [vmem:[%s2405 + $0xd0] sm:$0xff] %v2432
                  %v2434 = vld [vmem:[%s2404 + $0x70] sm:$0xff]
                  %2435 = vst [vmem:[%s2405 + $0xe0] sm:$0xff] %v2434
                  %v2436 = vld [vmem:[%s2404 + $0x78] sm:$0xff]
                  %2437 = vst [vmem:[%s2405 + $0xf0] sm:$0xff] %v2436
                $region68: #{rope_mamba_forward.5} parent=62 // loop_footer
                  %s2403 = sadd.s32 1, %s2399
                $region69: #{rope_mamba_forward.5} parent=62 // loop_footer_branch
                  %2398 = sbr.rel target = $region65
                $region70: #{rope_mamba_forward.5} parent=62 // loop_exit
                  _
              $region63: #{rope_mamba_forward.5} parent=47 // pred_fallthru
                _
              // Predicated region
              $region71: #{rope_mamba_forward.5} parent=47 // pred_check
                _
              $region72: #{rope_mamba_forward.5} parent=47 // pred_check_branch
                %2439 = sbr.rel target = $region74
              $region73: #{rope_mamba_forward.5} parent=47 // pred_region
                _
              $region74: #{rope_mamba_forward.5} parent=47 // pred_fallthru
                _
            $region48: #{rope_mamba_forward.5} parent=43 // pred_fallthru
              _
            // Predicated region
            $region49: #{rope_mamba_forward.5} parent=43 // pred_check
              _
            $region50: #{rope_mamba_forward.5} parent=43 // pred_check_branch
              %2353 = sbr.rel target = $region52
            $region51: #{rope_mamba_forward.5} parent=43 // pred_region
              %s2355 = ssub.s32 256, 1
              loop: start=0, step=1, limit=1
              $region53: #{rope_mamba_forward.5} parent=51 // loop_pre_header
                _
              $region54: #{rope_mamba_forward.5} parent=51 // loop_header
                %s2357 = sphi 0, %s2361
                %p2358 = scmp.ge.s32.totalorder %s2357, 1
                %s2362 = sphi %s2342, %s2342
                %s2363 = sphi %s2347, %s2347
              $region55: #{rope_mamba_forward.5} parent=51 // loop_header_branch
                %2360 = sbr.rel (%p2358) target = $region59
              $region56: #{rope_mamba_forward.5} parent=51 // loop_body
                %v2364 = vld [vmem:[%s2362] sm:%s2355]
                %2365 = vst [vmem:[%s2363] sm:%s2355] %v2364
                %v2366 = vld [vmem:[%s2362 + $0x8] sm:%s2355]
                %2367 = vst [vmem:[%s2363 + $0x10] sm:%s2355] %v2366
                %v2368 = vld [vmem:[%s2362 + $0x10] sm:%s2355]
                %2369 = vst [vmem:[%s2363 + $0x20] sm:%s2355] %v2368
                %v2370 = vld [vmem:[%s2362 + $0x18] sm:%s2355]
                %2371 = vst [vmem:[%s2363 + $0x30] sm:%s2355] %v2370
                %v2372 = vld [vmem:[%s2362 + $0x20] sm:%s2355]
                %2373 = vst [vmem:[%s2363 + $0x40] sm:%s2355] %v2372
                %v2374 = vld [vmem:[%s2362 + $0x28] sm:%s2355]
                %2375 = vst [vmem:[%s2363 + $0x50] sm:%s2355] %v2374
                %v2376 = vld [vmem:[%s2362 + $0x30] sm:%s2355]
                %2377 = vst [vmem:[%s2363 + $0x60] sm:%s2355] %v2376
                %v2378 = vld [vmem:[%s2362 + $0x38] sm:%s2355]
                %2379 = vst [vmem:[%s2363 + $0x70] sm:%s2355] %v2378
                %v2380 = vld [vmem:[%s2362 + $0x40] sm:%s2355]
                %2381 = vst [vmem:[%s2363 + $0x80] sm:%s2355] %v2380
                %v2382 = vld [vmem:[%s2362 + $0x48] sm:%s2355]
                %2383 = vst [vmem:[%s2363 + $0x90] sm:%s2355] %v2382
                %v2384 = vld [vmem:[%s2362 + $0x50] sm:%s2355]
                %2385 = vst [vmem:[%s2363 + $0xa0] sm:%s2355] %v2384
                %v2386 = vld [vmem:[%s2362 + $0x58] sm:%s2355]
                %2387 = vst [vmem:[%s2363 + $0xb0] sm:%s2355] %v2386
                %v2388 = vld [vmem:[%s2362 + $0x60] sm:%s2355]
                %2389 = vst [vmem:[%s2363 + $0xc0] sm:%s2355] %v2388
                %v2390 = vld [vmem:[%s2362 + $0x68] sm:%s2355]
                %2391 = vst [vmem:[%s2363 + $0xd0] sm:%s2355] %v2390
                %v2392 = vld [vmem:[%s2362 + $0x70] sm:%s2355]
                %2393 = vst [vmem:[%s2363 + $0xe0] sm:%s2355] %v2392
                %v2394 = vld [vmem:[%s2362 + $0x78] sm:%s2355]
                %2395 = vst [vmem:[%s2363 + $0xf0] sm:%s2355] %v2394
              $region57: #{rope_mamba_forward.5} parent=51 // loop_footer
                %s2361 = sadd.s32 1, %s2357
              $region58: #{rope_mamba_forward.5} parent=51 // loop_footer_branch
                %2356 = sbr.rel target = $region54
              $region59: #{rope_mamba_forward.5} parent=51 // loop_exit
                _
            $region52: #{rope_mamba_forward.5} parent=43 // pred_fallthru
              _
          $region44: #{rope_mamba_forward.5} parent=39 // pred_fallthru
            _
          %2440 = vnop
        $region40: #{rope_mamba_forward.5} parent=35 // pred_fallthru
          _
      $region36: #{rope_mamba_forward.5} parent=5 // pred_fallthru
        _
      %p2441 = scmp.le.s32.totalorder 2, %s10
      // Predicated region
      $region75: #{rope_mamba_forward.5} parent=5 // pred_check
        %p2442 = pneg %p2441
      $region76: #{rope_mamba_forward.5} parent=5 // pred_check_branch
        %2444 = sbr.rel (%p2442) target = $region78
      $region77: #{rope_mamba_forward.5} parent=5 // pred_region
        %s2445 = ssub.s32 %s10, 2
        // Predicated region
        $region79: #{rope_mamba_forward.5} parent=77 // pred_check
          %p2446 = pneg %p143
        $region80: #{rope_mamba_forward.5} parent=77 // pred_check_branch
          %2448 = sbr.rel (%p2446) target = $region82
        $region81: #{rope_mamba_forward.5} parent=77 // pred_region
          %s2449 = sand.u32 %s128, 1
          %s2450 = sand.u32 %s128, 1
          %s2451 = smul.addr %s2450, 128
          %s2452 = scalar_lea.vmem [#allocation2], %s2451
        $region82: #{rope_mamba_forward.5} parent=77 // pred_fallthru
          _
      $region78: #{rope_mamba_forward.5} parent=5 // pred_fallthru
        _
    $region6: #{rope_mamba_forward.5} parent=1 // loop_footer
      %s14 = sadd.s32 1, %s10
    $region7: #{rope_mamba_forward.5} parent=1 // loop_footer_branch
      %9 = sbr.rel target = $region3
    $region8: #{rope_mamba_forward.5} parent=1 // loop_exit
      _

// kernel: rope_mamba_forward.7
$region0: #{rope_mamba_forward.7}
  #allocation0 [shape = 'u32[]', space=smem, size = 0x4, offset = 0x4, fixed_abs, tag = 'smem constant byte address 0x4 - core index']
  #allocation1 [shape = 'u32[144,128]{1,0:T(1,128)}', space=vmem, size = 0x12000, scoped, tag = 'internal scratch']
  %s0 = inlined_call_operand.vmem [shape: bf16[32,512], index: 0, kind: input, shape index: {}]
  %s1 = inlined_call_operand.vmem [shape: bf16[512,32], index: 1, kind: input, shape index: {}]
  %s2 = inlined_call_operand.vmem [shape: f32[1,32], index: 2, kind: input, shape index: {}]
  %s3 = inlined_call_operand.vmem [shape: f32[1,32], index: 3, kind: input, shape index: {}]
  %s4 = inlined_call_operand.vmem [shape: f32[32,32], index: 4, kind: output, shape index: {}]
  %s5 = sld [smem:[#allocation0]]
  $region49: #{rope_mamba_forward.7} parent=0
    _
  %s7 = ssub.s32 1, %s5
  %s8 = scalar_select 0, %s7, %s5
  loop: start=0, step=1, limit=4
  $region2: #{rope_mamba_forward.7} parent=0 // loop_pre_header
    _
  $region3: #{rope_mamba_forward.7} parent=0 // loop_header
    %s10 = sphi 0, %s14
    %p11 = scmp.ge.s32.totalorder %s10, 4
    %s20 = sphi 0, %s22
    %s23 = sphi 0, %s20
    %s24 = sphi 0, %s23
    %s40 = sphi 0, %s24
    %s44 = sphi 0, %s44
    %s46 = sphi 0, %s44
    %s47 = sphi 0, %s46
    %s61 = sphi 0, %s47
    %s65 = sphi 0, %s65
    %s67 = sphi 0, %s65
    %s68 = sphi 0, %s67
    %s82 = sphi 0, %s68
    %s86 = sphi 0, %s86
    %s88 = sphi 0, %s86
    %s89 = sphi 0, %s88
    %s103 = sphi 0, %s89
    %s109 = sphi 0, %s111
    %s112 = sphi 0, %s109
    %s113 = sphi 0, %s112
    %s129 = sphi 0, %s113
  $region4: #{rope_mamba_forward.7} parent=0 // loop_header_branch
    %13 = sbr.rel (%p11) target = $region8
  $region5: #{rope_mamba_forward.7} parent=0 // loop_body
    %s15 = ssub.s32 %s10, 1
    %s16 = ssub.s32 %s10, 2
    %s17 = sadd.s32 %s10, 1
    %s18 = ssub.s32 %s10, %s17
    %p19 = scmp.eq.s32.totalorder %s18, 0
    %s21 = sadd.s32 %s20, 1
    %s22 = scalar_select %p19, %s20, %s21
    %p25 = pneg %p19
    %p26 = scmp.eq.s32.totalorder %s10, 1
    %p27 = por %p25, %p26
    %p28 = scmp.ne.s32.totalorder %s20, %s23
    %p29 = scmp.eq.s32.totalorder %s10, 0
    %p30 = por %p28, %p29
    %p31 = scmp.ne.s32.totalorder %s20, %s23
    %p32 = scmp.eq.s32.totalorder %s15, 1
    %p33 = por %p31, %p32
    %p34 = scmp.ne.s32.totalorder %s23, %s24
    %p35 = scmp.eq.s32.totalorder %s15, 0
    %p36 = por %p34, %p35
    %p37 = scmp.ne.s32.totalorder %s23, %s24
    %p38 = scmp.eq.s32.totalorder %s16, 1
    %p39 = por %p37, %p38
    %p41 = scmp.ne.s32.totalorder %s24, %s40
    %p42 = scmp.eq.s32.totalorder %s16, 0
    %p43 = por %p41, %p42
    %s45 = sadd.s32 %s44, 1
    %p48 = scmp.eq.s32.totalorder %s10, 1
    %p49 = scmp.ne.s32.totalorder %s44, %s46
    %p50 = scmp.eq.s32.totalorder %s10, 0
    %p51 = por %p49, %p50
    %p52 = scmp.ne.s32.totalorder %s44, %s46
    %p53 = scmp.eq.s32.totalorder %s15, 1
    %p54 = por %p52, %p53
    %p55 = scmp.ne.s32.totalorder %s46, %s47
    %p56 = scmp.eq.s32.totalorder %s15, 0
    %p57 = por %p55, %p56
    %p58 = scmp.ne.s32.totalorder %s46, %s47
    %p59 = scmp.eq.s32.totalorder %s16, 1
    %p60 = por %p58, %p59
    %p62 = scmp.ne.s32.totalorder %s47, %s61
    %p63 = scmp.eq.s32.totalorder %s16, 0
    %p64 = por %p62, %p63
    %s66 = sadd.s32 %s65, 1
    %p69 = scmp.eq.s32.totalorder %s10, 1
    %p70 = scmp.ne.s32.totalorder %s65, %s67
    %p71 = scmp.eq.s32.totalorder %s10, 0
    %p72 = por %p70, %p71
    %p73 = scmp.ne.s32.totalorder %s65, %s67
    %p74 = scmp.eq.s32.totalorder %s15, 1
    %p75 = por %p73, %p74
    %p76 = scmp.ne.s32.totalorder %s67, %s68
    %p77 = scmp.eq.s32.totalorder %s15, 0
    %p78 = por %p76, %p77
    %p79 = scmp.ne.s32.totalorder %s67, %s68
    %p80 = scmp.eq.s32.totalorder %s16, 1
    %p81 = por %p79, %p80
    %p83 = scmp.ne.s32.totalorder %s68, %s82
    %p84 = scmp.eq.s32.totalorder %s16, 0
    %p85 = por %p83, %p84
    %s87 = sadd.s32 %s86, 1
    %p90 = scmp.eq.s32.totalorder %s10, 1
    %p91 = scmp.ne.s32.totalorder %s86, %s88
    %p92 = scmp.eq.s32.totalorder %s10, 0
    %p93 = por %p91, %p92
    %p94 = scmp.ne.s32.totalorder %s86, %s88
    %p95 = scmp.eq.s32.totalorder %s15, 1
    %p96 = por %p94, %p95
    %p97 = scmp.ne.s32.totalorder %s88, %s89
    %p98 = scmp.eq.s32.totalorder %s15, 0
    %p99 = por %p97, %p98
    %p100 = scmp.ne.s32.totalorder %s88, %s89
    %p101 = scmp.eq.s32.totalorder %s16, 1
    %p102 = por %p100, %p101
    %p104 = scmp.ne.s32.totalorder %s89, %s103
    %p105 = scmp.eq.s32.totalorder %s16, 0
    %p106 = por %p104, %p105
    %s107 = ssub.s32 %s10, %s17
    %p108 = scmp.eq.s32.totalorder %s107, 0
    %s110 = sadd.s32 %s109, 1
    %s111 = scalar_select %p108, %s109, %s110
    %p114 = pneg %p108
    %p115 = scmp.eq.s32.totalorder %s10, 1
    %p116 = por %p114, %p115
    %p117 = scmp.ne.s32.totalorder %s109, %s112
    %p118 = scmp.eq.s32.totalorder %s10, 0
    %p119 = por %p117, %p118
    %p120 = scmp.ne.s32.totalorder %s109, %s112
    %p121 = scmp.eq.s32.totalorder %s15, 1
    %p122 = por %p120, %p121
    %p123 = scmp.ne.s32.totalorder %s112, %s113
    %p124 = scmp.eq.s32.totalorder %s15, 0
    %p125 = por %p123, %p124
    %p126 = scmp.ne.s32.totalorder %s112, %s113
    %p127 = scmp.eq.s32.totalorder %s16, 1
    %p128 = por %p126, %p127
    %p130 = scmp.ne.s32.totalorder %s113, %s129
    %p131 = scmp.eq.s32.totalorder %s16, 0
    %p132 = por %p130, %p131
    %p133 = scmp.le.s32.totalorder 1, %s10
    %p134 = scmp.lt.s32.totalorder %s10, 3
    %p135 = pnand %p133, %p134
    %p136 = pneg %p135
    // Predicated region
    $region9: #{rope_mamba_forward.7} parent=5 // pred_check
      _
    $region10: #{rope_mamba_forward.7} parent=5 // pred_check_branch
      %138 = sbr.rel (%p135) target = $region12
    $region11: #{rope_mamba_forward.7} parent=5 // pred_region
      %s139 = ssub.s32 %s10, 1
      // Predicated region
      $region13: #{rope_mamba_forward.7} parent=11 // pred_check
        %p140 = pneg %p57
      $region14: #{rope_mamba_forward.7} parent=11 // pred_check_branch
        %142 = sbr.rel (%p140) target = $region16
      $region15: #{rope_mamba_forward.7} parent=11 // pred_region
        _
      $region16: #{rope_mamba_forward.7} parent=11 // pred_fallthru
        _
      // Predicated region
      $region17: #{rope_mamba_forward.7} parent=11 // pred_check
        %p143 = pneg %p78
      $region18: #{rope_mamba_forward.7} parent=11 // pred_check_branch
        %145 = sbr.rel (%p143) target = $region20
      $region19: #{rope_mamba_forward.7} parent=11 // pred_region
        _
      $region20: #{rope_mamba_forward.7} parent=11 // pred_fallthru
        _
      // Predicated region
      $region21: #{rope_mamba_forward.7} parent=11 // pred_check
        %p146 = pneg %p99
      $region22: #{rope_mamba_forward.7} parent=11 // pred_check_branch
        %148 = sbr.rel (%p146) target = $region24
      $region23: #{rope_mamba_forward.7} parent=11 // pred_region
        _
      $region24: #{rope_mamba_forward.7} parent=11 // pred_fallthru
        _
    $region12: #{rope_mamba_forward.7} parent=5 // pred_fallthru
      _
    %p149 = scmp.lt.s32.totalorder %s10, 2
    // Predicated region
    $region25: #{rope_mamba_forward.7} parent=5 // pred_check
      %p150 = pneg %p149
    $region26: #{rope_mamba_forward.7} parent=5 // pred_check_branch
      %152 = sbr.rel (%p150) target = $region28
    $region27: #{rope_mamba_forward.7} parent=5 // pred_region
      // Predicated region
      $region29: #{rope_mamba_forward.7} parent=27 // pred_check
        %p153 = pneg %p30
      $region30: #{rope_mamba_forward.7} parent=27 // pred_check_branch
        %155 = sbr.rel (%p153) target = $region32
      $region31: #{rope_mamba_forward.7} parent=27 // pred_region
        %s156 = smul.u32 2, %s10
        %p157 = scmp.lt.s32.totalorder %s156, 3
        %s158 = scalar_select %p157, %s156, 3
        %s159 = smul.addr %s158, 4
        %s160 = smul.addr %s159, 4
        %s161 = scalar_lea.vmem %s0, %s160
        %s162 = smul.u32 2, %s10
      $region32: #{rope_mamba_forward.7} parent=27 // pred_fallthru
        _
    $region28: #{rope_mamba_forward.7} parent=5 // pred_fallthru
      _
    %p163 = scmp.le.s32.totalorder 1, %s10
    %p164 = scmp.lt.s32.totalorder %s10, 3
    %p165 = pnand %p163, %p164
    %p166 = pneg %p165
    // Predicated region
    $region33: #{rope_mamba_forward.7} parent=5 // pred_check
      _
    $region34: #{rope_mamba_forward.7} parent=5 // pred_check_branch
      %168 = sbr.rel (%p165) target = $region36
    $region35: #{rope_mamba_forward.7} parent=5 // pred_region
      %s169 = ssub.s32 %s10, 1
      %s170 = smul.u32 2, %s15
      %p171 = scmp.lt.s32.totalorder %s170, 3
      %s172 = scalar_select %p171, %s170, 3
      %s173 = smul.addr %s172, 4
      %s174 = smul.addr %s173, 4
      %s175 = scalar_lea.vmem %s0, %s174
      %p176 = pneg %p36
      %p177 = pneg %p33
      %p178 = pneg %p57
      %p179 = pneg %p54
      %p180 = pneg %p78
      %p181 = pneg %p75
      %p182 = pneg %p99
      %p183 = pneg %p96
      %p184 = pneg %p125
      %p185 = pneg %p122
      %s186 = smul.u32 2, %s15
      %p187 = scmp.lt.s32.totalorder %s186, 3
      %s188 = scalar_select %p187, %s186, 3
      %s189 = smul.addr %s188, 8
      %s190 = scalar_lea.vmem %s4, %s189
      %s191 = smul.u32 2, %s15
      %p192 = scmp.lt.s32.totalorder %s191, 3
      %s193 = scalar_select %p192, %s191, 3
      %s194 = smul.addr %s193, 4
      %s195 = smul.addr %s194, 4
      %s196 = scalar_lea.vmem %s0, %s195
      %s197 = smul.u32 2, %s15
      %s198 = smul.u32 2, %s15
      %p199 = scmp.lt.s32.totalorder %s198, 3
      %s200 = scalar_select %p199, %s198, 3
      %s201 = smul.addr %s200, 8
      %s202 = scalar_lea.vmem %s4, %s201
      %s203 = smul.u32 2, %s15
      %v205 = vld [vmem:[%s196] sm:$0xff]
      %v206 = vld [vmem:[%s196 + $0x8] sm:$0xff]
      %v207 = vld [vmem:[%s196 + $0x10] sm:$0xff]
      %v208 = vld [vmem:[%s196 + $0x18] sm:$0xff]
      %v209 = vld [vmem:[%s1] sm:$0xf]
      %v210 = vld [vmem:[%s1 + $0x4] sm:$0xf]
      %v211 = vld [vmem:[%s1 + $0x8] sm:$0xf]
      %v212 = vld [vmem:[%s1 + $0xc] sm:$0xf]
      %v213 = vld [vmem:[%s1 + $0x10] sm:$0xf]
      %v214 = vld [vmem:[%s1 + $0x14] sm:$0xf]
      %v215 = vld [vmem:[%s1 + $0x18] sm:$0xf]
      %v216 = vld [vmem:[%s1 + $0x1c] sm:$0xf]
      %v217 = vld [vmem:[%s1 + $0x20] sm:$0xf]
      %v218 = vld [vmem:[%s1 + $0x24] sm:$0xf]
      %v219 = vld [vmem:[%s1 + $0x28] sm:$0xf]
      %v220 = vld [vmem:[%s1 + $0x2c] sm:$0xf]
      %v221 = vld [vmem:[%s1 + $0x30] sm:$0xf]
      %v222 = vld [vmem:[%s1 + $0x34] sm:$0xf]
      %v223 = vld [vmem:[%s1 + $0x38] sm:$0xf]
      %v224 = vld [vmem:[%s1 + $0x3c] sm:$0xf]
      %v225 = vld [vmem:[%s1 + $0x40] sm:$0xf]
      %v226 = vld [vmem:[%s1 + $0x44] sm:$0xf]
      %v227 = vld [vmem:[%s1 + $0x48] sm:$0xf]
      %v228 = vld [vmem:[%s1 + $0x4c] sm:$0xf]
      %v229 = vld [vmem:[%s1 + $0x50] sm:$0xf]
      %v230 = vld [vmem:[%s1 + $0x54] sm:$0xf]
      %v231 = vld [vmem:[%s1 + $0x58] sm:$0xf]
      %v232 = vld [vmem:[%s1 + $0x5c] sm:$0xf]
      %v233 = vld [vmem:[%s1 + $0x60] sm:$0xf]
      %v234 = vld [vmem:[%s1 + $0x64] sm:$0xf]
      %v235 = vld [vmem:[%s1 + $0x68] sm:$0xf]
      %v236 = vld [vmem:[%s1 + $0x6c] sm:$0xf]
      %v237 = vld [vmem:[%s1 + $0x70] sm:$0xf]
      %v238 = vld [vmem:[%s1 + $0x74] sm:$0xf]
      %v239 = vld [vmem:[%s1 + $0x78] sm:$0xf]
      %v240 = vld [vmem:[%s1 + $0x7c] sm:$0xf]
      %v241 = vld [vmem:[%s1 + $0x80] sm:$0xf]
      %v242 = vld [vmem:[%s1 + $0x84] sm:$0xf]
      %v243 = vld [vmem:[%s1 + $0x88] sm:$0xf]
      %v244 = vld [vmem:[%s1 + $0x8c] sm:$0xf]
      %v245 = vld [vmem:[%s1 + $0x90] sm:$0xf]
      %v246 = vld [vmem:[%s1 + $0x94] sm:$0xf]
      %v247 = vld [vmem:[%s1 + $0x98] sm:$0xf]
      %v248 = vld [vmem:[%s1 + $0x9c] sm:$0xf]
      %v249 = vld [vmem:[%s1 + $0xa0] sm:$0xf]
      %v250 = vld [vmem:[%s1 + $0xa4] sm:$0xf]
      %v251 = vld [vmem:[%s1 + $0xa8] sm:$0xf]
      %v252 = vld [vmem:[%s1 + $0xac] sm:$0xf]
      %v253 = vld [vmem:[%s1 + $0xb0] sm:$0xf]
      %v254 = vld [vmem:[%s1 + $0xb4] sm:$0xf]
      %v255 = vld [vmem:[%s1 + $0xb8] sm:$0xf]
      %v256 = vld [vmem:[%s1 + $0xbc] sm:$0xf]
      %v257 = vld [vmem:[%s1 + $0xc0] sm:$0xf]
      %v258 = vld [vmem:[%s1 + $0xc4] sm:$0xf]
      %v259 = vld [vmem:[%s1 + $0xc8] sm:$0xf]
      %v260 = vld [vmem:[%s1 + $0xcc] sm:$0xf]
      %v261 = vld [vmem:[%s1 + $0xd0] sm:$0xf]
      %v262 = vld [vmem:[%s1 + $0xd4] sm:$0xf]
      %v263 = vld [vmem:[%s1 + $0xd8] sm:$0xf]
      %v264 = vld [vmem:[%s1 + $0xdc] sm:$0xf]
      %v265 = vld [vmem:[%s1 + $0xe0] sm:$0xf]
      %v266 = vld [vmem:[%s1 + $0xe4] sm:$0xf]
      %v267 = vld [vmem:[%s1 + $0xe8] sm:$0xf]
      %v268 = vld [vmem:[%s1 + $0xec] sm:$0xf]
      %v269 = vld [vmem:[%s1 + $0xf0] sm:$0xf]
      %v270 = vld [vmem:[%s1 + $0xf4] sm:$0xf]
      %v271 = vld [vmem:[%s1 + $0xf8] sm:$0xf]
      %v272 = vld [vmem:[%s1 + $0xfc] sm:$0xf]
      %v277 = vunpack.c.l.b16 %v205
      %v278 = vunpack.c.h.b16 %v205
      %v279 = vunpack.c.l.b16 %v206
      %v280 = vunpack.c.h.b16 %v206
      %v281 = vunpack.c.l.b16 %v207
      %v282 = vunpack.c.h.b16 %v207
      %v283 = vunpack.c.l.b16 %v208
      %v284 = vunpack.c.h.b16 %v208
      %v285 = vpack.c.b16 %v281, %v277
      %v286 = vpack.c.b16 %v282, %v278
      %v287 = vpack.c.b16 %v283, %v279
      %v288 = vpack.c.b16 %v284, %v280
      %v357 = vunpack.c.l.b16 %v209
      %v358 = vunpack.c.l.b16 %v210
      %v359 = vunpack.c.l.b16 %v211
      %v360 = vunpack.c.l.b16 %v212
      %v361 = vunpack.c.l.b16 %v213
      %v362 = vunpack.c.l.b16 %v214
      %v363 = vunpack.c.l.b16 %v215
      %v364 = vunpack.c.l.b16 %v216
      %v365 = vunpack.c.l.b16 %v217
      %v366 = vunpack.c.l.b16 %v218
      %v367 = vunpack.c.l.b16 %v219
      %v368 = vunpack.c.l.b16 %v220
      %v369 = vunpack.c.l.b16 %v221
      %v370 = vunpack.c.l.b16 %v222
      %v371 = vunpack.c.l.b16 %v223
      %v372 = vunpack.c.l.b16 %v224
      %v373 = vunpack.c.l.b16 %v225
      %v374 = vunpack.c.l.b16 %v226
      %v375 = vunpack.c.l.b16 %v227
      %v376 = vunpack.c.l.b16 %v228
      %v377 = vunpack.c.l.b16 %v229
      %v378 = vunpack.c.l.b16 %v230
      %v379 = vunpack.c.l.b16 %v231
      %v380 = vunpack.c.l.b16 %v232
      %v381 = vunpack.c.l.b16 %v233
      %v382 = vunpack.c.l.b16 %v234
      %v383 = vunpack.c.l.b16 %v235
      %v384 = vunpack.c.l.b16 %v236
      %v385 = vunpack.c.l.b16 %v237
      %v386 = vunpack.c.l.b16 %v238
      %v387 = vunpack.c.l.b16 %v239
      %v388 = vunpack.c.l.b16 %v240
      %v389 = vunpack.c.l.b16 %v241
      %v390 = vunpack.c.l.b16 %v242
      %v391 = vunpack.c.l.b16 %v243
      %v392 = vunpack.c.l.b16 %v244
      %v393 = vunpack.c.l.b16 %v245
      %v394 = vunpack.c.l.b16 %v246
      %v395 = vunpack.c.l.b16 %v247
      %v396 = vunpack.c.l.b16 %v248
      %v397 = vunpack.c.l.b16 %v249
      %v398 = vunpack.c.l.b16 %v250
      %v399 = vunpack.c.l.b16 %v251
      %v400 = vunpack.c.l.b16 %v252
      %v401 = vunpack.c.l.b16 %v253
      %v402 = vunpack.c.l.b16 %v254
      %v403 = vunpack.c.l.b16 %v255
      %v404 = vunpack.c.l.b16 %v256
      %v405 = vunpack.c.l.b16 %v257
      %v406 = vunpack.c.l.b16 %v258
      %v407 = vunpack.c.l.b16 %v259
      %v408 = vunpack.c.l.b16 %v260
      %v409 = vunpack.c.l.b16 %v261
      %v410 = vunpack.c.l.b16 %v262
      %v411 = vunpack.c.l.b16 %v263
      %v412 = vunpack.c.l.b16 %v264
      %v413 = vunpack.c.l.b16 %v265
      %v414 = vunpack.c.l.b16 %v266
      %v415 = vunpack.c.l.b16 %v267
      %v416 = vunpack.c.l.b16 %v268
      %v417 = vunpack.c.l.b16 %v269
      %v418 = vunpack.c.l.b16 %v270
      %v419 = vunpack.c.l.b16 %v271
      %v420 = vunpack.c.l.b16 %v272
      %v421 = vpack.c.b16 %v358, %v357
      %v422 = vpack.c.b16 %v360, %v359
      %v423 = vpack.c.b16 %v362, %v361
      %v424 = vpack.c.b16 %v364, %v363
      %v425 = vpack.c.b16 %v366, %v365
      %v426 = vpack.c.b16 %v368, %v367
      %v427 = vpack.c.b16 %v370, %v369
      %v428 = vpack.c.b16 %v372, %v371
      %v429 = vpack.c.b16 %v374, %v373
      %v430 = vpack.c.b16 %v376, %v375
      %v431 = vpack.c.b16 %v378, %v377
      %v432 = vpack.c.b16 %v380, %v379
      %v433 = vpack.c.b16 %v382, %v381
      %v434 = vpack.c.b16 %v384, %v383
      %v435 = vpack.c.b16 %v386, %v385
      %v436 = vpack.c.b16 %v388, %v387
      %v437 = vpack.c.b16 %v390, %v389
      %v438 = vpack.c.b16 %v392, %v391
      %v439 = vpack.c.b16 %v394, %v393
      %v440 = vpack.c.b16 %v396, %v395
      %v441 = vpack.c.b16 %v398, %v397
      %v442 = vpack.c.b16 %v400, %v399
      %v443 = vpack.c.b16 %v402, %v401
      %v444 = vpack.c.b16 %v404, %v403
      %v445 = vpack.c.b16 %v406, %v405
      %v446 = vpack.c.b16 %v408, %v407
      %v447 = vpack.c.b16 %v410, %v409
      %v448 = vpack.c.b16 %v412, %v411
      %v449 = vpack.c.b16 %v414, %v413
      %v450 = vpack.c.b16 %v416, %v415
      %v451 = vpack.c.b16 %v418, %v417
      %v452 = vpack.c.b16 %v420, %v419
      %485 = vmatprep.subr.bf16.mxu0 0
      %486 = vmatpush1.bf16.msra.mxu0 %v428
      %487 = vmatprep.subr.bf16.mxu0 0
      %488 = vmatpush1.bf16.msra.mxu0 %v427
      %489 = vmatprep.subr.bf16.mxu0 0
      %490 = vmatpush1.bf16.msra.mxu0 %v426
      %491 = vmatprep.subr.bf16.mxu0 0
      %492 = vmatpush1.bf16.msra.mxu0 %v425
      %493 = vmatprep.subr.bf16.mxu0 0
      %494 = vmatpush1.bf16.msra.mxu0 %v424
      %495 = vmatprep.subr.bf16.mxu0 0
      %496 = vmatpush1.bf16.msra.mxu0 %v423
      %497 = vmatprep.subr.bf16.mxu0 0
      %498 = vmatpush1.bf16.msra.mxu0 %v422
      %499 = vmatprep.subr.bf16.mxu0 0
      %500 = vmatpush1.bf16.msra.mxu0 %v421
      %501 = vmatprep.subr.bf16.mxu0 0
      %502 = vmatpush2.bf16.msra.mxu0 %v436
      %503 = vmatprep.subr.bf16.mxu0 0
      %504 = vmatpush2.bf16.msra.mxu0 %v435
      %505 = vmatprep.subr.bf16.mxu0 0
      %506 = vmatpush2.bf16.msra.mxu0 %v434
      %507 = vmatprep.subr.bf16.mxu0 0
      %508 = vmatpush2.bf16.msra.mxu0 %v433
      %509 = vmatprep.subr.bf16.mxu0 0
      %510 = vmatpush2.bf16.msra.mxu0 %v432
      %511 = vmatprep.subr.bf16.mxu0 0
      %512 = vmatpush2.bf16.msra.mxu0 %v431
      %513 = vmatprep.subr.bf16.mxu0 0
      %514 = vmatpush2.bf16.msra.mxu0 %v430
      %515 = vmatprep.subr.bf16.mxu0 0
      %516 = vmatpush2.bf16.msra.mxu0 %v429
      %517 = vmatprep.mubr.bf16.mxu0 %v286
      %518 = vmatmul.mubr.bf16.gmra.mxu0 %v285
      %v519 = vpop.f32.mrf.mxu0
      %v520 = vadd.f32 0.0, %v519
      %v521 = vpop.f32.mrf.mxu0
      %v522 = vpop.f32.mrf.mxu0
      %v523 = vadd.f32 0.0, %v522
      %v524 = vpop.f32.mrf.mxu0
      %525 = vdwg.mxu0
      %526 = vmatprep.subr.bf16.mxu0 0
      %527 = vmatpush1.bf16.msra.mxu0 %v444
      %528 = vmatprep.subr.bf16.mxu0 0
      %529 = vmatpush1.bf16.msra.mxu0 %v443
      %530 = vmatprep.subr.bf16.mxu0 0
      %531 = vmatpush1.bf16.msra.mxu0 %v442
      %532 = vmatprep.subr.bf16.mxu0 0
      %533 = vmatpush1.bf16.msra.mxu0 %v441
      %534 = vmatprep.subr.bf16.mxu0 0
      %535 = vmatpush1.bf16.msra.mxu0 %v440
      %536 = vmatprep.subr.bf16.mxu0 0
      %537 = vmatpush1.bf16.msra.mxu0 %v439
      %538 = vmatprep.subr.bf16.mxu0 0
      %539 = vmatpush1.bf16.msra.mxu0 %v438
      %540 = vmatprep.subr.bf16.mxu0 0
      %541 = vmatpush1.bf16.msra.mxu0 %v437
      %542 = vmatprep.subr.bf16.mxu0 0
      %543 = vmatpush2.bf16.msra.mxu0 %v452
      %544 = vmatprep.subr.bf16.mxu0 0
      %545 = vmatpush2.bf16.msra.mxu0 %v451
      %546 = vmatprep.subr.bf16.mxu0 0
      %547 = vmatpush2.bf16.msra.mxu0 %v450
      %548 = vmatprep.subr.bf16.mxu0 0
      %549 = vmatpush2.bf16.msra.mxu0 %v449
      %550 = vmatprep.subr.bf16.mxu0 0
      %551 = vmatpush2.bf16.msra.mxu0 %v448
      %552 = vmatprep.subr.bf16.mxu0 0
      %553 = vmatpush2.bf16.msra.mxu0 %v447
      %554 = vmatprep.subr.bf16.mxu0 0
      %555 = vmatpush2.bf16.msra.mxu0 %v446
      %556 = vmatprep.subr.bf16.mxu0 0
      %557 = vmatpush2.bf16.msra.mxu0 %v445
      %558 = vmatprep.mubr.bf16.mxu0 %v288
      %559 = vmatmul.mubr.bf16.gmra.mxu0 %v287
      %v560 = vpop.f32.mrf.mxu0
      %v561 = vadd.f32 %v520, %v560
      %v562 = vpop.f32.mrf.mxu0
      %v563 = vpop.f32.mrf.mxu0
      %v564 = vadd.f32 %v523, %v563
      %v565 = vpop.f32.mrf.mxu0
      %566 = vdwg.mxu0
      %vm567 = vcmask 261120
      %v568 = vsel %vm567, %v561, 0.0
      %569 = vadd.xlane.f32.xlu0 %v568
      %v570 = vpop.xlane.xlu0 %569
      %v571 = vsel %vm567, %v564, 0.0
      %572 = vadd.xlane.f32.xlu0 %v571
      %v573 = vpop.xlane.xlu0 %572
      %v574 = vrcp.pop 32.0
      %v575 = vmul.f32 %v570, %v574
      %v576 = vmul.f32 %v573, %v574
      %v577 = vsub.f32 %v561, %v575
      %v578 = vsub.f32 %v564, %v576
      %v579 = vmul.f32 %v577, %v577
      %v580 = vmul.f32 %v578, %v578
      %v581 = vsel %vm567, %v579, 0.0
      %582 = vadd.xlane.f32.xlu0 %v581
      %v583 = vpop.xlane.xlu0 %582
      %v584 = vsel %vm567, %v580, 0.0
      %585 = vadd.xlane.f32.xlu0 %v584
      %v586 = vpop.xlane.xlu0 %585
      %v587 = vmul.f32 %v583, %v574
      %v588 = vmul.f32 %v586, %v574
      %v589 = vadd.f32 %v587, 1e-06
      %v590 = vadd.f32 %v588, 1e-06
      %v591 = vrsqrt.pop %v589
      %v592 = vrsqrt.pop %v590
      %v593 = vmul.f32 %v577, %v591
      %v594 = vmul.f32 %v578, %v592
      %v595 = vld [vmem:[%s2] sm:$0x1]
      %v597 = vlaneseq
      %v598 = vshrl.u32 %v597, 7
      %v599 = vsub.s32 0, %v598
      %v600 = vrot.slane %v595, %v599
      %v602 = vmul.f32 %v593, %v600
      %v603 = vmul.f32 %v594, %v600
      %v604 = vld [vmem:[%s3] sm:$0x1]
      %v606 = vlaneseq
      %v607 = vshrl.u32 %v606, 7
      %v608 = vsub.s32 0, %v607
      %v609 = vrot.slane %v604, %v608
      %v611 = vadd.f32 %v602, %v609
      %v612 = vadd.f32 %v603, %v609
      %613 = vst.msk [vmem:[%s202] sm:$0xff] %vm567, %v611
      %614 = vst.msk [vmem:[%s202 + $0x8] sm:$0xff] %vm567, %v612
      %s615 = smul.u32 2, %s15
      %p616 = scmp.lt.s32.totalorder %s615, 3
      %s617 = scalar_select %p616, %s615, 3
      %s618 = smul.addr %s617, 8
      %s619 = scalar_lea.vmem %s4, %s618
      // Predicated region
      $region37: #{rope_mamba_forward.7} parent=35 // pred_check
        %p620 = pneg %p122
      $region38: #{rope_mamba_forward.7} parent=35 // pred_check_branch
        %622 = sbr.rel (%p620) target = $region40
      $region39: #{rope_mamba_forward.7} parent=35 // pred_region
        %s623 = smul.u32 2, %s15
      $region40: #{rope_mamba_forward.7} parent=35 // pred_fallthru
        _
    $region36: #{rope_mamba_forward.7} parent=5 // pred_fallthru
      _
    %p624 = scmp.le.s32.totalorder 2, %s10
    // Predicated region
    $region41: #{rope_mamba_forward.7} parent=5 // pred_check
      %p625 = pneg %p624
    $region42: #{rope_mamba_forward.7} parent=5 // pred_check_branch
      %627 = sbr.rel (%p625) target = $region44
    $region43: #{rope_mamba_forward.7} parent=5 // pred_region
      %s628 = ssub.s32 %s10, 2
      // Predicated region
      $region45: #{rope_mamba_forward.7} parent=43 // pred_check
        %p629 = pneg %p128
      $region46: #{rope_mamba_forward.7} parent=43 // pred_check_branch
        %631 = sbr.rel (%p629) target = $region48
      $region47: #{rope_mamba_forward.7} parent=43 // pred_region
        %s632 = smul.u32 2, %s16
        %p633 = scmp.lt.s32.totalorder %s632, 3
        %s634 = scalar_select %p633, %s632, 3
        %s635 = smul.addr %s634, 8
        %s636 = scalar_lea.vmem %s4, %s635
      $region48: #{rope_mamba_forward.7} parent=43 // pred_fallthru
        _
    $region44: #{rope_mamba_forward.7} parent=5 // pred_fallthru
      _
  $region6: #{rope_mamba_forward.7} parent=0 // loop_footer
    %s14 = sadd.s32 1, %s10
  $region7: #{rope_mamba_forward.7} parent=0 // loop_footer_branch
    %9 = sbr.rel target = $region3
  $region8: #{rope_mamba_forward.7} parent=0 // loop_exit
    _

// kernel: rope_mamba_forward.6
$region0: #{rope_mamba_forward.6}
  #allocation0 [shape = 'u32[]', space=smem, size = 0x4, offset = 0x4, fixed_abs, tag = 'smem constant byte address 0x4 - core index']
  #allocation1 [shape = 'u32[144,128]{1,0:T(1,128)}', space=vmem, size = 0x12000, scoped, tag = 'internal scratch']
  %s0 = inlined_call_operand.vmem [shape: f32[2,64,640], index: 0, kind: input, shape index: {}]
  %s1 = inlined_call_operand.vmem [shape: f32[2,64,256], index: 1, kind: input, shape index: {}]
  %s2 = inlined_call_operand.vmem [shape: f32[4,64,64], index: 2, kind: input, shape index: {}]
  %s3 = inlined_call_operand.vmem [shape: f32[4,64,64], index: 3, kind: input, shape index: {}]
  %s4 = inlined_call_operand.vmem [shape: f32[128,128], index: 4, kind: input, shape index: {}]
  %s5 = inlined_call_operand.vmem [shape: f32[64,128], index: 5, kind: input, shape index: {}]
  %s6 = inlined_call_operand.vmem [shape: f32[64,128], index: 6, kind: input, shape index: {}]
  %s7 = inlined_call_operand.vmem [shape: f32[1,128], index: 7, kind: input, shape index: {}]
  %s8 = inlined_call_operand.vmem [shape: f32[1,128], index: 8, kind: input, shape index: {}]
  %s9 = inlined_call_operand.vmem [shape: f32[1,128], index: 9, kind: input, shape index: {}]
  %s10 = inlined_call_operand.vmem [shape: f32[2,64,128], index: 10, kind: output, shape index: {}]
  %s11 = sld [smem:[#allocation0]]
  $region73: #{rope_mamba_forward.6} parent=0
    _
  %s13 = ssub.s32 1, %s11
  %s14 = scalar_select 0, %s13, %s11
  loop: start=0, step=1, limit=4
  $region2: #{rope_mamba_forward.6} parent=0 // loop_pre_header
    _
  $region3: #{rope_mamba_forward.6} parent=0 // loop_header
    %s16 = sphi 0, %s20
    %p17 = scmp.ge.s32.totalorder %s16, 4
    %s26 = sphi 0, %s28
    %s29 = sphi 0, %s26
    %s30 = sphi 0, %s29
    %s46 = sphi 0, %s30
    %s52 = sphi 0, %s54
    %s55 = sphi 0, %s52
    %s56 = sphi 0, %s55
    %s72 = sphi 0, %s56
    %s76 = sphi 0, %s76
    %s78 = sphi 0, %s76
    %s79 = sphi 0, %s78
    %s93 = sphi 0, %s79
    %s97 = sphi 0, %s97
    %s99 = sphi 0, %s97
    %s100 = sphi 0, %s99
    %s114 = sphi 0, %s100
    %s118 = sphi 0, %s118
    %s120 = sphi 0, %s118
    %s121 = sphi 0, %s120
    %s135 = sphi 0, %s121
    %s139 = sphi 0, %s139
    %s141 = sphi 0, %s139
    %s142 = sphi 0, %s141
    %s156 = sphi 0, %s142
    %s160 = sphi 0, %s160
    %s162 = sphi 0, %s160
    %s163 = sphi 0, %s162
    %s177 = sphi 0, %s163
    %s181 = sphi 0, %s181
    %s183 = sphi 0, %s181
    %s184 = sphi 0, %s183
    %s198 = sphi 0, %s184
    %s202 = sphi 0, %s202
    %s204 = sphi 0, %s202
    %s205 = sphi 0, %s204
    %s219 = sphi 0, %s205
    %s223 = sphi 0, %s223
    %s225 = sphi 0, %s223
    %s226 = sphi 0, %s225
    %s240 = sphi 0, %s226
    %s246 = sphi 0, %s248
    %s249 = sphi 0, %s246
    %s250 = sphi 0, %s249
    %s266 = sphi 0, %s250
  $region4: #{rope_mamba_forward.6} parent=0 // loop_header_branch
    %19 = sbr.rel (%p17) target = $region8
  $region5: #{rope_mamba_forward.6} parent=0 // loop_body
    %s21 = ssub.s32 %s16, 1
    %s22 = ssub.s32 %s16, 2
    %s23 = sadd.s32 %s16, 1
    %s24 = ssub.s32 %s16, %s23
    %p25 = scmp.eq.s32.totalorder %s24, 0
    %s27 = sadd.s32 %s26, 1
    %s28 = scalar_select %p25, %s26, %s27
    %p31 = pneg %p25
    %p32 = scmp.eq.s32.totalorder %s16, 1
    %p33 = por %p31, %p32
    %p34 = scmp.ne.s32.totalorder %s26, %s29
    %p35 = scmp.eq.s32.totalorder %s16, 0
    %p36 = por %p34, %p35
    %p37 = scmp.ne.s32.totalorder %s26, %s29
    %p38 = scmp.eq.s32.totalorder %s21, 1
    %p39 = por %p37, %p38
    %p40 = scmp.ne.s32.totalorder %s29, %s30
    %p41 = scmp.eq.s32.totalorder %s21, 0
    %p42 = por %p40, %p41
    %p43 = scmp.ne.s32.totalorder %s29, %s30
    %p44 = scmp.eq.s32.totalorder %s22, 1
    %p45 = por %p43, %p44
    %p47 = scmp.ne.s32.totalorder %s30, %s46
    %p48 = scmp.eq.s32.totalorder %s22, 0
    %p49 = por %p47, %p48
    %s50 = ssub.s32 %s16, %s23
    %p51 = scmp.eq.s32.totalorder %s50, 0
    %s53 = sadd.s32 %s52, 1
    %s54 = scalar_select %p51, %s52, %s53
    %p57 = pneg %p51
    %p58 = scmp.eq.s32.totalorder %s16, 1
    %p59 = por %p57, %p58
    %p60 = scmp.ne.s32.totalorder %s52, %s55
    %p61 = scmp.eq.s32.totalorder %s16, 0
    %p62 = por %p60, %p61
    %p63 = scmp.ne.s32.totalorder %s52, %s55
    %p64 = scmp.eq.s32.totalorder %s21, 1
    %p65 = por %p63, %p64
    %p66 = scmp.ne.s32.totalorder %s55, %s56
    %p67 = scmp.eq.s32.totalorder %s21, 0
    %p68 = por %p66, %p67
    %p69 = scmp.ne.s32.totalorder %s55, %s56
    %p70 = scmp.eq.s32.totalorder %s22, 1
    %p71 = por %p69, %p70
    %p73 = scmp.ne.s32.totalorder %s56, %s72
    %p74 = scmp.eq.s32.totalorder %s22, 0
    %p75 = por %p73, %p74
    %s77 = sadd.s32 %s76, 1
    %p80 = scmp.eq.s32.totalorder %s16, 1
    %p81 = scmp.ne.s32.totalorder %s76, %s78
    %p82 = scmp.eq.s32.totalorder %s16, 0
    %p83 = por %p81, %p82
    %p84 = scmp.ne.s32.totalorder %s76, %s78
    %p85 = scmp.eq.s32.totalorder %s21, 1
    %p86 = por %p84, %p85
    %p87 = scmp.ne.s32.totalorder %s78, %s79
    %p88 = scmp.eq.s32.totalorder %s21, 0
    %p89 = por %p87, %p88
    %p90 = scmp.ne.s32.totalorder %s78, %s79
    %p91 = scmp.eq.s32.totalorder %s22, 1
    %p92 = por %p90, %p91
    %p94 = scmp.ne.s32.totalorder %s79, %s93
    %p95 = scmp.eq.s32.totalorder %s22, 0
    %p96 = por %p94, %p95
    %s98 = sadd.s32 %s97, 1
    %p101 = scmp.eq.s32.totalorder %s16, 1
    %p102 = scmp.ne.s32.totalorder %s97, %s99
    %p103 = scmp.eq.s32.totalorder %s16, 0
    %p104 = por %p102, %p103
    %p105 = scmp.ne.s32.totalorder %s97, %s99
    %p106 = scmp.eq.s32.totalorder %s21, 1
    %p107 = por %p105, %p106
    %p108 = scmp.ne.s32.totalorder %s99, %s100
    %p109 = scmp.eq.s32.totalorder %s21, 0
    %p110 = por %p108, %p109
    %p111 = scmp.ne.s32.totalorder %s99, %s100
    %p112 = scmp.eq.s32.totalorder %s22, 1
    %p113 = por %p111, %p112
    %p115 = scmp.ne.s32.totalorder %s100, %s114
    %p116 = scmp.eq.s32.totalorder %s22, 0
    %p117 = por %p115, %p116
    %s119 = sadd.s32 %s118, 1
    %p122 = scmp.eq.s32.totalorder %s16, 1
    %p123 = scmp.ne.s32.totalorder %s118, %s120
    %p124 = scmp.eq.s32.totalorder %s16, 0
    %p125 = por %p123, %p124
    %p126 = scmp.ne.s32.totalorder %s118, %s120
    %p127 = scmp.eq.s32.totalorder %s21, 1
    %p128 = por %p126, %p127
    %p129 = scmp.ne.s32.totalorder %s120, %s121
    %p130 = scmp.eq.s32.totalorder %s21, 0
    %p131 = por %p129, %p130
    %p132 = scmp.ne.s32.totalorder %s120, %s121
    %p133 = scmp.eq.s32.totalorder %s22, 1
    %p134 = por %p132, %p133
    %p136 = scmp.ne.s32.totalorder %s121, %s135
    %p137 = scmp.eq.s32.totalorder %s22, 0
    %p138 = por %p136, %p137
    %s140 = sadd.s32 %s139, 1
    %p143 = scmp.eq.s32.totalorder %s16, 1
    %p144 = scmp.ne.s32.totalorder %s139, %s141
    %p145 = scmp.eq.s32.totalorder %s16, 0
    %p146 = por %p144, %p145
    %p147 = scmp.ne.s32.totalorder %s139, %s141
    %p148 = scmp.eq.s32.totalorder %s21, 1
    %p149 = por %p147, %p148
    %p150 = scmp.ne.s32.totalorder %s141, %s142
    %p151 = scmp.eq.s32.totalorder %s21, 0
    %p152 = por %p150, %p151
    %p153 = scmp.ne.s32.totalorder %s141, %s142
    %p154 = scmp.eq.s32.totalorder %s22, 1
    %p155 = por %p153, %p154
    %p157 = scmp.ne.s32.totalorder %s142, %s156
    %p158 = scmp.eq.s32.totalorder %s22, 0
    %p159 = por %p157, %p158
    %s161 = sadd.s32 %s160, 1
    %p164 = scmp.eq.s32.totalorder %s16, 1
    %p165 = scmp.ne.s32.totalorder %s160, %s162
    %p166 = scmp.eq.s32.totalorder %s16, 0
    %p167 = por %p165, %p166
    %p168 = scmp.ne.s32.totalorder %s160, %s162
    %p169 = scmp.eq.s32.totalorder %s21, 1
    %p170 = por %p168, %p169
    %p171 = scmp.ne.s32.totalorder %s162, %s163
    %p172 = scmp.eq.s32.totalorder %s21, 0
    %p173 = por %p171, %p172
    %p174 = scmp.ne.s32.totalorder %s162, %s163
    %p175 = scmp.eq.s32.totalorder %s22, 1
    %p176 = por %p174, %p175
    %p178 = scmp.ne.s32.totalorder %s163, %s177
    %p179 = scmp.eq.s32.totalorder %s22, 0
    %p180 = por %p178, %p179
    %s182 = sadd.s32 %s181, 1
    %p185 = scmp.eq.s32.totalorder %s16, 1
    %p186 = scmp.ne.s32.totalorder %s181, %s183
    %p187 = scmp.eq.s32.totalorder %s16, 0
    %p188 = por %p186, %p187
    %p189 = scmp.ne.s32.totalorder %s181, %s183
    %p190 = scmp.eq.s32.totalorder %s21, 1
    %p191 = por %p189, %p190
    %p192 = scmp.ne.s32.totalorder %s183, %s184
    %p193 = scmp.eq.s32.totalorder %s21, 0
    %p194 = por %p192, %p193
    %p195 = scmp.ne.s32.totalorder %s183, %s184
    %p196 = scmp.eq.s32.totalorder %s22, 1
    %p197 = por %p195, %p196
    %p199 = scmp.ne.s32.totalorder %s184, %s198
    %p200 = scmp.eq.s32.totalorder %s22, 0
    %p201 = por %p199, %p200
    %s203 = sadd.s32 %s202, 1
    %p206 = scmp.eq.s32.totalorder %s16, 1
    %p207 = scmp.ne.s32.totalorder %s202, %s204
    %p208 = scmp.eq.s32.totalorder %s16, 0
    %p209 = por %p207, %p208
    %p210 = scmp.ne.s32.totalorder %s202, %s204
    %p211 = scmp.eq.s32.totalorder %s21, 1
    %p212 = por %p210, %p211
    %p213 = scmp.ne.s32.totalorder %s204, %s205
    %p214 = scmp.eq.s32.totalorder %s21, 0
    %p215 = por %p213, %p214
    %p216 = scmp.ne.s32.totalorder %s204, %s205
    %p217 = scmp.eq.s32.totalorder %s22, 1
    %p218 = por %p216, %p217
    %p220 = scmp.ne.s32.totalorder %s205, %s219
    %p221 = scmp.eq.s32.totalorder %s22, 0
    %p222 = por %p220, %p221
    %s224 = sadd.s32 %s223, 1
    %p227 = scmp.eq.s32.totalorder %s16, 1
    %p228 = scmp.ne.s32.totalorder %s223, %s225
    %p229 = scmp.eq.s32.totalorder %s16, 0
    %p230 = por %p228, %p229
    %p231 = scmp.ne.s32.totalorder %s223, %s225
    %p232 = scmp.eq.s32.totalorder %s21, 1
    %p233 = por %p231, %p232
    %p234 = scmp.ne.s32.totalorder %s225, %s226
    %p235 = scmp.eq.s32.totalorder %s21, 0
    %p236 = por %p234, %p235
    %p237 = scmp.ne.s32.totalorder %s225, %s226
    %p238 = scmp.eq.s32.totalorder %s22, 1
    %p239 = por %p237, %p238
    %p241 = scmp.ne.s32.totalorder %s226, %s240
    %p242 = scmp.eq.s32.totalorder %s22, 0
    %p243 = por %p241, %p242
    %s244 = ssub.s32 %s16, %s23
    %p245 = scmp.eq.s32.totalorder %s244, 0
    %s247 = sadd.s32 %s246, 1
    %s248 = scalar_select %p245, %s246, %s247
    %p251 = pneg %p245
    %p252 = scmp.eq.s32.totalorder %s16, 1
    %p253 = por %p251, %p252
    %p254 = scmp.ne.s32.totalorder %s246, %s249
    %p255 = scmp.eq.s32.totalorder %s16, 0
    %p256 = por %p254, %p255
    %p257 = scmp.ne.s32.totalorder %s246, %s249
    %p258 = scmp.eq.s32.totalorder %s21, 1
    %p259 = por %p257, %p258
    %p260 = scmp.ne.s32.totalorder %s249, %s250
    %p261 = scmp.eq.s32.totalorder %s21, 0
    %p262 = por %p260, %p261
    %p263 = scmp.ne.s32.totalorder %s249, %s250
    %p264 = scmp.eq.s32.totalorder %s22, 1
    %p265 = por %p263, %p264
    %p267 = scmp.ne.s32.totalorder %s250, %s266
    %p268 = scmp.eq.s32.totalorder %s22, 0
    %p269 = por %p267, %p268
    %p270 = scmp.le.s32.totalorder 1, %s16
    %p271 = scmp.lt.s32.totalorder %s16, 3
    %p272 = pnand %p270, %p271
    %p273 = pneg %p272
    // Predicated region
    $region9: #{rope_mamba_forward.6} parent=5 // pred_check
      _
    $region10: #{rope_mamba_forward.6} parent=5 // pred_check_branch
      %275 = sbr.rel (%p272) target = $region12
    $region11: #{rope_mamba_forward.6} parent=5 // pred_region
      %s276 = ssub.s32 %s16, 1
      // Predicated region
      $region13: #{rope_mamba_forward.6} parent=11 // pred_check
        %p277 = pneg %p89
      $region14: #{rope_mamba_forward.6} parent=11 // pred_check_branch
        %279 = sbr.rel (%p277) target = $region16
      $region15: #{rope_mamba_forward.6} parent=11 // pred_region
        _
      $region16: #{rope_mamba_forward.6} parent=11 // pred_fallthru
        _
      // Predicated region
      $region17: #{rope_mamba_forward.6} parent=11 // pred_check
        %p280 = pneg %p110
      $region18: #{rope_mamba_forward.6} parent=11 // pred_check_branch
        %282 = sbr.rel (%p280) target = $region20
      $region19: #{rope_mamba_forward.6} parent=11 // pred_region
        _
      $region20: #{rope_mamba_forward.6} parent=11 // pred_fallthru
        _
      // Predicated region
      $region21: #{rope_mamba_forward.6} parent=11 // pred_check
        %p283 = pneg %p131
      $region22: #{rope_mamba_forward.6} parent=11 // pred_check_branch
        %285 = sbr.rel (%p283) target = $region24
      $region23: #{rope_mamba_forward.6} parent=11 // pred_region
        _
      $region24: #{rope_mamba_forward.6} parent=11 // pred_fallthru
        _
      // Predicated region
      $region25: #{rope_mamba_forward.6} parent=11 // pred_check
        %p286 = pneg %p152
      $region26: #{rope_mamba_forward.6} parent=11 // pred_check_branch
        %288 = sbr.rel (%p286) target = $region28
      $region27: #{rope_mamba_forward.6} parent=11 // pred_region
        _
      $region28: #{rope_mamba_forward.6} parent=11 // pred_fallthru
        _
      // Predicated region
      $region29: #{rope_mamba_forward.6} parent=11 // pred_check
        %p289 = pneg %p173
      $region30: #{rope_mamba_forward.6} parent=11 // pred_check_branch
        %291 = sbr.rel (%p289) target = $region32
      $region31: #{rope_mamba_forward.6} parent=11 // pred_region
        _
      $region32: #{rope_mamba_forward.6} parent=11 // pred_fallthru
        _
      // Predicated region
      $region33: #{rope_mamba_forward.6} parent=11 // pred_check
        %p292 = pneg %p194
      $region34: #{rope_mamba_forward.6} parent=11 // pred_check_branch
        %294 = sbr.rel (%p292) target = $region36
      $region35: #{rope_mamba_forward.6} parent=11 // pred_region
        _
      $region36: #{rope_mamba_forward.6} parent=11 // pred_fallthru
        _
      // Predicated region
      $region37: #{rope_mamba_forward.6} parent=11 // pred_check
        %p295 = pneg %p215
      $region38: #{rope_mamba_forward.6} parent=11 // pred_check_branch
        %297 = sbr.rel (%p295) target = $region40
      $region39: #{rope_mamba_forward.6} parent=11 // pred_region
        _
      $region40: #{rope_mamba_forward.6} parent=11 // pred_fallthru
        _
      // Predicated region
      $region41: #{rope_mamba_forward.6} parent=11 // pred_check
        %p298 = pneg %p236
      $region42: #{rope_mamba_forward.6} parent=11 // pred_check_branch
        %300 = sbr.rel (%p298) target = $region44
      $region43: #{rope_mamba_forward.6} parent=11 // pred_region
        _
      $region44: #{rope_mamba_forward.6} parent=11 // pred_fallthru
        _
    $region12: #{rope_mamba_forward.6} parent=5 // pred_fallthru
      _
    %p301 = scmp.lt.s32.totalorder %s16, 2
    // Predicated region
    $region45: #{rope_mamba_forward.6} parent=5 // pred_check
      %p302 = pneg %p301
    $region46: #{rope_mamba_forward.6} parent=5 // pred_check_branch
      %304 = sbr.rel (%p302) target = $region48
    $region47: #{rope_mamba_forward.6} parent=5 // pred_region
      // Predicated region
      $region49: #{rope_mamba_forward.6} parent=47 // pred_check
        %p305 = pneg %p36
      $region50: #{rope_mamba_forward.6} parent=47 // pred_check_branch
        %307 = sbr.rel (%p305) target = $region52
      $region51: #{rope_mamba_forward.6} parent=47 // pred_region
        %p308 = scmp.lt.s32.totalorder %s16, 1
        %s309 = scalar_select %p308, %s16, 1
        %s310 = smul.addr %s309, 40
        %s311 = smul.addr %s310, 8
        %s312 = scalar_lea.vmem %s0, %s311
      $region52: #{rope_mamba_forward.6} parent=47 // pred_fallthru
        _
      // Predicated region
      $region53: #{rope_mamba_forward.6} parent=47 // pred_check
        %p313 = pneg %p62
      $region54: #{rope_mamba_forward.6} parent=47 // pred_check_branch
        %315 = sbr.rel (%p313) target = $region56
      $region55: #{rope_mamba_forward.6} parent=47 // pred_region
        %p316 = scmp.lt.s32.totalorder %s16, 1
        %s317 = scalar_select %p316, %s16, 1
        %s318 = smul.addr %s317, 16
        %s319 = smul.addr %s318, 8
        %s320 = scalar_lea.vmem %s1, %s319
      $region56: #{rope_mamba_forward.6} parent=47 // pred_fallthru
        _
    $region48: #{rope_mamba_forward.6} parent=5 // pred_fallthru
      _
    %p321 = scmp.le.s32.totalorder 1, %s16
    %p322 = scmp.lt.s32.totalorder %s16, 3
    %p323 = pnand %p321, %p322
    %p324 = pneg %p323
    // Predicated region
    $region57: #{rope_mamba_forward.6} parent=5 // pred_check
      _
    $region58: #{rope_mamba_forward.6} parent=5 // pred_check_branch
      %326 = sbr.rel (%p323) target = $region60
    $region59: #{rope_mamba_forward.6} parent=5 // pred_region
      %s327 = ssub.s32 %s16, 1
      %p328 = scmp.lt.s32.totalorder %s21, 1
      %s329 = scalar_select %p328, %s21, 1
      %s330 = smul.addr %s329, 40
      %s331 = smul.addr %s330, 8
      %s332 = scalar_lea.vmem %s0, %s331
      %p333 = pneg %p42
      %p334 = pneg %p39
      %p335 = scmp.lt.s32.totalorder %s21, 1
      %s336 = scalar_select %p335, %s21, 1
      %s337 = smul.addr %s336, 16
      %s338 = smul.addr %s337, 8
      %s339 = scalar_lea.vmem %s1, %s338
      %p340 = pneg %p68
      %p341 = pneg %p65
      %p342 = pneg %p89
      %p343 = pneg %p86
      %p344 = pneg %p110
      %p345 = pneg %p107
      %p346 = pneg %p131
      %p347 = pneg %p128
      %p348 = pneg %p152
      %p349 = pneg %p149
      %p350 = pneg %p173
      %p351 = pneg %p170
      %p352 = pneg %p194
      %p353 = pneg %p191
      %p354 = pneg %p215
      %p355 = pneg %p212
      %p356 = pneg %p236
      %p357 = pneg %p233
      %p358 = pneg %p262
      %p359 = pneg %p259
      %p360 = scmp.lt.s32.totalorder %s21, 1
      %s361 = scalar_select %p360, %s21, 1
      %s362 = smul.addr %s361, 8
      %s363 = smul.addr %s362, 8
      %s364 = scalar_lea.vmem %s10, %s363
      %p365 = scmp.lt.s32.totalorder %s21, 1
      %s366 = scalar_select %p365, %s21, 1
      %s367 = smul.addr %s366, 40
      %s368 = smul.addr %s367, 8
      %s369 = scalar_lea.vmem %s0, %s368
      %p370 = scmp.lt.s32.totalorder %s21, 1
      %s371 = scalar_select %p370, %s21, 1
      %s372 = smul.addr %s371, 16
      %s373 = smul.addr %s372, 8
      %s374 = scalar_lea.vmem %s1, %s373
      %p375 = scmp.lt.s32.totalorder %s21, 1
      %s376 = scalar_select %p375, %s21, 1
      %s377 = smul.addr %s376, 8
      %s378 = smul.addr %s377, 8
      %s379 = scalar_lea.vmem %s10, %s378
      %v380 = vld [vmem:[%s2] sm:$0xff]
      %v381 = vld [vmem:[%s2 + $0x8] sm:$0xff]
      %v382 = vld [vmem:[%s2 + $0x10] sm:$0xff]
      %v383 = vld [vmem:[%s2 + $0x18] sm:$0xff]
      %v384 = vld [vmem:[%s2 + $0x20] sm:$0xff]
      %v385 = vld [vmem:[%s2 + $0x28] sm:$0xff]
      %v386 = vld [vmem:[%s2 + $0x30] sm:$0xff]
      %v387 = vld [vmem:[%s2 + $0x38] sm:$0xff]
      %v388 = vld [vmem:[%s374] sm:$0xff]
      %v389 = vld [vmem:[%s374 + $0x10] sm:$0xff]
      %v390 = vld [vmem:[%s374 + $0x20] sm:$0xff]
      %v391 = vld [vmem:[%s374 + $0x30] sm:$0xff]
      %v392 = vld [vmem:[%s374 + $0x40] sm:$0xff]
      %v393 = vld [vmem:[%s374 + $0x50] sm:$0xff]
      %v394 = vld [vmem:[%s374 + $0x60] sm:$0xff]
      %v395 = vld [vmem:[%s374 + $0x70] sm:$0xff]
      %vm396 = vcmask 523264
      %v398 = vsel %vm396, %v380, 0
      %v401 = vsel %vm396, %v381, 0
      %v404 = vsel %vm396, %v382, 0
      %v407 = vsel %vm396, %v383, 0
      %v410 = vsel %vm396, %v384, 0
      %v413 = vsel %vm396, %v385, 0
      %v416 = vsel %vm396, %v386, 0
      %v419 = vsel %vm396, %v387, 0
      %421 = vmatprep.subr.mxu0 0.0
      %422 = vmatpush1.msra.mxu0 0.0
      %423 = vmatprep.subr.mxu0 0.0
      %424 = vmatpush1.msra.mxu0 0.0
      %425 = vmatprep.subr.mxu0 0.0
      %426 = vmatpush1.msra.mxu0 0.0
      %427 = vmatprep.subr.mxu0 0.0
      %428 = vmatpush1.msra.mxu0 0.0
      %429 = vmatprep.subr.mxu0 0.0
      %430 = vmatpush1.msra.mxu0 0.0
      %431 = vmatprep.subr.mxu0 0.0
      %432 = vmatpush1.msra.mxu0 0.0
      %433 = vmatprep.subr.mxu0 0.0
      %434 = vmatpush1.msra.mxu0 0.0
      %435 = vmatprep.subr.mxu0 0.0
      %436 = vmatpush1.msra.mxu0 0.0
      %437 = vmatprep.subr.mxu0 0.0
      %438 = vmatpush1.msra.mxu0 %v395
      %439 = vmatprep.subr.mxu0 0.0
      %440 = vmatpush1.msra.mxu0 %v394
      %441 = vmatprep.subr.mxu0 0.0
      %442 = vmatpush1.msra.mxu0 %v393
      %443 = vmatprep.subr.mxu0 0.0
      %444 = vmatpush1.msra.mxu0 %v392
      %445 = vmatprep.subr.mxu0 0.0
      %446 = vmatpush1.msra.mxu0 %v391
      %447 = vmatprep.subr.mxu0 0.0
      %448 = vmatpush1.msra.mxu0 %v390
      %449 = vmatprep.subr.mxu0 0.0
      %450 = vmatpush1.msra.mxu0 %v389
      %451 = vmatprep.subr.mxu0 0.0
      %452 = vmatpush1.msra.mxu0 %v388
      %453 = vmatprep.subr.mxu0 0.0
      %454 = vmatpush2.msra.mxu0 0.0
      %455 = vmatprep.subr.mxu0 0.0
      %456 = vmatpush2.msra.mxu0 0.0
      %457 = vmatprep.subr.mxu0 0.0
      %458 = vmatpush2.msra.mxu0 0.0
      %459 = vmatprep.subr.mxu0 0.0
      %460 = vmatpush2.msra.mxu0 0.0
      %461 = vmatprep.subr.mxu0 0.0
      %462 = vmatpush2.msra.mxu0 0.0
      %463 = vmatprep.subr.mxu0 0.0
      %464 = vmatpush2.msra.mxu0 0.0
      %465 = vmatprep.subr.mxu0 0.0
      %466 = vmatpush2.msra.mxu0 0.0
      %467 = vmatprep.subr.mxu0 0.0
      %468 = vmatpush2.msra.mxu0 0.0
      %469 = vmatprep.subr.mxu0 0.0
      %470 = vmatpush2.msra.mxu0 0.0
      %471 = vmatprep.subr.mxu0 0.0
      %472 = vmatpush2.msra.mxu0 0.0
      %473 = vmatprep.subr.mxu0 0.0
      %474 = vmatpush2.msra.mxu0 0.0
      %475 = vmatprep.subr.mxu0 0.0
      %476 = vmatpush2.msra.mxu0 0.0
      %477 = vmatprep.subr.mxu0 0.0
      %478 = vmatpush2.msra.mxu0 0.0
      %479 = vmatprep.subr.mxu0 0.0
      %480 = vmatpush2.msra.mxu0 0.0
      %481 = vmatprep.subr.mxu0 0.0
      %482 = vmatpush2.msra.mxu0 0.0
      %483 = vmatprep.subr.mxu0 0.0
      %484 = vmatpush2.msra.mxu0 0.0
      %485 = vmatprep.mubr.f32.mxu0 0.0
      %486 = vmatmul.mubr.f32.gmra.mxu0 %v398
      %v487 = vpop.f32.mrf.mxu0
      %v488 = vadd.f32 0.0, %v487
      %v489 = vpop.f32.mrf.mxu0
      %490 = vmatprep.mubr.f32.mxu0 0.0
      %491 = vmatmul.mubr.f32.gmra.mxu0 %v401
      %v492 = vpop.f32.mrf.mxu0
      %v493 = vadd.f32 0.0, %v492
      %v494 = vpop.f32.mrf.mxu0
      %495 = vmatprep.mubr.f32.mxu0 0.0
      %496 = vmatmul.mubr.f32.gmra.mxu0 %v404
      %v497 = vpop.f32.mrf.mxu0
      %v498 = vadd.f32 0.0, %v497
      %v499 = vpop.f32.mrf.mxu0
      %500 = vmatprep.mubr.f32.mxu0 0.0
      %501 = vmatmul.mubr.f32.gmra.mxu0 %v407
      %v502 = vpop.f32.mrf.mxu0
      %v503 = vadd.f32 0.0, %v502
      %v504 = vpop.f32.mrf.mxu0
      %505 = vmatprep.mubr.f32.mxu0 0.0
      %506 = vmatmul.mubr.f32.gmra.mxu0 %v410
      %v507 = vpop.f32.mrf.mxu0
      %v508 = vadd.f32 0.0, %v507
      %v509 = vpop.f32.mrf.mxu0
      %510 = vmatprep.mubr.f32.mxu0 0.0
      %511 = vmatmul.mubr.f32.gmra.mxu0 %v413
      %v512 = vpop.f32.mrf.mxu0
      %v513 = vadd.f32 0.0, %v512
      %v514 = vpop.f32.mrf.mxu0
      %515 = vmatprep.mubr.f32.mxu0 0.0
      %516 = vmatmul.mubr.f32.gmra.mxu0 %v416
      %v517 = vpop.f32.mrf.mxu0
      %v518 = vadd.f32 0.0, %v517
      %v519 = vpop.f32.mrf.mxu0
      %520 = vmatprep.mubr.f32.mxu0 0.0
      %521 = vmatmul.mubr.f32.gmra.mxu0 %v419
      %v522 = vpop.f32.mrf.mxu0
      %v523 = vadd.f32 0.0, %v522
      %v524 = vpop.f32.mrf.mxu0
      %525 = vdwg.mxu0
      %v526 = vld [vmem:[%s369 + $0x10] sm:$0xff]
      %v527 = vld [vmem:[%s369 + $0x38] sm:$0xff]
      %v528 = vld [vmem:[%s369 + $0x60] sm:$0xff]
      %v529 = vld [vmem:[%s369 + $0x88] sm:$0xff]
      %v530 = vld [vmem:[%s369 + $0xb0] sm:$0xff]
      %v531 = vld [vmem:[%s369 + $0xd8] sm:$0xff]
      %v532 = vld [vmem:[%s369 + $0x100] sm:$0xff]
      %v533 = vld [vmem:[%s369 + $0x128] sm:$0xff]
      %534 = vmatprep.subr.mxu0 0.0
      %535 = vmatpush1.msra.mxu0 0.0
      %536 = vmatprep.subr.mxu0 0.0
      %537 = vmatpush1.msra.mxu0 0.0
      %538 = vmatprep.subr.mxu0 0.0
      %539 = vmatpush1.msra.mxu0 0.0
      %540 = vmatprep.subr.mxu0 0.0
      %541 = vmatpush1.msra.mxu0 0.0
      %542 = vmatprep.subr.mxu0 0.0
      %543 = vmatpush1.msra.mxu0 0.0
      %544 = vmatprep.subr.mxu0 0.0
      %545 = vmatpush1.msra.mxu0 0.0
      %546 = vmatprep.subr.mxu0 0.0
      %547 = vmatpush1.msra.mxu0 0.0
      %548 = vmatprep.subr.mxu0 0.0
      %549 = vmatpush1.msra.mxu0 0.0
      %550 = vmatprep.subr.mxu0 0.0
      %551 = vmatpush1.msra.mxu0 %v533
      %552 = vmatprep.subr.mxu0 0.0
      %553 = vmatpush1.msra.mxu0 %v532
      %554 = vmatprep.subr.mxu0 0.0
      %555 = vmatpush1.msra.mxu0 %v531
      %556 = vmatprep.subr.mxu0 0.0
      %557 = vmatpush1.msra.mxu0 %v530
      %558 = vmatprep.subr.mxu0 0.0
      %559 = vmatpush1.msra.mxu0 %v529
      %560 = vmatprep.subr.mxu0 0.0
      %561 = vmatpush1.msra.mxu0 %v528
      %562 = vmatprep.subr.mxu0 0.0
      %563 = vmatpush1.msra.mxu0 %v527
      %564 = vmatprep.subr.mxu0 0.0
      %565 = vmatpush1.msra.mxu0 %v526
      %566 = vmatprep.subr.mxu0 0.0
      %567 = vmatpush2.msra.mxu0 0.0
      %568 = vmatprep.subr.mxu0 0.0
      %569 = vmatpush2.msra.mxu0 0.0
      %570 = vmatprep.subr.mxu0 0.0
      %571 = vmatpush2.msra.mxu0 0.0
      %572 = vmatprep.subr.mxu0 0.0
      %573 = vmatpush2.msra.mxu0 0.0
      %574 = vmatprep.subr.mxu0 0.0
      %575 = vmatpush2.msra.mxu0 0.0
      %576 = vmatprep.subr.mxu0 0.0
      %577 = vmatpush2.msra.mxu0 0.0
      %578 = vmatprep.subr.mxu0 0.0
      %579 = vmatpush2.msra.mxu0 0.0
      %580 = vmatprep.subr.mxu0 0.0
      %581 = vmatpush2.msra.mxu0 0.0
      %582 = vmatprep.subr.mxu0 0.0
      %583 = vmatpush2.msra.mxu0 0.0
      %584 = vmatprep.subr.mxu0 0.0
      %585 = vmatpush2.msra.mxu0 0.0
      %586 = vmatprep.subr.mxu0 0.0
      %587 = vmatpush2.msra.mxu0 0.0
      %588 = vmatprep.subr.mxu0 0.0
      %589 = vmatpush2.msra.mxu0 0.0
      %590 = vmatprep.subr.mxu0 0.0
      %591 = vmatpush2.msra.mxu0 0.0
      %592 = vmatprep.subr.mxu0 0.0
      %593 = vmatpush2.msra.mxu0 0.0
      %594 = vmatprep.subr.mxu0 0.0
      %595 = vmatpush2.msra.mxu0 0.0
      %596 = vmatprep.subr.mxu0 0.0
      %597 = vmatpush2.msra.mxu0 0.0
      %598 = vmatprep.mubr.f32.mxu0 0.0
      %599 = vmatmul.mubr.f32.gmra.mxu0 %v398
      %v600 = vpop.f32.mrf.mxu0
      %v601 = vadd.f32 0.0, %v600
      %v602 = vpop.f32.mrf.mxu0
      %603 = vmatprep.mubr.f32.mxu0 0.0
      %604 = vmatmul.mubr.f32.gmra.mxu0 %v401
      %v605 = vpop.f32.mrf.mxu0
      %v606 = vadd.f32 0.0, %v605
      %v607 = vpop.f32.mrf.mxu0
      %608 = vmatprep.mubr.f32.mxu0 0.0
      %609 = vmatmul.mubr.f32.gmra.mxu0 %v404
      %v610 = vpop.f32.mrf.mxu0
      %v611 = vadd.f32 0.0, %v610
      %v612 = vpop.f32.mrf.mxu0
      %613 = vmatprep.mubr.f32.mxu0 0.0
      %614 = vmatmul.mubr.f32.gmra.mxu0 %v407
      %v615 = vpop.f32.mrf.mxu0
      %v616 = vadd.f32 0.0, %v615
      %v617 = vpop.f32.mrf.mxu0
      %618 = vmatprep.mubr.f32.mxu0 0.0
      %619 = vmatmul.mubr.f32.gmra.mxu0 %v410
      %v620 = vpop.f32.mrf.mxu0
      %v621 = vadd.f32 0.0, %v620
      %v622 = vpop.f32.mrf.mxu0
      %623 = vmatprep.mubr.f32.mxu0 0.0
      %624 = vmatmul.mubr.f32.gmra.mxu0 %v413
      %v625 = vpop.f32.mrf.mxu0
      %v626 = vadd.f32 0.0, %v625
      %v627 = vpop.f32.mrf.mxu0
      %628 = vmatprep.mubr.f32.mxu0 0.0
      %629 = vmatmul.mubr.f32.gmra.mxu0 %v416
      %v630 = vpop.f32.mrf.mxu0
      %v631 = vadd.f32 0.0, %v630
      %v632 = vpop.f32.mrf.mxu0
      %633 = vmatprep.mubr.f32.mxu0 0.0
      %634 = vmatmul.mubr.f32.gmra.mxu0 %v419
      %v635 = vpop.f32.mrf.mxu0
      %v636 = vadd.f32 0.0, %v635
      %v637 = vpop.f32.mrf.mxu0
      %638 = vdwg.mxu0
      %s639 = scalar_lea.vmem %s2, 64
      %v640 = vld [vmem:[%s639] sm:$0xff]
      %v641 = vld [vmem:[%s639 + $0x8] sm:$0xff]
      %v642 = vld [vmem:[%s639 + $0x10] sm:$0xff]
      %v643 = vld [vmem:[%s639 + $0x18] sm:$0xff]
      %v644 = vld [vmem:[%s639 + $0x20] sm:$0xff]
      %v645 = vld [vmem:[%s639 + $0x28] sm:$0xff]
      %v646 = vld [vmem:[%s639 + $0x30] sm:$0xff]
      %v647 = vld [vmem:[%s639 + $0x38] sm:$0xff]
      %656 = vrot.lane.b32.xlu0 %v388, 64
      %v657 = vpop.permute.xlu0 %656
      %658 = vrot.lane.b32.xlu0 %v389, 64
      %v659 = vpop.permute.xlu0 %658
      %660 = vrot.lane.b32.xlu0 %v390, 64
      %v661 = vpop.permute.xlu0 %660
      %662 = vrot.lane.b32.xlu0 %v391, 64
      %v663 = vpop.permute.xlu0 %662
      %664 = vrot.lane.b32.xlu0 %v392, 64
      %v665 = vpop.permute.xlu0 %664
      %666 = vrot.lane.b32.xlu0 %v393, 64
      %v667 = vpop.permute.xlu0 %666
      %668 = vrot.lane.b32.xlu0 %v394, 64
      %v669 = vpop.permute.xlu0 %668
      %670 = vrot.lane.b32.xlu0 %v395, 64
      %v671 = vpop.permute.xlu0 %670
      %v681 = vsel %vm396, %v640, 0
      %v684 = vsel %vm396, %v641, 0
      %v687 = vsel %vm396, %v642, 0
      %v690 = vsel %vm396, %v643, 0
      %v693 = vsel %vm396, %v644, 0
      %v696 = vsel %vm396, %v645, 0
      %v699 = vsel %vm396, %v646, 0
      %v702 = vsel %vm396, %v647, 0
      %704 = vmatprep.subr.mxu0 0.0
      %705 = vmatpush1.msra.mxu0 0.0
      %706 = vmatprep.subr.mxu0 0.0
      %707 = vmatpush1.msra.mxu0 0.0
      %708 = vmatprep.subr.mxu0 0.0
      %709 = vmatpush1.msra.mxu0 0.0
      %710 = vmatprep.subr.mxu0 0.0
      %711 = vmatpush1.msra.mxu0 0.0
      %712 = vmatprep.subr.mxu0 0.0
      %713 = vmatpush1.msra.mxu0 0.0
      %714 = vmatprep.subr.mxu0 0.0
      %715 = vmatpush1.msra.mxu0 0.0
      %716 = vmatprep.subr.mxu0 0.0
      %717 = vmatpush1.msra.mxu0 0.0
      %718 = vmatprep.subr.mxu0 0.0
      %719 = vmatpush1.msra.mxu0 0.0
      %720 = vmatprep.subr.mxu0 0.0
      %721 = vmatpush1.msra.mxu0 %v671
      %722 = vmatprep.subr.mxu0 0.0
      %723 = vmatpush1.msra.mxu0 %v669
      %724 = vmatprep.subr.mxu0 0.0
      %725 = vmatpush1.msra.mxu0 %v667
      %726 = vmatprep.subr.mxu0 0.0
      %727 = vmatpush1.msra.mxu0 %v665
      %728 = vmatprep.subr.mxu0 0.0
      %729 = vmatpush1.msra.mxu0 %v663
      %730 = vmatprep.subr.mxu0 0.0
      %731 = vmatpush1.msra.mxu0 %v661
      %732 = vmatprep.subr.mxu0 0.0
      %733 = vmatpush1.msra.mxu0 %v659
      %734 = vmatprep.subr.mxu0 0.0
      %735 = vmatpush1.msra.mxu0 %v657
      %736 = vmatprep.subr.mxu0 0.0
      %737 = vmatpush2.msra.mxu0 0.0
      %738 = vmatprep.subr.mxu0 0.0
      %739 = vmatpush2.msra.mxu0 0.0
      %740 = vmatprep.subr.mxu0 0.0
      %741 = vmatpush2.msra.mxu0 0.0
      %742 = vmatprep.subr.mxu0 0.0
      %743 = vmatpush2.msra.mxu0 0.0
      %744 = vmatprep.subr.mxu0 0.0
      %745 = vmatpush2.msra.mxu0 0.0
      %746 = vmatprep.subr.mxu0 0.0
      %747 = vmatpush2.msra.mxu0 0.0
      %748 = vmatprep.subr.mxu0 0.0
      %749 = vmatpush2.msra.mxu0 0.0
      %750 = vmatprep.subr.mxu0 0.0
      %751 = vmatpush2.msra.mxu0 0.0
      %752 = vmatprep.subr.mxu0 0.0
      %753 = vmatpush2.msra.mxu0 0.0
      %754 = vmatprep.subr.mxu0 0.0
      %755 = vmatpush2.msra.mxu0 0.0
      %756 = vmatprep.subr.mxu0 0.0
      %757 = vmatpush2.msra.mxu0 0.0
      %758 = vmatprep.subr.mxu0 0.0
      %759 = vmatpush2.msra.mxu0 0.0
      %760 = vmatprep.subr.mxu0 0.0
      %761 = vmatpush2.msra.mxu0 0.0
      %762 = vmatprep.subr.mxu0 0.0
      %763 = vmatpush2.msra.mxu0 0.0
      %764 = vmatprep.subr.mxu0 0.0
      %765 = vmatpush2.msra.mxu0 0.0
      %766 = vmatprep.subr.mxu0 0.0
      %767 = vmatpush2.msra.mxu0 0.0
      %768 = vmatprep.mubr.f32.mxu0 0.0
      %769 = vmatmul.mubr.f32.gmra.mxu0 %v681
      %v770 = vpop.f32.mrf.mxu0
      %v771 = vadd.f32 0.0, %v770
      %v772 = vpop.f32.mrf.mxu0
      %773 = vmatprep.mubr.f32.mxu0 0.0
      %774 = vmatmul.mubr.f32.gmra.mxu0 %v684
      %v775 = vpop.f32.mrf.mxu0
      %v776 = vadd.f32 0.0, %v775
      %v777 = vpop.f32.mrf.mxu0
      %778 = vmatprep.mubr.f32.mxu0 0.0
      %779 = vmatmul.mubr.f32.gmra.mxu0 %v687
      %v780 = vpop.f32.mrf.mxu0
      %v781 = vadd.f32 0.0, %v780
      %v782 = vpop.f32.mrf.mxu0
      %783 = vmatprep.mubr.f32.mxu0 0.0
      %784 = vmatmul.mubr.f32.gmra.mxu0 %v690
      %v785 = vpop.f32.mrf.mxu0
      %v786 = vadd.f32 0.0, %v785
      %v787 = vpop.f32.mrf.mxu0
      %788 = vmatprep.mubr.f32.mxu0 0.0
      %789 = vmatmul.mubr.f32.gmra.mxu0 %v693
      %v790 = vpop.f32.mrf.mxu0
      %v791 = vadd.f32 0.0, %v790
      %v792 = vpop.f32.mrf.mxu0
      %793 = vmatprep.mubr.f32.mxu0 0.0
      %794 = vmatmul.mubr.f32.gmra.mxu0 %v696
      %v795 = vpop.f32.mrf.mxu0
      %v796 = vadd.f32 0.0, %v795
      %v797 = vpop.f32.mrf.mxu0
      %798 = vmatprep.mubr.f32.mxu0 0.0
      %799 = vmatmul.mubr.f32.gmra.mxu0 %v699
      %v800 = vpop.f32.mrf.mxu0
      %v801 = vadd.f32 0.0, %v800
      %v802 = vpop.f32.mrf.mxu0
      %803 = vmatprep.mubr.f32.mxu0 0.0
      %804 = vmatmul.mubr.f32.gmra.mxu0 %v702
      %v805 = vpop.f32.mrf.mxu0
      %v806 = vadd.f32 0.0, %v805
      %v807 = vpop.f32.mrf.mxu0
      %808 = vdwg.mxu0
      %v809 = vld [vmem:[%s369 + $0x10] sm:$0xff]
      %v810 = vld [vmem:[%s369 + $0x18] sm:$0xff]
      %v811 = vld [vmem:[%s369 + $0x38] sm:$0xff]
      %v812 = vld [vmem:[%s369 + $0x40] sm:$0xff]
      %v813 = vld [vmem:[%s369 + $0x60] sm:$0xff]
      %v814 = vld [vmem:[%s369 + $0x68] sm:$0xff]
      %v815 = vld [vmem:[%s369 + $0x88] sm:$0xff]
      %v816 = vld [vmem:[%s369 + $0x90] sm:$0xff]
      %v817 = vld [vmem:[%s369 + $0xb0] sm:$0xff]
      %v818 = vld [vmem:[%s369 + $0xb8] sm:$0xff]
      %v819 = vld [vmem:[%s369 + $0xd8] sm:$0xff]
      %v820 = vld [vmem:[%s369 + $0xe0] sm:$0xff]
      %v821 = vld [vmem:[%s369 + $0x100] sm:$0xff]
      %v822 = vld [vmem:[%s369 + $0x108] sm:$0xff]
      %v823 = vld [vmem:[%s369 + $0x128] sm:$0xff]
      %v824 = vld [vmem:[%s369 + $0x130] sm:$0xff]
      %841 = vrot.lane.b32.xlu0 %v809, 32
      %v842 = vpop.permute.xlu0 %841
      %843 = vrot.lane.b32.xlu0 %v810, 32
      %v844 = vpop.permute.xlu0 %843
      %845 = vrot.lane.b32.xlu0 %v811, 32
      %v846 = vpop.permute.xlu0 %845
      %847 = vrot.lane.b32.xlu0 %v812, 32
      %v848 = vpop.permute.xlu0 %847
      %849 = vrot.lane.b32.xlu0 %v813, 32
      %v850 = vpop.permute.xlu0 %849
      %851 = vrot.lane.b32.xlu0 %v814, 32
      %v852 = vpop.permute.xlu0 %851
      %853 = vrot.lane.b32.xlu0 %v815, 32
      %v854 = vpop.permute.xlu0 %853
      %855 = vrot.lane.b32.xlu0 %v816, 32
      %v856 = vpop.permute.xlu0 %855
      %857 = vrot.lane.b32.xlu0 %v817, 32
      %v858 = vpop.permute.xlu0 %857
      %859 = vrot.lane.b32.xlu0 %v818, 32
      %v860 = vpop.permute.xlu0 %859
      %861 = vrot.lane.b32.xlu0 %v819, 32
      %v862 = vpop.permute.xlu0 %861
      %863 = vrot.lane.b32.xlu0 %v820, 32
      %v864 = vpop.permute.xlu0 %863
      %865 = vrot.lane.b32.xlu0 %v821, 32
      %v866 = vpop.permute.xlu0 %865
      %867 = vrot.lane.b32.xlu0 %v822, 32
      %v868 = vpop.permute.xlu0 %867
      %869 = vrot.lane.b32.xlu0 %v823, 32
      %v870 = vpop.permute.xlu0 %869
      %871 = vrot.lane.b32.xlu0 %v824, 32
      %v872 = vpop.permute.xlu0 %871
      %vm873 = vcmask 261120
      %v874 = vsel %vm873, %v842, %v844
      %v875 = vsel %vm873, %v846, %v848
      %v876 = vsel %vm873, %v850, %v852
      %v877 = vsel %vm873, %v854, %v856
      %v878 = vsel %vm873, %v858, %v860
      %v879 = vsel %vm873, %v862, %v864
      %v880 = vsel %vm873, %v866, %v868
      %v881 = vsel %vm873, %v870, %v872
      %890 = vmatprep.subr.mxu0 0.0
      %891 = vmatpush1.msra.mxu0 0.0
      %892 = vmatprep.subr.mxu0 0.0
      %893 = vmatpush1.msra.mxu0 0.0
      %894 = vmatprep.subr.mxu0 0.0
      %895 = vmatpush1.msra.mxu0 0.0
      %896 = vmatprep.subr.mxu0 0.0
      %897 = vmatpush1.msra.mxu0 0.0
      %898 = vmatprep.subr.mxu0 0.0
      %899 = vmatpush1.msra.mxu0 0.0
      %900 = vmatprep.subr.mxu0 0.0
      %901 = vmatpush1.msra.mxu0 0.0
      %902 = vmatprep.subr.mxu0 0.0
      %903 = vmatpush1.msra.mxu0 0.0
      %904 = vmatprep.subr.mxu0 0.0
      %905 = vmatpush1.msra.mxu0 0.0
      %906 = vmatprep.subr.mxu0 0.0
      %907 = vmatpush1.msra.mxu0 %v881
      %908 = vmatprep.subr.mxu0 0.0
      %909 = vmatpush1.msra.mxu0 %v880
      %910 = vmatprep.subr.mxu0 0.0
      %911 = vmatpush1.msra.mxu0 %v879
      %912 = vmatprep.subr.mxu0 0.0
      %913 = vmatpush1.msra.mxu0 %v878
      %914 = vmatprep.subr.mxu0 0.0
      %915 = vmatpush1.msra.mxu0 %v877
      %916 = vmatprep.subr.mxu0 0.0
      %917 = vmatpush1.msra.mxu0 %v876
      %918 = vmatprep.subr.mxu0 0.0
      %919 = vmatpush1.msra.mxu0 %v875
      %920 = vmatprep.subr.mxu0 0.0
      %921 = vmatpush1.msra.mxu0 %v874
      %922 = vmatprep.subr.mxu0 0.0
      %923 = vmatpush2.msra.mxu0 0.0
      %924 = vmatprep.subr.mxu0 0.0
      %925 = vmatpush2.msra.mxu0 0.0
      %926 = vmatprep.subr.mxu0 0.0
      %927 = vmatpush2.msra.mxu0 0.0
      %928 = vmatprep.subr.mxu0 0.0
      %929 = vmatpush2.msra.mxu0 0.0
      %930 = vmatprep.subr.mxu0 0.0
      %931 = vmatpush2.msra.mxu0 0.0
      %932 = vmatprep.subr.mxu0 0.0
      %933 = vmatpush2.msra.mxu0 0.0
      %934 = vmatprep.subr.mxu0 0.0
      %935 = vmatpush2.msra.mxu0 0.0
      %936 = vmatprep.subr.mxu0 0.0
      %937 = vmatpush2.msra.mxu0 0.0
      %938 = vmatprep.subr.mxu0 0.0
      %939 = vmatpush2.msra.mxu0 0.0
      %940 = vmatprep.subr.mxu0 0.0
      %941 = vmatpush2.msra.mxu0 0.0
      %942 = vmatprep.subr.mxu0 0.0
      %943 = vmatpush2.msra.mxu0 0.0
      %944 = vmatprep.subr.mxu0 0.0
      %945 = vmatpush2.msra.mxu0 0.0
      %946 = vmatprep.subr.mxu0 0.0
      %947 = vmatpush2.msra.mxu0 0.0
      %948 = vmatprep.subr.mxu0 0.0
      %949 = vmatpush2.msra.mxu0 0.0
      %950 = vmatprep.subr.mxu0 0.0
      %951 = vmatpush2.msra.mxu0 0.0
      %952 = vmatprep.subr.mxu0 0.0
      %953 = vmatpush2.msra.mxu0 0.0
      %954 = vmatprep.mubr.f32.mxu0 0.0
      %955 = vmatmul.mubr.f32.gmra.mxu0 %v681
      %v956 = vpop.f32.mrf.mxu0
      %v957 = vadd.f32 0.0, %v956
      %v958 = vpop.f32.mrf.mxu0
      %959 = vmatprep.mubr.f32.mxu0 0.0
      %960 = vmatmul.mubr.f32.gmra.mxu0 %v684
      %v961 = vpop.f32.mrf.mxu0
      %v962 = vadd.f32 0.0, %v961
      %v963 = vpop.f32.mrf.mxu0
      %964 = vmatprep.mubr.f32.mxu0 0.0
      %965 = vmatmul.mubr.f32.gmra.mxu0 %v687
      %v966 = vpop.f32.mrf.mxu0
      %v967 = vadd.f32 0.0, %v966
      %v968 = vpop.f32.mrf.mxu0
      %969 = vmatprep.mubr.f32.mxu0 0.0
      %970 = vmatmul.mubr.f32.gmra.mxu0 %v690
      %v971 = vpop.f32.mrf.mxu0
      %v972 = vadd.f32 0.0, %v971
      %v973 = vpop.f32.mrf.mxu0
      %974 = vmatprep.mubr.f32.mxu0 0.0
      %975 = vmatmul.mubr.f32.gmra.mxu0 %v693
      %v976 = vpop.f32.mrf.mxu0
      %v977 = vadd.f32 0.0, %v976
      %v978 = vpop.f32.mrf.mxu0
      %979 = vmatprep.mubr.f32.mxu0 0.0
      %980 = vmatmul.mubr.f32.gmra.mxu0 %v696
      %v981 = vpop.f32.mrf.mxu0
      %v982 = vadd.f32 0.0, %v981
      %v983 = vpop.f32.mrf.mxu0
      %984 = vmatprep.mubr.f32.mxu0 0.0
      %985 = vmatmul.mubr.f32.gmra.mxu0 %v699
      %v986 = vpop.f32.mrf.mxu0
      %v987 = vadd.f32 0.0, %v986
      %v988 = vpop.f32.mrf.mxu0
      %989 = vmatprep.mubr.f32.mxu0 0.0
      %990 = vmatmul.mubr.f32.gmra.mxu0 %v702
      %v991 = vpop.f32.mrf.mxu0
      %v992 = vadd.f32 0.0, %v991
      %v993 = vpop.f32.mrf.mxu0
      %994 = vdwg.mxu0
      %s995 = scalar_lea.vmem %s2, 128
      %v996 = vld [vmem:[%s995] sm:$0xff]
      %v997 = vld [vmem:[%s995 + $0x8] sm:$0xff]
      %v998 = vld [vmem:[%s995 + $0x10] sm:$0xff]
      %v999 = vld [vmem:[%s995 + $0x18] sm:$0xff]
      %v1000 = vld [vmem:[%s995 + $0x20] sm:$0xff]
      %v1001 = vld [vmem:[%s995 + $0x28] sm:$0xff]
      %v1002 = vld [vmem:[%s995 + $0x30] sm:$0xff]
      %v1003 = vld [vmem:[%s995 + $0x38] sm:$0xff]
      %v1004 = vld [vmem:[%s374 + $0x8] sm:$0xff]
      %v1005 = vld [vmem:[%s374 + $0x18] sm:$0xff]
      %v1006 = vld [vmem:[%s374 + $0x28] sm:$0xff]
      %v1007 = vld [vmem:[%s374 + $0x38] sm:$0xff]
      %v1008 = vld [vmem:[%s374 + $0x48] sm:$0xff]
      %v1009 = vld [vmem:[%s374 + $0x58] sm:$0xff]
      %v1010 = vld [vmem:[%s374 + $0x68] sm:$0xff]
      %v1011 = vld [vmem:[%s374 + $0x78] sm:$0xff]
      %v1013 = vsel %vm396, %v996, 0
      %v1016 = vsel %vm396, %v997, 0
      %v1019 = vsel %vm396, %v998, 0
      %v1022 = vsel %vm396, %v999, 0
      %v1025 = vsel %vm396, %v1000, 0
      %v1028 = vsel %vm396, %v1001, 0
      %v1031 = vsel %vm396, %v1002, 0
      %v1034 = vsel %vm396, %v1003, 0
      %1036 = vmatprep.subr.mxu0 0.0
      %1037 = vmatpush1.msra.mxu0 0.0
      %1038 = vmatprep.subr.mxu0 0.0
      %1039 = vmatpush1.msra.mxu0 0.0
      %1040 = vmatprep.subr.mxu0 0.0
      %1041 = vmatpush1.msra.mxu0 0.0
      %1042 = vmatprep.subr.mxu0 0.0
      %1043 = vmatpush1.msra.mxu0 0.0
      %1044 = vmatprep.subr.mxu0 0.0
      %1045 = vmatpush1.msra.mxu0 0.0
      %1046 = vmatprep.subr.mxu0 0.0
      %1047 = vmatpush1.msra.mxu0 0.0
      %1048 = vmatprep.subr.mxu0 0.0
      %1049 = vmatpush1.msra.mxu0 0.0
      %1050 = vmatprep.subr.mxu0 0.0
      %1051 = vmatpush1.msra.mxu0 0.0
      %1052 = vmatprep.subr.mxu0 0.0
      %1053 = vmatpush1.msra.mxu0 %v1011
      %1054 = vmatprep.subr.mxu0 0.0
      %1055 = vmatpush1.msra.mxu0 %v1010
      %1056 = vmatprep.subr.mxu0 0.0
      %1057 = vmatpush1.msra.mxu0 %v1009
      %1058 = vmatprep.subr.mxu0 0.0
      %1059 = vmatpush1.msra.mxu0 %v1008
      %1060 = vmatprep.subr.mxu0 0.0
      %1061 = vmatpush1.msra.mxu0 %v1007
      %1062 = vmatprep.subr.mxu0 0.0
      %1063 = vmatpush1.msra.mxu0 %v1006
      %1064 = vmatprep.subr.mxu0 0.0
      %1065 = vmatpush1.msra.mxu0 %v1005
      %1066 = vmatprep.subr.mxu0 0.0
      %1067 = vmatpush1.msra.mxu0 %v1004
      %1068 = vmatprep.subr.mxu0 0.0
      %1069 = vmatpush2.msra.mxu0 0.0
      %1070 = vmatprep.subr.mxu0 0.0
      %1071 = vmatpush2.msra.mxu0 0.0
      %1072 = vmatprep.subr.mxu0 0.0
      %1073 = vmatpush2.msra.mxu0 0.0
      %1074 = vmatprep.subr.mxu0 0.0
      %1075 = vmatpush2.msra.mxu0 0.0
      %1076 = vmatprep.subr.mxu0 0.0
      %1077 = vmatpush2.msra.mxu0 0.0
      %1078 = vmatprep.subr.mxu0 0.0
      %1079 = vmatpush2.msra.mxu0 0.0
      %1080 = vmatprep.subr.mxu0 0.0
      %1081 = vmatpush2.msra.mxu0 0.0
      %1082 = vmatprep.subr.mxu0 0.0
      %1083 = vmatpush2.msra.mxu0 0.0
      %1084 = vmatprep.subr.mxu0 0.0
      %1085 = vmatpush2.msra.mxu0 0.0
      %1086 = vmatprep.subr.mxu0 0.0
      %1087 = vmatpush2.msra.mxu0 0.0
      %1088 = vmatprep.subr.mxu0 0.0
      %1089 = vmatpush2.msra.mxu0 0.0
      %1090 = vmatprep.subr.mxu0 0.0
      %1091 = vmatpush2.msra.mxu0 0.0
      %1092 = vmatprep.subr.mxu0 0.0
      %1093 = vmatpush2.msra.mxu0 0.0
      %1094 = vmatprep.subr.mxu0 0.0
      %1095 = vmatpush2.msra.mxu0 0.0
      %1096 = vmatprep.subr.mxu0 0.0
      %1097 = vmatpush2.msra.mxu0 0.0
      %1098 = vmatprep.subr.mxu0 0.0
      %1099 = vmatpush2.msra.mxu0 0.0
      %1100 = vmatprep.mubr.f32.mxu0 0.0
      %1101 = vmatmul.mubr.f32.gmra.mxu0 %v1013
      %v1102 = vpop.f32.mrf.mxu0
      %v1103 = vadd.f32 0.0, %v1102
      %v1104 = vpop.f32.mrf.mxu0
      %1105 = vmatprep.mubr.f32.mxu0 0.0
      %1106 = vmatmul.mubr.f32.gmra.mxu0 %v1016
      %v1107 = vpop.f32.mrf.mxu0
      %v1108 = vadd.f32 0.0, %v1107
      %v1109 = vpop.f32.mrf.mxu0
      %1110 = vmatprep.mubr.f32.mxu0 0.0
      %1111 = vmatmul.mubr.f32.gmra.mxu0 %v1019
      %v1112 = vpop.f32.mrf.mxu0
      %v1113 = vadd.f32 0.0, %v1112
      %v1114 = vpop.f32.mrf.mxu0
      %1115 = vmatprep.mubr.f32.mxu0 0.0
      %1116 = vmatmul.mubr.f32.gmra.mxu0 %v1022
      %v1117 = vpop.f32.mrf.mxu0
      %v1118 = vadd.f32 0.0, %v1117
      %v1119 = vpop.f32.mrf.mxu0
      %1120 = vmatprep.mubr.f32.mxu0 0.0
      %1121 = vmatmul.mubr.f32.gmra.mxu0 %v1025
      %v1122 = vpop.f32.mrf.mxu0
      %v1123 = vadd.f32 0.0, %v1122
      %v1124 = vpop.f32.mrf.mxu0
      %1125 = vmatprep.mubr.f32.mxu0 0.0
      %1126 = vmatmul.mubr.f32.gmra.mxu0 %v1028
      %v1127 = vpop.f32.mrf.mxu0
      %v1128 = vadd.f32 0.0, %v1127
      %v1129 = vpop.f32.mrf.mxu0
      %1130 = vmatprep.mubr.f32.mxu0 0.0
      %1131 = vmatmul.mubr.f32.gmra.mxu0 %v1031
      %v1132 = vpop.f32.mrf.mxu0
      %v1133 = vadd.f32 0.0, %v1132
      %v1134 = vpop.f32.mrf.mxu0
      %1135 = vmatprep.mubr.f32.mxu0 0.0
      %1136 = vmatmul.mubr.f32.gmra.mxu0 %v1034
      %v1137 = vpop.f32.mrf.mxu0
      %v1138 = vadd.f32 0.0, %v1137
      %v1139 = vpop.f32.mrf.mxu0
      %1140 = vdwg.mxu0
      %v1141 = vld [vmem:[%s369 + $0x18] sm:$0xff]
      %v1142 = vld [vmem:[%s369 + $0x20] sm:$0xff]
      %v1143 = vld [vmem:[%s369 + $0x40] sm:$0xff]
      %v1144 = vld [vmem:[%s369 + $0x48] sm:$0xff]
      %v1145 = vld [vmem:[%s369 + $0x68] sm:$0xff]
      %v1146 = vld [vmem:[%s369 + $0x70] sm:$0xff]
      %v1147 = vld [vmem:[%s369 + $0x90] sm:$0xff]
      %v1148 = vld [vmem:[%s369 + $0x98] sm:$0xff]
      %v1149 = vld [vmem:[%s369 + $0xb8] sm:$0xff]
      %v1150 = vld [vmem:[%s369 + $0xc0] sm:$0xff]
      %v1151 = vld [vmem:[%s369 + $0xe0] sm:$0xff]
      %v1152 = vld [vmem:[%s369 + $0xe8] sm:$0xff]
      %v1153 = vld [vmem:[%s369 + $0x108] sm:$0xff]
      %v1154 = vld [vmem:[%s369 + $0x110] sm:$0xff]
      %v1155 = vld [vmem:[%s369 + $0x130] sm:$0xff]
      %v1156 = vld [vmem:[%s369 + $0x138] sm:$0xff]
      %1173 = vrot.lane.b32.xlu0 %v1141, 64
      %v1174 = vpop.permute.xlu0 %1173
      %1175 = vrot.lane.b32.xlu0 %v1142, 64
      %v1176 = vpop.permute.xlu0 %1175
      %1177 = vrot.lane.b32.xlu0 %v1143, 64
      %v1178 = vpop.permute.xlu0 %1177
      %1179 = vrot.lane.b32.xlu0 %v1144, 64
      %v1180 = vpop.permute.xlu0 %1179
      %1181 = vrot.lane.b32.xlu0 %v1145, 64
      %v1182 = vpop.permute.xlu0 %1181
      %1183 = vrot.lane.b32.xlu0 %v1146, 64
      %v1184 = vpop.permute.xlu0 %1183
      %1185 = vrot.lane.b32.xlu0 %v1147, 64
      %v1186 = vpop.permute.xlu0 %1185
      %1187 = vrot.lane.b32.xlu0 %v1148, 64
      %v1188 = vpop.permute.xlu0 %1187
      %1189 = vrot.lane.b32.xlu0 %v1149, 64
      %v1190 = vpop.permute.xlu0 %1189
      %1191 = vrot.lane.b32.xlu0 %v1150, 64
      %v1192 = vpop.permute.xlu0 %1191
      %1193 = vrot.lane.b32.xlu0 %v1151, 64
      %v1194 = vpop.permute.xlu0 %1193
      %1195 = vrot.lane.b32.xlu0 %v1152, 64
      %v1196 = vpop.permute.xlu0 %1195
      %1197 = vrot.lane.b32.xlu0 %v1153, 64
      %v1198 = vpop.permute.xlu0 %1197
      %1199 = vrot.lane.b32.xlu0 %v1154, 64
      %v1200 = vpop.permute.xlu0 %1199
      %1201 = vrot.lane.b32.xlu0 %v1155, 64
      %v1202 = vpop.permute.xlu0 %1201
      %1203 = vrot.lane.b32.xlu0 %v1156, 64
      %v1204 = vpop.permute.xlu0 %1203
      %v1205 = vsel %vm396, %v1174, %v1176
      %v1206 = vsel %vm396, %v1178, %v1180
      %v1207 = vsel %vm396, %v1182, %v1184
      %v1208 = vsel %vm396, %v1186, %v1188
      %v1209 = vsel %vm396, %v1190, %v1192
      %v1210 = vsel %vm396, %v1194, %v1196
      %v1211 = vsel %vm396, %v1198, %v1200
      %v1212 = vsel %vm396, %v1202, %v1204
      %1221 = vmatprep.subr.mxu0 0.0
      %1222 = vmatpush1.msra.mxu0 0.0
      %1223 = vmatprep.subr.mxu0 0.0
      %1224 = vmatpush1.msra.mxu0 0.0
      %1225 = vmatprep.subr.mxu0 0.0
      %1226 = vmatpush1.msra.mxu0 0.0
      %1227 = vmatprep.subr.mxu0 0.0
      %1228 = vmatpush1.msra.mxu0 0.0
      %1229 = vmatprep.subr.mxu0 0.0
      %1230 = vmatpush1.msra.mxu0 0.0
      %1231 = vmatprep.subr.mxu0 0.0
      %1232 = vmatpush1.msra.mxu0 0.0
      %1233 = vmatprep.subr.mxu0 0.0
      %1234 = vmatpush1.msra.mxu0 0.0
      %1235 = vmatprep.subr.mxu0 0.0
      %1236 = vmatpush1.msra.mxu0 0.0
      %1237 = vmatprep.subr.mxu0 0.0
      %1238 = vmatpush1.msra.mxu0 %v1212
      %1239 = vmatprep.subr.mxu0 0.0
      %1240 = vmatpush1.msra.mxu0 %v1211
      %1241 = vmatprep.subr.mxu0 0.0
      %1242 = vmatpush1.msra.mxu0 %v1210
      %1243 = vmatprep.subr.mxu0 0.0
      %1244 = vmatpush1.msra.mxu0 %v1209
      %1245 = vmatprep.subr.mxu0 0.0
      %1246 = vmatpush1.msra.mxu0 %v1208
      %1247 = vmatprep.subr.mxu0 0.0
      %1248 = vmatpush1.msra.mxu0 %v1207
      %1249 = vmatprep.subr.mxu0 0.0
      %1250 = vmatpush1.msra.mxu0 %v1206
      %1251 = vmatprep.subr.mxu0 0.0
      %1252 = vmatpush1.msra.mxu0 %v1205
      %1253 = vmatprep.subr.mxu0 0.0
      %1254 = vmatpush2.msra.mxu0 0.0
      %1255 = vmatprep.subr.mxu0 0.0
      %1256 = vmatpush2.msra.mxu0 0.0
      %1257 = vmatprep.subr.mxu0 0.0
      %1258 = vmatpush2.msra.mxu0 0.0
      %1259 = vmatprep.subr.mxu0 0.0
      %1260 = vmatpush2.msra.mxu0 0.0
      %1261 = vmatprep.subr.mxu0 0.0
      %1262 = vmatpush2.msra.mxu0 0.0
      %1263 = vmatprep.subr.mxu0 0.0
      %1264 = vmatpush2.msra.mxu0 0.0
      %1265 = vmatprep.subr.mxu0 0.0
      %1266 = vmatpush2.msra.mxu0 0.0
      %1267 = vmatprep.subr.mxu0 0.0
      %1268 = vmatpush2.msra.mxu0 0.0
      %1269 = vmatprep.subr.mxu0 0.0
      %1270 = vmatpush2.msra.mxu0 0.0
      %1271 = vmatprep.subr.mxu0 0.0
      %1272 = vmatpush2.msra.mxu0 0.0
      %1273 = vmatprep.subr.mxu0 0.0
      %1274 = vmatpush2.msra.mxu0 0.0
      %1275 = vmatprep.subr.mxu0 0.0
      %1276 = vmatpush2.msra.mxu0 0.0
      %1277 = vmatprep.subr.mxu0 0.0
      %1278 = vmatpush2.msra.mxu0 0.0
      %1279 = vmatprep.subr.mxu0 0.0
      %1280 = vmatpush2.msra.mxu0 0.0
      %1281 = vmatprep.subr.mxu0 0.0
      %1282 = vmatpush2.msra.mxu0 0.0
      %1283 = vmatprep.subr.mxu0 0.0
      %1284 = vmatpush2.msra.mxu0 0.0
      %1285 = vmatprep.mubr.f32.mxu0 0.0
      %1286 = vmatmul.mubr.f32.gmra.mxu0 %v1013
      %v1287 = vpop.f32.mrf.mxu0
      %v1288 = vadd.f32 0.0, %v1287
      %v1289 = vpop.f32.mrf.mxu0
      %1290 = vmatprep.mubr.f32.mxu0 0.0
      %1291 = vmatmul.mubr.f32.gmra.mxu0 %v1016
      %v1292 = vpop.f32.mrf.mxu0
      %v1293 = vadd.f32 0.0, %v1292
      %v1294 = vpop.f32.mrf.mxu0
      %1295 = vmatprep.mubr.f32.mxu0 0.0
      %1296 = vmatmul.mubr.f32.gmra.mxu0 %v1019
      %v1297 = vpop.f32.mrf.mxu0
      %v1298 = vadd.f32 0.0, %v1297
      %v1299 = vpop.f32.mrf.mxu0
      %1300 = vmatprep.mubr.f32.mxu0 0.0
      %1301 = vmatmul.mubr.f32.gmra.mxu0 %v1022
      %v1302 = vpop.f32.mrf.mxu0
      %v1303 = vadd.f32 0.0, %v1302
      %v1304 = vpop.f32.mrf.mxu0
      %1305 = vmatprep.mubr.f32.mxu0 0.0
      %1306 = vmatmul.mubr.f32.gmra.mxu0 %v1025
      %v1307 = vpop.f32.mrf.mxu0
      %v1308 = vadd.f32 0.0, %v1307
      %v1309 = vpop.f32.mrf.mxu0
      %1310 = vmatprep.mubr.f32.mxu0 0.0
      %1311 = vmatmul.mubr.f32.gmra.mxu0 %v1028
      %v1312 = vpop.f32.mrf.mxu0
      %v1313 = vadd.f32 0.0, %v1312
      %v1314 = vpop.f32.mrf.mxu0
      %1315 = vmatprep.mubr.f32.mxu0 0.0
      %1316 = vmatmul.mubr.f32.gmra.mxu0 %v1031
      %v1317 = vpop.f32.mrf.mxu0
      %v1318 = vadd.f32 0.0, %v1317
      %v1319 = vpop.f32.mrf.mxu0
      %1320 = vmatprep.mubr.f32.mxu0 0.0
      %1321 = vmatmul.mubr.f32.gmra.mxu0 %v1034
      %v1322 = vpop.f32.mrf.mxu0
      %v1323 = vadd.f32 0.0, %v1322
      %v1324 = vpop.f32.mrf.mxu0
      %1325 = vdwg.mxu0
      %s1326 = scalar_lea.vmem %s2, 192
      %v1327 = vld [vmem:[%s1326] sm:$0xff]
      %v1328 = vld [vmem:[%s1326 + $0x8] sm:$0xff]
      %v1329 = vld [vmem:[%s1326 + $0x10] sm:$0xff]
      %v1330 = vld [vmem:[%s1326 + $0x18] sm:$0xff]
      %v1331 = vld [vmem:[%s1326 + $0x20] sm:$0xff]
      %v1332 = vld [vmem:[%s1326 + $0x28] sm:$0xff]
      %v1333 = vld [vmem:[%s1326 + $0x30] sm:$0xff]
      %v1334 = vld [vmem:[%s1326 + $0x38] sm:$0xff]
      %1343 = vrot.lane.b32.xlu0 %v1004, 64
      %v1344 = vpop.permute.xlu0 %1343
      %1345 = vrot.lane.b32.xlu0 %v1005, 64
      %v1346 = vpop.permute.xlu0 %1345
      %1347 = vrot.lane.b32.xlu0 %v1006, 64
      %v1348 = vpop.permute.xlu0 %1347
      %1349 = vrot.lane.b32.xlu0 %v1007, 64
      %v1350 = vpop.permute.xlu0 %1349
      %1351 = vrot.lane.b32.xlu0 %v1008, 64
      %v1352 = vpop.permute.xlu0 %1351
      %1353 = vrot.lane.b32.xlu0 %v1009, 64
      %v1354 = vpop.permute.xlu0 %1353
      %1355 = vrot.lane.b32.xlu0 %v1010, 64
      %v1356 = vpop.permute.xlu0 %1355
      %1357 = vrot.lane.b32.xlu0 %v1011, 64
      %v1358 = vpop.permute.xlu0 %1357
      %v1368 = vsel %vm396, %v1327, 0
      %v1371 = vsel %vm396, %v1328, 0
      %v1374 = vsel %vm396, %v1329, 0
      %v1377 = vsel %vm396, %v1330, 0
      %v1380 = vsel %vm396, %v1331, 0
      %v1383 = vsel %vm396, %v1332, 0
      %v1386 = vsel %vm396, %v1333, 0
      %v1389 = vsel %vm396, %v1334, 0
      %1391 = vmatprep.subr.mxu0 0.0
      %1392 = vmatpush1.msra.mxu0 0.0
      %1393 = vmatprep.subr.mxu0 0.0
      %1394 = vmatpush1.msra.mxu0 0.0
      %1395 = vmatprep.subr.mxu0 0.0
      %1396 = vmatpush1.msra.mxu0 0.0
      %1397 = vmatprep.subr.mxu0 0.0
      %1398 = vmatpush1.msra.mxu0 0.0
      %1399 = vmatprep.subr.mxu0 0.0
      %1400 = vmatpush1.msra.mxu0 0.0
      %1401 = vmatprep.subr.mxu0 0.0
      %1402 = vmatpush1.msra.mxu0 0.0
      %1403 = vmatprep.subr.mxu0 0.0
      %1404 = vmatpush1.msra.mxu0 0.0
      %1405 = vmatprep.subr.mxu0 0.0
      %1406 = vmatpush1.msra.mxu0 0.0
      %1407 = vmatprep.subr.mxu0 0.0
      %1408 = vmatpush1.msra.mxu0 %v1358
      %1409 = vmatprep.subr.mxu0 0.0
      %1410 = vmatpush1.msra.mxu0 %v1356
      %1411 = vmatprep.subr.mxu0 0.0
      %1412 = vmatpush1.msra.mxu0 %v1354
      %1413 = vmatprep.subr.mxu0 0.0
      %1414 = vmatpush1.msra.mxu0 %v1352
      %1415 = vmatprep.subr.mxu0 0.0
      %1416 = vmatpush1.msra.mxu0 %v1350
      %1417 = vmatprep.subr.mxu0 0.0
      %1418 = vmatpush1.msra.mxu0 %v1348
      %1419 = vmatprep.subr.mxu0 0.0
      %1420 = vmatpush1.msra.mxu0 %v1346
      %1421 = vmatprep.subr.mxu0 0.0
      %1422 = vmatpush1.msra.mxu0 %v1344
      %1423 = vmatprep.subr.mxu0 0.0
      %1424 = vmatpush2.msra.mxu0 0.0
      %1425 = vmatprep.subr.mxu0 0.0
      %1426 = vmatpush2.msra.mxu0 0.0
      %1427 = vmatprep.subr.mxu0 0.0
      %1428 = vmatpush2.msra.mxu0 0.0
      %1429 = vmatprep.subr.mxu0 0.0
      %1430 = vmatpush2.msra.mxu0 0.0
      %1431 = vmatprep.subr.mxu0 0.0
      %1432 = vmatpush2.msra.mxu0 0.0
      %1433 = vmatprep.subr.mxu0 0.0
      %1434 = vmatpush2.msra.mxu0 0.0
      %1435 = vmatprep.subr.mxu0 0.0
      %1436 = vmatpush2.msra.mxu0 0.0
      %1437 = vmatprep.subr.mxu0 0.0
      %1438 = vmatpush2.msra.mxu0 0.0
      %1439 = vmatprep.subr.mxu0 0.0
      %1440 = vmatpush2.msra.mxu0 0.0
      %1441 = vmatprep.subr.mxu0 0.0
      %1442 = vmatpush2.msra.mxu0 0.0
      %1443 = vmatprep.subr.mxu0 0.0
      %1444 = vmatpush2.msra.mxu0 0.0
      %1445 = vmatprep.subr.mxu0 0.0
      %1446 = vmatpush2.msra.mxu0 0.0
      %1447 = vmatprep.subr.mxu0 0.0
      %1448 = vmatpush2.msra.mxu0 0.0
      %1449 = vmatprep.subr.mxu0 0.0
      %1450 = vmatpush2.msra.mxu0 0.0
      %1451 = vmatprep.subr.mxu0 0.0
      %1452 = vmatpush2.msra.mxu0 0.0
      %1453 = vmatprep.subr.mxu0 0.0
      %1454 = vmatpush2.msra.mxu0 0.0
      %1455 = vmatprep.mubr.f32.mxu0 0.0
      %1456 = vmatmul.mubr.f32.gmra.mxu0 %v1368
      %v1457 = vpop.f32.mrf.mxu0
      %v1458 = vadd.f32 0.0, %v1457
      %v1459 = vpop.f32.mrf.mxu0
      %1460 = vmatprep.mubr.f32.mxu0 0.0
      %1461 = vmatmul.mubr.f32.gmra.mxu0 %v1371
      %v1462 = vpop.f32.mrf.mxu0
      %v1463 = vadd.f32 0.0, %v1462
      %v1464 = vpop.f32.mrf.mxu0
      %1465 = vmatprep.mubr.f32.mxu0 0.0
      %1466 = vmatmul.mubr.f32.gmra.mxu0 %v1374
      %v1467 = vpop.f32.mrf.mxu0
      %v1468 = vadd.f32 0.0, %v1467
      %v1469 = vpop.f32.mrf.mxu0
      %1470 = vmatprep.mubr.f32.mxu0 0.0
      %1471 = vmatmul.mubr.f32.gmra.mxu0 %v1377
      %v1472 = vpop.f32.mrf.mxu0
      %v1473 = vadd.f32 0.0, %v1472
      %v1474 = vpop.f32.mrf.mxu0
      %1475 = vmatprep.mubr.f32.mxu0 0.0
      %1476 = vmatmul.mubr.f32.gmra.mxu0 %v1380
      %v1477 = vpop.f32.mrf.mxu0
      %v1478 = vadd.f32 0.0, %v1477
      %v1479 = vpop.f32.mrf.mxu0
      %1480 = vmatprep.mubr.f32.mxu0 0.0
      %1481 = vmatmul.mubr.f32.gmra.mxu0 %v1383
      %v1482 = vpop.f32.mrf.mxu0
      %v1483 = vadd.f32 0.0, %v1482
      %v1484 = vpop.f32.mrf.mxu0
      %1485 = vmatprep.mubr.f32.mxu0 0.0
      %1486 = vmatmul.mubr.f32.gmra.mxu0 %v1386
      %v1487 = vpop.f32.mrf.mxu0
      %v1488 = vadd.f32 0.0, %v1487
      %v1489 = vpop.f32.mrf.mxu0
      %1490 = vmatprep.mubr.f32.mxu0 0.0
      %1491 = vmatmul.mubr.f32.gmra.mxu0 %v1389
      %v1492 = vpop.f32.mrf.mxu0
      %v1493 = vadd.f32 0.0, %v1492
      %v1494 = vpop.f32.mrf.mxu0
      %1495 = vdwg.mxu0
      %1496 = vrot.lane.b32.xlu0 %v1142, 96
      %v1497 = vpop.permute.xlu0 %1496
      %1498 = vrot.lane.b32.xlu0 %v1144, 96
      %v1499 = vpop.permute.xlu0 %1498
      %1500 = vrot.lane.b32.xlu0 %v1146, 96
      %v1501 = vpop.permute.xlu0 %1500
      %1502 = vrot.lane.b32.xlu0 %v1148, 96
      %v1503 = vpop.permute.xlu0 %1502
      %1504 = vrot.lane.b32.xlu0 %v1150, 96
      %v1505 = vpop.permute.xlu0 %1504
      %1506 = vrot.lane.b32.xlu0 %v1152, 96
      %v1507 = vpop.permute.xlu0 %1506
      %1508 = vrot.lane.b32.xlu0 %v1154, 96
      %v1509 = vpop.permute.xlu0 %1508
      %1510 = vrot.lane.b32.xlu0 %v1156, 96
      %v1511 = vpop.permute.xlu0 %1510
      %1520 = vmatprep.subr.mxu0 0.0
      %1521 = vmatpush1.msra.mxu0 0.0
      %1522 = vmatprep.subr.mxu0 0.0
      %1523 = vmatpush1.msra.mxu0 0.0
      %1524 = vmatprep.subr.mxu0 0.0
      %1525 = vmatpush1.msra.mxu0 0.0
      %1526 = vmatprep.subr.mxu0 0.0
      %1527 = vmatpush1.msra.mxu0 0.0
      %1528 = vmatprep.subr.mxu0 0.0
      %1529 = vmatpush1.msra.mxu0 0.0
      %1530 = vmatprep.subr.mxu0 0.0
      %1531 = vmatpush1.msra.mxu0 0.0
      %1532 = vmatprep.subr.mxu0 0.0
      %1533 = vmatpush1.msra.mxu0 0.0
      %1534 = vmatprep.subr.mxu0 0.0
      %1535 = vmatpush1.msra.mxu0 0.0
      %1536 = vmatprep.subr.mxu0 0.0
      %1537 = vmatpush1.msra.mxu0 %v1511
      %1538 = vmatprep.subr.mxu0 0.0
      %1539 = vmatpush1.msra.mxu0 %v1509
      %1540 = vmatprep.subr.mxu0 0.0
      %1541 = vmatpush1.msra.mxu0 %v1507
      %1542 = vmatprep.subr.mxu0 0.0
      %1543 = vmatpush1.msra.mxu0 %v1505
      %1544 = vmatprep.subr.mxu0 0.0
      %1545 = vmatpush1.msra.mxu0 %v1503
      %1546 = vmatprep.subr.mxu0 0.0
      %1547 = vmatpush1.msra.mxu0 %v1501
      %1548 = vmatprep.subr.mxu0 0.0
      %1549 = vmatpush1.msra.mxu0 %v1499
      %1550 = vmatprep.subr.mxu0 0.0
      %1551 = vmatpush1.msra.mxu0 %v1497
      %1552 = vmatprep.subr.mxu0 0.0
      %1553 = vmatpush2.msra.mxu0 0.0
      %1554 = vmatprep.subr.mxu0 0.0
      %1555 = vmatpush2.msra.mxu0 0.0
      %1556 = vmatprep.subr.mxu0 0.0
      %1557 = vmatpush2.msra.mxu0 0.0
      %1558 = vmatprep.subr.mxu0 0.0
      %1559 = vmatpush2.msra.mxu0 0.0
      %1560 = vmatprep.subr.mxu0 0.0
      %1561 = vmatpush2.msra.mxu0 0.0
      %1562 = vmatprep.subr.mxu0 0.0
      %1563 = vmatpush2.msra.mxu0 0.0
      %1564 = vmatprep.subr.mxu0 0.0
      %1565 = vmatpush2.msra.mxu0 0.0
      %1566 = vmatprep.subr.mxu0 0.0
      %1567 = vmatpush2.msra.mxu0 0.0
      %1568 = vmatprep.subr.mxu0 0.0
      %1569 = vmatpush2.msra.mxu0 0.0
      %1570 = vmatprep.subr.mxu0 0.0
      %1571 = vmatpush2.msra.mxu0 0.0
      %1572 = vmatprep.subr.mxu0 0.0
      %1573 = vmatpush2.msra.mxu0 0.0
      %1574 = vmatprep.subr.mxu0 0.0
      %1575 = vmatpush2.msra.mxu0 0.0
      %1576 = vmatprep.subr.mxu0 0.0
      %1577 = vmatpush2.msra.mxu0 0.0
      %1578 = vmatprep.subr.mxu0 0.0
      %1579 = vmatpush2.msra.mxu0 0.0
      %1580 = vmatprep.subr.mxu0 0.0
      %1581 = vmatpush2.msra.mxu0 0.0
      %1582 = vmatprep.subr.mxu0 0.0
      %1583 = vmatpush2.msra.mxu0 0.0
      %1584 = vmatprep.mubr.f32.mxu0 0.0
      %1585 = vmatmul.mubr.f32.gmra.mxu0 %v1368
      %v1586 = vpop.f32.mrf.mxu0
      %v1587 = vadd.f32 0.0, %v1586
      %v1588 = vpop.f32.mrf.mxu0
      %1589 = vmatprep.mubr.f32.mxu0 0.0
      %1590 = vmatmul.mubr.f32.gmra.mxu0 %v1371
      %v1591 = vpop.f32.mrf.mxu0
      %v1592 = vadd.f32 0.0, %v1591
      %v1593 = vpop.f32.mrf.mxu0
      %1594 = vmatprep.mubr.f32.mxu0 0.0
      %1595 = vmatmul.mubr.f32.gmra.mxu0 %v1374
      %v1596 = vpop.f32.mrf.mxu0
      %v1597 = vadd.f32 0.0, %v1596
      %v1598 = vpop.f32.mrf.mxu0
      %1599 = vmatprep.mubr.f32.mxu0 0.0
      %1600 = vmatmul.mubr.f32.gmra.mxu0 %v1377
      %v1601 = vpop.f32.mrf.mxu0
      %v1602 = vadd.f32 0.0, %v1601
      %v1603 = vpop.f32.mrf.mxu0
      %1604 = vmatprep.mubr.f32.mxu0 0.0
      %1605 = vmatmul.mubr.f32.gmra.mxu0 %v1380
      %v1606 = vpop.f32.mrf.mxu0
      %v1607 = vadd.f32 0.0, %v1606
      %v1608 = vpop.f32.mrf.mxu0
      %1609 = vmatprep.mubr.f32.mxu0 0.0
      %1610 = vmatmul.mubr.f32.gmra.mxu0 %v1383
      %v1611 = vpop.f32.mrf.mxu0
      %v1612 = vadd.f32 0.0, %v1611
      %v1613 = vpop.f32.mrf.mxu0
      %1614 = vmatprep.mubr.f32.mxu0 0.0
      %1615 = vmatmul.mubr.f32.gmra.mxu0 %v1386
      %v1616 = vpop.f32.mrf.mxu0
      %v1617 = vadd.f32 0.0, %v1616
      %v1618 = vpop.f32.mrf.mxu0
      %1619 = vmatprep.mubr.f32.mxu0 0.0
      %1620 = vmatmul.mubr.f32.gmra.mxu0 %v1389
      %v1621 = vpop.f32.mrf.mxu0
      %v1622 = vadd.f32 0.0, %v1621
      %v1623 = vpop.f32.mrf.mxu0
      %1624 = vdwg.mxu0
      %1633 = vrot.lane.b32.xlu0 %v771, 32
      %v1634 = vpop.permute.xlu0 %1633
      %1635 = vrot.lane.b32.xlu0 %v776, 32
      %v1636 = vpop.permute.xlu0 %1635
      %1637 = vrot.lane.b32.xlu0 %v781, 32
      %v1638 = vpop.permute.xlu0 %1637
      %1639 = vrot.lane.b32.xlu0 %v786, 32
      %v1640 = vpop.permute.xlu0 %1639
      %1641 = vrot.lane.b32.xlu0 %v791, 32
      %v1642 = vpop.permute.xlu0 %1641
      %1643 = vrot.lane.b32.xlu0 %v796, 32
      %v1644 = vpop.permute.xlu0 %1643
      %1645 = vrot.lane.b32.xlu0 %v801, 32
      %v1646 = vpop.permute.xlu0 %1645
      %1647 = vrot.lane.b32.xlu0 %v806, 32
      %v1648 = vpop.permute.xlu0 %1647
      %1665 = vrot.lane.b32.xlu0 %v1103, 64
      %v1666 = vpop.permute.xlu0 %1665
      %1667 = vrot.lane.b32.xlu0 %v1108, 64
      %v1668 = vpop.permute.xlu0 %1667
      %1669 = vrot.lane.b32.xlu0 %v1113, 64
      %v1670 = vpop.permute.xlu0 %1669
      %1671 = vrot.lane.b32.xlu0 %v1118, 64
      %v1672 = vpop.permute.xlu0 %1671
      %1673 = vrot.lane.b32.xlu0 %v1123, 64
      %v1674 = vpop.permute.xlu0 %1673
      %1675 = vrot.lane.b32.xlu0 %v1128, 64
      %v1676 = vpop.permute.xlu0 %1675
      %1677 = vrot.lane.b32.xlu0 %v1133, 64
      %v1678 = vpop.permute.xlu0 %1677
      %1679 = vrot.lane.b32.xlu0 %v1138, 64
      %v1680 = vpop.permute.xlu0 %1679
      %1697 = vrot.lane.b32.xlu0 %v1458, 96
      %v1698 = vpop.permute.xlu0 %1697
      %1699 = vrot.lane.b32.xlu0 %v1463, 96
      %v1700 = vpop.permute.xlu0 %1699
      %1701 = vrot.lane.b32.xlu0 %v1468, 96
      %v1702 = vpop.permute.xlu0 %1701
      %1703 = vrot.lane.b32.xlu0 %v1473, 96
      %v1704 = vpop.permute.xlu0 %1703
      %1705 = vrot.lane.b32.xlu0 %v1478, 96
      %v1706 = vpop.permute.xlu0 %1705
      %1707 = vrot.lane.b32.xlu0 %v1483, 96
      %v1708 = vpop.permute.xlu0 %1707
      %1709 = vrot.lane.b32.xlu0 %v1488, 96
      %v1710 = vpop.permute.xlu0 %1709
      %1711 = vrot.lane.b32.xlu0 %v1493, 96
      %v1712 = vpop.permute.xlu0 %1711
      %v1721 = vsel %vm873, %v488, %v1634
      %v1722 = vsel %vm873, %v493, %v1636
      %v1723 = vsel %vm873, %v498, %v1638
      %v1724 = vsel %vm873, %v503, %v1640
      %v1725 = vsel %vm873, %v508, %v1642
      %v1726 = vsel %vm873, %v513, %v1644
      %v1727 = vsel %vm873, %v518, %v1646
      %v1728 = vsel %vm873, %v523, %v1648
      %v1729 = vsel %vm396, %v1721, %v1666
      %v1730 = vsel %vm396, %v1722, %v1668
      %v1731 = vsel %vm396, %v1723, %v1670
      %v1732 = vsel %vm396, %v1724, %v1672
      %v1733 = vsel %vm396, %v1725, %v1674
      %v1734 = vsel %vm396, %v1726, %v1676
      %v1735 = vsel %vm396, %v1727, %v1678
      %v1736 = vsel %vm396, %v1728, %v1680
      %vm1737 = vcmask 785408
      %v1738 = vsel %vm1737, %v1729, %v1698
      %v1739 = vsel %vm1737, %v1730, %v1700
      %v1740 = vsel %vm1737, %v1731, %v1702
      %v1741 = vsel %vm1737, %v1732, %v1704
      %v1742 = vsel %vm1737, %v1733, %v1706
      %v1743 = vsel %vm1737, %v1734, %v1708
      %v1744 = vsel %vm1737, %v1735, %v1710
      %v1745 = vsel %vm1737, %v1736, %v1712
      %1754 = vrot.lane.b32.xlu0 %v488, 96
      %v1755 = vpop.permute.xlu0 %1754
      %1756 = vrot.lane.b32.xlu0 %v493, 96
      %v1757 = vpop.permute.xlu0 %1756
      %1758 = vrot.lane.b32.xlu0 %v498, 96
      %v1759 = vpop.permute.xlu0 %1758
      %1760 = vrot.lane.b32.xlu0 %v503, 96
      %v1761 = vpop.permute.xlu0 %1760
      %1762 = vrot.lane.b32.xlu0 %v508, 96
      %v1763 = vpop.permute.xlu0 %1762
      %1764 = vrot.lane.b32.xlu0 %v513, 96
      %v1765 = vpop.permute.xlu0 %1764
      %1766 = vrot.lane.b32.xlu0 %v518, 96
      %v1767 = vpop.permute.xlu0 %1766
      %1768 = vrot.lane.b32.xlu0 %v523, 96
      %v1769 = vpop.permute.xlu0 %1768
      %1778 = vrot.lane.b32.xlu0 %v1103, 32
      %v1779 = vpop.permute.xlu0 %1778
      %1780 = vrot.lane.b32.xlu0 %v1108, 32
      %v1781 = vpop.permute.xlu0 %1780
      %1782 = vrot.lane.b32.xlu0 %v1113, 32
      %v1783 = vpop.permute.xlu0 %1782
      %1784 = vrot.lane.b32.xlu0 %v1118, 32
      %v1785 = vpop.permute.xlu0 %1784
      %1786 = vrot.lane.b32.xlu0 %v1123, 32
      %v1787 = vpop.permute.xlu0 %1786
      %1788 = vrot.lane.b32.xlu0 %v1128, 32
      %v1789 = vpop.permute.xlu0 %1788
      %1790 = vrot.lane.b32.xlu0 %v1133, 32
      %v1791 = vpop.permute.xlu0 %1790
      %1792 = vrot.lane.b32.xlu0 %v1138, 32
      %v1793 = vpop.permute.xlu0 %1792
      %1802 = vrot.lane.b32.xlu0 %v1458, 64
      %v1803 = vpop.permute.xlu0 %1802
      %1804 = vrot.lane.b32.xlu0 %v1463, 64
      %v1805 = vpop.permute.xlu0 %1804
      %1806 = vrot.lane.b32.xlu0 %v1468, 64
      %v1807 = vpop.permute.xlu0 %1806
      %1808 = vrot.lane.b32.xlu0 %v1473, 64
      %v1809 = vpop.permute.xlu0 %1808
      %1810 = vrot.lane.b32.xlu0 %v1478, 64
      %v1811 = vpop.permute.xlu0 %1810
      %1812 = vrot.lane.b32.xlu0 %v1483, 64
      %v1813 = vpop.permute.xlu0 %1812
      %1814 = vrot.lane.b32.xlu0 %v1488, 64
      %v1815 = vpop.permute.xlu0 %1814
      %1816 = vrot.lane.b32.xlu0 %v1493, 64
      %v1817 = vpop.permute.xlu0 %1816
      %v1826 = vsel %vm873, %v1755, %v771
      %v1827 = vsel %vm873, %v1757, %v776
      %v1828 = vsel %vm873, %v1759, %v781
      %v1829 = vsel %vm873, %v1761, %v786
      %v1830 = vsel %vm873, %v1763, %v791
      %v1831 = vsel %vm873, %v1765, %v796
      %v1832 = vsel %vm873, %v1767, %v801
      %v1833 = vsel %vm873, %v1769, %v806
      %v1834 = vsel %vm396, %v1826, %v1779
      %v1835 = vsel %vm396, %v1827, %v1781
      %v1836 = vsel %vm396, %v1828, %v1783
      %v1837 = vsel %vm396, %v1829, %v1785
      %v1838 = vsel %vm396, %v1830, %v1787
      %v1839 = vsel %vm396, %v1831, %v1789
      %v1840 = vsel %vm396, %v1832, %v1791
      %v1841 = vsel %vm396, %v1833, %v1793
      %v1842 = vsel %vm1737, %v1834, %v1803
      %v1843 = vsel %vm1737, %v1835, %v1805
      %v1844 = vsel %vm1737, %v1836, %v1807
      %v1845 = vsel %vm1737, %v1837, %v1809
      %v1846 = vsel %vm1737, %v1838, %v1811
      %v1847 = vsel %vm1737, %v1839, %v1813
      %v1848 = vsel %vm1737, %v1840, %v1815
      %v1849 = vsel %vm1737, %v1841, %v1817
      %1858 = vrot.lane.b32.xlu0 %v957, 32
      %v1859 = vpop.permute.xlu0 %1858
      %1860 = vrot.lane.b32.xlu0 %v962, 32
      %v1861 = vpop.permute.xlu0 %1860
      %1862 = vrot.lane.b32.xlu0 %v967, 32
      %v1863 = vpop.permute.xlu0 %1862
      %1864 = vrot.lane.b32.xlu0 %v972, 32
      %v1865 = vpop.permute.xlu0 %1864
      %1866 = vrot.lane.b32.xlu0 %v977, 32
      %v1867 = vpop.permute.xlu0 %1866
      %1868 = vrot.lane.b32.xlu0 %v982, 32
      %v1869 = vpop.permute.xlu0 %1868
      %1870 = vrot.lane.b32.xlu0 %v987, 32
      %v1871 = vpop.permute.xlu0 %1870
      %1872 = vrot.lane.b32.xlu0 %v992, 32
      %v1873 = vpop.permute.xlu0 %1872
      %1890 = vrot.lane.b32.xlu0 %v1288, 64
      %v1891 = vpop.permute.xlu0 %1890
      %1892 = vrot.lane.b32.xlu0 %v1293, 64
      %v1893 = vpop.permute.xlu0 %1892
      %1894 = vrot.lane.b32.xlu0 %v1298, 64
      %v1895 = vpop.permute.xlu0 %1894
      %1896 = vrot.lane.b32.xlu0 %v1303, 64
      %v1897 = vpop.permute.xlu0 %1896
      %1898 = vrot.lane.b32.xlu0 %v1308, 64
      %v1899 = vpop.permute.xlu0 %1898
      %1900 = vrot.lane.b32.xlu0 %v1313, 64
      %v1901 = vpop.permute.xlu0 %1900
      %1902 = vrot.lane.b32.xlu0 %v1318, 64
      %v1903 = vpop.permute.xlu0 %1902
      %1904 = vrot.lane.b32.xlu0 %v1323, 64
      %v1905 = vpop.permute.xlu0 %1904
      %1922 = vrot.lane.b32.xlu0 %v1587, 96
      %v1923 = vpop.permute.xlu0 %1922
      %1924 = vrot.lane.b32.xlu0 %v1592, 96
      %v1925 = vpop.permute.xlu0 %1924
      %1926 = vrot.lane.b32.xlu0 %v1597, 96
      %v1927 = vpop.permute.xlu0 %1926
      %1928 = vrot.lane.b32.xlu0 %v1602, 96
      %v1929 = vpop.permute.xlu0 %1928
      %1930 = vrot.lane.b32.xlu0 %v1607, 96
      %v1931 = vpop.permute.xlu0 %1930
      %1932 = vrot.lane.b32.xlu0 %v1612, 96
      %v1933 = vpop.permute.xlu0 %1932
      %1934 = vrot.lane.b32.xlu0 %v1617, 96
      %v1935 = vpop.permute.xlu0 %1934
      %1936 = vrot.lane.b32.xlu0 %v1622, 96
      %v1937 = vpop.permute.xlu0 %1936
      %v1946 = vsel %vm873, %v601, %v1859
      %v1947 = vsel %vm873, %v606, %v1861
      %v1948 = vsel %vm873, %v611, %v1863
      %v1949 = vsel %vm873, %v616, %v1865
      %v1950 = vsel %vm873, %v621, %v1867
      %v1951 = vsel %vm873, %v626, %v1869
      %v1952 = vsel %vm873, %v631, %v1871
      %v1953 = vsel %vm873, %v636, %v1873
      %v1954 = vsel %vm396, %v1946, %v1891
      %v1955 = vsel %vm396, %v1947, %v1893
      %v1956 = vsel %vm396, %v1948, %v1895
      %v1957 = vsel %vm396, %v1949, %v1897
      %v1958 = vsel %vm396, %v1950, %v1899
      %v1959 = vsel %vm396, %v1951, %v1901
      %v1960 = vsel %vm396, %v1952, %v1903
      %v1961 = vsel %vm396, %v1953, %v1905
      %v1962 = vsel %vm1737, %v1954, %v1923
      %v1963 = vsel %vm1737, %v1955, %v1925
      %v1964 = vsel %vm1737, %v1956, %v1927
      %v1965 = vsel %vm1737, %v1957, %v1929
      %v1966 = vsel %vm1737, %v1958, %v1931
      %v1967 = vsel %vm1737, %v1959, %v1933
      %v1968 = vsel %vm1737, %v1960, %v1935
      %v1969 = vsel %vm1737, %v1961, %v1937
      %1978 = vrot.lane.b32.xlu0 %v601, 96
      %v1979 = vpop.permute.xlu0 %1978
      %1980 = vrot.lane.b32.xlu0 %v606, 96
      %v1981 = vpop.permute.xlu0 %1980
      %1982 = vrot.lane.b32.xlu0 %v611, 96
      %v1983 = vpop.permute.xlu0 %1982
      %1984 = vrot.lane.b32.xlu0 %v616, 96
      %v1985 = vpop.permute.xlu0 %1984
      %1986 = vrot.lane.b32.xlu0 %v621, 96
      %v1987 = vpop.permute.xlu0 %1986
      %1988 = vrot.lane.b32.xlu0 %v626, 96
      %v1989 = vpop.permute.xlu0 %1988
      %1990 = vrot.lane.b32.xlu0 %v631, 96
      %v1991 = vpop.permute.xlu0 %1990
      %1992 = vrot.lane.b32.xlu0 %v636, 96
      %v1993 = vpop.permute.xlu0 %1992
      %2002 = vrot.lane.b32.xlu0 %v1288, 32
      %v2003 = vpop.permute.xlu0 %2002
      %2004 = vrot.lane.b32.xlu0 %v1293, 32
      %v2005 = vpop.permute.xlu0 %2004
      %2006 = vrot.lane.b32.xlu0 %v1298, 32
      %v2007 = vpop.permute.xlu0 %2006
      %2008 = vrot.lane.b32.xlu0 %v1303, 32
      %v2009 = vpop.permute.xlu0 %2008
      %2010 = vrot.lane.b32.xlu0 %v1308, 32
      %v2011 = vpop.permute.xlu0 %2010
      %2012 = vrot.lane.b32.xlu0 %v1313, 32
      %v2013 = vpop.permute.xlu0 %2012
      %2014 = vrot.lane.b32.xlu0 %v1318, 32
      %v2015 = vpop.permute.xlu0 %2014
      %2016 = vrot.lane.b32.xlu0 %v1323, 32
      %v2017 = vpop.permute.xlu0 %2016
      %2026 = vrot.lane.b32.xlu0 %v1587, 64
      %v2027 = vpop.permute.xlu0 %2026
      %2028 = vrot.lane.b32.xlu0 %v1592, 64
      %v2029 = vpop.permute.xlu0 %2028
      %2030 = vrot.lane.b32.xlu0 %v1597, 64
      %v2031 = vpop.permute.xlu0 %2030
      %2032 = vrot.lane.b32.xlu0 %v1602, 64
      %v2033 = vpop.permute.xlu0 %2032
      %2034 = vrot.lane.b32.xlu0 %v1607, 64
      %v2035 = vpop.permute.xlu0 %2034
      %2036 = vrot.lane.b32.xlu0 %v1612, 64
      %v2037 = vpop.permute.xlu0 %2036
      %2038 = vrot.lane.b32.xlu0 %v1617, 64
      %v2039 = vpop.permute.xlu0 %2038
      %2040 = vrot.lane.b32.xlu0 %v1622, 64
      %v2041 = vpop.permute.xlu0 %2040
      %v2050 = vsel %vm873, %v1979, %v957
      %v2051 = vsel %vm873, %v1981, %v962
      %v2052 = vsel %vm873, %v1983, %v967
      %v2053 = vsel %vm873, %v1985, %v972
      %v2054 = vsel %vm873, %v1987, %v977
      %v2055 = vsel %vm873, %v1989, %v982
      %v2056 = vsel %vm873, %v1991, %v987
      %v2057 = vsel %vm873, %v1993, %v992
      %v2058 = vsel %vm396, %v2050, %v2003
      %v2059 = vsel %vm396, %v2051, %v2005
      %v2060 = vsel %vm396, %v2052, %v2007
      %v2061 = vsel %vm396, %v2053, %v2009
      %v2062 = vsel %vm396, %v2054, %v2011
      %v2063 = vsel %vm396, %v2055, %v2013
      %v2064 = vsel %vm396, %v2056, %v2015
      %v2065 = vsel %vm396, %v2057, %v2017
      %v2066 = vsel %vm1737, %v2058, %v2027
      %v2067 = vsel %vm1737, %v2059, %v2029
      %v2068 = vsel %vm1737, %v2060, %v2031
      %v2069 = vsel %vm1737, %v2061, %v2033
      %v2070 = vsel %vm1737, %v2062, %v2035
      %v2071 = vsel %vm1737, %v2063, %v2037
      %v2072 = vsel %vm1737, %v2064, %v2039
      %v2073 = vsel %vm1737, %v2065, %v2041
      %2074 = vrot.lane.b32.xlu0 %v601, 64
      %v2075 = vpop.permute.xlu0 %2074
      %2076 = vrot.lane.b32.xlu0 %v606, 64
      %v2077 = vpop.permute.xlu0 %2076
      %2078 = vrot.lane.b32.xlu0 %v611, 64
      %v2079 = vpop.permute.xlu0 %2078
      %2080 = vrot.lane.b32.xlu0 %v616, 64
      %v2081 = vpop.permute.xlu0 %2080
      %2082 = vrot.lane.b32.xlu0 %v621, 64
      %v2083 = vpop.permute.xlu0 %2082
      %2084 = vrot.lane.b32.xlu0 %v626, 64
      %v2085 = vpop.permute.xlu0 %2084
      %2086 = vrot.lane.b32.xlu0 %v631, 64
      %v2087 = vpop.permute.xlu0 %2086
      %2088 = vrot.lane.b32.xlu0 %v636, 64
      %v2089 = vpop.permute.xlu0 %2088
      %2098 = vrot.lane.b32.xlu0 %v957, 96
      %v2099 = vpop.permute.xlu0 %2098
      %2100 = vrot.lane.b32.xlu0 %v962, 96
      %v2101 = vpop.permute.xlu0 %2100
      %2102 = vrot.lane.b32.xlu0 %v967, 96
      %v2103 = vpop.permute.xlu0 %2102
      %2104 = vrot.lane.b32.xlu0 %v972, 96
      %v2105 = vpop.permute.xlu0 %2104
      %2106 = vrot.lane.b32.xlu0 %v977, 96
      %v2107 = vpop.permute.xlu0 %2106
      %2108 = vrot.lane.b32.xlu0 %v982, 96
      %v2109 = vpop.permute.xlu0 %2108
      %2110 = vrot.lane.b32.xlu0 %v987, 96
      %v2111 = vpop.permute.xlu0 %2110
      %2112 = vrot.lane.b32.xlu0 %v992, 96
      %v2113 = vpop.permute.xlu0 %2112
      %2122 = vrot.lane.b32.xlu0 %v1587, 32
      %v2123 = vpop.permute.xlu0 %2122
      %2124 = vrot.lane.b32.xlu0 %v1592, 32
      %v2125 = vpop.permute.xlu0 %2124
      %2126 = vrot.lane.b32.xlu0 %v1597, 32
      %v2127 = vpop.permute.xlu0 %2126
      %2128 = vrot.lane.b32.xlu0 %v1602, 32
      %v2129 = vpop.permute.xlu0 %2128
      %2130 = vrot.lane.b32.xlu0 %v1607, 32
      %v2131 = vpop.permute.xlu0 %2130
      %2132 = vrot.lane.b32.xlu0 %v1612, 32
      %v2133 = vpop.permute.xlu0 %2132
      %2134 = vrot.lane.b32.xlu0 %v1617, 32
      %v2135 = vpop.permute.xlu0 %2134
      %2136 = vrot.lane.b32.xlu0 %v1622, 32
      %v2137 = vpop.permute.xlu0 %2136
      %v2146 = vsel %vm873, %v2075, %v2099
      %v2147 = vsel %vm873, %v2077, %v2101
      %v2148 = vsel %vm873, %v2079, %v2103
      %v2149 = vsel %vm873, %v2081, %v2105
      %v2150 = vsel %vm873, %v2083, %v2107
      %v2151 = vsel %vm873, %v2085, %v2109
      %v2152 = vsel %vm873, %v2087, %v2111
      %v2153 = vsel %vm873, %v2089, %v2113
      %v2154 = vsel %vm396, %v2146, %v1288
      %v2155 = vsel %vm396, %v2147, %v1293
      %v2156 = vsel %vm396, %v2148, %v1298
      %v2157 = vsel %vm396, %v2149, %v1303
      %v2158 = vsel %vm396, %v2150, %v1308
      %v2159 = vsel %vm396, %v2151, %v1313
      %v2160 = vsel %vm396, %v2152, %v1318
      %v2161 = vsel %vm396, %v2153, %v1323
      %v2162 = vsel %vm1737, %v2154, %v2123
      %v2163 = vsel %vm1737, %v2155, %v2125
      %v2164 = vsel %vm1737, %v2156, %v2127
      %v2165 = vsel %vm1737, %v2157, %v2129
      %v2166 = vsel %vm1737, %v2158, %v2131
      %v2167 = vsel %vm1737, %v2159, %v2133
      %v2168 = vsel %vm1737, %v2160, %v2135
      %v2169 = vsel %vm1737, %v2161, %v2137
      %v2170 = vld [vmem:[%s4] sm:$0xff]
      %v2171 = vld [vmem:[%s4 + $0x8] sm:$0xff]
      %v2172 = vld [vmem:[%s4 + $0x10] sm:$0xff]
      %v2173 = vld [vmem:[%s4 + $0x18] sm:$0xff]
      %v2174 = vld [vmem:[%s4 + $0x20] sm:$0xff]
      %v2175 = vld [vmem:[%s4 + $0x28] sm:$0xff]
      %v2176 = vld [vmem:[%s4 + $0x30] sm:$0xff]
      %v2177 = vld [vmem:[%s4 + $0x38] sm:$0xff]
      %v2178 = vld [vmem:[%s4 + $0x40] sm:$0xff]
      %v2179 = vld [vmem:[%s4 + $0x48] sm:$0xff]
      %v2180 = vld [vmem:[%s4 + $0x50] sm:$0xff]
      %v2181 = vld [vmem:[%s4 + $0x58] sm:$0xff]
      %v2182 = vld [vmem:[%s4 + $0x60] sm:$0xff]
      %v2183 = vld [vmem:[%s4 + $0x68] sm:$0xff]
      %v2184 = vld [vmem:[%s4 + $0x70] sm:$0xff]
      %v2185 = vld [vmem:[%s4 + $0x78] sm:$0xff]
      %2186 = vmatprep.subr.mxu0 0.0
      %2187 = vmatpush1.msra.mxu0 %v2185
      %2188 = vmatprep.subr.mxu0 0.0
      %2189 = vmatpush1.msra.mxu0 %v2184
      %2190 = vmatprep.subr.mxu0 0.0
      %2191 = vmatpush1.msra.mxu0 %v2183
      %2192 = vmatprep.subr.mxu0 0.0
      %2193 = vmatpush1.msra.mxu0 %v2182
      %2194 = vmatprep.subr.mxu0 0.0
      %2195 = vmatpush1.msra.mxu0 %v2181
      %2196 = vmatprep.subr.mxu0 0.0
      %2197 = vmatpush1.msra.mxu0 %v2180
      %2198 = vmatprep.subr.mxu0 0.0
      %2199 = vmatpush1.msra.mxu0 %v2179
      %2200 = vmatprep.subr.mxu0 0.0
      %2201 = vmatpush1.msra.mxu0 %v2178
      %2202 = vmatprep.subr.mxu0 0.0
      %2203 = vmatpush1.msra.mxu0 %v2177
      %2204 = vmatprep.subr.mxu0 0.0
      %2205 = vmatpush1.msra.mxu0 %v2176
      %2206 = vmatprep.subr.mxu0 0.0
      %2207 = vmatpush1.msra.mxu0 %v2175
      %2208 = vmatprep.subr.mxu0 0.0
      %2209 = vmatpush1.msra.mxu0 %v2174
      %2210 = vmatprep.subr.mxu0 0.0
      %2211 = vmatpush1.msra.mxu0 %v2173
      %2212 = vmatprep.subr.mxu0 0.0
      %2213 = vmatpush1.msra.mxu0 %v2172
      %2214 = vmatprep.subr.mxu0 0.0
      %2215 = vmatpush1.msra.mxu0 %v2171
      %2216 = vmatprep.subr.mxu0 0.0
      %2217 = vmatpush1.msra.mxu0 %v2170
      %2218 = vmatprep.subr.mxu0 0.0
      %2219 = vmatpush2.msra.mxu0 0.0
      %2220 = vmatprep.subr.mxu0 0.0
      %2221 = vmatpush2.msra.mxu0 0.0
      %2222 = vmatprep.subr.mxu0 0.0
      %2223 = vmatpush2.msra.mxu0 0.0
      %2224 = vmatprep.subr.mxu0 0.0
      %2225 = vmatpush2.msra.mxu0 0.0
      %2226 = vmatprep.subr.mxu0 0.0
      %2227 = vmatpush2.msra.mxu0 0.0
      %2228 = vmatprep.subr.mxu0 0.0
      %2229 = vmatpush2.msra.mxu0 0.0
      %2230 = vmatprep.subr.mxu0 0.0
      %2231 = vmatpush2.msra.mxu0 0.0
      %2232 = vmatprep.subr.mxu0 0.0
      %2233 = vmatpush2.msra.mxu0 0.0
      %2234 = vmatprep.subr.mxu0 0.0
      %2235 = vmatpush2.msra.mxu0 0.0
      %2236 = vmatprep.subr.mxu0 0.0
      %2237 = vmatpush2.msra.mxu0 0.0
      %2238 = vmatprep.subr.mxu0 0.0
      %2239 = vmatpush2.msra.mxu0 0.0
      %2240 = vmatprep.subr.mxu0 0.0
      %2241 = vmatpush2.msra.mxu0 0.0
      %2242 = vmatprep.subr.mxu0 0.0
      %2243 = vmatpush2.msra.mxu0 0.0
      %2244 = vmatprep.subr.mxu0 0.0
      %2245 = vmatpush2.msra.mxu0 0.0
      %2246 = vmatprep.subr.mxu0 0.0
      %2247 = vmatpush2.msra.mxu0 0.0
      %2248 = vmatprep.subr.mxu0 0.0
      %2249 = vmatpush2.msra.mxu0 0.0
      %2250 = vmatprep.mubr.f32.mxu0 0.0
      %2251 = vmatmul.mubr.f32.gmra.mxu0 %v1738
      %v2252 = vpop.f32.mrf.mxu0
      %v2253 = vadd.f32 0.0, %v2252
      %v2254 = vpop.f32.mrf.mxu0
      %2255 = vmatprep.mubr.f32.mxu0 0.0
      %2256 = vmatmul.mubr.f32.gmra.mxu0 %v1739
      %v2257 = vpop.f32.mrf.mxu0
      %v2258 = vadd.f32 0.0, %v2257
      %v2259 = vpop.f32.mrf.mxu0
      %2260 = vmatprep.mubr.f32.mxu0 0.0
      %2261 = vmatmul.mubr.f32.gmra.mxu0 %v1740
      %v2262 = vpop.f32.mrf.mxu0
      %v2263 = vadd.f32 0.0, %v2262
      %v2264 = vpop.f32.mrf.mxu0
      %2265 = vmatprep.mubr.f32.mxu0 0.0
      %2266 = vmatmul.mubr.f32.gmra.mxu0 %v1741
      %v2267 = vpop.f32.mrf.mxu0
      %v2268 = vadd.f32 0.0, %v2267
      %v2269 = vpop.f32.mrf.mxu0
      %2270 = vmatprep.mubr.f32.mxu0 0.0
      %2271 = vmatmul.mubr.f32.gmra.mxu0 %v1742
      %v2272 = vpop.f32.mrf.mxu0
      %v2273 = vadd.f32 0.0, %v2272
      %v2274 = vpop.f32.mrf.mxu0
      %2275 = vmatprep.mubr.f32.mxu0 0.0
      %2276 = vmatmul.mubr.f32.gmra.mxu0 %v1743
      %v2277 = vpop.f32.mrf.mxu0
      %v2278 = vadd.f32 0.0, %v2277
      %v2279 = vpop.f32.mrf.mxu0
      %2280 = vmatprep.mubr.f32.mxu0 0.0
      %2281 = vmatmul.mubr.f32.gmra.mxu0 %v1744
      %v2282 = vpop.f32.mrf.mxu0
      %v2283 = vadd.f32 0.0, %v2282
      %v2284 = vpop.f32.mrf.mxu0
      %2285 = vmatprep.mubr.f32.mxu0 0.0
      %2286 = vmatmul.mubr.f32.gmra.mxu0 %v1745
      %v2287 = vpop.f32.mrf.mxu0
      %v2288 = vadd.f32 0.0, %v2287
      %v2289 = vpop.f32.mrf.mxu0
      %2290 = vdwg.mxu0
      %v2291 = vld [vmem:[%s5] sm:$0xff]
      %v2292 = vld [vmem:[%s5 + $0x8] sm:$0xff]
      %v2293 = vld [vmem:[%s5 + $0x10] sm:$0xff]
      %v2294 = vld [vmem:[%s5 + $0x18] sm:$0xff]
      %v2295 = vld [vmem:[%s5 + $0x20] sm:$0xff]
      %v2296 = vld [vmem:[%s5 + $0x28] sm:$0xff]
      %v2297 = vld [vmem:[%s5 + $0x30] sm:$0xff]
      %v2298 = vld [vmem:[%s5 + $0x38] sm:$0xff]
      %v2299 = vmul.f32 %v1738, %v2291
      %v2300 = vmul.f32 %v1739, %v2292
      %v2301 = vmul.f32 %v1740, %v2293
      %v2302 = vmul.f32 %v1741, %v2294
      %v2303 = vmul.f32 %v1742, %v2295
      %v2304 = vmul.f32 %v1743, %v2296
      %v2305 = vmul.f32 %v1744, %v2297
      %v2306 = vmul.f32 %v1745, %v2298
      %v2307 = vld [vmem:[%s6] sm:$0xff]
      %v2308 = vld [vmem:[%s6 + $0x8] sm:$0xff]
      %v2309 = vld [vmem:[%s6 + $0x10] sm:$0xff]
      %v2310 = vld [vmem:[%s6 + $0x18] sm:$0xff]
      %v2311 = vld [vmem:[%s6 + $0x20] sm:$0xff]
      %v2312 = vld [vmem:[%s6 + $0x28] sm:$0xff]
      %v2313 = vld [vmem:[%s6 + $0x30] sm:$0xff]
      %v2314 = vld [vmem:[%s6 + $0x38] sm:$0xff]
      %v2315 = vmul.f32 %v2253, %v2307
      %v2316 = vmul.f32 %v2258, %v2308
      %v2317 = vmul.f32 %v2263, %v2309
      %v2318 = vmul.f32 %v2268, %v2310
      %v2319 = vmul.f32 %v2273, %v2311
      %v2320 = vmul.f32 %v2278, %v2312
      %v2321 = vmul.f32 %v2283, %v2313
      %v2322 = vmul.f32 %v2288, %v2314
      %v2323 = vadd.f32 %v2299, %v2315
      %v2324 = vadd.f32 %v2300, %v2316
      %v2325 = vadd.f32 %v2301, %v2317
      %v2326 = vadd.f32 %v2302, %v2318
      %v2327 = vadd.f32 %v2303, %v2319
      %v2328 = vadd.f32 %v2304, %v2320
      %v2329 = vadd.f32 %v2305, %v2321
      %v2330 = vadd.f32 %v2306, %v2322
      %v2331 = vld [vmem:[%s8] sm:$0x1]
      %v2333 = vlaneseq
      %v2334 = vshrl.u32 %v2333, 7
      %v2335 = vsub.s32 0, %v2334
      %v2336 = vrot.slane %v2331, %v2335
      %v2338 = vadd.f32 %v2162, %v2336
      %v2339 = vadd.f32 %v2163, %v2336
      %v2340 = vadd.f32 %v2164, %v2336
      %v2341 = vadd.f32 %v2165, %v2336
      %v2342 = vadd.f32 %v2166, %v2336
      %v2343 = vadd.f32 %v2167, %v2336
      %v2344 = vadd.f32 %v2168, %v2336
      %v2345 = vadd.f32 %v2169, %v2336
      %vm2346 = vcmp.gt.f32.partialorder %v2338, 20.0
      %vm2347 = vcmp.gt.f32.partialorder %v2339, 20.0
      %vm2348 = vcmp.gt.f32.partialorder %v2340, 20.0
      %vm2349 = vcmp.gt.f32.partialorder %v2341, 20.0
      %vm2350 = vcmp.gt.f32.partialorder %v2342, 20.0
      %vm2351 = vcmp.gt.f32.partialorder %v2343, 20.0
      %vm2352 = vcmp.gt.f32.partialorder %v2344, 20.0
      %vm2353 = vcmp.gt.f32.partialorder %v2345, 20.0
      %v2354 = vmin.f32 %v2338, 20.0
      %v2355 = vmin.f32 %v2339, 20.0
      %v2356 = vmin.f32 %v2340, 20.0
      %v2357 = vmin.f32 %v2341, 20.0
      %v2358 = vmin.f32 %v2342, 20.0
      %v2359 = vmin.f32 %v2343, 20.0
      %v2360 = vmin.f32 %v2344, 20.0
      %v2361 = vmin.f32 %v2345, 20.0
      %v2362 = vmul.f32 %v2354, 1.442695
      %v2363 = vpow.pop %v2362
      %v2364 = vmul.f32 %v2355, 1.442695
      %v2365 = vpow.pop %v2364
      %v2366 = vmul.f32 %v2356, 1.442695
      %v2367 = vpow.pop %v2366
      %v2368 = vmul.f32 %v2357, 1.442695
      %v2369 = vpow.pop %v2368
      %v2370 = vmul.f32 %v2358, 1.442695
      %v2371 = vpow.pop %v2370
      %v2372 = vmul.f32 %v2359, 1.442695
      %v2373 = vpow.pop %v2372
      %v2374 = vmul.f32 %v2360, 1.442695
      %v2375 = vpow.pop %v2374
      %v2376 = vmul.f32 %v2361, 1.442695
      %v2377 = vpow.pop %v2376
      %v2378 = vadd.f32 %v2363, 1.0
      %v2379 = vadd.f32 %v2365, 1.0
      %v2380 = vadd.f32 %v2367, 1.0
      %v2381 = vadd.f32 %v2369, 1.0
      %v2382 = vadd.f32 %v2371, 1.0
      %v2383 = vadd.f32 %v2373, 1.0
      %v2384 = vadd.f32 %v2375, 1.0
      %v2385 = vadd.f32 %v2377, 1.0
      %v2386 = vlog2.pop %v2378
      %v2387 = vmul.f32 %v2386, 0.6931472
      %v2388 = vlog2.pop %v2379
      %v2389 = vmul.f32 %v2388, 0.6931472
      %v2390 = vlog2.pop %v2380
      %v2391 = vmul.f32 %v2390, 0.6931472
      %v2392 = vlog2.pop %v2381
      %v2393 = vmul.f32 %v2392, 0.6931472
      %v2394 = vlog2.pop %v2382
      %v2395 = vmul.f32 %v2394, 0.6931472
      %v2396 = vlog2.pop %v2383
      %v2397 = vmul.f32 %v2396, 0.6931472
      %v2398 = vlog2.pop %v2384
      %v2399 = vmul.f32 %v2398, 0.6931472
      %v2400 = vlog2.pop %v2385
      %v2401 = vmul.f32 %v2400, 0.6931472
      %v2402 = vsel %vm2346, %v2338, %v2387
      %v2403 = vsel %vm2347, %v2339, %v2389
      %v2404 = vsel %vm2348, %v2340, %v2391
      %v2405 = vsel %vm2349, %v2341, %v2393
      %v2406 = vsel %vm2350, %v2342, %v2395
      %v2407 = vsel %vm2351, %v2343, %v2397
      %v2408 = vsel %vm2352, %v2344, %v2399
      %v2409 = vsel %vm2353, %v2345, %v2401
      %v2410 = vld [vmem:[%s7] sm:$0x1]
      %v2412 = vlaneseq
      %v2413 = vshrl.u32 %v2412, 7
      %v2414 = vsub.s32 0, %v2413
      %v2415 = vrot.slane %v2410, %v2414
      %v2417 = vmul.f32 %v2402, %v2415
      %v2418 = vmul.f32 %v2403, %v2415
      %v2419 = vmul.f32 %v2404, %v2415
      %v2420 = vmul.f32 %v2405, %v2415
      %v2421 = vmul.f32 %v2406, %v2415
      %v2422 = vmul.f32 %v2407, %v2415
      %v2423 = vmul.f32 %v2408, %v2415
      %v2424 = vmul.f32 %v2409, %v2415
      %v2425 = vmul.f32 %v2417, 1.442695
      %v2426 = vpow.pop %v2425
      %v2427 = vmul.f32 %v2418, 1.442695
      %v2428 = vpow.pop %v2427
      %v2429 = vmul.f32 %v2419, 1.442695
      %v2430 = vpow.pop %v2429
      %v2431 = vmul.f32 %v2420, 1.442695
      %v2432 = vpow.pop %v2431
      %v2433 = vmul.f32 %v2421, 1.442695
      %v2434 = vpow.pop %v2433
      %v2435 = vmul.f32 %v2422, 1.442695
      %v2436 = vpow.pop %v2435
      %v2437 = vmul.f32 %v2423, 1.442695
      %v2438 = vpow.pop %v2437
      %v2439 = vmul.f32 %v2424, 1.442695
      %v2440 = vpow.pop %v2439
      %v2441 = vmul.f32 %v1962, %v2402
      %v2442 = vmul.f32 %v1963, %v2403
      %v2443 = vmul.f32 %v1964, %v2404
      %v2444 = vmul.f32 %v1965, %v2405
      %v2445 = vmul.f32 %v1966, %v2406
      %v2446 = vmul.f32 %v1967, %v2407
      %v2447 = vmul.f32 %v1968, %v2408
      %v2448 = vmul.f32 %v1969, %v2409
      %v2449 = vmul.f32 %v2441, %v2323
      %v2450 = vmul.f32 %v2442, %v2324
      %v2451 = vmul.f32 %v2443, %v2325
      %v2452 = vmul.f32 %v2444, %v2326
      %v2453 = vmul.f32 %v2445, %v2327
      %v2454 = vmul.f32 %v2446, %v2328
      %v2455 = vmul.f32 %v2447, %v2329
      %v2456 = vmul.f32 %v2448, %v2330
      %v2457 = vlaneseq
      %v2458 = vshrl.u32 %v2457, 7
      %vm2459 = vcmp.ge.s32.totalorder %v2458, 1
      %v2460 = vrot.slane %v2426, 7
      %v2461 = vsel %vm2459, %v2460, 1.0
      %v2462 = vrot.slane %v2449, 7
      %v2463 = vsel %vm2459, %v2462, 0.0
      %v2464 = vmul.f32 %v2426, %v2463
      %v2465 = vadd.f32 %v2464, %v2449
      %v2466 = vmul.f32 %v2426, %v2461
      %vm2467 = vcmp.ge.s32.totalorder %v2458, 2
      %v2468 = vrot.slane %v2466, 6
      %v2469 = vsel %vm2467, %v2468, 1.0
      %v2470 = vrot.slane %v2465, 6
      %v2471 = vsel %vm2467, %v2470, 0.0
      %v2472 = vmul.f32 %v2466, %v2471
      %v2473 = vadd.f32 %v2472, %v2465
      %v2474 = vmul.f32 %v2466, %v2469
      %vm2475 = vcmp.ge.s32.totalorder %v2458, 4
      %v2476 = vrot.slane %v2474, 4
      %v2477 = vsel %vm2475, %v2476, 1.0
      %v2478 = vrot.slane %v2473, 4
      %v2479 = vsel %vm2475, %v2478, 0.0
      %v2480 = vmul.f32 %v2474, %v2479
      %v2481 = vadd.f32 %v2480, %v2473
      %v2482 = vmul.f32 %v2474, %v2477
      %v2483 = vmul.f32 %v2482, 0.0
      %v2484 = vadd.f32 %v2483, %v2481
      %v2485 = vrot.slane %v2428, 7
      %v2486 = vsel %vm2459, %v2485, 1.0
      %v2487 = vrot.slane %v2450, 7
      %v2488 = vsel %vm2459, %v2487, 0.0
      %v2489 = vmul.f32 %v2428, %v2488
      %v2490 = vadd.f32 %v2489, %v2450
      %v2491 = vmul.f32 %v2428, %v2486
      %v2492 = vrot.slane %v2491, 6
      %v2493 = vsel %vm2467, %v2492, 1.0
      %v2494 = vrot.slane %v2490, 6
      %v2495 = vsel %vm2467, %v2494, 0.0
      %v2496 = vmul.f32 %v2491, %v2495
      %v2497 = vadd.f32 %v2496, %v2490
      %v2498 = vmul.f32 %v2491, %v2493
      %v2499 = vrot.slane %v2498, 4
      %v2500 = vsel %vm2475, %v2499, 1.0
      %v2501 = vrot.slane %v2497, 4
      %v2502 = vsel %vm2475, %v2501, 0.0
      %v2503 = vmul.f32 %v2498, %v2502
      %v2504 = vadd.f32 %v2503, %v2497
      %v2505 = vmul.f32 %v2498, %v2500
      %v2506 = vlaneseq
      %v2507 = vshrl.u32 %v2506, 7
      %v2508 = vsub.s32 7, %v2507
      %v2509 = vrot.slane %v2484, %v2508
      %v2510 = vmul.f32 %v2505, %v2509
      %v2511 = vadd.f32 %v2510, %v2504
      %v2512 = vrot.slane %v2430, 7
      %v2513 = vsel %vm2459, %v2512, 1.0
      %v2514 = vrot.slane %v2451, 7
      %v2515 = vsel %vm2459, %v2514, 0.0
      %v2516 = vmul.f32 %v2430, %v2515
      %v2517 = vadd.f32 %v2516, %v2451
      %v2518 = vmul.f32 %v2430, %v2513
      %v2519 = vrot.slane %v2518, 6
      %v2520 = vsel %vm2467, %v2519, 1.0
      %v2521 = vrot.slane %v2517, 6
      %v2522 = vsel %vm2467, %v2521, 0.0
      %v2523 = vmul.f32 %v2518, %v2522
      %v2524 = vadd.f32 %v2523, %v2517
      %v2525 = vmul.f32 %v2518, %v2520
      %v2526 = vrot.slane %v2525, 4
      %v2527 = vsel %vm2475, %v2526, 1.0
      %v2528 = vrot.slane %v2524, 4
      %v2529 = vsel %vm2475, %v2528, 0.0
      %v2530 = vmul.f32 %v2525, %v2529
      %v2531 = vadd.f32 %v2530, %v2524
      %v2532 = vmul.f32 %v2525, %v2527
      %v2533 = vlaneseq
      %v2534 = vshrl.u32 %v2533, 7
      %v2535 = vsub.s32 7, %v2534
      %v2536 = vrot.slane %v2511, %v2535
      %v2537 = vmul.f32 %v2532, %v2536
      %v2538 = vadd.f32 %v2537, %v2531
      %v2539 = vrot.slane %v2432, 7
      %v2540 = vsel %vm2459, %v2539, 1.0
      %v2541 = vrot.slane %v2452, 7
      %v2542 = vsel %vm2459, %v2541, 0.0
      %v2543 = vmul.f32 %v2432, %v2542
      %v2544 = vadd.f32 %v2543, %v2452
      %v2545 = vmul.f32 %v2432, %v2540
      %v2546 = vrot.slane %v2545, 6
      %v2547 = vsel %vm2467, %v2546, 1.0
      %v2548 = vrot.slane %v2544, 6
      %v2549 = vsel %vm2467, %v2548, 0.0
      %v2550 = vmul.f32 %v2545, %v2549
      %v2551 = vadd.f32 %v2550, %v2544
      %v2552 = vmul.f32 %v2545, %v2547
      %v2553 = vrot.slane %v2552, 4
      %v2554 = vsel %vm2475, %v2553, 1.0
      %v2555 = vrot.slane %v2551, 4
      %v2556 = vsel %vm2475, %v2555, 0.0
      %v2557 = vmul.f32 %v2552, %v2556
      %v2558 = vadd.f32 %v2557, %v2551
      %v2559 = vmul.f32 %v2552, %v2554
      %v2560 = vlaneseq
      %v2561 = vshrl.u32 %v2560, 7
      %v2562 = vsub.s32 7, %v2561
      %v2563 = vrot.slane %v2538, %v2562
      %v2564 = vmul.f32 %v2559, %v2563
      %v2565 = vadd.f32 %v2564, %v2558
      %v2566 = vrot.slane %v2434, 7
      %v2567 = vsel %vm2459, %v2566, 1.0
      %v2568 = vrot.slane %v2453, 7
      %v2569 = vsel %vm2459, %v2568, 0.0
      %v2570 = vmul.f32 %v2434, %v2569
      %v2571 = vadd.f32 %v2570, %v2453
      %v2572 = vmul.f32 %v2434, %v2567
      %v2573 = vrot.slane %v2572, 6
      %v2574 = vsel %vm2467, %v2573, 1.0
      %v2575 = vrot.slane %v2571, 6
      %v2576 = vsel %vm2467, %v2575, 0.0
      %v2577 = vmul.f32 %v2572, %v2576
      %v2578 = vadd.f32 %v2577, %v2571
      %v2579 = vmul.f32 %v2572, %v2574
      %v2580 = vrot.slane %v2579, 4
      %v2581 = vsel %vm2475, %v2580, 1.0
      %v2582 = vrot.slane %v2578, 4
      %v2583 = vsel %vm2475, %v2582, 0.0
      %v2584 = vmul.f32 %v2579, %v2583
      %v2585 = vadd.f32 %v2584, %v2578
      %v2586 = vmul.f32 %v2579, %v2581
      %v2587 = vlaneseq
      %v2588 = vshrl.u32 %v2587, 7
      %v2589 = vsub.s32 7, %v2588
      %v2590 = vrot.slane %v2565, %v2589
      %v2591 = vmul.f32 %v2586, %v2590
      %v2592 = vadd.f32 %v2591, %v2585
      %v2593 = vrot.slane %v2436, 7
      %v2594 = vsel %vm2459, %v2593, 1.0
      %v2595 = vrot.slane %v2454, 7
      %v2596 = vsel %vm2459, %v2595, 0.0
      %v2597 = vmul.f32 %v2436, %v2596
      %v2598 = vadd.f32 %v2597, %v2454
      %v2599 = vmul.f32 %v2436, %v2594
      %v2600 = vrot.slane %v2599, 6
      %v2601 = vsel %vm2467, %v2600, 1.0
      %v2602 = vrot.slane %v2598, 6
      %v2603 = vsel %vm2467, %v2602, 0.0
      %v2604 = vmul.f32 %v2599, %v2603
      %v2605 = vadd.f32 %v2604, %v2598
      %v2606 = vmul.f32 %v2599, %v2601
      %v2607 = vrot.slane %v2606, 4
      %v2608 = vsel %vm2475, %v2607, 1.0
      %v2609 = vrot.slane %v2605, 4
      %v2610 = vsel %vm2475, %v2609, 0.0
      %v2611 = vmul.f32 %v2606, %v2610
      %v2612 = vadd.f32 %v2611, %v2605
      %v2613 = vmul.f32 %v2606, %v2608
      %v2614 = vlaneseq
      %v2615 = vshrl.u32 %v2614, 7
      %v2616 = vsub.s32 7, %v2615
      %v2617 = vrot.slane %v2592, %v2616
      %v2618 = vmul.f32 %v2613, %v2617
      %v2619 = vadd.f32 %v2618, %v2612
      %v2620 = vrot.slane %v2438, 7
      %v2621 = vsel %vm2459, %v2620, 1.0
      %v2622 = vrot.slane %v2455, 7
      %v2623 = vsel %vm2459, %v2622, 0.0
      %v2624 = vmul.f32 %v2438, %v2623
      %v2625 = vadd.f32 %v2624, %v2455
      %v2626 = vmul.f32 %v2438, %v2621
      %v2627 = vrot.slane %v2626, 6
      %v2628 = vsel %vm2467, %v2627, 1.0
      %v2629 = vrot.slane %v2625, 6
      %v2630 = vsel %vm2467, %v2629, 0.0
      %v2631 = vmul.f32 %v2626, %v2630
      %v2632 = vadd.f32 %v2631, %v2625
      %v2633 = vmul.f32 %v2626, %v2628
      %v2634 = vrot.slane %v2633, 4
      %v2635 = vsel %vm2475, %v2634, 1.0
      %v2636 = vrot.slane %v2632, 4
      %v2637 = vsel %vm2475, %v2636, 0.0
      %v2638 = vmul.f32 %v2633, %v2637
      %v2639 = vadd.f32 %v2638, %v2632
      %v2640 = vmul.f32 %v2633, %v2635
      %v2641 = vlaneseq
      %v2642 = vshrl.u32 %v2641, 7
      %v2643 = vsub.s32 7, %v2642
      %v2644 = vrot.slane %v2619, %v2643
      %v2645 = vmul.f32 %v2640, %v2644
      %v2646 = vadd.f32 %v2645, %v2639
      %v2647 = vrot.slane %v2440, 7
      %v2648 = vsel %vm2459, %v2647, 1.0
      %v2649 = vrot.slane %v2456, 7
      %v2650 = vsel %vm2459, %v2649, 0.0
      %v2651 = vmul.f32 %v2440, %v2650
      %v2652 = vadd.f32 %v2651, %v2456
      %v2653 = vmul.f32 %v2440, %v2648
      %v2654 = vrot.slane %v2653, 6
      %v2655 = vsel %vm2467, %v2654, 1.0
      %v2656 = vrot.slane %v2652, 6
      %v2657 = vsel %vm2467, %v2656, 0.0
      %v2658 = vmul.f32 %v2653, %v2657
      %v2659 = vadd.f32 %v2658, %v2652
      %v2660 = vmul.f32 %v2653, %v2655
      %v2661 = vrot.slane %v2660, 4
      %v2662 = vsel %vm2475, %v2661, 1.0
      %v2663 = vrot.slane %v2659, 4
      %v2664 = vsel %vm2475, %v2663, 0.0
      %v2665 = vmul.f32 %v2660, %v2664
      %v2666 = vadd.f32 %v2665, %v2659
      %v2667 = vmul.f32 %v2660, %v2662
      %v2668 = vlaneseq
      %v2669 = vshrl.u32 %v2668, 7
      %v2670 = vsub.s32 7, %v2669
      %v2671 = vrot.slane %v2646, %v2670
      %v2672 = vmul.f32 %v2667, %v2671
      %v2673 = vadd.f32 %v2672, %v2666
      %v2674 = vmul.f32 %v2066, %v2484
      %v2675 = vmul.f32 %v2067, %v2511
      %v2676 = vmul.f32 %v2068, %v2538
      %v2677 = vmul.f32 %v2069, %v2565
      %v2678 = vmul.f32 %v2070, %v2592
      %v2679 = vmul.f32 %v2071, %v2619
      %v2680 = vmul.f32 %v2072, %v2646
      %v2681 = vmul.f32 %v2073, %v2673
      %v2682 = vld [vmem:[%s9] sm:$0x1]
      %v2684 = vlaneseq
      %v2685 = vshrl.u32 %v2684, 7
      %v2686 = vsub.s32 0, %v2685
      %v2687 = vrot.slane %v2682, %v2686
      %v2689 = vmul.f32 %v2687, %v2323
      %v2690 = vmul.f32 %v2687, %v2324
      %v2691 = vmul.f32 %v2687, %v2325
      %v2692 = vmul.f32 %v2687, %v2326
      %v2693 = vmul.f32 %v2687, %v2327
      %v2694 = vmul.f32 %v2687, %v2328
      %v2695 = vmul.f32 %v2687, %v2329
      %v2696 = vmul.f32 %v2687, %v2330
      %v2697 = vadd.f32 %v2674, %v2689
      %v2698 = vadd.f32 %v2675, %v2690
      %v2699 = vadd.f32 %v2676, %v2691
      %v2700 = vadd.f32 %v2677, %v2692
      %v2701 = vadd.f32 %v2678, %v2693
      %v2702 = vadd.f32 %v2679, %v2694
      %v2703 = vadd.f32 %v2680, %v2695
      %v2704 = vadd.f32 %v2681, %v2696
      %v2705 = vsub.f32 0.0, %v1842
      %v2706 = vsub.f32 0.0, %v1843
      %v2707 = vsub.f32 0.0, %v1844
      %v2708 = vsub.f32 0.0, %v1845
      %v2709 = vsub.f32 0.0, %v1846
      %v2710 = vsub.f32 0.0, %v1847
      %v2711 = vsub.f32 0.0, %v1848
      %v2712 = vsub.f32 0.0, %v1849
      %v2713 = vmul.f32 %v2705, 1.442695
      %v2714 = vpow.pop %v2713
      %v2715 = vmul.f32 %v2706, 1.442695
      %v2716 = vpow.pop %v2715
      %v2717 = vmul.f32 %v2707, 1.442695
      %v2718 = vpow.pop %v2717
      %v2719 = vmul.f32 %v2708, 1.442695
      %v2720 = vpow.pop %v2719
      %v2721 = vmul.f32 %v2709, 1.442695
      %v2722 = vpow.pop %v2721
      %v2723 = vmul.f32 %v2710, 1.442695
      %v2724 = vpow.pop %v2723
      %v2725 = vmul.f32 %v2711, 1.442695
      %v2726 = vpow.pop %v2725
      %v2727 = vmul.f32 %v2712, 1.442695
      %v2728 = vpow.pop %v2727
      %v2729 = vadd.f32 %v2714, 1.0
      %v2730 = vadd.f32 %v2716, 1.0
      %v2731 = vadd.f32 %v2718, 1.0
      %v2732 = vadd.f32 %v2720, 1.0
      %v2733 = vadd.f32 %v2722, 1.0
      %v2734 = vadd.f32 %v2724, 1.0
      %v2735 = vadd.f32 %v2726, 1.0
      %v2736 = vadd.f32 %v2728, 1.0
      %v2737 = vrcp.pop %v2729
      %v2738 = vrcp.pop %v2730
      %v2739 = vrcp.pop %v2731
      %v2740 = vrcp.pop %v2732
      %v2741 = vrcp.pop %v2733
      %v2742 = vrcp.pop %v2734
      %v2743 = vrcp.pop %v2735
      %v2744 = vrcp.pop %v2736
      %v2745 = vmul.f32 %v1842, %v2737
      %v2746 = vmul.f32 %v1843, %v2738
      %v2747 = vmul.f32 %v1844, %v2739
      %v2748 = vmul.f32 %v1845, %v2740
      %v2749 = vmul.f32 %v1846, %v2741
      %v2750 = vmul.f32 %v1847, %v2742
      %v2751 = vmul.f32 %v1848, %v2743
      %v2752 = vmul.f32 %v1849, %v2744
      %v2753 = vmul.f32 %v2697, %v2745
      %v2754 = vmul.f32 %v2698, %v2746
      %v2755 = vmul.f32 %v2699, %v2747
      %v2756 = vmul.f32 %v2700, %v2748
      %v2757 = vmul.f32 %v2701, %v2749
      %v2758 = vmul.f32 %v2702, %v2750
      %v2759 = vmul.f32 %v2703, %v2751
      %v2760 = vmul.f32 %v2704, %v2752
      %v2761 = vld [vmem:[%s3] sm:$0xff]
      %v2762 = vld [vmem:[%s3 + $0x8] sm:$0xff]
      %v2763 = vld [vmem:[%s3 + $0x10] sm:$0xff]
      %v2764 = vld [vmem:[%s3 + $0x18] sm:$0xff]
      %v2765 = vld [vmem:[%s3 + $0x20] sm:$0xff]
      %v2766 = vld [vmem:[%s3 + $0x28] sm:$0xff]
      %v2767 = vld [vmem:[%s3 + $0x30] sm:$0xff]
      %v2768 = vld [vmem:[%s3 + $0x38] sm:$0xff]
      %v2770 = vsel %vm396, %v2761, 0
      %v2773 = vsel %vm396, %v2762, 0
      %v2776 = vsel %vm396, %v2763, 0
      %v2779 = vsel %vm396, %v2764, 0
      %v2782 = vsel %vm396, %v2765, 0
      %v2785 = vsel %vm396, %v2766, 0
      %v2788 = vsel %vm396, %v2767, 0
      %v2791 = vsel %vm396, %v2768, 0
      %2793 = vmatprep.subr.mxu0 0.0
      %2794 = vmatpush1.msra.mxu0 0.0
      %2795 = vmatprep.subr.mxu0 0.0
      %2796 = vmatpush1.msra.mxu0 0.0
      %2797 = vmatprep.subr.mxu0 0.0
      %2798 = vmatpush1.msra.mxu0 0.0
      %2799 = vmatprep.subr.mxu0 0.0
      %2800 = vmatpush1.msra.mxu0 0.0
      %2801 = vmatprep.subr.mxu0 0.0
      %2802 = vmatpush1.msra.mxu0 0.0
      %2803 = vmatprep.subr.mxu0 0.0
      %2804 = vmatpush1.msra.mxu0 0.0
      %2805 = vmatprep.subr.mxu0 0.0
      %2806 = vmatpush1.msra.mxu0 0.0
      %2807 = vmatprep.subr.mxu0 0.0
      %2808 = vmatpush1.msra.mxu0 0.0
      %2809 = vmatprep.subr.mxu0 0.0
      %2810 = vmatpush1.msra.mxu0 %v2760
      %2811 = vmatprep.subr.mxu0 0.0
      %2812 = vmatpush1.msra.mxu0 %v2759
      %2813 = vmatprep.subr.mxu0 0.0
      %2814 = vmatpush1.msra.mxu0 %v2758
      %2815 = vmatprep.subr.mxu0 0.0
      %2816 = vmatpush1.msra.mxu0 %v2757
      %2817 = vmatprep.subr.mxu0 0.0
      %2818 = vmatpush1.msra.mxu0 %v2756
      %2819 = vmatprep.subr.mxu0 0.0
      %2820 = vmatpush1.msra.mxu0 %v2755
      %2821 = vmatprep.subr.mxu0 0.0
      %2822 = vmatpush1.msra.mxu0 %v2754
      %2823 = vmatprep.subr.mxu0 0.0
      %2824 = vmatpush1.msra.mxu0 %v2753
      %2825 = vmatprep.subr.mxu0 0.0
      %2826 = vmatpush2.msra.mxu0 0.0
      %2827 = vmatprep.subr.mxu0 0.0
      %2828 = vmatpush2.msra.mxu0 0.0
      %2829 = vmatprep.subr.mxu0 0.0
      %2830 = vmatpush2.msra.mxu0 0.0
      %2831 = vmatprep.subr.mxu0 0.0
      %2832 = vmatpush2.msra.mxu0 0.0
      %2833 = vmatprep.subr.mxu0 0.0
      %2834 = vmatpush2.msra.mxu0 0.0
      %2835 = vmatprep.subr.mxu0 0.0
      %2836 = vmatpush2.msra.mxu0 0.0
      %2837 = vmatprep.subr.mxu0 0.0
      %2838 = vmatpush2.msra.mxu0 0.0
      %2839 = vmatprep.subr.mxu0 0.0
      %2840 = vmatpush2.msra.mxu0 0.0
      %2841 = vmatprep.subr.mxu0 0.0
      %2842 = vmatpush2.msra.mxu0 0.0
      %2843 = vmatprep.subr.mxu0 0.0
      %2844 = vmatpush2.msra.mxu0 0.0
      %2845 = vmatprep.subr.mxu0 0.0
      %2846 = vmatpush2.msra.mxu0 0.0
      %2847 = vmatprep.subr.mxu0 0.0
      %2848 = vmatpush2.msra.mxu0 0.0
      %2849 = vmatprep.subr.mxu0 0.0
      %2850 = vmatpush2.msra.mxu0 0.0
      %2851 = vmatprep.subr.mxu0 0.0
      %2852 = vmatpush2.msra.mxu0 0.0
      %2853 = vmatprep.subr.mxu0 0.0
      %2854 = vmatpush2.msra.mxu0 0.0
      %2855 = vmatprep.subr.mxu0 0.0
      %2856 = vmatpush2.msra.mxu0 0.0
      %2857 = vmatprep.mubr.f32.mxu0 0.0
      %2858 = vmatmul.mubr.f32.gmra.mxu0 %v2770
      %v2859 = vpop.f32.mrf.mxu0
      %v2860 = vadd.f32 0.0, %v2859
      %v2861 = vpop.f32.mrf.mxu0
      %2862 = vmatprep.mubr.f32.mxu0 0.0
      %2863 = vmatmul.mubr.f32.gmra.mxu0 %v2773
      %v2864 = vpop.f32.mrf.mxu0
      %v2865 = vadd.f32 0.0, %v2864
      %v2866 = vpop.f32.mrf.mxu0
      %2867 = vmatprep.mubr.f32.mxu0 0.0
      %2868 = vmatmul.mubr.f32.gmra.mxu0 %v2776
      %v2869 = vpop.f32.mrf.mxu0
      %v2870 = vadd.f32 0.0, %v2869
      %v2871 = vpop.f32.mrf.mxu0
      %2872 = vmatprep.mubr.f32.mxu0 0.0
      %2873 = vmatmul.mubr.f32.gmra.mxu0 %v2779
      %v2874 = vpop.f32.mrf.mxu0
      %v2875 = vadd.f32 0.0, %v2874
      %v2876 = vpop.f32.mrf.mxu0
      %2877 = vmatprep.mubr.f32.mxu0 0.0
      %2878 = vmatmul.mubr.f32.gmra.mxu0 %v2782
      %v2879 = vpop.f32.mrf.mxu0
      %v2880 = vadd.f32 0.0, %v2879
      %v2881 = vpop.f32.mrf.mxu0
      %2882 = vmatprep.mubr.f32.mxu0 0.0
      %2883 = vmatmul.mubr.f32.gmra.mxu0 %v2785
      %v2884 = vpop.f32.mrf.mxu0
      %v2885 = vadd.f32 0.0, %v2884
      %v2886 = vpop.f32.mrf.mxu0
      %2887 = vmatprep.mubr.f32.mxu0 0.0
      %2888 = vmatmul.mubr.f32.gmra.mxu0 %v2788
      %v2889 = vpop.f32.mrf.mxu0
      %v2890 = vadd.f32 0.0, %v2889
      %v2891 = vpop.f32.mrf.mxu0
      %2892 = vmatprep.mubr.f32.mxu0 0.0
      %2893 = vmatmul.mubr.f32.gmra.mxu0 %v2791
      %v2894 = vpop.f32.mrf.mxu0
      %v2895 = vadd.f32 0.0, %v2894
      %v2896 = vpop.f32.mrf.mxu0
      %2897 = vdwg.mxu0
      %s2898 = scalar_lea.vmem %s3, 64
      %v2899 = vld [vmem:[%s2898] sm:$0xff]
      %v2900 = vld [vmem:[%s2898 + $0x8] sm:$0xff]
      %v2901 = vld [vmem:[%s2898 + $0x10] sm:$0xff]
      %v2902 = vld [vmem:[%s2898 + $0x18] sm:$0xff]
      %v2903 = vld [vmem:[%s2898 + $0x20] sm:$0xff]
      %v2904 = vld [vmem:[%s2898 + $0x28] sm:$0xff]
      %v2905 = vld [vmem:[%s2898 + $0x30] sm:$0xff]
      %v2906 = vld [vmem:[%s2898 + $0x38] sm:$0xff]
      %2915 = vrot.lane.b32.xlu0 %v2753, 96
      %v2916 = vpop.permute.xlu0 %2915
      %2917 = vrot.lane.b32.xlu0 %v2754, 96
      %v2918 = vpop.permute.xlu0 %2917
      %2919 = vrot.lane.b32.xlu0 %v2755, 96
      %v2920 = vpop.permute.xlu0 %2919
      %2921 = vrot.lane.b32.xlu0 %v2756, 96
      %v2922 = vpop.permute.xlu0 %2921
      %2923 = vrot.lane.b32.xlu0 %v2757, 96
      %v2924 = vpop.permute.xlu0 %2923
      %2925 = vrot.lane.b32.xlu0 %v2758, 96
      %v2926 = vpop.permute.xlu0 %2925
      %2927 = vrot.lane.b32.xlu0 %v2759, 96
      %v2928 = vpop.permute.xlu0 %2927
      %2929 = vrot.lane.b32.xlu0 %v2760, 96
      %v2930 = vpop.permute.xlu0 %2929
      %v2940 = vsel %vm396, %v2899, 0
      %v2943 = vsel %vm396, %v2900, 0
      %v2946 = vsel %vm396, %v2901, 0
      %v2949 = vsel %vm396, %v2902, 0
      %v2952 = vsel %vm396, %v2903, 0
      %v2955 = vsel %vm396, %v2904, 0
      %v2958 = vsel %vm396, %v2905, 0
      %v2961 = vsel %vm396, %v2906, 0
      %2963 = vmatprep.subr.mxu0 0.0
      %2964 = vmatpush1.msra.mxu0 0.0
      %2965 = vmatprep.subr.mxu0 0.0
      %2966 = vmatpush1.msra.mxu0 0.0
      %2967 = vmatprep.subr.mxu0 0.0
      %2968 = vmatpush1.msra.mxu0 0.0
      %2969 = vmatprep.subr.mxu0 0.0
      %2970 = vmatpush1.msra.mxu0 0.0
      %2971 = vmatprep.subr.mxu0 0.0
      %2972 = vmatpush1.msra.mxu0 0.0
      %2973 = vmatprep.subr.mxu0 0.0
      %2974 = vmatpush1.msra.mxu0 0.0
      %2975 = vmatprep.subr.mxu0 0.0
      %2976 = vmatpush1.msra.mxu0 0.0
      %2977 = vmatprep.subr.mxu0 0.0
      %2978 = vmatpush1.msra.mxu0 0.0
      %2979 = vmatprep.subr.mxu0 0.0
      %2980 = vmatpush1.msra.mxu0 %v2930
      %2981 = vmatprep.subr.mxu0 0.0
      %2982 = vmatpush1.msra.mxu0 %v2928
      %2983 = vmatprep.subr.mxu0 0.0
      %2984 = vmatpush1.msra.mxu0 %v2926
      %2985 = vmatprep.subr.mxu0 0.0
      %2986 = vmatpush1.msra.mxu0 %v2924
      %2987 = vmatprep.subr.mxu0 0.0
      %2988 = vmatpush1.msra.mxu0 %v2922
      %2989 = vmatprep.subr.mxu0 0.0
      %2990 = vmatpush1.msra.mxu0 %v2920
      %2991 = vmatprep.subr.mxu0 0.0
      %2992 = vmatpush1.msra.mxu0 %v2918
      %2993 = vmatprep.subr.mxu0 0.0
      %2994 = vmatpush1.msra.mxu0 %v2916
      %2995 = vmatprep.subr.mxu0 0.0
      %2996 = vmatpush2.msra.mxu0 0.0
      %2997 = vmatprep.subr.mxu0 0.0
      %2998 = vmatpush2.msra.mxu0 0.0
      %2999 = vmatprep.subr.mxu0 0.0
      %3000 = vmatpush2.msra.mxu0 0.0
      %3001 = vmatprep.subr.mxu0 0.0
      %3002 = vmatpush2.msra.mxu0 0.0
      %3003 = vmatprep.subr.mxu0 0.0
      %3004 = vmatpush2.msra.mxu0 0.0
      %3005 = vmatprep.subr.mxu0 0.0
      %3006 = vmatpush2.msra.mxu0 0.0
      %3007 = vmatprep.subr.mxu0 0.0
      %3008 = vmatpush2.msra.mxu0 0.0
      %3009 = vmatprep.subr.mxu0 0.0
      %3010 = vmatpush2.msra.mxu0 0.0
      %3011 = vmatprep.subr.mxu0 0.0
      %3012 = vmatpush2.msra.mxu0 0.0
      %3013 = vmatprep.subr.mxu0 0.0
      %3014 = vmatpush2.msra.mxu0 0.0
      %3015 = vmatprep.subr.mxu0 0.0
      %3016 = vmatpush2.msra.mxu0 0.0
      %3017 = vmatprep.subr.mxu0 0.0
      %3018 = vmatpush2.msra.mxu0 0.0
      %3019 = vmatprep.subr.mxu0 0.0
      %3020 = vmatpush2.msra.mxu0 0.0
      %3021 = vmatprep.subr.mxu0 0.0
      %3022 = vmatpush2.msra.mxu0 0.0
      %3023 = vmatprep.subr.mxu0 0.0
      %3024 = vmatpush2.msra.mxu0 0.0
      %3025 = vmatprep.subr.mxu0 0.0
      %3026 = vmatpush2.msra.mxu0 0.0
      %3027 = vmatprep.mubr.f32.mxu0 0.0
      %3028 = vmatmul.mubr.f32.gmra.mxu0 %v2940
      %v3029 = vpop.f32.mrf.mxu0
      %v3030 = vadd.f32 0.0, %v3029
      %v3031 = vpop.f32.mrf.mxu0
      %3032 = vmatprep.mubr.f32.mxu0 0.0
      %3033 = vmatmul.mubr.f32.gmra.mxu0 %v2943
      %v3034 = vpop.f32.mrf.mxu0
      %v3035 = vadd.f32 0.0, %v3034
      %v3036 = vpop.f32.mrf.mxu0
      %3037 = vmatprep.mubr.f32.mxu0 0.0
      %3038 = vmatmul.mubr.f32.gmra.mxu0 %v2946
      %v3039 = vpop.f32.mrf.mxu0
      %v3040 = vadd.f32 0.0, %v3039
      %v3041 = vpop.f32.mrf.mxu0
      %3042 = vmatprep.mubr.f32.mxu0 0.0
      %3043 = vmatmul.mubr.f32.gmra.mxu0 %v2949
      %v3044 = vpop.f32.mrf.mxu0
      %v3045 = vadd.f32 0.0, %v3044
      %v3046 = vpop.f32.mrf.mxu0
      %3047 = vmatprep.mubr.f32.mxu0 0.0
      %3048 = vmatmul.mubr.f32.gmra.mxu0 %v2952
      %v3049 = vpop.f32.mrf.mxu0
      %v3050 = vadd.f32 0.0, %v3049
      %v3051 = vpop.f32.mrf.mxu0
      %3052 = vmatprep.mubr.f32.mxu0 0.0
      %3053 = vmatmul.mubr.f32.gmra.mxu0 %v2955
      %v3054 = vpop.f32.mrf.mxu0
      %v3055 = vadd.f32 0.0, %v3054
      %v3056 = vpop.f32.mrf.mxu0
      %3057 = vmatprep.mubr.f32.mxu0 0.0
      %3058 = vmatmul.mubr.f32.gmra.mxu0 %v2958
      %v3059 = vpop.f32.mrf.mxu0
      %v3060 = vadd.f32 0.0, %v3059
      %v3061 = vpop.f32.mrf.mxu0
      %3062 = vmatprep.mubr.f32.mxu0 0.0
      %3063 = vmatmul.mubr.f32.gmra.mxu0 %v2961
      %v3064 = vpop.f32.mrf.mxu0
      %v3065 = vadd.f32 0.0, %v3064
      %v3066 = vpop.f32.mrf.mxu0
      %3067 = vdwg.mxu0
      %s3068 = scalar_lea.vmem %s3, 128
      %v3069 = vld [vmem:[%s3068] sm:$0xff]
      %v3070 = vld [vmem:[%s3068 + $0x8] sm:$0xff]
      %v3071 = vld [vmem:[%s3068 + $0x10] sm:$0xff]
      %v3072 = vld [vmem:[%s3068 + $0x18] sm:$0xff]
      %v3073 = vld [vmem:[%s3068 + $0x20] sm:$0xff]
      %v3074 = vld [vmem:[%s3068 + $0x28] sm:$0xff]
      %v3075 = vld [vmem:[%s3068 + $0x30] sm:$0xff]
      %v3076 = vld [vmem:[%s3068 + $0x38] sm:$0xff]
      %3077 = vrot.lane.b32.xlu0 %v2753, 64
      %v3078 = vpop.permute.xlu0 %3077
      %3079 = vrot.lane.b32.xlu0 %v2754, 64
      %v3080 = vpop.permute.xlu0 %3079
      %3081 = vrot.lane.b32.xlu0 %v2755, 64
      %v3082 = vpop.permute.xlu0 %3081
      %3083 = vrot.lane.b32.xlu0 %v2756, 64
      %v3084 = vpop.permute.xlu0 %3083
      %3085 = vrot.lane.b32.xlu0 %v2757, 64
      %v3086 = vpop.permute.xlu0 %3085
      %3087 = vrot.lane.b32.xlu0 %v2758, 64
      %v3088 = vpop.permute.xlu0 %3087
      %3089 = vrot.lane.b32.xlu0 %v2759, 64
      %v3090 = vpop.permute.xlu0 %3089
      %3091 = vrot.lane.b32.xlu0 %v2760, 64
      %v3092 = vpop.permute.xlu0 %3091
      %v3102 = vsel %vm396, %v3069, 0
      %v3105 = vsel %vm396, %v3070, 0
      %v3108 = vsel %vm396, %v3071, 0
      %v3111 = vsel %vm396, %v3072, 0
      %v3114 = vsel %vm396, %v3073, 0
      %v3117 = vsel %vm396, %v3074, 0
      %v3120 = vsel %vm396, %v3075, 0
      %v3123 = vsel %vm396, %v3076, 0
      %3125 = vmatprep.subr.mxu0 0.0
      %3126 = vmatpush1.msra.mxu0 0.0
      %3127 = vmatprep.subr.mxu0 0.0
      %3128 = vmatpush1.msra.mxu0 0.0
      %3129 = vmatprep.subr.mxu0 0.0
      %3130 = vmatpush1.msra.mxu0 0.0
      %3131 = vmatprep.subr.mxu0 0.0
      %3132 = vmatpush1.msra.mxu0 0.0
      %3133 = vmatprep.subr.mxu0 0.0
      %3134 = vmatpush1.msra.mxu0 0.0
      %3135 = vmatprep.subr.mxu0 0.0
      %3136 = vmatpush1.msra.mxu0 0.0
      %3137 = vmatprep.subr.mxu0 0.0
      %3138 = vmatpush1.msra.mxu0 0.0
      %3139 = vmatprep.subr.mxu0 0.0
      %3140 = vmatpush1.msra.mxu0 0.0
      %3141 = vmatprep.subr.mxu0 0.0
      %3142 = vmatpush1.msra.mxu0 %v3092
      %3143 = vmatprep.subr.mxu0 0.0
      %3144 = vmatpush1.msra.mxu0 %v3090
      %3145 = vmatprep.subr.mxu0 0.0
      %3146 = vmatpush1.msra.mxu0 %v3088
      %3147 = vmatprep.subr.mxu0 0.0
      %3148 = vmatpush1.msra.mxu0 %v3086
      %3149 = vmatprep.subr.mxu0 0.0
      %3150 = vmatpush1.msra.mxu0 %v3084
      %3151 = vmatprep.subr.mxu0 0.0
      %3152 = vmatpush1.msra.mxu0 %v3082
      %3153 = vmatprep.subr.mxu0 0.0
      %3154 = vmatpush1.msra.mxu0 %v3080
      %3155 = vmatprep.subr.mxu0 0.0
      %3156 = vmatpush1.msra.mxu0 %v3078
      %3157 = vmatprep.subr.mxu0 0.0
      %3158 = vmatpush2.msra.mxu0 0.0
      %3159 = vmatprep.subr.mxu0 0.0
      %3160 = vmatpush2.msra.mxu0 0.0
      %3161 = vmatprep.subr.mxu0 0.0
      %3162 = vmatpush2.msra.mxu0 0.0
      %3163 = vmatprep.subr.mxu0 0.0
      %3164 = vmatpush2.msra.mxu0 0.0
      %3165 = vmatprep.subr.mxu0 0.0
      %3166 = vmatpush2.msra.mxu0 0.0
      %3167 = vmatprep.subr.mxu0 0.0
      %3168 = vmatpush2.msra.mxu0 0.0
      %3169 = vmatprep.subr.mxu0 0.0
      %3170 = vmatpush2.msra.mxu0 0.0
      %3171 = vmatprep.subr.mxu0 0.0
      %3172 = vmatpush2.msra.mxu0 0.0
      %3173 = vmatprep.subr.mxu0 0.0
      %3174 = vmatpush2.msra.mxu0 0.0
      %3175 = vmatprep.subr.mxu0 0.0
      %3176 = vmatpush2.msra.mxu0 0.0
      %3177 = vmatprep.subr.mxu0 0.0
      %3178 = vmatpush2.msra.mxu0 0.0
      %3179 = vmatprep.subr.mxu0 0.0
      %3180 = vmatpush2.msra.mxu0 0.0
      %3181 = vmatprep.subr.mxu0 0.0
      %3182 = vmatpush2.msra.mxu0 0.0
      %3183 = vmatprep.subr.mxu0 0.0
      %3184 = vmatpush2.msra.mxu0 0.0
      %3185 = vmatprep.subr.mxu0 0.0
      %3186 = vmatpush2.msra.mxu0 0.0
      %3187 = vmatprep.subr.mxu0 0.0
      %3188 = vmatpush2.msra.mxu0 0.0
      %3189 = vmatprep.mubr.f32.mxu0 0.0
      %3190 = vmatmul.mubr.f32.gmra.mxu0 %v3102
      %v3191 = vpop.f32.mrf.mxu0
      %v3192 = vadd.f32 0.0, %v3191
      %v3193 = vpop.f32.mrf.mxu0
      %3194 = vmatprep.mubr.f32.mxu0 0.0
      %3195 = vmatmul.mubr.f32.gmra.mxu0 %v3105
      %v3196 = vpop.f32.mrf.mxu0
      %v3197 = vadd.f32 0.0, %v3196
      %v3198 = vpop.f32.mrf.mxu0
      %3199 = vmatprep.mubr.f32.mxu0 0.0
      %3200 = vmatmul.mubr.f32.gmra.mxu0 %v3108
      %v3201 = vpop.f32.mrf.mxu0
      %v3202 = vadd.f32 0.0, %v3201
      %v3203 = vpop.f32.mrf.mxu0
      %3204 = vmatprep.mubr.f32.mxu0 0.0
      %3205 = vmatmul.mubr.f32.gmra.mxu0 %v3111
      %v3206 = vpop.f32.mrf.mxu0
      %v3207 = vadd.f32 0.0, %v3206
      %v3208 = vpop.f32.mrf.mxu0
      %3209 = vmatprep.mubr.f32.mxu0 0.0
      %3210 = vmatmul.mubr.f32.gmra.mxu0 %v3114
      %v3211 = vpop.f32.mrf.mxu0
      %v3212 = vadd.f32 0.0, %v3211
      %v3213 = vpop.f32.mrf.mxu0
      %3214 = vmatprep.mubr.f32.mxu0 0.0
      %3215 = vmatmul.mubr.f32.gmra.mxu0 %v3117
      %v3216 = vpop.f32.mrf.mxu0
      %v3217 = vadd.f32 0.0, %v3216
      %v3218 = vpop.f32.mrf.mxu0
      %3219 = vmatprep.mubr.f32.mxu0 0.0
      %3220 = vmatmul.mubr.f32.gmra.mxu0 %v3120
      %v3221 = vpop.f32.mrf.mxu0
      %v3222 = vadd.f32 0.0, %v3221
      %v3223 = vpop.f32.mrf.mxu0
      %3224 = vmatprep.mubr.f32.mxu0 0.0
      %3225 = vmatmul.mubr.f32.gmra.mxu0 %v3123
      %v3226 = vpop.f32.mrf.mxu0
      %v3227 = vadd.f32 0.0, %v3226
      %v3228 = vpop.f32.mrf.mxu0
      %3229 = vdwg.mxu0
      %s3230 = scalar_lea.vmem %s3, 192
      %v3231 = vld [vmem:[%s3230] sm:$0xff]
      %v3232 = vld [vmem:[%s3230 + $0x8] sm:$0xff]
      %v3233 = vld [vmem:[%s3230 + $0x10] sm:$0xff]
      %v3234 = vld [vmem:[%s3230 + $0x18] sm:$0xff]
      %v3235 = vld [vmem:[%s3230 + $0x20] sm:$0xff]
      %v3236 = vld [vmem:[%s3230 + $0x28] sm:$0xff]
      %v3237 = vld [vmem:[%s3230 + $0x30] sm:$0xff]
      %v3238 = vld [vmem:[%s3230 + $0x38] sm:$0xff]
      %3239 = vrot.lane.b32.xlu0 %v2753, 32
      %v3240 = vpop.permute.xlu0 %3239
      %3241 = vrot.lane.b32.xlu0 %v2754, 32
      %v3242 = vpop.permute.xlu0 %3241
      %3243 = vrot.lane.b32.xlu0 %v2755, 32
      %v3244 = vpop.permute.xlu0 %3243
      %3245 = vrot.lane.b32.xlu0 %v2756, 32
      %v3246 = vpop.permute.xlu0 %3245
      %3247 = vrot.lane.b32.xlu0 %v2757, 32
      %v3248 = vpop.permute.xlu0 %3247
      %3249 = vrot.lane.b32.xlu0 %v2758, 32
      %v3250 = vpop.permute.xlu0 %3249
      %3251 = vrot.lane.b32.xlu0 %v2759, 32
      %v3252 = vpop.permute.xlu0 %3251
      %3253 = vrot.lane.b32.xlu0 %v2760, 32
      %v3254 = vpop.permute.xlu0 %3253
      %v3264 = vsel %vm396, %v3231, 0
      %v3267 = vsel %vm396, %v3232, 0
      %v3270 = vsel %vm396, %v3233, 0
      %v3273 = vsel %vm396, %v3234, 0
      %v3276 = vsel %vm396, %v3235, 0
      %v3279 = vsel %vm396, %v3236, 0
      %v3282 = vsel %vm396, %v3237, 0
      %v3285 = vsel %vm396, %v3238, 0
      %3287 = vmatprep.subr.mxu0 0.0
      %3288 = vmatpush1.msra.mxu0 0.0
      %3289 = vmatprep.subr.mxu0 0.0
      %3290 = vmatpush1.msra.mxu0 0.0
      %3291 = vmatprep.subr.mxu0 0.0
      %3292 = vmatpush1.msra.mxu0 0.0
      %3293 = vmatprep.subr.mxu0 0.0
      %3294 = vmatpush1.msra.mxu0 0.0
      %3295 = vmatprep.subr.mxu0 0.0
      %3296 = vmatpush1.msra.mxu0 0.0
      %3297 = vmatprep.subr.mxu0 0.0
      %3298 = vmatpush1.msra.mxu0 0.0
      %3299 = vmatprep.subr.mxu0 0.0
      %3300 = vmatpush1.msra.mxu0 0.0
      %3301 = vmatprep.subr.mxu0 0.0
      %3302 = vmatpush1.msra.mxu0 0.0
      %3303 = vmatprep.subr.mxu0 0.0
      %3304 = vmatpush1.msra.mxu0 %v3254
      %3305 = vmatprep.subr.mxu0 0.0
      %3306 = vmatpush1.msra.mxu0 %v3252
      %3307 = vmatprep.subr.mxu0 0.0
      %3308 = vmatpush1.msra.mxu0 %v3250
      %3309 = vmatprep.subr.mxu0 0.0
      %3310 = vmatpush1.msra.mxu0 %v3248
      %3311 = vmatprep.subr.mxu0 0.0
      %3312 = vmatpush1.msra.mxu0 %v3246
      %3313 = vmatprep.subr.mxu0 0.0
      %3314 = vmatpush1.msra.mxu0 %v3244
      %3315 = vmatprep.subr.mxu0 0.0
      %3316 = vmatpush1.msra.mxu0 %v3242
      %3317 = vmatprep.subr.mxu0 0.0
      %3318 = vmatpush1.msra.mxu0 %v3240
      %3319 = vmatprep.subr.mxu0 0.0
      %3320 = vmatpush2.msra.mxu0 0.0
      %3321 = vmatprep.subr.mxu0 0.0
      %3322 = vmatpush2.msra.mxu0 0.0
      %3323 = vmatprep.subr.mxu0 0.0
      %3324 = vmatpush2.msra.mxu0 0.0
      %3325 = vmatprep.subr.mxu0 0.0
      %3326 = vmatpush2.msra.mxu0 0.0
      %3327 = vmatprep.subr.mxu0 0.0
      %3328 = vmatpush2.msra.mxu0 0.0
      %3329 = vmatprep.subr.mxu0 0.0
      %3330 = vmatpush2.msra.mxu0 0.0
      %3331 = vmatprep.subr.mxu0 0.0
      %3332 = vmatpush2.msra.mxu0 0.0
      %3333 = vmatprep.subr.mxu0 0.0
      %3334 = vmatpush2.msra.mxu0 0.0
      %3335 = vmatprep.subr.mxu0 0.0
      %3336 = vmatpush2.msra.mxu0 0.0
      %3337 = vmatprep.subr.mxu0 0.0
      %3338 = vmatpush2.msra.mxu0 0.0
      %3339 = vmatprep.subr.mxu0 0.0
      %3340 = vmatpush2.msra.mxu0 0.0
      %3341 = vmatprep.subr.mxu0 0.0
      %3342 = vmatpush2.msra.mxu0 0.0
      %3343 = vmatprep.subr.mxu0 0.0
      %3344 = vmatpush2.msra.mxu0 0.0
      %3345 = vmatprep.subr.mxu0 0.0
      %3346 = vmatpush2.msra.mxu0 0.0
      %3347 = vmatprep.subr.mxu0 0.0
      %3348 = vmatpush2.msra.mxu0 0.0
      %3349 = vmatprep.subr.mxu0 0.0
      %3350 = vmatpush2.msra.mxu0 0.0
      %3351 = vmatprep.mubr.f32.mxu0 0.0
      %3352 = vmatmul.mubr.f32.gmra.mxu0 %v3264
      %v3353 = vpop.f32.mrf.mxu0
      %v3354 = vadd.f32 0.0, %v3353
      %v3355 = vpop.f32.mrf.mxu0
      %3356 = vmatprep.mubr.f32.mxu0 0.0
      %3357 = vmatmul.mubr.f32.gmra.mxu0 %v3267
      %v3358 = vpop.f32.mrf.mxu0
      %v3359 = vadd.f32 0.0, %v3358
      %v3360 = vpop.f32.mrf.mxu0
      %3361 = vmatprep.mubr.f32.mxu0 0.0
      %3362 = vmatmul.mubr.f32.gmra.mxu0 %v3270
      %v3363 = vpop.f32.mrf.mxu0
      %v3364 = vadd.f32 0.0, %v3363
      %v3365 = vpop.f32.mrf.mxu0
      %3366 = vmatprep.mubr.f32.mxu0 0.0
      %3367 = vmatmul.mubr.f32.gmra.mxu0 %v3273
      %v3368 = vpop.f32.mrf.mxu0
      %v3369 = vadd.f32 0.0, %v3368
      %v3370 = vpop.f32.mrf.mxu0
      %3371 = vmatprep.mubr.f32.mxu0 0.0
      %3372 = vmatmul.mubr.f32.gmra.mxu0 %v3276
      %v3373 = vpop.f32.mrf.mxu0
      %v3374 = vadd.f32 0.0, %v3373
      %v3375 = vpop.f32.mrf.mxu0
      %3376 = vmatprep.mubr.f32.mxu0 0.0
      %3377 = vmatmul.mubr.f32.gmra.mxu0 %v3279
      %v3378 = vpop.f32.mrf.mxu0
      %v3379 = vadd.f32 0.0, %v3378
      %v3380 = vpop.f32.mrf.mxu0
      %3381 = vmatprep.mubr.f32.mxu0 0.0
      %3382 = vmatmul.mubr.f32.gmra.mxu0 %v3282
      %v3383 = vpop.f32.mrf.mxu0
      %v3384 = vadd.f32 0.0, %v3383
      %v3385 = vpop.f32.mrf.mxu0
      %3386 = vmatprep.mubr.f32.mxu0 0.0
      %3387 = vmatmul.mubr.f32.gmra.mxu0 %v3285
      %v3388 = vpop.f32.mrf.mxu0
      %v3389 = vadd.f32 0.0, %v3388
      %v3390 = vpop.f32.mrf.mxu0
      %3391 = vdwg.mxu0
      %3400 = vrot.lane.b32.xlu0 %v3030, 32
      %v3401 = vpop.permute.xlu0 %3400
      %3402 = vrot.lane.b32.xlu0 %v3035, 32
      %v3403 = vpop.permute.xlu0 %3402
      %3404 = vrot.lane.b32.xlu0 %v3040, 32
      %v3405 = vpop.permute.xlu0 %3404
      %3406 = vrot.lane.b32.xlu0 %v3045, 32
      %v3407 = vpop.permute.xlu0 %3406
      %3408 = vrot.lane.b32.xlu0 %v3050, 32
      %v3409 = vpop.permute.xlu0 %3408
      %3410 = vrot.lane.b32.xlu0 %v3055, 32
      %v3411 = vpop.permute.xlu0 %3410
      %3412 = vrot.lane.b32.xlu0 %v3060, 32
      %v3413 = vpop.permute.xlu0 %3412
      %3414 = vrot.lane.b32.xlu0 %v3065, 32
      %v3415 = vpop.permute.xlu0 %3414
      %3432 = vrot.lane.b32.xlu0 %v3192, 64
      %v3433 = vpop.permute.xlu0 %3432
      %3434 = vrot.lane.b32.xlu0 %v3197, 64
      %v3435 = vpop.permute.xlu0 %3434
      %3436 = vrot.lane.b32.xlu0 %v3202, 64
      %v3437 = vpop.permute.xlu0 %3436
      %3438 = vrot.lane.b32.xlu0 %v3207, 64
      %v3439 = vpop.permute.xlu0 %3438
      %3440 = vrot.lane.b32.xlu0 %v3212, 64
      %v3441 = vpop.permute.xlu0 %3440
      %3442 = vrot.lane.b32.xlu0 %v3217, 64
      %v3443 = vpop.permute.xlu0 %3442
      %3444 = vrot.lane.b32.xlu0 %v3222, 64
      %v3445 = vpop.permute.xlu0 %3444
      %3446 = vrot.lane.b32.xlu0 %v3227, 64
      %v3447 = vpop.permute.xlu0 %3446
      %3464 = vrot.lane.b32.xlu0 %v3354, 96
      %v3465 = vpop.permute.xlu0 %3464
      %3466 = vrot.lane.b32.xlu0 %v3359, 96
      %v3467 = vpop.permute.xlu0 %3466
      %3468 = vrot.lane.b32.xlu0 %v3364, 96
      %v3469 = vpop.permute.xlu0 %3468
      %3470 = vrot.lane.b32.xlu0 %v3369, 96
      %v3471 = vpop.permute.xlu0 %3470
      %3472 = vrot.lane.b32.xlu0 %v3374, 96
      %v3473 = vpop.permute.xlu0 %3472
      %3474 = vrot.lane.b32.xlu0 %v3379, 96
      %v3475 = vpop.permute.xlu0 %3474
      %3476 = vrot.lane.b32.xlu0 %v3384, 96
      %v3477 = vpop.permute.xlu0 %3476
      %3478 = vrot.lane.b32.xlu0 %v3389, 96
      %v3479 = vpop.permute.xlu0 %3478
      %v3488 = vsel %vm873, %v2860, %v3401
      %v3489 = vsel %vm873, %v2865, %v3403
      %v3490 = vsel %vm873, %v2870, %v3405
      %v3491 = vsel %vm873, %v2875, %v3407
      %v3492 = vsel %vm873, %v2880, %v3409
      %v3493 = vsel %vm873, %v2885, %v3411
      %v3494 = vsel %vm873, %v2890, %v3413
      %v3495 = vsel %vm873, %v2895, %v3415
      %v3496 = vsel %vm396, %v3488, %v3433
      %v3497 = vsel %vm396, %v3489, %v3435
      %v3498 = vsel %vm396, %v3490, %v3437
      %v3499 = vsel %vm396, %v3491, %v3439
      %v3500 = vsel %vm396, %v3492, %v3441
      %v3501 = vsel %vm396, %v3493, %v3443
      %v3502 = vsel %vm396, %v3494, %v3445
      %v3503 = vsel %vm396, %v3495, %v3447
      %v3504 = vsel %vm1737, %v3496, %v3465
      %v3505 = vsel %vm1737, %v3497, %v3467
      %v3506 = vsel %vm1737, %v3498, %v3469
      %v3507 = vsel %vm1737, %v3499, %v3471
      %v3508 = vsel %vm1737, %v3500, %v3473
      %v3509 = vsel %vm1737, %v3501, %v3475
      %v3510 = vsel %vm1737, %v3502, %v3477
      %v3511 = vsel %vm1737, %v3503, %v3479
      %3512 = vst [vmem:[%s379] sm:$0xff] %v3504
      %3513 = vst [vmem:[%s379 + $0x8] sm:$0xff] %v3505
      %3514 = vst [vmem:[%s379 + $0x10] sm:$0xff] %v3506
      %3515 = vst [vmem:[%s379 + $0x18] sm:$0xff] %v3507
      %3516 = vst [vmem:[%s379 + $0x20] sm:$0xff] %v3508
      %3517 = vst [vmem:[%s379 + $0x28] sm:$0xff] %v3509
      %3518 = vst [vmem:[%s379 + $0x30] sm:$0xff] %v3510
      %3519 = vst [vmem:[%s379 + $0x38] sm:$0xff] %v3511
      %p3520 = scmp.lt.s32.totalorder %s21, 1
      %s3521 = scalar_select %p3520, %s21, 1
      %s3522 = smul.addr %s3521, 8
      %s3523 = smul.addr %s3522, 8
      %s3524 = scalar_lea.vmem %s10, %s3523
      // Predicated region
      $region61: #{rope_mamba_forward.6} parent=59 // pred_check
        %p3525 = pneg %p259
      $region62: #{rope_mamba_forward.6} parent=59 // pred_check_branch
        %3527 = sbr.rel (%p3525) target = $region64
      $region63: #{rope_mamba_forward.6} parent=59 // pred_region
        _
      $region64: #{rope_mamba_forward.6} parent=59 // pred_fallthru
        _
    $region60: #{rope_mamba_forward.6} parent=5 // pred_fallthru
      _
    %p3528 = scmp.le.s32.totalorder 2, %s16
    // Predicated region
    $region65: #{rope_mamba_forward.6} parent=5 // pred_check
      %p3529 = pneg %p3528
    $region66: #{rope_mamba_forward.6} parent=5 // pred_check_branch
      %3531 = sbr.rel (%p3529) target = $region68
    $region67: #{rope_mamba_forward.6} parent=5 // pred_region
      %s3532 = ssub.s32 %s16, 2
      // Predicated region
      $region69: #{rope_mamba_forward.6} parent=67 // pred_check
        %p3533 = pneg %p265
      $region70: #{rope_mamba_forward.6} parent=67 // pred_check_branch
        %3535 = sbr.rel (%p3533) target = $region72
      $region71: #{rope_mamba_forward.6} parent=67 // pred_region
        %p3536 = scmp.lt.s32.totalorder %s22, 1
        %s3537 = scalar_select %p3536, %s22, 1
        %s3538 = smul.addr %s3537, 8
        %s3539 = smul.addr %s3538, 8
        %s3540 = scalar_lea.vmem %s10, %s3539
      $region72: #{rope_mamba_forward.6} parent=67 // pred_fallthru
        _
    $region68: #{rope_mamba_forward.6} parent=5 // pred_fallthru
      _
  $region6: #{rope_mamba_forward.6} parent=0 // loop_footer
    %s20 = sadd.s32 1, %s16
  $region7: #{rope_mamba_forward.6} parent=0 // loop_footer_branch
    %15 = sbr.rel target = $region3
  $region8: #{rope_mamba_forward.6} parent=0 // loop_exit
    _

</llo_original>
